<compile_context>
chip_gen: v5e
topology: v5e:2x2
jax: 0.10.0
libtpu: 0.0.40
codegen_flags: <defaults>
</compile_context>

<pallas_src>
import functools

import jax
import jax.numpy as jnp
from jax.experimental import pallas as pl
from jax.experimental.pallas import tpu as pltpu

# ---------------- model hyper-parameters (small synthetic ViT backbone) ----------------
PATCH = 4          # patch size (DINO ViT-B/16 analogue, scaled down)
HIDDEN = 32        # hidden dim (self.hidden_dim in the torch module)
HEADS = 2
HEAD_DIM = HIDDEN // HEADS
DEPTH = 2
MLP_DIM = 4 * HIDDEN
EPS = 1e-6
VMEM_LIMIT = 32 * 1024 * 1024   # explicit scoped-VMEM cap, safe on v5e/v6e/v7x


# ---------------- shared in-kernel helpers ----------------
def _ln_rows(x, gamma, beta, eps):
    """Row-wise LayerNorm in f32. x: (M, D); gamma/beta: (1, D) broadcast over rows."""
    mean = jnp.mean(x, axis=-1, keepdims=True)
    xc = x - mean
    var = jnp.mean(xc * xc, axis=-1, keepdims=True)
    return xc * jax.lax.rsqrt(var + eps) * gamma + beta


# ---------------- patch embed + cls + pos (one fused kernel, whole batch) ----------------
def _embed_kernel(p_ref, w_ref, b_ref, pos_ref, cls_ref, o_ref):
    B, Np, K = p_ref.shape
    D = w_ref.shape[1]
    p = p_ref[...].reshape(B * Np, K)                                 # bf16, (B*Np, K)
    acc = jnp.dot(p, w_ref[...], preferred_element_type=jnp.float32)  # f32 (B*Np, D)
    pos = pos_ref[...]                                                # (Np+1, D) f32
    tok = acc.reshape(B, Np, D) + (b_ref[...] + pos[1:, :])           # bias + pos, f32
    cls_row = (cls_ref[...] + pos[0:1, :]).astype(o_ref.dtype)        # (1, D)
    o_ref[:, 0:1, :] = jnp.broadcast_to(cls_row.reshape(1, 1, D), (B, 1, D))
    o_ref[:, 1:, :] = tok.astype(o_ref.dtype)


def embed_tokens(patches, params):
    """patches: [B, Np, C*P*P] (bf16) -> tokens [B, Np+1, D] (bf16), cls + pos fused."""
    B, Np, K = patches.shape
    D = HIDDEN
    return pl.pallas_call(
        _embed_kernel,
        out_shape=jax.ShapeDtypeStruct((B, Np + 1, D), jnp.bfloat16),
        grid=(1,),
        in_specs=[
            pl.BlockSpec((B, Np, K), lambda i: (0, 0, 0)),     # patches (bf16)
            pl.BlockSpec((K, D), lambda i: (0, 0)),            # patch_w (bf16)
            pl.BlockSpec((1, D), lambda i: (0, 0)),            # patch_b (f32)
            pl.BlockSpec((Np + 1, D), lambda i: (0, 0)),       # pos     (f32)
            pl.BlockSpec((1, D), lambda i: (0, 0)),            # cls     (f32)
        ],
        out_specs=pl.BlockSpec((B, Np + 1, D), lambda i: (0, 0, 0)),
        compiler_params=pltpu.CompilerParams(
            dimension_semantics=("arbitrary",), vmem_limit_bytes=VMEM_LIMIT),
    )(patches, params["patch_w"], params["patch_b"].reshape(1, D),
      params["pos"], params["cls"])


# ---------------- fused transformer block (whole batch in one grid step) ----------------
def _block_kernel(x_ref, ln1_g_ref, ln1_b_ref, qkv_w_ref, qkv_b_ref,
                  proj_w_ref, proj_b_ref, ln2_g_ref, ln2_b_ref,
                  fc1_w_ref, fc1_b_ref, fc2_w_ref, fc2_b_ref, *rest,
                  heads, head_dim, scale, eps, final_ln):
    if final_ln:
        norm_g_ref, norm_b_ref, o_ref = rest
    else:
        (o_ref,) = rest

    B, N, D = x_ref.shape
    x = x_ref[...].astype(jnp.float32).reshape(B * N, D)      # residual stream, f32

    # ---------- attention branch (pre-norm LN fused); big dots on (B*N, D) ----------
    h = _ln_rows(x, ln1_g_ref[...], ln1_b_ref[...], eps)
    qkv = jnp.dot(h.astype(jnp.bfloat16), qkv_w_ref[...],
                  preferred_element_type=jnp.float32) + qkv_b_ref[...]   # (B*N, 3D) f32
    qkv3 = qkv.reshape(B, N, 3 * D)

    proj_w = proj_w_ref[...]                                   # bf16 (D, D), pre-cast
    acc = None
    for hd in range(heads):        # TODO(synk): lax.fori_loop(unroll=True) at 12 heads
        lo = hd * head_dim
        # scale folded into q before the bf16 cast (N*dh muls instead of N*N)
        q = (qkv3[:, :, lo:lo + head_dim] * scale).astype(jnp.bfloat16)   # (B, N, dh)
        k = qkv3[:, :, D + lo:D + lo + head_dim].astype(jnp.bfloat16)
        v = qkv3[:, :, 2 * D + lo:2 * D + lo + head_dim].astype(jnp.bfloat16)
        # scores: contraction over the last dims -> no explicit transpose through XLU
        s = jnp.einsum('bqd,bkd->bqk', q, k, preferred_element_type=jnp.float32)
        s = s - jnp.max(s, axis=-1, keepdims=True)             # f32 softmax
        pr = jnp.exp(s)
        pr = pr * pl.reciprocal(jnp.sum(pr, axis=-1, keepdims=True), approx=True)
        o_h = jnp.einsum('bqk,bkd->bqd', pr.astype(jnp.bfloat16), v,
                         preferred_element_type=jnp.float32)   # (B, N, dh)
        # per-head slice of proj_w avoids an explicit head concat
        contrib = jnp.dot(o_h.reshape(B * N, head_dim).astype(jnp.bfloat16),
                          proj_w[lo:lo + head_dim, :],
                          preferred_element_type=jnp.float32)  # (B*N, D)
        acc = contrib if acc is None else acc + contrib
    x = x + acc + proj_b_ref[...]                              # residual 1 (fused)

    # ---------- MLP branch (pre-norm LN + GELU + residual, fused) ----------
    h = _ln_rows(x, ln2_g_ref[...], ln2_b_ref[...], eps)
    h = jnp.dot(h.astype(jnp.bfloat16), fc1_w_ref[...],
                preferred_element_type=jnp.float32) + fc1_b_ref[...]
    # TODO(synk): PyTorch nn.GELU defaults to exact (erf); tanh approximation used here.
    h = jax.nn.gelu(h, approximate=True)                       # f32 VPU/EUP math
    h = jnp.dot(h.astype(jnp.bfloat16), fc2_w_ref[...],
                preferred_element_type=jnp.float32) + fc2_b_ref[...]
    y = x + h                                                  # residual 2 (fused), f32

    if final_ln:
        # final LayerNorm applied only to the returned cls rows (row-wise -> equivalent)
        cls = y.reshape(B, N, D)[:, 0, :]                      # (B, D)
        o_ref[...] = _ln_rows(cls, norm_g_ref[...], norm_b_ref[...], eps).astype(o_ref.dtype)
    else:
        o_ref[...] = y.reshape(B, N, D).astype(o_ref.dtype)    # bf16 residual stream


def transformer_block(x, p, norm=None):
    """x: [B, N, D] bf16 -> [B, N, D] bf16, or [B, D] f32 cls features when norm=(g, b)
    (final LayerNorm fused into the last block)."""
    B, N, D = x.shape
    D3 = p["qkv_w"].shape[1]
    DM = p["fc1_w"].shape[1]
    final_ln = norm is not None
    kernel = functools.partial(_block_kernel, heads=HEADS, head_dim=HEAD_DIM,
                               scale=HEAD_DIM ** -0.5, eps=EPS, final_ln=final_ln)

    def full2d(r, c):
        return pl.BlockSpec((r, c), lambda i: (0, 0))

    in_specs = [
        pl.BlockSpec((B, N, D), lambda i: (0, 0, 0)),   # x (bf16 residual stream)
        full2d(1, D), full2d(1, D),                     # ln1_g, ln1_b
        full2d(D, D3), full2d(1, D3),                   # qkv_w (bf16), qkv_b
        full2d(D, D), full2d(1, D),                     # proj_w (bf16), proj_b
        full2d(1, D), full2d(1, D),                     # ln2_g, ln2_b
        full2d(D, DM), full2d(1, DM),                   # fc1_w (bf16), fc1_b
        full2d(DM, D), full2d(1, D),                    # fc2_w (bf16), fc2_b
    ]
    args = [x,
            p["ln1_g"].reshape(1, D), p["ln1_b"].reshape(1, D),
            p["qkv_w"], p["qkv_b"].reshape(1, D3),
            p["proj_w"], p["proj_b"].reshape(1, D),
            p["ln2_g"].reshape(1, D), p["ln2_b"].reshape(1, D),
            p["fc1_w"], p["fc1_b"].reshape(1, DM),
            p["fc2_w"], p["fc2_b"].reshape(1, D)]
    if final_ln:
        in_specs += [full2d(1, D), full2d(1, D)]        # norm_g, norm_b
        args += [norm[0].reshape(1, D), norm[1].reshape(1, D)]
        out_shape = jax.ShapeDtypeStruct((B, D), jnp.float32)
        out_specs = pl.BlockSpec((B, D), lambda i: (0, 0))
    else:
        out_shape = jax.ShapeDtypeStruct((B, N, D), jnp.bfloat16)
        out_specs = pl.BlockSpec((B, N, D), lambda i: (0, 0, 0))

    return pl.pallas_call(
        kernel,
        out_shape=out_shape,
        grid=(1,),
        in_specs=in_specs,
        out_specs=out_specs,
        compiler_params=pltpu.CompilerParams(
            dimension_semantics=("arbitrary",), vmem_limit_bytes=VMEM_LIMIT),
    )(*args)


# ---------------- parameter init (deterministic, synthetic; matmul weights bf16) ----------------
def init_params(key, in_chans=3):
    ks = jax.random.split(key, 4 + DEPTH)
    std = 0.02

    def rnd(k, shape, dtype=jnp.float32):
        return (std * jax.random.normal(k, shape)).astype(dtype)

    n_tokens = 1 + (16 // PATCH) * (16 // PATCH)   # cls + patches at the demo resolution
    params = {
        "patch_w": rnd(ks[0], (in_chans * PATCH * PATCH, HIDDEN), jnp.bfloat16),
        "patch_b": jnp.zeros((HIDDEN,), jnp.float32),
        "cls": rnd(ks[1], (1, HIDDEN)),
        "pos": rnd(ks[2], (n_tokens, HIDDEN)),
        "norm_g": jnp.ones((HIDDEN,), jnp.float32),
        "norm_b": jnp.zeros((HIDDEN,), jnp.float32),
        "blocks": [],
    }
    for d in range(DEPTH):
        bk = jax.random.split(ks[3 + d], 4)
        params["blocks"].append({
            "ln1_g": jnp.ones((HIDDEN,), jnp.float32),
            "ln1_b": jnp.zeros((HIDDEN,), jnp.float32),
            "qkv_w": rnd(bk[0], (HIDDEN, 3 * HIDDEN), jnp.bfloat16),
            "qkv_b": jnp.zeros((3 * HIDDEN,), jnp.float32),
            "proj_w": rnd(bk[1], (HIDDEN, HIDDEN), jnp.bfloat16),
            "proj_b": jnp.zeros((HIDDEN,), jnp.float32),
            "ln2_g": jnp.ones((HIDDEN,), jnp.float32),
            "ln2_b": jnp.zeros((HIDDEN,), jnp.float32),
            "fc1_w": rnd(bk[2], (HIDDEN, MLP_DIM), jnp.bfloat16),
            "fc1_b": jnp.zeros((MLP_DIM,), jnp.float32),
            "fc2_w": rnd(bk[3], (MLP_DIM, HIDDEN), jnp.bfloat16),
            "fc2_b": jnp.zeros((HIDDEN,), jnp.float32),
        })
    return params


# ---------------- forward pass (DINO ViT-style backbone) ----------------
def vit_forward(params, x):
    """x: [B, C, H, W] (NCHW, float32) -> cls-token features [B, HIDDEN] (f32)."""
    params = jax.tree_util.tree_map(jax.lax.stop_gradient, params)  # frozen backbone
    B, C, H, W = x.shape
    P = PATCH
    Hp, Wp = H // P, W // P
    Np = Hp * Wp
    assert params["pos"].shape[0] == Np + 1, "pos-embed sized for the demo resolution only"
    # TODO(synk): DINO interpolates pos-embeddings for other resolutions; not implemented.
    # patch-embed conv (kernel=stride=P) == im2col + matmul; patch flat order (C, P, P)
    patches = (x.reshape(B, C, Hp, P, Wp, P)
                 .transpose(0, 2, 4, 1, 3, 5)
                 .reshape(B, Np, C * P * P)).astype(jnp.bfloat16)
    tok = embed_tokens(patches, params)                     # (B, Np+1, D) bf16, cls+pos fused
    n_blocks = len(params["blocks"])
    for i, blk in enumerate(params["blocks"]):
        if i == n_blocks - 1:
            # final LayerNorm fused into the last block; returns cls features (B, D) f32
            tok = transformer_block(tok, blk, norm=(params["norm_g"], params["norm_b"]))
        else:
            tok = transformer_block(tok, blk)
    return tok


# ---------------- BaseExtractor equivalent ----------------
class BaseExtractor:
    """Mirrors the torch BaseExtractor: frozen backbone; forward returns a list of features.
    torch.utils.checkpoint remat is intentionally NOT replicated: the backbone params are
    frozen, so rematerialization would double forward cost with zero memory benefit."""

    def __init__(self, params, use_checkpoint=True):
        self.params = params
        self.hidden_dim = HIDDEN
        self.use_checkpoint = use_checkpoint          # kept for API parity; remat not used
        self._fwd = jax.jit(vit_forward)

    def single_forward(self, inputs, prompt=None, batch_img_metas=None):
        out = self._fwd(self.params, inputs)
        return [out]                                  # backbone output wrapped in a list

    def forward(self, inputs, prompt=None, batch_img_metas=None):
        return self.single_forward(inputs, prompt, batch_img_metas)

    __call__ = forward


if __name__ == "__main__":
    key = jax.random.PRNGKey(0)
    k_param, k_input = jax.random.split(key)

    params = init_params(k_param, in_chans=3)
    x = jax.random.normal(k_input, (2, 3, 16, 16), dtype=jnp.float32)  # NCHW image batch

    model = BaseExtractor(params, use_checkpoint=True)
    out_list = model(x)                      # list with one tensor, like the torch module
    out = jax.block_until_ready(out_list[0])

    assert out.shape == (2, HIDDEN), out.shape
    assert out.dtype == jnp.float32
    assert bool(jnp.all(jnp.isfinite(out)))
    print("KERNEL_OK")
</pallas_src>

<mosaic_0001>
module attributes {stable_mosaic.version = 11 : i64} {
  func.func @_embed_kernel(%arg0: i32, %arg1: memref<2x16x48xbf16, #tpu.memory_space<vmem>>, %arg2: memref<48x32xbf16, #tpu.memory_space<vmem>>, %arg3: memref<1x32xf32, #tpu.memory_space<vmem>>, %arg4: memref<17x32xf32, #tpu.memory_space<vmem>>, %arg5: memref<1x32xf32, #tpu.memory_space<vmem>>, %arg6: memref<2x17x32xbf16, #tpu.memory_space<vmem>>) attributes {dimension_semantics = [#tpu.dimension_semantics<arbitrary>], iteration_bounds = array<i64: 1>, scalar_prefetch = 0 : i64, scratch_operands = 0 : i64, tpu.core_type = #tpu.core_type<tc>, window_params = [{pipeline_mode = #tpu.pipeline_mode<synchronous>, transform_indices = @transform_0, window_bounds = array<i64: 2, 16, 48>}, {pipeline_mode = #tpu.pipeline_mode<synchronous>, transform_indices = @transform_1, window_bounds = array<i64: 48, 32>}, {pipeline_mode = #tpu.pipeline_mode<synchronous>, transform_indices = @transform_2, window_bounds = array<i64: 1, 32>}, {pipeline_mode = #tpu.pipeline_mode<synchronous>, transform_indices = @transform_3, window_bounds = array<i64: 17, 32>}, {pipeline_mode = #tpu.pipeline_mode<synchronous>, transform_indices = @transform_4, window_bounds = array<i64: 1, 32>}, {pipeline_mode = #tpu.pipeline_mode<synchronous>, transform_indices = @transform_5, window_bounds = array<i64: 2, 17, 32>}]} {
    %c0 = arith.constant 0 : index
    %c0_0 = arith.constant 0 : index
    %c0_1 = arith.constant 0 : index
    %0 = vector.load %arg1[%c0, %c0_0, %c0_1] : memref<2x16x48xbf16, #tpu.memory_space<vmem>>, vector<2x16x48xbf16>
    %1 = vector.shape_cast %0 : vector<2x16x48xbf16> to vector<32x48xbf16>
    %c0_2 = arith.constant 0 : index
    %c0_3 = arith.constant 0 : index
    %2 = vector.load %arg2[%c0_2, %c0_3] : memref<48x32xbf16, #tpu.memory_space<vmem>>, vector<48x32xbf16>
    %cst = arith.constant dense<0.000000e+00> : vector<32x32xf32>
    %3 = tpu.matmul %1, %2, %cst {dimension_numbers = #tpu.dot_dimension_numbers<[1], [0], [0], [1], [0, 0, 1, 1], [], []>} : vector<32x48xbf16>, vector<48x32xbf16>, vector<32x32xf32> -> vector<32x32xf32>
    %c0_4 = arith.constant 0 : index
    %c0_5 = arith.constant 0 : index
    %4 = vector.load %arg4[%c0_4, %c0_5] : memref<17x32xf32, #tpu.memory_space<vmem>>, vector<17x32xf32>
    %5 = vector.shape_cast %3 : vector<32x32xf32> to vector<2x16x32xf32>
    %c0_6 = arith.constant 0 : index
    %c0_7 = arith.constant 0 : index
    %6 = vector.load %arg3[%c0_6, %c0_7] : memref<1x32xf32, #tpu.memory_space<vmem>>, vector<1x32xf32>
    %7 = vector.extract_strided_slice %4 {offsets = [1, 0], sizes = [16, 32], strides = [1, 1]} : vector<17x32xf32> to vector<16x32xf32>
    %8 = vector.broadcast %6 : vector<1x32xf32> to vector<16x32xf32>
    %9 = arith.addf %8, %7 : vector<16x32xf32>
    %10 = vector.shape_cast %9 : vector<16x32xf32> to vector<1x16x32xf32>
    %11 = vector.broadcast %10 : vector<1x16x32xf32> to vector<2x16x32xf32>
    %12 = arith.addf %5, %11 : vector<2x16x32xf32>
    %c0_8 = arith.constant 0 : index
    %c0_9 = arith.constant 0 : index
    %13 = vector.load %arg5[%c0_8, %c0_9] : memref<1x32xf32, #tpu.memory_space<vmem>>, vector<1x32xf32>
    %14 = vector.extract_strided_slice %4 {offsets = [0, 0], sizes = [1, 32], strides = [1, 1]} : vector<17x32xf32> to vector<1x32xf32>
    %15 = arith.addf %13, %14 : vector<1x32xf32>
    %16 = arith.truncf %15 : vector<1x32xf32> to vector<1x32xbf16>
    %17 = vector.shape_cast %16 : vector<1x32xbf16> to vector<1x1x32xbf16>
    %18 = vector.shape_cast %17 : vector<1x1x32xbf16> to vector<1x1x32xbf16>
    %19 = vector.broadcast %18 : vector<1x1x32xbf16> to vector<2x1x32xbf16>
    %c0_10 = arith.constant 0 : index
    %c0_11 = arith.constant 0 : index
    %c0_12 = arith.constant 0 : index
    %20 = vector.load %arg6[%c0_10, %c0_11, %c0_12] : memref<2x17x32xbf16, #tpu.memory_space<vmem>>, vector<2x1x32xbf16>
    tpu.vector_store %arg6[%c0_10, %c0_11, %c0_12], %19 {strides = array<i32>} : memref<2x17x32xbf16, #tpu.memory_space<vmem>>, vector<2x1x32xbf16>,
    %21 = arith.truncf %12 : vector<2x16x32xf32> to vector<2x16x32xbf16>
    %c0_13 = arith.constant 0 : index
    %c1 = arith.constant 1 : index
    %c0_14 = arith.constant 0 : index
    %22 = vector.load %arg6[%c0_13, %c1, %c0_14] : memref<2x17x32xbf16, #tpu.memory_space<vmem>>, vector<2x16x32xbf16>
    tpu.vector_store %arg6[%c0_13, %c1, %c0_14], %21 {strides = array<i32>} : memref<2x17x32xbf16, #tpu.memory_space<vmem>>, vector<2x16x32xbf16>,
    return
  }
  func.func @transform_0(%arg0: i32) -> (i32, i32, i32) {
    %c0_i32 = arith.constant 0 : i32
    %c0_i32_0 = arith.constant 0 : i32
    %c0_i32_1 = arith.constant 0 : i32
    %c0_i32_2 = arith.constant 0 : i32
    return %c0_i32, %c0_i32_0, %c0_i32_1 : i32, i32, i32
  }
  func.func @transform_1(%arg0: i32) -> (i32, i32) {
    %c0_i32 = arith.constant 0 : i32
    %c0_i32_0 = arith.constant 0 : i32
    %c0_i32_1 = arith.constant 0 : i32
    return %c0_i32, %c0_i32_0 : i32, i32
  }
  func.func @transform_2(%arg0: i32) -> (i32, i32) {
    %c0_i32 = arith.constant 0 : i32
    %c0_i32_0 = arith.constant 0 : i32
    %c0_i32_1 = arith.constant 0 : i32
    return %c0_i32, %c0_i32_0 : i32, i32
  }
  func.func @transform_3(%arg0: i32) -> (i32, i32) {
    %c0_i32 = arith.constant 0 : i32
    %c0_i32_0 = arith.constant 0 : i32
    %c0_i32_1 = arith.constant 0 : i32
    return %c0_i32, %c0_i32_0 : i32, i32
  }
  func.func @transform_4(%arg0: i32) -> (i32, i32) {
    %c0_i32 = arith.constant 0 : i32
    %c0_i32_0 = arith.constant 0 : i32
    %c0_i32_1 = arith.constant 0 : i32
    return %c0_i32, %c0_i32_0 : i32, i32
  }
  func.func @transform_5(%arg0: i32) -> (i32, i32, i32) {
    %c0_i32 = arith.constant 0 : i32
    %c0_i32_0 = arith.constant 0 : i32
    %c0_i32_1 = arith.constant 0 : i32
    %c0_i32_2 = arith.constant 0 : i32
    return %c0_i32, %c0_i32_0, %c0_i32_1 : i32, i32, i32
  }
}

module attributes {stable_mosaic.version = 11 : i64} {
  func.func @_block_kernel(%arg0: i32, %arg1: memref<2x17x32xbf16, #tpu.memory_space<vmem>>, %arg2: memref<1x32xf32, #tpu.memory_space<vmem>>, %arg3: memref<1x32xf32, #tpu.memory_space<vmem>>, %arg4: memref<32x96xbf16, #tpu.memory_space<vmem>>, %arg5: memref<1x96xf32, #tpu.memory_space<vmem>>, %arg6: memref<32x32xbf16, #tpu.memory_space<vmem>>, %arg7: memref<1x32xf32, #tpu.memory_space<vmem>>, %arg8: memref<1x32xf32, #tpu.memory_space<vmem>>, %arg9: memref<1x32xf32, #tpu.memory_space<vmem>>, %arg10: memref<32x128xbf16, #tpu.memory_space<vmem>>, %arg11: memref<1x128xf32, #tpu.memory_space<vmem>>, %arg12: memref<128x32xbf16, #tpu.memory_space<vmem>>, %arg13: memref<1x32xf32, #tpu.memory_space<vmem>>, %arg14: memref<2x17x32xbf16, #tpu.memory_space<vmem>>) attributes {dimension_semantics = [#tpu.dimension_semantics<arbitrary>], iteration_bounds = array<i64: 1>, scalar_prefetch = 0 : i64, scratch_operands = 0 : i64, tpu.core_type = #tpu.core_type<tc>, window_params = [{pipeline_mode = #tpu.pipeline_mode<synchronous>, transform_indices = @transform_0, window_bounds = array<i64: 2, 17, 32>}, {pipeline_mode = #tpu.pipeline_mode<synchronous>, transform_indices = @transform_1, window_bounds = array<i64: 1, 32>}, {pipeline_mode = #tpu.pipeline_mode<synchronous>, transform_indices = @transform_2, window_bounds = array<i64: 1, 32>}, {pipeline_mode = #tpu.pipeline_mode<synchronous>, transform_indices = @transform_3, window_bounds = array<i64: 32, 96>}, {pipeline_mode = #tpu.pipeline_mode<synchronous>, transform_indices = @transform_4, window_bounds = array<i64: 1, 96>}, {pipeline_mode = #tpu.pipeline_mode<synchronous>, transform_indices = @transform_5, window_bounds = array<i64: 32, 32>}, {pipeline_mode = #tpu.pipeline_mode<synchronous>, transform_indices = @transform_6, window_bounds = array<i64: 1, 32>}, {pipeline_mode = #tpu.pipeline_mode<synchronous>, transform_indices = @transform_7, window_bounds = array<i64: 1, 32>}, {pipeline_mode = #tpu.pipeline_mode<synchronous>, transform_indices = @transform_8, window_bounds = array<i64: 1, 32>}, {pipeline_mode = #tpu.pipeline_mode<synchronous>, transform_indices = @transform_9, window_bounds = array<i64: 32, 128>}, {pipeline_mode = #tpu.pipeline_mode<synchronous>, transform_indices = @transform_10, window_bounds = array<i64: 1, 128>}, {pipeline_mode = #tpu.pipeline_mode<synchronous>, transform_indices = @transform_11, window_bounds = array<i64: 128, 32>}, {pipeline_mode = #tpu.pipeline_mode<synchronous>, transform_indices = @transform_12, window_bounds = array<i64: 1, 32>}, {pipeline_mode = #tpu.pipeline_mode<synchronous>, transform_indices = @transform_13, window_bounds = array<i64: 2, 17, 32>}]} {
    %c0 = arith.constant 0 : index
    %c0_0 = arith.constant 0 : index
    %c0_1 = arith.constant 0 : index
    %0 = vector.load %arg1[%c0, %c0_0, %c0_1] : memref<2x17x32xbf16, #tpu.memory_space<vmem>>, vector<2x17x32xbf16>
    %1 = arith.extf %0 : vector<2x17x32xbf16> to vector<2x17x32xf32>
    %2 = vector.shape_cast %1 : vector<2x17x32xf32> to vector<34x32xf32>
    %c0_2 = arith.constant 0 : index
    %c0_3 = arith.constant 0 : index
    %3 = vector.load %arg2[%c0_2, %c0_3] : memref<1x32xf32, #tpu.memory_space<vmem>>, vector<1x32xf32>
    %c0_4 = arith.constant 0 : index
    %c0_5 = arith.constant 0 : index
    %4 = vector.load %arg3[%c0_4, %c0_5] : memref<1x32xf32, #tpu.memory_space<vmem>>, vector<1x32xf32>
    %cst = arith.constant dense<0.000000e+00> : vector<34xf32>
    %5 = vector.multi_reduction <add>, %2, %cst [1] : vector<34x32xf32> to vector<34xf32>
    %6 = vector.shape_cast %5 : vector<34xf32> to vector<34x1xf32>
    %cst_6 = arith.constant 3.200000e+01 : f32
    %7 = vector.broadcast %cst_6 : f32 to vector<34x1xf32>
    %8 = arith.divf %6, %7 : vector<34x1xf32>
    %9 = vector.broadcast %8 : vector<34x1xf32> to vector<34x32xf32>
    %10 = arith.subf %2, %9 : vector<34x32xf32>
    %11 = arith.mulf %10, %10 : vector<34x32xf32>
    %cst_7 = arith.constant dense<0.000000e+00> : vector<34xf32>
    %12 = vector.multi_reduction <add>, %11, %cst_7 [1] : vector<34x32xf32> to vector<34xf32>
    %13 = vector.shape_cast %12 : vector<34xf32> to vector<34x1xf32>
    %cst_8 = arith.constant 3.200000e+01 : f32
    %14 = vector.broadcast %cst_8 : f32 to vector<34x1xf32>
    %15 = arith.divf %13, %14 : vector<34x1xf32>
    %cst_9 = arith.constant 9.99999997E-7 : f32
    %16 = vector.broadcast %cst_9 : f32 to vector<34x1xf32>
    %17 = arith.addf %15, %16 : vector<34x1xf32>
    %18 = math.rsqrt %17 : vector<34x1xf32>
    %19 = vector.broadcast %18 : vector<34x1xf32> to vector<34x32xf32>
    %20 = arith.mulf %10, %19 : vector<34x32xf32>
    %21 = vector.broadcast %3 : vector<1x32xf32> to vector<34x32xf32>
    %22 = arith.mulf %20, %21 : vector<34x32xf32>
    %23 = vector.broadcast %4 : vector<1x32xf32> to vector<34x32xf32>
    %24 = arith.addf %22, %23 : vector<34x32xf32>
    %25 = arith.truncf %24 : vector<34x32xf32> to vector<34x32xbf16>
    %c0_10 = arith.constant 0 : index
    %c0_11 = arith.constant 0 : index
    %26 = vector.load %arg4[%c0_10, %c0_11] : memref<32x96xbf16, #tpu.memory_space<vmem>>, vector<32x96xbf16>
    %cst_12 = arith.constant dense<0.000000e+00> : vector<34x96xf32>
    %27 = tpu.matmul %25, %26, %cst_12 {dimension_numbers = #tpu.dot_dimension_numbers<[1], [0], [0], [1], [0, 0, 1, 1], [], []>} : vector<34x32xbf16>, vector<32x96xbf16>, vector<34x96xf32> -> vector<34x96xf32>
    %c0_13 = arith.constant 0 : index
    %c0_14 = arith.constant 0 : index
    %28 = vector.load %arg5[%c0_13, %c0_14] : memref<1x96xf32, #tpu.memory_space<vmem>>, vector<1x96xf32>
    %29 = vector.broadcast %28 : vector<1x96xf32> to vector<34x96xf32>
    %30 = arith.addf %27, %29 : vector<34x96xf32>
    %31 = vector.shape_cast %30 : vector<34x96xf32> to vector<2x17x96xf32>
    %c0_15 = arith.constant 0 : index
    %c0_16 = arith.constant 0 : index
    %32 = vector.load %arg6[%c0_15, %c0_16] : memref<32x32xbf16, #tpu.memory_space<vmem>>, vector<32x32xbf16>
    %33 = vector.extract_strided_slice %31 {offsets = [0, 0, 0], sizes = [2, 17, 16], strides = [1, 1, 1]} : vector<2x17x96xf32> to vector<2x17x16xf32>
    %cst_17 = arith.constant 2.500000e-01 : f32
    %34 = vector.broadcast %cst_17 : f32 to vector<2x17x16xf32>
    %35 = arith.mulf %33, %34 : vector<2x17x16xf32>
    %36 = arith.truncf %35 : vector<2x17x16xf32> to vector<2x17x16xbf16>
    %37 = vector.extract_strided_slice %31 {offsets = [0, 0, 32], sizes = [2, 17, 16], strides = [1, 1, 1]} : vector<2x17x96xf32> to vector<2x17x16xf32>
    %38 = arith.truncf %37 : vector<2x17x16xf32> to vector<2x17x16xbf16>
    %39 = vector.extract_strided_slice %31 {offsets = [0, 0, 64], sizes = [2, 17, 16], strides = [1, 1, 1]} : vector<2x17x96xf32> to vector<2x17x16xf32>
    %40 = arith.truncf %39 : vector<2x17x16xf32> to vector<2x17x16xbf16>
    "tpu.trace_start"() <{level = 10 : i32, message = "bqd,bkd->bqk"}> : () -> ()
    %cst_18 = arith.constant dense<0.000000e+00> : vector<2x17x17xf32>
    %41 = tpu.matmul %36, %38, %cst_18 {dimension_numbers = #tpu.dot_dimension_numbers<[2], [2], [1], [1], [0, 0, 0, 1, 1, 1], [0], [0]>} : vector<2x17x16xbf16>, vector<2x17x16xbf16>, vector<2x17x17xf32> -> vector<2x17x17xf32>
    "tpu.trace_stop"() : () -> ()
    %cst_19 = arith.constant dense<0xFF800000> : vector<2x17xf32>
    %42 = vector.multi_reduction <maximumf>, %41, %cst_19 [2] : vector<2x17x17xf32> to vector<2x17xf32>
    %43 = vector.shape_cast %42 : vector<2x17xf32> to vector<2x17x1xf32>
    %44 = vector.broadcast %43 : vector<2x17x1xf32> to vector<2x17x17xf32>
    %45 = arith.subf %41, %44 : vector<2x17x17xf32>
    %46 = math.exp %45 : vector<2x17x17xf32>
    %cst_20 = arith.constant dense<0.000000e+00> : vector<2x17xf32>
    %47 = vector.multi_reduction <add>, %46, %cst_20 [2] : vector<2x17x17xf32> to vector<2x17xf32>
    %48 = vector.shape_cast %47 : vector<2x17xf32> to vector<2x17x1xf32>
    %49 = tpu.reciprocal %48 {approx = true} : vector<2x17x1xf32> -> vector<2x17x1xf32>
    %50 = vector.broadcast %49 : vector<2x17x1xf32> to vector<2x17x17xf32>
    %51 = arith.mulf %46, %50 : vector<2x17x17xf32>
    %52 = arith.truncf %51 : vector<2x17x17xf32> to vector<2x17x17xbf16>
    "tpu.trace_start"() <{level = 10 : i32, message = "bqk,bkd->bqd"}> : () -> ()
    %cst_21 = arith.constant dense<0.000000e+00> : vector<2x17x16xf32>
    %53 = tpu.matmul %52, %40, %cst_21 {dimension_numbers = #tpu.dot_dimension_numbers<[2], [1], [1], [2], [0, 0, 0, 1, 1, 2], [0], [0]>} : vector<2x17x17xbf16>, vector<2x17x16xbf16>, vector<2x17x16xf32> -> vector<2x17x16xf32>
    "tpu.trace_stop"() : () -> ()
    %54 = vector.shape_cast %53 : vector<2x17x16xf32> to vector<34x16xf32>
    %55 = arith.truncf %54 : vector<34x16xf32> to vector<34x16xbf16>
    %56 = vector.extract_strided_slice %32 {offsets = [0, 0], sizes = [16, 32], strides = [1, 1]} : vector<32x32xbf16> to vector<16x32xbf16>
    %cst_22 = arith.constant dense<0.000000e+00> : vector<34x32xf32>
    %57 = tpu.matmul %55, %56, %cst_22 {dimension_numbers = #tpu.dot_dimension_numbers<[1], [0], [0], [1], [0, 0, 1, 1], [], []>} : vector<34x16xbf16>, vector<16x32xbf16>, vector<34x32xf32> -> vector<34x32xf32>
    %58 = vector.extract_strided_slice %31 {offsets = [0, 0, 16], sizes = [2, 17, 16], strides = [1, 1, 1]} : vector<2x17x96xf32> to vector<2x17x16xf32>
    %cst_23 = arith.constant 2.500000e-01 : f32
    %59 = vector.broadcast %cst_23 : f32 to vector<2x17x16xf32>
    %60 = arith.mulf %58, %59 : vector<2x17x16xf32>
    %61 = arith.truncf %60 : vector<2x17x16xf32> to vector<2x17x16xbf16>
    %62 = vector.extract_strided_slice %31 {offsets = [0, 0, 48], sizes = [2, 17, 16], strides = [1, 1, 1]} : vector<2x17x96xf32> to vector<2x17x16xf32>
    %63 = arith.truncf %62 : vector<2x17x16xf32> to vector<2x17x16xbf16>
    %64 = vector.extract_strided_slice %31 {offsets = [0, 0, 80], sizes = [2, 17, 16], strides = [1, 1, 1]} : vector<2x17x96xf32> to vector<2x17x16xf32>
    %65 = arith.truncf %64 : vector<2x17x16xf32> to vector<2x17x16xbf16>
    "tpu.trace_start"() <{level = 10 : i32, message = "bqd,bkd->bqk"}> : () -> ()
    %cst_24 = arith.constant dense<0.000000e+00> : vector<2x17x17xf32>
    %66 = tpu.matmul %61, %63, %cst_24 {dimension_numbers = #tpu.dot_dimension_numbers<[2], [2], [1], [1], [0, 0, 0, 1, 1, 1], [0], [0]>} : vector<2x17x16xbf16>, vector<2x17x16xbf16>, vector<2x17x17xf32> -> vector<2x17x17xf32>
    "tpu.trace_stop"() : () -> ()
    %cst_25 = arith.constant dense<0xFF800000> : vector<2x17xf32>
    %67 = vector.multi_reduction <maximumf>, %66, %cst_25 [2] : vector<2x17x17xf32> to vector<2x17xf32>
    %68 = vector.shape_cast %67 : vector<2x17xf32> to vector<2x17x1xf32>
    %69 = vector.broadcast %68 : vector<2x17x1xf32> to vector<2x17x17xf32>
    %70 = arith.subf %66, %69 : vector<2x17x17xf32>
    %71 = math.exp %70 : vector<2x17x17xf32>
    %cst_26 = arith.constant dense<0.000000e+00> : vector<2x17xf32>
    %72 = vector.multi_reduction <add>, %71, %cst_26 [2] : vector<2x17x17xf32> to vector<2x17xf32>
    %73 = vector.shape_cast %72 : vector<2x17xf32> to vector<2x17x1xf32>
    %74 = tpu.reciprocal %73 {approx = true} : vector<2x17x1xf32> -> vector<2x17x1xf32>
    %75 = vector.broadcast %74 : vector<2x17x1xf32> to vector<2x17x17xf32>
    %76 = arith.mulf %71, %75 : vector<2x17x17xf32>
    %77 = arith.truncf %76 : vector<2x17x17xf32> to vector<2x17x17xbf16>
    "tpu.trace_start"() <{level = 10 : i32, message = "bqk,bkd->bqd"}> : () -> ()
    %cst_27 = arith.constant dense<0.000000e+00> : vector<2x17x16xf32>
    %78 = tpu.matmul %77, %65, %cst_27 {dimension_numbers = #tpu.dot_dimension_numbers<[2], [1], [1], [2], [0, 0, 0, 1, 1, 2], [0], [0]>} : vector<2x17x17xbf16>, vector<2x17x16xbf16>, vector<2x17x16xf32> -> vector<2x17x16xf32>
    "tpu.trace_stop"() : () -> ()
    %79 = vector.shape_cast %78 : vector<2x17x16xf32> to vector<34x16xf32>
    %80 = arith.truncf %79 : vector<34x16xf32> to vector<34x16xbf16>
    %81 = vector.extract_strided_slice %32 {offsets = [16, 0], sizes = [16, 32], strides = [1, 1]} : vector<32x32xbf16> to vector<16x32xbf16>
    %cst_28 = arith.constant dense<0.000000e+00> : vector<34x32xf32>
    %82 = tpu.matmul %80, %81, %cst_28 {dimension_numbers = #tpu.dot_dimension_numbers<[1], [0], [0], [1], [0, 0, 1, 1], [], []>} : vector<34x16xbf16>, vector<16x32xbf16>, vector<34x32xf32> -> vector<34x32xf32>
    %83 = arith.addf %57, %82 : vector<34x32xf32>
    %84 = arith.addf %2, %83 : vector<34x32xf32>
    %c0_29 = arith.constant 0 : index
    %c0_30 = arith.constant 0 : index
    %85 = vector.load %arg7[%c0_29, %c0_30] : memref<1x32xf32, #tpu.memory_space<vmem>>, vector<1x32xf32>
    %86 = vector.broadcast %85 : vector<1x32xf32> to vector<34x32xf32>
    %87 = arith.addf %84, %86 : vector<34x32xf32>
    %c0_31 = arith.constant 0 : index
    %c0_32 = arith.constant 0 : index
    %88 = vector.load %arg8[%c0_31, %c0_32] : memref<1x32xf32, #tpu.memory_space<vmem>>, vector<1x32xf32>
    %c0_33 = arith.constant 0 : index
    %c0_34 = arith.constant 0 : index
    %89 = vector.load %arg9[%c0_33, %c0_34] : memref<1x32xf32, #tpu.memory_space<vmem>>, vector<1x32xf32>
    %cst_35 = arith.constant dense<0.000000e+00> : vector<34xf32>
    %90 = vector.multi_reduction <add>, %87, %cst_35 [1] : vector<34x32xf32> to vector<34xf32>
    %91 = vector.shape_cast %90 : vector<34xf32> to vector<34x1xf32>
    %cst_36 = arith.constant 3.200000e+01 : f32
    %92 = vector.broadcast %cst_36 : f32 to vector<34x1xf32>
    %93 = arith.divf %91, %92 : vector<34x1xf32>
    %94 = vector.broadcast %93 : vector<34x1xf32> to vector<34x32xf32>
    %95 = arith.subf %87, %94 : vector<34x32xf32>
    %96 = arith.mulf %95, %95 : vector<34x32xf32>
    %cst_37 = arith.constant dense<0.000000e+00> : vector<34xf32>
    %97 = vector.multi_reduction <add>, %96, %cst_37 [1] : vector<34x32xf32> to vector<34xf32>
    %98 = vector.shape_cast %97 : vector<34xf32> to vector<34x1xf32>
    %cst_38 = arith.constant 3.200000e+01 : f32
    %99 = vector.broadcast %cst_38 : f32 to vector<34x1xf32>
    %100 = arith.divf %98, %99 : vector<34x1xf32>
    %cst_39 = arith.constant 9.99999997E-7 : f32
    %101 = vector.broadcast %cst_39 : f32 to vector<34x1xf32>
    %102 = arith.addf %100, %101 : vector<34x1xf32>
    %103 = math.rsqrt %102 : vector<34x1xf32>
    %104 = vector.broadcast %103 : vector<34x1xf32> to vector<34x32xf32>
    %105 = arith.mulf %95, %104 : vector<34x32xf32>
    %106 = vector.broadcast %88 : vector<1x32xf32> to vector<34x32xf32>
    %107 = arith.mulf %105, %106 : vector<34x32xf32>
    %108 = vector.broadcast %89 : vector<1x32xf32> to vector<34x32xf32>
    %109 = arith.addf %107, %108 : vector<34x32xf32>
    %110 = arith.truncf %109 : vector<34x32xf32> to vector<34x32xbf16>
    %c0_40 = arith.constant 0 : index
    %c0_41 = arith.constant 0 : index
    %111 = vector.load %arg10[%c0_40, %c0_41] : memref<32x128xbf16, #tpu.memory_space<vmem>>, vector<32x128xbf16>
    %cst_42 = arith.constant dense<0.000000e+00> : vector<34x128xf32>
    %112 = tpu.matmul %110, %111, %cst_42 {dimension_numbers = #tpu.dot_dimension_numbers<[1], [0], [0], [1], [0, 0, 1, 1], [], []>} : vector<34x32xbf16>, vector<32x128xbf16>, vector<34x128xf32> -> vector<34x128xf32>
    %c0_43 = arith.constant 0 : index
    %c0_44 = arith.constant 0 : index
    %113 = vector.load %arg11[%c0_43, %c0_44] : memref<1x128xf32, #tpu.memory_space<vmem>>, vector<1x128xf32>
    %114 = vector.broadcast %113 : vector<1x128xf32> to vector<34x128xf32>
    %115 = arith.addf %112, %114 : vector<34x128xf32>
    %116 = arith.mulf %115, %115 : vector<34x128xf32>
    %117 = arith.mulf %115, %116 : vector<34x128xf32>
    %cst_45 = arith.constant 4.471500e-02 : f32
    %118 = vector.broadcast %cst_45 : f32 to vector<34x128xf32>
    %119 = arith.mulf %118, %117 : vector<34x128xf32>
    %120 = arith.addf %115, %119 : vector<34x128xf32>
    %cst_46 = arith.constant 0.797884583 : f32
    %121 = vector.broadcast %cst_46 : f32 to vector<34x128xf32>
    %122 = arith.mulf %121, %120 : vector<34x128xf32>
    %123 = math.tanh %122 : vector<34x128xf32>
    %cst_47 = arith.constant 1.000000e+00 : f32
    %124 = vector.broadcast %cst_47 : f32 to vector<34x128xf32>
    %125 = arith.addf %124, %123 : vector<34x128xf32>
    %cst_48 = arith.constant 5.000000e-01 : f32
    %126 = vector.broadcast %cst_48 : f32 to vector<34x128xf32>
    %127 = arith.mulf %126, %125 : vector<34x128xf32>
    %128 = arith.mulf %115, %127 : vector<34x128xf32>
    %129 = arith.truncf %128 : vector<34x128xf32> to vector<34x128xbf16>
    %c0_49 = arith.constant 0 : index
    %c0_50 = arith.constant 0 : index
    %130 = vector.load %arg12[%c0_49, %c0_50] : memref<128x32xbf16, #tpu.memory_space<vmem>>, vector<128x32xbf16>
    %cst_51 = arith.constant dense<0.000000e+00> : vector<34x32xf32>
    %131 = tpu.matmul %129, %130, %cst_51 {dimension_numbers = #tpu.dot_dimension_numbers<[1], [0], [0], [1], [0, 0, 1, 1], [], []>} : vector<34x128xbf16>, vector<128x32xbf16>, vector<34x32xf32> -> vector<34x32xf32>
    %c0_52 = arith.constant 0 : index
    %c0_53 = arith.constant 0 : index
    %132 = vector.load %arg13[%c0_52, %c0_53] : memref<1x32xf32, #tpu.memory_space<vmem>>, vector<1x32xf32>
    %133 = vector.broadcast %132 : vector<1x32xf32> to vector<34x32xf32>
    %134 = arith.addf %131, %133 : vector<34x32xf32>
    %135 = arith.addf %87, %134 : vector<34x32xf32>
    %136 = vector.shape_cast %135 : vector<34x32xf32> to vector<2x17x32xf32>
    %137 = arith.truncf %136 : vector<2x17x32xf32> to vector<2x17x32xbf16>
    %c0_54 = arith.constant 0 : index
    %c0_55 = arith.constant 0 : index
    %c0_56 = arith.constant 0 : index
    %138 = vector.load %arg14[%c0_54, %c0_55, %c0_56] : memref<2x17x32xbf16, #tpu.memory_space<vmem>>, vector<2x17x32xbf16>
    tpu.vector_store %arg14[%c0_54, %c0_55, %c0_56], %137 {strides = array<i32>} : memref<2x17x32xbf16, #tpu.memory_space<vmem>>, vector<2x17x32xbf16>,
    return
  }
  func.func @transform_0(%arg0: i32) -> (i32, i32, i32) {
    %c0_i32 = arith.constant 0 : i32
    %c0_i32_0 = arith.constant 0 : i32
    %c0_i32_1 = arith.constant 0 : i32
    %c0_i32_2 = arith.constant 0 : i32
    return %c0_i32, %c0_i32_0, %c0_i32_1 : i32, i32, i32
  }
  func.func @transform_1(%arg0: i32) -> (i32, i32) {
    %c0_i32 = arith.constant 0 : i32
    %c0_i32_0 = arith.constant 0 : i32
    %c0_i32_1 = arith.constant 0 : i32
    return %c0_i32, %c0_i32_0 : i32, i32
  }
  func.func @transform_2(%arg0: i32) -> (i32, i32) {
    %c0_i32 = arith.constant 0 : i32
    %c0_i32_0 = arith.constant 0 : i32
    %c0_i32_1 = arith.constant 0 : i32
    return %c0_i32, %c0_i32_0 : i32, i32
  }
  func.func @transform_3(%arg0: i32) -> (i32, i32) {
    %c0_i32 = arith.constant 0 : i32
    %c0_i32_0 = arith.constant 0 : i32
    %c0_i32_1 = arith.constant 0 : i32
    return %c0_i32, %c0_i32_0 : i32, i32
  }
  func.func @transform_4(%arg0: i32) -> (i32, i32) {
    %c0_i32 = arith.constant 0 : i32
    %c0_i32_0 = arith.constant 0 : i32
    %c0_i32_1 = arith.constant 0 : i32
    return %c0_i32, %c0_i32_0 : i32, i32
  }
  func.func @transform_5(%arg0: i32) -> (i32, i32) {
    %c0_i32 = arith.constant 0 : i32
    %c0_i32_0 = arith.constant 0 : i32
    %c0_i32_1 = arith.constant 0 : i32
    return %c0_i32, %c0_i32_0 : i32, i32
  }
  func.func @transform_6(%arg0: i32) -> (i32, i32) {
    %c0_i32 = arith.constant 0 : i32
    %c0_i32_0 = arith.constant 0 : i32
    %c0_i32_1 = arith.constant 0 : i32
    return %c0_i32, %c0_i32_0 : i32, i32
  }
  func.func @transform_7(%arg0: i32) -> (i32, i32) {
    %c0_i32 = arith.constant 0 : i32
    %c0_i32_0 = arith.constant 0 : i32
    %c0_i32_1 = arith.constant 0 : i32
    return %c0_i32, %c0_i32_0 : i32, i32
  }
  func.func @transform_8(%arg0: i32) -> (i32, i32) {
    %c0_i32 = arith.constant 0 : i32
    %c0_i32_0 = arith.constant 0 : i32
    %c0_i32_1 = arith.constant 0 : i32
    return %c0_i32, %c0_i32_0 : i32, i32
  }
  func.func @transform_9(%arg0: i32) -> (i32, i32) {
    %c0_i32 = arith.constant 0 : i32
    %c0_i32_0 = arith.constant 0 : i32
    %c0_i32_1 = arith.constant 0 : i32
    return %c0_i32, %c0_i32_0 : i32, i32
  }
  func.func @transform_10(%arg0: i32) -> (i32, i32) {
    %c0_i32 = arith.constant 0 : i32
    %c0_i32_0 = arith.constant 0 : i32
    %c0_i32_1 = arith.constant 0 : i32
    return %c0_i32, %c0_i32_0 : i32, i32
  }
  func.func @transform_11(%arg0: i32) -> (i32, i32) {
    %c0_i32 = arith.constant 0 : i32
    %c0_i32_0 = arith.constant 0 : i32
    %c0_i32_1 = arith.constant 0 : i32
    return %c0_i32, %c0_i32_0 : i32, i32
  }
  func.func @transform_12(%arg0: i32) -> (i32, i32) {
    %c0_i32 = arith.constant 0 : i32
    %c0_i32_0 = arith.constant 0 : i32
    %c0_i32_1 = arith.constant 0 : i32
    return %c0_i32, %c0_i32_0 : i32, i32
  }
  func.func @transform_13(%arg0: i32) -> (i32, i32, i32) {
    %c0_i32 = arith.constant 0 : i32
    %c0_i32_0 = arith.constant 0 : i32
    %c0_i32_1 = arith.constant 0 : i32
    %c0_i32_2 = arith.constant 0 : i32
    return %c0_i32, %c0_i32_0, %c0_i32_1 : i32, i32, i32
  }
}

module attributes {stable_mosaic.version = 11 : i64} {
  func.func @_block_kernel(%arg0: i32, %arg1: memref<2x17x32xbf16, #tpu.memory_space<vmem>>, %arg2: memref<1x32xf32, #tpu.memory_space<vmem>>, %arg3: memref<1x32xf32, #tpu.memory_space<vmem>>, %arg4: memref<32x96xbf16, #tpu.memory_space<vmem>>, %arg5: memref<1x96xf32, #tpu.memory_space<vmem>>, %arg6: memref<32x32xbf16, #tpu.memory_space<vmem>>, %arg7: memref<1x32xf32, #tpu.memory_space<vmem>>, %arg8: memref<1x32xf32, #tpu.memory_space<vmem>>, %arg9: memref<1x32xf32, #tpu.memory_space<vmem>>, %arg10: memref<32x128xbf16, #tpu.memory_space<vmem>>, %arg11: memref<1x128xf32, #tpu.memory_space<vmem>>, %arg12: memref<128x32xbf16, #tpu.memory_space<vmem>>, %arg13: memref<1x32xf32, #tpu.memory_space<vmem>>, %arg14: memref<1x32xf32, #tpu.memory_space<vmem>>, %arg15: memref<1x32xf32, #tpu.memory_space<vmem>>, %arg16: memref<2x32xf32, #tpu.memory_space<vmem>>) attributes {dimension_semantics = [#tpu.dimension_semantics<arbitrary>], iteration_bounds = array<i64: 1>, scalar_prefetch = 0 : i64, scratch_operands = 0 : i64, tpu.core_type = #tpu.core_type<tc>, window_params = [{pipeline_mode = #tpu.pipeline_mode<synchronous>, transform_indices = @transform_0, window_bounds = array<i64: 2, 17, 32>}, {pipeline_mode = #tpu.pipeline_mode<synchronous>, transform_indices = @transform_1, window_bounds = array<i64: 1, 32>}, {pipeline_mode = #tpu.pipeline_mode<synchronous>, transform_indices = @transform_2, window_bounds = array<i64: 1, 32>}, {pipeline_mode = #tpu.pipeline_mode<synchronous>, transform_indices = @transform_3, window_bounds = array<i64: 32, 96>}, {pipeline_mode = #tpu.pipeline_mode<synchronous>, transform_indices = @transform_4, window_bounds = array<i64: 1, 96>}, {pipeline_mode = #tpu.pipeline_mode<synchronous>, transform_indices = @transform_5, window_bounds = array<i64: 32, 32>}, {pipeline_mode = #tpu.pipeline_mode<synchronous>, transform_indices = @transform_6, window_bounds = array<i64: 1, 32>}, {pipeline_mode = #tpu.pipeline_mode<synchronous>, transform_indices = @transform_7, window_bounds = array<i64: 1, 32>}, {pipeline_mode = #tpu.pipeline_mode<synchronous>, transform_indices = @transform_8, window_bounds = array<i64: 1, 32>}, {pipeline_mode = #tpu.pipeline_mode<synchronous>, transform_indices = @transform_9, window_bounds = array<i64: 32, 128>}, {pipeline_mode = #tpu.pipeline_mode<synchronous>, transform_indices = @transform_10, window_bounds = array<i64: 1, 128>}, {pipeline_mode = #tpu.pipeline_mode<synchronous>, transform_indices = @transform_11, window_bounds = array<i64: 128, 32>}, {pipeline_mode = #tpu.pipeline_mode<synchronous>, transform_indices = @transform_12, window_bounds = array<i64: 1, 32>}, {pipeline_mode = #tpu.pipeline_mode<synchronous>, transform_indices = @transform_13, window_bounds = array<i64: 1, 32>}, {pipeline_mode = #tpu.pipeline_mode<synchronous>, transform_indices = @transform_14, window_bounds = array<i64: 1, 32>}, {pipeline_mode = #tpu.pipeline_mode<synchronous>, transform_indices = @transform_15, window_bounds = array<i64: 2, 32>}]} {
    %c0 = arith.constant 0 : index
    %c0_0 = arith.constant 0 : index
    %c0_1 = arith.constant 0 : index
    %0 = vector.load %arg1[%c0, %c0_0, %c0_1] : memref<2x17x32xbf16, #tpu.memory_space<vmem>>, vector<2x17x32xbf16>
    %1 = arith.extf %0 : vector<2x17x32xbf16> to vector<2x17x32xf32>
    %2 = vector.shape_cast %1 : vector<2x17x32xf32> to vector<34x32xf32>
    %c0_2 = arith.constant 0 : index
    %c0_3 = arith.constant 0 : index
    %3 = vector.load %arg2[%c0_2, %c0_3] : memref<1x32xf32, #tpu.memory_space<vmem>>, vector<1x32xf32>
    %c0_4 = arith.constant 0 : index
    %c0_5 = arith.constant 0 : index
    %4 = vector.load %arg3[%c0_4, %c0_5] : memref<1x32xf32, #tpu.memory_space<vmem>>, vector<1x32xf32>
    %cst = arith.constant dense<0.000000e+00> : vector<34xf32>
    %5 = vector.multi_reduction <add>, %2, %cst [1] : vector<34x32xf32> to vector<34xf32>
    %6 = vector.shape_cast %5 : vector<34xf32> to vector<34x1xf32>
    %cst_6 = arith.constant 3.200000e+01 : f32
    %7 = vector.broadcast %cst_6 : f32 to vector<34x1xf32>
    %8 = arith.divf %6, %7 : vector<34x1xf32>
    %9 = vector.broadcast %8 : vector<34x1xf32> to vector<34x32xf32>
    %10 = arith.subf %2, %9 : vector<34x32xf32>
    %11 = arith.mulf %10, %10 : vector<34x32xf32>
    %cst_7 = arith.constant dense<0.000000e+00> : vector<34xf32>
    %12 = vector.multi_reduction <add>, %11, %cst_7 [1] : vector<34x32xf32> to vector<34xf32>
    %13 = vector.shape_cast %12 : vector<34xf32> to vector<34x1xf32>
    %cst_8 = arith.constant 3.200000e+01 : f32
    %14 = vector.broadcast %cst_8 : f32 to vector<34x1xf32>
    %15 = arith.divf %13, %14 : vector<34x1xf32>
    %cst_9 = arith.constant 9.99999997E-7 : f32
    %16 = vector.broadcast %cst_9 : f32 to vector<34x1xf32>
    %17 = arith.addf %15, %16 : vector<34x1xf32>
    %18 = math.rsqrt %17 : vector<34x1xf32>
    %19 = vector.broadcast %18 : vector<34x1xf32> to vector<34x32xf32>
    %20 = arith.mulf %10, %19 : vector<34x32xf32>
    %21 = vector.broadcast %3 : vector<1x32xf32> to vector<34x32xf32>
    %22 = arith.mulf %20, %21 : vector<34x32xf32>
    %23 = vector.broadcast %4 : vector<1x32xf32> to vector<34x32xf32>
    %24 = arith.addf %22, %23 : vector<34x32xf32>
    %25 = arith.truncf %24 : vector<34x32xf32> to vector<34x32xbf16>
    %c0_10 = arith.constant 0 : index
    %c0_11 = arith.constant 0 : index
    %26 = vector.load %arg4[%c0_10, %c0_11] : memref<32x96xbf16, #tpu.memory_space<vmem>>, vector<32x96xbf16>
    %cst_12 = arith.constant dense<0.000000e+00> : vector<34x96xf32>
    %27 = tpu.matmul %25, %26, %cst_12 {dimension_numbers = #tpu.dot_dimension_numbers<[1], [0], [0], [1], [0, 0, 1, 1], [], []>} : vector<34x32xbf16>, vector<32x96xbf16>, vector<34x96xf32> -> vector<34x96xf32>
    %c0_13 = arith.constant 0 : index
    %c0_14 = arith.constant 0 : index
    %28 = vector.load %arg5[%c0_13, %c0_14] : memref<1x96xf32, #tpu.memory_space<vmem>>, vector<1x96xf32>
    %29 = vector.broadcast %28 : vector<1x96xf32> to vector<34x96xf32>
    %30 = arith.addf %27, %29 : vector<34x96xf32>
    %31 = vector.shape_cast %30 : vector<34x96xf32> to vector<2x17x96xf32>
    %c0_15 = arith.constant 0 : index
    %c0_16 = arith.constant 0 : index
    %32 = vector.load %arg6[%c0_15, %c0_16] : memref<32x32xbf16, #tpu.memory_space<vmem>>, vector<32x32xbf16>
    %33 = vector.extract_strided_slice %31 {offsets = [0, 0, 0], sizes = [2, 17, 16], strides = [1, 1, 1]} : vector<2x17x96xf32> to vector<2x17x16xf32>
    %cst_17 = arith.constant 2.500000e-01 : f32
    %34 = vector.broadcast %cst_17 : f32 to vector<2x17x16xf32>
    %35 = arith.mulf %33, %34 : vector<2x17x16xf32>
    %36 = arith.truncf %35 : vector<2x17x16xf32> to vector<2x17x16xbf16>
    %37 = vector.extract_strided_slice %31 {offsets = [0, 0, 32], sizes = [2, 17, 16], strides = [1, 1, 1]} : vector<2x17x96xf32> to vector<2x17x16xf32>
    %38 = arith.truncf %37 : vector<2x17x16xf32> to vector<2x17x16xbf16>
    %39 = vector.extract_strided_slice %31 {offsets = [0, 0, 64], sizes = [2, 17, 16], strides = [1, 1, 1]} : vector<2x17x96xf32> to vector<2x17x16xf32>
    %40 = arith.truncf %39 : vector<2x17x16xf32> to vector<2x17x16xbf16>
    "tpu.trace_start"() <{level = 10 : i32, message = "bqd,bkd->bqk"}> : () -> ()
    %cst_18 = arith.constant dense<0.000000e+00> : vector<2x17x17xf32>
    %41 = tpu.matmul %36, %38, %cst_18 {dimension_numbers = #tpu.dot_dimension_numbers<[2], [2], [1], [1], [0, 0, 0, 1, 1, 1], [0], [0]>} : vector<2x17x16xbf16>, vector<2x17x16xbf16>, vector<2x17x17xf32> -> vector<2x17x17xf32>
    "tpu.trace_stop"() : () -> ()
    %cst_19 = arith.constant dense<0xFF800000> : vector<2x17xf32>
    %42 = vector.multi_reduction <maximumf>, %41, %cst_19 [2] : vector<2x17x17xf32> to vector<2x17xf32>
    %43 = vector.shape_cast %42 : vector<2x17xf32> to vector<2x17x1xf32>
    %44 = vector.broadcast %43 : vector<2x17x1xf32> to vector<2x17x17xf32>
    %45 = arith.subf %41, %44 : vector<2x17x17xf32>
    %46 = math.exp %45 : vector<2x17x17xf32>
    %cst_20 = arith.constant dense<0.000000e+00> : vector<2x17xf32>
    %47 = vector.multi_reduction <add>, %46, %cst_20 [2] : vector<2x17x17xf32> to vector<2x17xf32>
    %48 = vector.shape_cast %47 : vector<2x17xf32> to vector<2x17x1xf32>
    %49 = tpu.reciprocal %48 {approx = true} : vector<2x17x1xf32> -> vector<2x17x1xf32>
    %50 = vector.broadcast %49 : vector<2x17x1xf32> to vector<2x17x17xf32>
    %51 = arith.mulf %46, %50 : vector<2x17x17xf32>
    %52 = arith.truncf %51 : vector<2x17x17xf32> to vector<2x17x17xbf16>
    "tpu.trace_start"() <{level = 10 : i32, message = "bqk,bkd->bqd"}> : () -> ()
    %cst_21 = arith.constant dense<0.000000e+00> : vector<2x17x16xf32>
    %53 = tpu.matmul %52, %40, %cst_21 {dimension_numbers = #tpu.dot_dimension_numbers<[2], [1], [1], [2], [0, 0, 0, 1, 1, 2], [0], [0]>} : vector<2x17x17xbf16>, vector<2x17x16xbf16>, vector<2x17x16xf32> -> vector<2x17x16xf32>
    "tpu.trace_stop"() : () -> ()
    %54 = vector.shape_cast %53 : vector<2x17x16xf32> to vector<34x16xf32>
    %55 = arith.truncf %54 : vector<34x16xf32> to vector<34x16xbf16>
    %56 = vector.extract_strided_slice %32 {offsets = [0, 0], sizes = [16, 32], strides = [1, 1]} : vector<32x32xbf16> to vector<16x32xbf16>
    %cst_22 = arith.constant dense<0.000000e+00> : vector<34x32xf32>
    %57 = tpu.matmul %55, %56, %cst_22 {dimension_numbers = #tpu.dot_dimension_numbers<[1], [0], [0], [1], [0, 0, 1, 1], [], []>} : vector<34x16xbf16>, vector<16x32xbf16>, vector<34x32xf32> -> vector<34x32xf32>
    %58 = vector.extract_strided_slice %31 {offsets = [0, 0, 16], sizes = [2, 17, 16], strides = [1, 1, 1]} : vector<2x17x96xf32> to vector<2x17x16xf32>
    %cst_23 = arith.constant 2.500000e-01 : f32
    %59 = vector.broadcast %cst_23 : f32 to vector<2x17x16xf32>
    %60 = arith.mulf %58, %59 : vector<2x17x16xf32>
    %61 = arith.truncf %60 : vector<2x17x16xf32> to vector<2x17x16xbf16>
    %62 = vector.extract_strided_slice %31 {offsets = [0, 0, 48], sizes = [2, 17, 16], strides = [1, 1, 1]} : vector<2x17x96xf32> to vector<2x17x16xf32>
    %63 = arith.truncf %62 : vector<2x17x16xf32> to vector<2x17x16xbf16>
    %64 = vector.extract_strided_slice %31 {offsets = [0, 0, 80], sizes = [2, 17, 16], strides = [1, 1, 1]} : vector<2x17x96xf32> to vector<2x17x16xf32>
    %65 = arith.truncf %64 : vector<2x17x16xf32> to vector<2x17x16xbf16>
    "tpu.trace_start"() <{level = 10 : i32, message = "bqd,bkd->bqk"}> : () -> ()
    %cst_24 = arith.constant dense<0.000000e+00> : vector<2x17x17xf32>
    %66 = tpu.matmul %61, %63, %cst_24 {dimension_numbers = #tpu.dot_dimension_numbers<[2], [2], [1], [1], [0, 0, 0, 1, 1, 1], [0], [0]>} : vector<2x17x16xbf16>, vector<2x17x16xbf16>, vector<2x17x17xf32> -> vector<2x17x17xf32>
    "tpu.trace_stop"() : () -> ()
    %cst_25 = arith.constant dense<0xFF800000> : vector<2x17xf32>
    %67 = vector.multi_reduction <maximumf>, %66, %cst_25 [2] : vector<2x17x17xf32> to vector<2x17xf32>
    %68 = vector.shape_cast %67 : vector<2x17xf32> to vector<2x17x1xf32>
    %69 = vector.broadcast %68 : vector<2x17x1xf32> to vector<2x17x17xf32>
    %70 = arith.subf %66, %69 : vector<2x17x17xf32>
    %71 = math.exp %70 : vector<2x17x17xf32>
    %cst_26 = arith.constant dense<0.000000e+00> : vector<2x17xf32>
    %72 = vector.multi_reduction <add>, %71, %cst_26 [2] : vector<2x17x17xf32> to vector<2x17xf32>
    %73 = vector.shape_cast %72 : vector<2x17xf32> to vector<2x17x1xf32>
    %74 = tpu.reciprocal %73 {approx = true} : vector<2x17x1xf32> -> vector<2x17x1xf32>
    %75 = vector.broadcast %74 : vector<2x17x1xf32> to vector<2x17x17xf32>
    %76 = arith.mulf %71, %75 : vector<2x17x17xf32>
    %77 = arith.truncf %76 : vector<2x17x17xf32> to vector<2x17x17xbf16>
    "tpu.trace_start"() <{level = 10 : i32, message = "bqk,bkd->bqd"}> : () -> ()
    %cst_27 = arith.constant dense<0.000000e+00> : vector<2x17x16xf32>
    %78 = tpu.matmul %77, %65, %cst_27 {dimension_numbers = #tpu.dot_dimension_numbers<[2], [1], [1], [2], [0, 0, 0, 1, 1, 2], [0], [0]>} : vector<2x17x17xbf16>, vector<2x17x16xbf16>, vector<2x17x16xf32> -> vector<2x17x16xf32>
    "tpu.trace_stop"() : () -> ()
    %79 = vector.shape_cast %78 : vector<2x17x16xf32> to vector<34x16xf32>
    %80 = arith.truncf %79 : vector<34x16xf32> to vector<34x16xbf16>
    %81 = vector.extract_strided_slice %32 {offsets = [16, 0], sizes = [16, 32], strides = [1, 1]} : vector<32x32xbf16> to vector<16x32xbf16>
    %cst_28 = arith.constant dense<0.000000e+00> : vector<34x32xf32>
    %82 = tpu.matmul %80, %81, %cst_28 {dimension_numbers = #tpu.dot_dimension_numbers<[1], [0], [0], [1], [0, 0, 1, 1], [], []>} : vector<34x16xbf16>, vector<16x32xbf16>, vector<34x32xf32> -> vector<34x32xf32>
    %83 = arith.addf %57, %82 : vector<34x32xf32>
    %84 = arith.addf %2, %83 : vector<34x32xf32>
    %c0_29 = arith.constant 0 : index
    %c0_30 = arith.constant 0 : index
    %85 = vector.load %arg7[%c0_29, %c0_30] : memref<1x32xf32, #tpu.memory_space<vmem>>, vector<1x32xf32>
    %86 = vector.broadcast %85 : vector<1x32xf32> to vector<34x32xf32>
    %87 = arith.addf %84, %86 : vector<34x32xf32>
    %c0_31 = arith.constant 0 : index
    %c0_32 = arith.constant 0 : index
    %88 = vector.load %arg8[%c0_31, %c0_32] : memref<1x32xf32, #tpu.memory_space<vmem>>, vector<1x32xf32>
    %c0_33 = arith.constant 0 : index
    %c0_34 = arith.constant 0 : index
    %89 = vector.load %arg9[%c0_33, %c0_34] : memref<1x32xf32, #tpu.memory_space<vmem>>, vector<1x32xf32>
    %cst_35 = arith.constant dense<0.000000e+00> : vector<34xf32>
    %90 = vector.multi_reduction <add>, %87, %cst_35 [1] : vector<34x32xf32> to vector<34xf32>
    %91 = vector.shape_cast %90 : vector<34xf32> to vector<34x1xf32>
    %cst_36 = arith.constant 3.200000e+01 : f32
    %92 = vector.broadcast %cst_36 : f32 to vector<34x1xf32>
    %93 = arith.divf %91, %92 : vector<34x1xf32>
    %94 = vector.broadcast %93 : vector<34x1xf32> to vector<34x32xf32>
    %95 = arith.subf %87, %94 : vector<34x32xf32>
    %96 = arith.mulf %95, %95 : vector<34x32xf32>
    %cst_37 = arith.constant dense<0.000000e+00> : vector<34xf32>
    %97 = vector.multi_reduction <add>, %96, %cst_37 [1] : vector<34x32xf32> to vector<34xf32>
    %98 = vector.shape_cast %97 : vector<34xf32> to vector<34x1xf32>
    %cst_38 = arith.constant 3.200000e+01 : f32
    %99 = vector.broadcast %cst_38 : f32 to vector<34x1xf32>
    %100 = arith.divf %98, %99 : vector<34x1xf32>
    %cst_39 = arith.constant 9.99999997E-7 : f32
    %101 = vector.broadcast %cst_39 : f32 to vector<34x1xf32>
    %102 = arith.addf %100, %101 : vector<34x1xf32>
    %103 = math.rsqrt %102 : vector<34x1xf32>
    %104 = vector.broadcast %103 : vector<34x1xf32> to vector<34x32xf32>
    %105 = arith.mulf %95, %104 : vector<34x32xf32>
    %106 = vector.broadcast %88 : vector<1x32xf32> to vector<34x32xf32>
    %107 = arith.mulf %105, %106 : vector<34x32xf32>
    %108 = vector.broadcast %89 : vector<1x32xf32> to vector<34x32xf32>
    %109 = arith.addf %107, %108 : vector<34x32xf32>
    %110 = arith.truncf %109 : vector<34x32xf32> to vector<34x32xbf16>
    %c0_40 = arith.constant 0 : index
    %c0_41 = arith.constant 0 : index
    %111 = vector.load %arg10[%c0_40, %c0_41] : memref<32x128xbf16, #tpu.memory_space<vmem>>, vector<32x128xbf16>
    %cst_42 = arith.constant dense<0.000000e+00> : vector<34x128xf32>
    %112 = tpu.matmul %110, %111, %cst_42 {dimension_numbers = #tpu.dot_dimension_numbers<[1], [0], [0], [1], [0, 0, 1, 1], [], []>} : vector<34x32xbf16>, vector<32x128xbf16>, vector<34x128xf32> -> vector<34x128xf32>
    %c0_43 = arith.constant 0 : index
    %c0_44 = arith.constant 0 : index
    %113 = vector.load %arg11[%c0_43, %c0_44] : memref<1x128xf32, #tpu.memory_space<vmem>>, vector<1x128xf32>
    %114 = vector.broadcast %113 : vector<1x128xf32> to vector<34x128xf32>
    %115 = arith.addf %112, %114 : vector<34x128xf32>
    %116 = arith.mulf %115, %115 : vector<34x128xf32>
    %117 = arith.mulf %115, %116 : vector<34x128xf32>
    %cst_45 = arith.constant 4.471500e-02 : f32
    %118 = vector.broadcast %cst_45 : f32 to vector<34x128xf32>
    %119 = arith.mulf %118, %117 : vector<34x128xf32>
    %120 = arith.addf %115, %119 : vector<34x128xf32>
    %cst_46 = arith.constant 0.797884583 : f32
    %121 = vector.broadcast %cst_46 : f32 to vector<34x128xf32>
    %122 = arith.mulf %121, %120 : vector<34x128xf32>
    %123 = math.tanh %122 : vector<34x128xf32>
    %cst_47 = arith.constant 1.000000e+00 : f32
    %124 = vector.broadcast %cst_47 : f32 to vector<34x128xf32>
    %125 = arith.addf %124, %123 : vector<34x128xf32>
    %cst_48 = arith.constant 5.000000e-01 : f32
    %126 = vector.broadcast %cst_48 : f32 to vector<34x128xf32>
    %127 = arith.mulf %126, %125 : vector<34x128xf32>
    %128 = arith.mulf %115, %127 : vector<34x128xf32>
    %129 = arith.truncf %128 : vector<34x128xf32> to vector<34x128xbf16>
    %c0_49 = arith.constant 0 : index
    %c0_50 = arith.constant 0 : index
    %130 = vector.load %arg12[%c0_49, %c0_50] : memref<128x32xbf16, #tpu.memory_space<vmem>>, vector<128x32xbf16>
    %cst_51 = arith.constant dense<0.000000e+00> : vector<34x32xf32>
    %131 = tpu.matmul %129, %130, %cst_51 {dimension_numbers = #tpu.dot_dimension_numbers<[1], [0], [0], [1], [0, 0, 1, 1], [], []>} : vector<34x128xbf16>, vector<128x32xbf16>, vector<34x32xf32> -> vector<34x32xf32>
    %c0_52 = arith.constant 0 : index
    %c0_53 = arith.constant 0 : index
    %132 = vector.load %arg13[%c0_52, %c0_53] : memref<1x32xf32, #tpu.memory_space<vmem>>, vector<1x32xf32>
    %133 = vector.broadcast %132 : vector<1x32xf32> to vector<34x32xf32>
    %134 = arith.addf %131, %133 : vector<34x32xf32>
    %135 = arith.addf %87, %134 : vector<34x32xf32>
    %136 = vector.shape_cast %135 : vector<34x32xf32> to vector<2x17x32xf32>
    %137 = vector.extract_strided_slice %136 {offsets = [0, 0, 0], sizes = [2, 1, 32], strides = [1, 1, 1]} : vector<2x17x32xf32> to vector<2x1x32xf32>
    %138 = vector.shape_cast %137 : vector<2x1x32xf32> to vector<2x32xf32>
    %c0_54 = arith.constant 0 : index
    %c0_55 = arith.constant 0 : index
    %139 = vector.load %arg14[%c0_54, %c0_55] : memref<1x32xf32, #tpu.memory_space<vmem>>, vector<1x32xf32>
    %c0_56 = arith.constant 0 : index
    %c0_57 = arith.constant 0 : index
    %140 = vector.load %arg15[%c0_56, %c0_57] : memref<1x32xf32, #tpu.memory_space<vmem>>, vector<1x32xf32>
    %cst_58 = arith.constant dense<0.000000e+00> : vector<2xf32>
    %141 = vector.multi_reduction <add>, %138, %cst_58 [1] : vector<2x32xf32> to vector<2xf32>
    %142 = vector.shape_cast %141 : vector<2xf32> to vector<2x1xf32>
    %cst_59 = arith.constant 3.200000e+01 : f32
    %143 = vector.broadcast %cst_59 : f32 to vector<2x1xf32>
    %144 = arith.divf %142, %143 : vector<2x1xf32>
    %145 = vector.broadcast %144 : vector<2x1xf32> to vector<2x32xf32>
    %146 = arith.subf %138, %145 : vector<2x32xf32>
    %147 = arith.mulf %146, %146 : vector<2x32xf32>
    %cst_60 = arith.constant dense<0.000000e+00> : vector<2xf32>
    %148 = vector.multi_reduction <add>, %147, %cst_60 [1] : vector<2x32xf32> to vector<2xf32>
    %149 = vector.shape_cast %148 : vector<2xf32> to vector<2x1xf32>
    %cst_61 = arith.constant 3.200000e+01 : f32
    %150 = vector.broadcast %cst_61 : f32 to vector<2x1xf32>
    %151 = arith.divf %149, %150 : vector<2x1xf32>
    %cst_62 = arith.constant 9.99999997E-7 : f32
    %152 = vector.broadcast %cst_62 : f32 to vector<2x1xf32>
    %153 = arith.addf %151, %152 : vector<2x1xf32>
    %154 = math.rsqrt %153 : vector<2x1xf32>
    %155 = vector.broadcast %154 : vector<2x1xf32> to vector<2x32xf32>
    %156 = arith.mulf %146, %155 : vector<2x32xf32>
    %157 = vector.broadcast %139 : vector<1x32xf32> to vector<2x32xf32>
    %158 = arith.mulf %156, %157 : vector<2x32xf32>
    %159 = vector.broadcast %140 : vector<1x32xf32> to vector<2x32xf32>
    %160 = arith.addf %158, %159 : vector<2x32xf32>
    %c0_63 = arith.constant 0 : index
    %c0_64 = arith.constant 0 : index
    %161 = vector.load %arg16[%c0_63, %c0_64] : memref<2x32xf32, #tpu.memory_space<vmem>>, vector<2x32xf32>
    tpu.vector_store %arg16[%c0_63, %c0_64], %160 {strides = array<i32>} : memref<2x32xf32, #tpu.memory_space<vmem>>, vector<2x32xf32>,
    return
  }
  func.func @transform_0(%arg0: i32) -> (i32, i32, i32) {
    %c0_i32 = arith.constant 0 : i32
    %c0_i32_0 = arith.constant 0 : i32
    %c0_i32_1 = arith.constant 0 : i32
    %c0_i32_2 = arith.constant 0 : i32
    return %c0_i32, %c0_i32_0, %c0_i32_1 : i32, i32, i32
  }
  func.func @transform_1(%arg0: i32) -> (i32, i32) {
    %c0_i32 = arith.constant 0 : i32
    %c0_i32_0 = arith.constant 0 : i32
    %c0_i32_1 = arith.constant 0 : i32
    return %c0_i32, %c0_i32_0 : i32, i32
  }
  func.func @transform_2(%arg0: i32) -> (i32, i32) {
    %c0_i32 = arith.constant 0 : i32
    %c0_i32_0 = arith.constant 0 : i32
    %c0_i32_1 = arith.constant 0 : i32
    return %c0_i32, %c0_i32_0 : i32, i32
  }
  func.func @transform_3(%arg0: i32) -> (i32, i32) {
    %c0_i32 = arith.constant 0 : i32
    %c0_i32_0 = arith.constant 0 : i32
    %c0_i32_1 = arith.constant 0 : i32
    return %c0_i32, %c0_i32_0 : i32, i32
  }
  func.func @transform_4(%arg0: i32) -> (i32, i32) {
    %c0_i32 = arith.constant 0 : i32
    %c0_i32_0 = arith.constant 0 : i32
    %c0_i32_1 = arith.constant 0 : i32
    return %c0_i32, %c0_i32_0 : i32, i32
  }
  func.func @transform_5(%arg0: i32) -> (i32, i32) {
    %c0_i32 = arith.constant 0 : i32
    %c0_i32_0 = arith.constant 0 : i32
    %c0_i32_1 = arith.constant 0 : i32
    return %c0_i32, %c0_i32_0 : i32, i32
  }
  func.func @transform_6(%arg0: i32) -> (i32, i32) {
    %c0_i32 = arith.constant 0 : i32
    %c0_i32_0 = arith.constant 0 : i32
    %c0_i32_1 = arith.constant 0 : i32
    return %c0_i32, %c0_i32_0 : i32, i32
  }
  func.func @transform_7(%arg0: i32) -> (i32, i32) {
    %c0_i32 = arith.constant 0 : i32
    %c0_i32_0 = arith.constant 0 : i32
    %c0_i32_1 = arith.constant 0 : i32
    return %c0_i32, %c0_i32_0 : i32, i32
  }
  func.func @transform_8(%arg0: i32) -> (i32, i32) {
    %c0_i32 = arith.constant 0 : i32
    %c0_i32_0 = arith.constant 0 : i32
    %c0_i32_1 = arith.constant 0 : i32
    return %c0_i32, %c0_i32_0 : i32, i32
  }
  func.func @transform_9(%arg0: i32) -> (i32, i32) {
    %c0_i32 = arith.constant 0 : i32
    %c0_i32_0 = arith.constant 0 : i32
    %c0_i32_1 = arith.constant 0 : i32
    return %c0_i32, %c0_i32_0 : i32, i32
  }
  func.func @transform_10(%arg0: i32) -> (i32, i32) {
    %c0_i32 = arith.constant 0 : i32
    %c0_i32_0 = arith.constant 0 : i32
    %c0_i32_1 = arith.constant 0 : i32
    return %c0_i32, %c0_i32_0 : i32, i32
  }
  func.func @transform_11(%arg0: i32) -> (i32, i32) {
    %c0_i32 = arith.constant 0 : i32
    %c0_i32_0 = arith.constant 0 : i32
    %c0_i32_1 = arith.constant 0 : i32
    return %c0_i32, %c0_i32_0 : i32, i32
  }
  func.func @transform_12(%arg0: i32) -> (i32, i32) {
    %c0_i32 = arith.constant 0 : i32
    %c0_i32_0 = arith.constant 0 : i32
    %c0_i32_1 = arith.constant 0 : i32
    return %c0_i32, %c0_i32_0 : i32, i32
  }
  func.func @transform_13(%arg0: i32) -> (i32, i32) {
    %c0_i32 = arith.constant 0 : i32
    %c0_i32_0 = arith.constant 0 : i32
    %c0_i32_1 = arith.constant 0 : i32
    return %c0_i32, %c0_i32_0 : i32, i32
  }
  func.func @transform_14(%arg0: i32) -> (i32, i32) {
    %c0_i32 = arith.constant 0 : i32
    %c0_i32_0 = arith.constant 0 : i32
    %c0_i32_1 = arith.constant 0 : i32
    return %c0_i32, %c0_i32_0 : i32, i32
  }
  func.func @transform_15(%arg0: i32) -> (i32, i32) {
    %c0_i32 = arith.constant 0 : i32
    %c0_i32_0 = arith.constant 0 : i32
    %c0_i32_1 = arith.constant 0 : i32
    return %c0_i32, %c0_i32_0 : i32, i32
  }
}

</mosaic_0001>

<llo_original>
// kernel: vit_forward.3
$region0: #{vit_forward.3}
  #allocation0 [shape = 'u32[]', space=smem, size = 0x4, offset = 0x4, fixed_abs, tag = 'smem constant byte address 0x4 - core index']
  #allocation1 [shape = 'u32[72,128]{1,0:T(1,128)}', space=vmem, size = 0x9000, scoped, tag = 'internal scratch']
  %s0 = inlined_call_operand.vmem [shape: bf16[2,16,48], index: 0, kind: input, shape index: {}]
  %s1 = inlined_call_operand.vmem [shape: bf16[48,32], index: 1, kind: input, shape index: {}]
  %s2 = inlined_call_operand.vmem [shape: f32[1,32], index: 2, kind: input, shape index: {}]
  %s3 = inlined_call_operand.vmem [shape: f32[17,32], index: 3, kind: input, shape index: {}]
  %s4 = inlined_call_operand.vmem [shape: f32[1,32], index: 4, kind: input, shape index: {}]
  %s5 = inlined_call_operand.vmem [shape: bf16[2,17,32], index: 5, kind: output, shape index: {}]
  %s6 = sld [smem:[#allocation0]]
  $region30: #{vit_forward.3} parent=0
    _
  %s8 = ssub.s32 1, %s6
  %s9 = scalar_select 0, %s8, %s6
  // Predicated region
  $region2: #{vit_forward.3} parent=0 // pred_check
    _
  $region3: #{vit_forward.3} parent=0 // pred_check_branch
    %11 = sbr.rel (0) target = $region5
  $region4: #{vit_forward.3} parent=0 // pred_region
    _
  $region5: #{vit_forward.3} parent=0 // pred_fallthru
    _
  // Predicated region
  $region6: #{vit_forward.3} parent=0 // pred_check
    _
  $region7: #{vit_forward.3} parent=0 // pred_check_branch
    %13 = sbr.rel (0) target = $region9
  $region8: #{vit_forward.3} parent=0 // pred_region
    _
  $region9: #{vit_forward.3} parent=0 // pred_fallthru
    _
  // Predicated region
  $region10: #{vit_forward.3} parent=0 // pred_check
    _
  $region11: #{vit_forward.3} parent=0 // pred_check_branch
    %15 = sbr.rel (0) target = $region13
  $region12: #{vit_forward.3} parent=0 // pred_region
    _
  $region13: #{vit_forward.3} parent=0 // pred_fallthru
    _
  // Predicated region
  $region14: #{vit_forward.3} parent=0 // pred_check
    _
  $region15: #{vit_forward.3} parent=0 // pred_check_branch
    %17 = sbr.rel (0) target = $region17
  $region16: #{vit_forward.3} parent=0 // pred_region
    _
  $region17: #{vit_forward.3} parent=0 // pred_fallthru
    _
  // Predicated region
  $region18: #{vit_forward.3} parent=0 // pred_check
    _
  $region19: #{vit_forward.3} parent=0 // pred_check_branch
    %19 = sbr.rel (0) target = $region21
  $region20: #{vit_forward.3} parent=0 // pred_region
    _
  $region21: #{vit_forward.3} parent=0 // pred_fallthru
    _
  %v21 = vld [vmem:[%s0] sm:$0xf]
  %v22 = vld [vmem:[%s0 + $0x4] sm:$0xf]
  %v23 = vld [vmem:[%s0 + $0x8] sm:$0xf]
  %v24 = vld [vmem:[%s0 + $0xc] sm:$0xf]
  %v25 = vld [vmem:[%s1] sm:$0xf]
  %v26 = vld [vmem:[%s1 + $0x4] sm:$0xf]
  %v27 = vld [vmem:[%s1 + $0x8] sm:$0xf]
  %v28 = vld [vmem:[%s1 + $0xc] sm:$0xf]
  %v29 = vld [vmem:[%s1 + $0x10] sm:$0xf]
  %v30 = vld [vmem:[%s1 + $0x14] sm:$0xf]
  %v35 = vunpack.c.l.b16 %v21
  %v36 = vunpack.c.l.b16 %v22
  %v37 = vunpack.c.l.b16 %v23
  %v38 = vunpack.c.l.b16 %v24
  %v39 = vpack.c.b16 %v36, %v35
  %v40 = vpack.c.b16 %v38, %v37
  %v47 = vunpack.c.l.b16 %v25
  %v48 = vunpack.c.l.b16 %v26
  %v49 = vunpack.c.l.b16 %v27
  %v50 = vunpack.c.l.b16 %v28
  %v51 = vunpack.c.l.b16 %v29
  %v52 = vunpack.c.l.b16 %v30
  %v53 = vpack.c.b16 %v48, %v47
  %v54 = vpack.c.b16 %v50, %v49
  %v55 = vpack.c.b16 %v52, %v51
  %vm59 = vcmask 392192
  %v61 = vsel %vm59, %v39, 0
  %v64 = vsel %vm59, %v40, 0
  %66 = vmatpush.bf16.msra.mxu0 0
  %67 = vmatpush.bf16.msra.mxu0 0
  %68 = vmatpush.bf16.msra.mxu0 0
  %69 = vmatpush.bf16.msra.mxu0 0
  %70 = vmatpush.bf16.msra.mxu0 0
  %71 = vmatpush.bf16.msra.mxu0 %v55
  %72 = vmatpush.bf16.msra.mxu0 %v54
  %73 = vmatpush.bf16.msra.mxu0 %v53
  %74 = vmatmul.bf16.gmra.mxu0 %v61
  %v75 = vpop.f32.mrf.mxu0
  %v76 = vadd.f32 0.0, %v75
  %v77 = vpop.f32.mrf.mxu0
  %v78 = vadd.f32 0.0, %v77
  %79 = vmatmul.bf16.gmra.mxu0 %v64
  %v80 = vpop.f32.mrf.mxu0
  %v81 = vadd.f32 0.0, %v80
  %v82 = vpop.f32.mrf.mxu0
  %v83 = vadd.f32 0.0, %v82
  %84 = vdwg.mxu0
  %v85 = vld [vmem:[%s3] sm:$0xff]
  %v86 = vld [vmem:[%s3 + $0x8] sm:$0xff]
  %v87 = vld [vmem:[%s3 + $0x10] sm:$0x1]
  %v88 = vld [vmem:[%s2] sm:$0x1]
  %v90 = vperm.slane %v88, 0
  %v92 = vadd.f32 %v90, %v85
  %v93 = vadd.f32 %v90, %v86
  %v94 = vadd.f32 %v90, %v87
  %vm98 = vcmask 1046528
  %v99 = vrot.slane %v92, 1
  %v100 = vrot.slane %v93, 1
  %v101 = vsel %vm98, %v99, %v100
  %v102 = vrot.slane %v94, 1
  %v103 = vsel %vm98, %v100, %v102
  %v106 = vadd.f32 %v76, %v101
  %v107 = vadd.f32 %v78, %v103
  %v108 = vadd.f32 %v81, %v101
  %v109 = vadd.f32 %v83, %v103
  %v110 = vld [vmem:[%s4] sm:$0x1]
  %v111 = vadd.f32 %v110, %v85
  %v112 = vpack.c.bf16 %v111, %v111
  %vm113 = vcmask 253952
  %vm114 = vsmask.f32 256
  %vm115 = vmand %vm113, %vm114
  %v116 = vld [vmem:[%s5] sm:$0x1]
  %v117 = vsel %vm115, %v112, %v116
  %118 = vst [vmem:[%s5] sm:$0x1] %v117
  %v119 = vld [vmem:[%s5 + $0xc] sm:$0x1]
  %v120 = vsel %vm115, %v112, %v119
  %121 = vst [vmem:[%s5 + $0xc] sm:$0x1] %v120
  %v122 = vpack.c.bf16 %v106, %v106
  %v123 = vpack.c.bf16 %v107, %v107
  %v124 = vpack.c.bf16 %v108, %v108
  %v125 = vpack.c.bf16 %v109, %v109
  %vm126 = vsmask.f32 4368
  %vm127 = vmor %vm114, %vm126
  %v129 = vshrl.u32 %v122, 16
  %v131 = vrot.slane %v129, 7
  %v132 = vshll.u32 %v122, 16
  %v134 = vor.u32 %v131, %v132
  %v135 = vrot.slane %v131, 4
  %v137 = vshrl.u32 %v123, 16
  %v139 = vrot.slane %v137, 7
  %v140 = vshll.u32 %v123, 16
  %v142 = vor.u32 %v139, %v140
  %v143 = vsel %vm127, %v135, %v142
  %v144 = vrot.slane %v139, 4
  %v146 = vshrl.u32 %v124, 16
  %v148 = vrot.slane %v146, 7
  %v149 = vshll.u32 %v124, 16
  %v151 = vor.u32 %v148, %v149
  %v152 = vrot.slane %v148, 4
  %v154 = vshrl.u32 %v125, 16
  %v156 = vrot.slane %v154, 7
  %v157 = vshll.u32 %v125, 16
  %v159 = vor.u32 %v156, %v157
  %v160 = vsel %vm127, %v152, %v159
  %v161 = vrot.slane %v156, 4
  %vm168 = vcmask 257024
  %vm169 = vsmask.f32 7938
  %vm170 = vmand %vm168, %vm169
  %v171 = vld [vmem:[%s5] sm:$0xf]
  %v172 = vsel %vm170, %v134, %v171
  %173 = vst [vmem:[%s5] sm:$0xf] %v172
  %vm174 = vcmask 257024
  %175 = vst.msk [vmem:[%s5 + $0x4] sm:$0xf] %vm174, %v143
  %v176 = vld [vmem:[%s5 + $0x8] sm:$0x1]
  %v177 = vsel %vm115, %v144, %v176
  %178 = vst [vmem:[%s5 + $0x8] sm:$0x1] %v177
  %v179 = vld [vmem:[%s5 + $0xc] sm:$0xf]
  %v180 = vsel %vm170, %v151, %v179
  %181 = vst [vmem:[%s5 + $0xc] sm:$0xf] %v180
  %182 = vst.msk [vmem:[%s5 + $0x10] sm:$0xf] %vm174, %v160
  %v183 = vld [vmem:[%s5 + $0x14] sm:$0x1]
  %v184 = vsel %vm115, %v161, %v183
  %185 = vst [vmem:[%s5 + $0x14] sm:$0x1] %v184
  // Predicated region
  $region22: #{vit_forward.3} parent=0 // pred_check
    _
  $region23: #{vit_forward.3} parent=0 // pred_check_branch
    %187 = sbr.rel (0) target = $region25
  $region24: #{vit_forward.3} parent=0 // pred_region
    _
  $region25: #{vit_forward.3} parent=0 // pred_fallthru
    _
  // Predicated region
  $region26: #{vit_forward.3} parent=0 // pred_check
    _
  $region27: #{vit_forward.3} parent=0 // pred_check_branch
    %189 = sbr.rel (0) target = $region29
  $region28: #{vit_forward.3} parent=0 // pred_region
    _
  $region29: #{vit_forward.3} parent=0 // pred_fallthru
    _

// kernel: vit_forward.5
$region0: #{vit_forward.5}
  #allocation0 [shape = 'u32[]', space=smem, size = 0x4, offset = 0x4, fixed_abs, tag = 'smem constant byte address 0x4 - core index']
  #allocation1 [shape = 'u32[72,128]{1,0:T(1,128)}', space=vmem, size = 0x9000, scoped, tag = 'internal scratch']
  %s0 = inlined_call_operand.vmem [shape: bf16[2,17,32], index: 0, kind: input, shape index: {}]
  %s1 = inlined_call_operand.vmem [shape: f32[1,32], index: 1, kind: input, shape index: {}]
  %s2 = inlined_call_operand.vmem [shape: f32[1,32], index: 2, kind: input, shape index: {}]
  %s3 = inlined_call_operand.vmem [shape: bf16[32,96], index: 3, kind: input, shape index: {}]
  %s4 = inlined_call_operand.vmem [shape: f32[1,96], index: 4, kind: input, shape index: {}]
  %s5 = inlined_call_operand.vmem [shape: bf16[32,32], index: 5, kind: input, shape index: {}]
  %s6 = inlined_call_operand.vmem [shape: f32[1,32], index: 6, kind: input, shape index: {}]
  %s7 = inlined_call_operand.vmem [shape: f32[1,32], index: 7, kind: input, shape index: {}]
  %s8 = inlined_call_operand.vmem [shape: f32[1,32], index: 8, kind: input, shape index: {}]
  %s9 = inlined_call_operand.vmem [shape: bf16[32,128], index: 9, kind: input, shape index: {}]
  %s10 = inlined_call_operand.vmem [shape: f32[1,128], index: 10, kind: input, shape index: {}]
  %s11 = inlined_call_operand.vmem [shape: bf16[128,32], index: 11, kind: input, shape index: {}]
  %s12 = inlined_call_operand.vmem [shape: f32[1,32], index: 12, kind: input, shape index: {}]
  %s13 = inlined_call_operand.vmem [shape: f32[1,32], index: 13, kind: input, shape index: {}]
  %s14 = inlined_call_operand.vmem [shape: f32[1,32], index: 14, kind: input, shape index: {}]
  %s15 = inlined_call_operand.hbm [shape: f32[2,32], index: 15, kind: output, shape index: {}]
  %s16 = sld [smem:[#allocation0]]
  $region70: #{vit_forward.5} parent=0
    _
  %s18 = ssub.s32 1, %s16
  %s19 = scalar_select 0, %s18, %s16
  $region1: #{vit_forward.5} parent=0
    #allocation2 [shape = 'u8[1024]{0}', space=vmem, size = 0x400, scoped, tag = 'output window, operand 0, single buffered']
    #allocation3 [shape = 's32[1]{0}', space=sflag, size = 0x4, scoped, tag = 'scoped memory for vit_forward.5']
    %20 = vsyncpa [#allocation3], 0
    // Predicated region
    $region2: #{vit_forward.5} parent=1 // pred_check
      _
    $region3: #{vit_forward.5} parent=1 // pred_check_branch
      %22 = sbr.rel (0) target = $region5
    $region4: #{vit_forward.5} parent=1 // pred_region
      _
    $region5: #{vit_forward.5} parent=1 // pred_fallthru
      _
    // Predicated region
    $region6: #{vit_forward.5} parent=1 // pred_check
      _
    $region7: #{vit_forward.5} parent=1 // pred_check_branch
      %24 = sbr.rel (0) target = $region9
    $region8: #{vit_forward.5} parent=1 // pred_region
      _
    $region9: #{vit_forward.5} parent=1 // pred_fallthru
      _
    // Predicated region
    $region10: #{vit_forward.5} parent=1 // pred_check
      _
    $region11: #{vit_forward.5} parent=1 // pred_check_branch
      %26 = sbr.rel (0) target = $region13
    $region12: #{vit_forward.5} parent=1 // pred_region
      _
    $region13: #{vit_forward.5} parent=1 // pred_fallthru
      _
    // Predicated region
    $region14: #{vit_forward.5} parent=1 // pred_check
      _
    $region15: #{vit_forward.5} parent=1 // pred_check_branch
      %28 = sbr.rel (0) target = $region17
    $region16: #{vit_forward.5} parent=1 // pred_region
      _
    $region17: #{vit_forward.5} parent=1 // pred_fallthru
      _
    // Predicated region
    $region18: #{vit_forward.5} parent=1 // pred_check
      _
    $region19: #{vit_forward.5} parent=1 // pred_check_branch
      %30 = sbr.rel (0) target = $region21
    $region20: #{vit_forward.5} parent=1 // pred_region
      _
    $region21: #{vit_forward.5} parent=1 // pred_fallthru
      _
    // Predicated region
    $region22: #{vit_forward.5} parent=1 // pred_check
      _
    $region23: #{vit_forward.5} parent=1 // pred_check_branch
      %32 = sbr.rel (0) target = $region25
    $region24: #{vit_forward.5} parent=1 // pred_region
      _
    $region25: #{vit_forward.5} parent=1 // pred_fallthru
      _
    // Predicated region
    $region26: #{vit_forward.5} parent=1 // pred_check
      _
    $region27: #{vit_forward.5} parent=1 // pred_check_branch
      %34 = sbr.rel (0) target = $region29
    $region28: #{vit_forward.5} parent=1 // pred_region
      _
    $region29: #{vit_forward.5} parent=1 // pred_fallthru
      _
    // Predicated region
    $region30: #{vit_forward.5} parent=1 // pred_check
      _
    $region31: #{vit_forward.5} parent=1 // pred_check_branch
      %36 = sbr.rel (0) target = $region33
    $region32: #{vit_forward.5} parent=1 // pred_region
      _
    $region33: #{vit_forward.5} parent=1 // pred_fallthru
      _
    // Predicated region
    $region34: #{vit_forward.5} parent=1 // pred_check
      _
    $region35: #{vit_forward.5} parent=1 // pred_check_branch
      %38 = sbr.rel (0) target = $region37
    $region36: #{vit_forward.5} parent=1 // pred_region
      _
    $region37: #{vit_forward.5} parent=1 // pred_fallthru
      _
    // Predicated region
    $region38: #{vit_forward.5} parent=1 // pred_check
      _
    $region39: #{vit_forward.5} parent=1 // pred_check_branch
      %40 = sbr.rel (0) target = $region41
    $region40: #{vit_forward.5} parent=1 // pred_region
      _
    $region41: #{vit_forward.5} parent=1 // pred_fallthru
      _
    // Predicated region
    $region42: #{vit_forward.5} parent=1 // pred_check
      _
    $region43: #{vit_forward.5} parent=1 // pred_check_branch
      %42 = sbr.rel (0) target = $region45
    $region44: #{vit_forward.5} parent=1 // pred_region
      _
    $region45: #{vit_forward.5} parent=1 // pred_fallthru
      _
    // Predicated region
    $region46: #{vit_forward.5} parent=1 // pred_check
      _
    $region47: #{vit_forward.5} parent=1 // pred_check_branch
      %44 = sbr.rel (0) target = $region49
    $region48: #{vit_forward.5} parent=1 // pred_region
      _
    $region49: #{vit_forward.5} parent=1 // pred_fallthru
      _
    // Predicated region
    $region50: #{vit_forward.5} parent=1 // pred_check
      _
    $region51: #{vit_forward.5} parent=1 // pred_check_branch
      %46 = sbr.rel (0) target = $region53
    $region52: #{vit_forward.5} parent=1 // pred_region
      _
    $region53: #{vit_forward.5} parent=1 // pred_fallthru
      _
    // Predicated region
    $region54: #{vit_forward.5} parent=1 // pred_check
      _
    $region55: #{vit_forward.5} parent=1 // pred_check_branch
      %48 = sbr.rel (0) target = $region57
    $region56: #{vit_forward.5} parent=1 // pred_region
      _
    $region57: #{vit_forward.5} parent=1 // pred_fallthru
      _
    // Predicated region
    $region58: #{vit_forward.5} parent=1 // pred_check
      _
    $region59: #{vit_forward.5} parent=1 // pred_check_branch
      %50 = sbr.rel (0) target = $region61
    $region60: #{vit_forward.5} parent=1 // pred_region
      _
    $region61: #{vit_forward.5} parent=1 // pred_fallthru
      _
    %v52 = vld [vmem:[%s0] sm:$0xf]
    %v53 = vld [vmem:[%s0 + $0x4] sm:$0xf]
    %v54 = vld [vmem:[%s0 + $0x8] sm:$0x1]
    %v55 = vld [vmem:[%s0 + $0xc] sm:$0xf]
    %v56 = vld [vmem:[%s0 + $0x10] sm:$0xf]
    %v57 = vld [vmem:[%s0 + $0x14] sm:$0x1]
    %v58 = vunpack.c.l.bf16 %v52
    %v59 = vunpack.c.l.bf16 %v53
    %v60 = vunpack.c.l.bf16 %v54
    %v61 = vunpack.c.l.bf16 %v55
    %v62 = vunpack.c.l.bf16 %v56
    %v63 = vunpack.c.l.bf16 %v57
    %v70 = vrot.slane %v58, 1
    %v71 = vrot.slane %v58, 2
    %v72 = vrot.slane %v58, 3
    %v73 = vrot.slane %v58, 4
    %v74 = vrot.slane %v58, 5
    %v75 = vrot.slane %v58, 6
    %v76 = vrot.slane %v58, 7
    %v77 = vrot.slane %v59, 1
    %v78 = vrot.slane %v59, 2
    %v79 = vrot.slane %v59, 3
    %v80 = vrot.slane %v59, 4
    %v81 = vrot.slane %v59, 5
    %v82 = vrot.slane %v59, 6
    %v83 = vrot.slane %v59, 7
    %v84 = vrot.slane %v61, 1
    %v85 = vrot.slane %v61, 2
    %v86 = vrot.slane %v61, 3
    %v87 = vrot.slane %v61, 4
    %v88 = vrot.slane %v61, 5
    %v89 = vrot.slane %v61, 6
    %v90 = vrot.slane %v61, 7
    %v91 = vrot.slane %v62, 1
    %v92 = vrot.slane %v62, 2
    %v93 = vrot.slane %v62, 3
    %v94 = vrot.slane %v62, 4
    %v95 = vrot.slane %v62, 5
    %v96 = vrot.slane %v62, 6
    %v97 = vrot.slane %v62, 7
    %v126 = vld [vmem:[%s1] sm:$0x1]
    %v127 = vld [vmem:[%s2] sm:$0x1]
    %128 = vst [vmem:[#allocation1] ss:$9 sm:$0xff] %v58
    %s129 = scalar_lea.vmem [#allocation1], 1
    %130 = vst [vmem:[%s129] ss:$9 sm:$0xff] %v70
    %s131 = scalar_lea.vmem [#allocation1], 2
    %132 = vst [vmem:[%s131] ss:$9 sm:$0xff] %v71
    %s133 = scalar_lea.vmem [#allocation1], 3
    %134 = vst [vmem:[%s133] ss:$9 sm:$0xff] %v72
    %s135 = scalar_lea.vmem [#allocation1], 4
    %136 = vst [vmem:[%s135] ss:$9 sm:$0xff] %v73
    %s137 = scalar_lea.vmem [#allocation1], 5
    %138 = vst [vmem:[%s137] ss:$9 sm:$0xff] %v74
    %s139 = scalar_lea.vmem [#allocation1], 6
    %140 = vst [vmem:[%s139] ss:$9 sm:$0xff] %v75
    %s141 = scalar_lea.vmem [#allocation1], 7
    %142 = vst [vmem:[%s141] ss:$9 sm:$0xff] %v76
    %v143 = vld [vmem:[#allocation1] sm:$0xff]
    %144 = vst [vmem:[#allocation1] ss:$9 sm:$0xff] %v59
    %145 = vst [vmem:[%s129] ss:$9 sm:$0xff] %v77
    %146 = vst [vmem:[%s131] ss:$9 sm:$0xff] %v78
    %147 = vst [vmem:[%s133] ss:$9 sm:$0xff] %v79
    %148 = vst [vmem:[%s135] ss:$9 sm:$0xff] %v80
    %149 = vst [vmem:[%s137] ss:$9 sm:$0xff] %v81
    %150 = vst [vmem:[%s139] ss:$9 sm:$0xff] %v82
    %151 = vst [vmem:[%s141] ss:$9 sm:$0xff] %v83
    %v152 = vld [vmem:[#allocation1] sm:$0xff]
    %153 = vst [vmem:[#allocation1] ss:$9 sm:$0xff] %v60
    %154 = vst [vmem:[%s129] ss:$9 sm:$0xff] %v61
    %155 = vst [vmem:[%s131] ss:$9 sm:$0xff] %v84
    %156 = vst [vmem:[%s133] ss:$9 sm:$0xff] %v85
    %157 = vst [vmem:[%s135] ss:$9 sm:$0xff] %v86
    %158 = vst [vmem:[%s137] ss:$9 sm:$0xff] %v87
    %159 = vst [vmem:[%s139] ss:$9 sm:$0xff] %v88
    %160 = vst [vmem:[%s141] ss:$9 sm:$0xff] %v89
    %v161 = vld [vmem:[#allocation1] sm:$0xff]
    %162 = vst [vmem:[#allocation1] ss:$9 sm:$0xff] %v90
    %163 = vst [vmem:[%s129] ss:$9 sm:$0xff] %v62
    %164 = vst [vmem:[%s131] ss:$9 sm:$0xff] %v91
    %165 = vst [vmem:[%s133] ss:$9 sm:$0xff] %v92
    %166 = vst [vmem:[%s135] ss:$9 sm:$0xff] %v93
    %167 = vst [vmem:[%s137] ss:$9 sm:$0xff] %v94
    %168 = vst [vmem:[%s139] ss:$9 sm:$0xff] %v95
    %169 = vst [vmem:[%s141] ss:$9 sm:$0xff] %v96
    %v170 = vld [vmem:[#allocation1] sm:$0xff]
    %171 = vst [vmem:[#allocation1] ss:$9 sm:$0xff] %v97
    %172 = vst [vmem:[%s129] ss:$9 sm:$0xff] %v63
    %v173 = vld [vmem:[#allocation1] sm:$0xff]
    %vm179 = vcmask 261120
    %v180 = vsel %vm179, %v143, 0.0
    %181 = vadd.xlane.f32.xlu0 %v180
    %v182 = vpop.xlane.xlu0 %181
    %v183 = vsel %vm179, %v152, 0.0
    %184 = vadd.xlane.f32.xlu0 %v183
    %v185 = vpop.xlane.xlu0 %184
    %v186 = vsel %vm179, %v161, 0.0
    %187 = vadd.xlane.f32.xlu0 %v186
    %v188 = vpop.xlane.xlu0 %187
    %v189 = vsel %vm179, %v170, 0.0
    %190 = vadd.xlane.f32.xlu0 %v189
    %v191 = vpop.xlane.xlu0 %190
    %vm192 = vcmask 254976
    %v193 = vsel %vm192, %v173, 0.0
    %194 = vadd.xlane.f32.xlu0 %v193
    %v195 = vpop.xlane.xlu0 %194
    %v196 = vrcp.pop 32.0
    %v197 = vmul.f32 32.0, %v196
    %v198 = vsub.f32 1.0, %v197
    %v199 = vmul.f32 %v196, %v198
    %v200 = vadd.f32 %v196, %v199
    %vm201 = vweird.f32 %v196
    %v202 = vsel %vm201, %v196, %v200
    %v203 = vmul.f32 %v182, %v202
    %v204 = vmul.f32 %v185, %v202
    %v205 = vmul.f32 %v188, %v202
    %v206 = vmul.f32 %v191, %v202
    %v207 = vmul.f32 %v195, %v202
    %v213 = vperm.slane %v203, 0
    %v214 = vperm.slane %v203, 1
    %v215 = vperm.slane %v203, 2
    %v216 = vperm.slane %v203, 3
    %v217 = vperm.slane %v203, 4
    %v218 = vperm.slane %v203, 5
    %v219 = vperm.slane %v203, 6
    %v220 = vperm.slane %v203, 7
    %v221 = vperm.slane %v204, 0
    %v222 = vperm.slane %v204, 1
    %v223 = vperm.slane %v204, 2
    %v224 = vperm.slane %v204, 3
    %v225 = vperm.slane %v204, 4
    %v226 = vperm.slane %v204, 5
    %v227 = vperm.slane %v204, 6
    %v228 = vperm.slane %v204, 7
    %v229 = vperm.slane %v205, 0
    %v230 = vperm.slane %v205, 1
    %v231 = vperm.slane %v205, 2
    %v232 = vperm.slane %v205, 3
    %v233 = vperm.slane %v205, 4
    %v234 = vperm.slane %v205, 5
    %v235 = vperm.slane %v205, 6
    %v236 = vperm.slane %v205, 7
    %v237 = vperm.slane %v206, 0
    %v238 = vperm.slane %v206, 1
    %v239 = vperm.slane %v206, 2
    %v240 = vperm.slane %v206, 3
    %v241 = vperm.slane %v206, 4
    %v242 = vperm.slane %v206, 5
    %v243 = vperm.slane %v206, 6
    %v244 = vperm.slane %v206, 7
    %v245 = vperm.slane %v207, 0
    %v246 = vperm.slane %v207, 1
    %v281 = vsub.f32 %v58, %v213
    %v282 = vsub.f32 %v70, %v214
    %v283 = vsub.f32 %v71, %v215
    %v284 = vsub.f32 %v72, %v216
    %v285 = vsub.f32 %v73, %v217
    %v286 = vsub.f32 %v74, %v218
    %v287 = vsub.f32 %v75, %v219
    %v288 = vsub.f32 %v76, %v220
    %v289 = vsub.f32 %v59, %v221
    %v290 = vsub.f32 %v77, %v222
    %v291 = vsub.f32 %v78, %v223
    %v292 = vsub.f32 %v79, %v224
    %v293 = vsub.f32 %v80, %v225
    %v294 = vsub.f32 %v81, %v226
    %v295 = vsub.f32 %v82, %v227
    %v296 = vsub.f32 %v83, %v228
    %v297 = vsub.f32 %v60, %v229
    %v298 = vsub.f32 %v61, %v230
    %v299 = vsub.f32 %v84, %v231
    %v300 = vsub.f32 %v85, %v232
    %v301 = vsub.f32 %v86, %v233
    %v302 = vsub.f32 %v87, %v234
    %v303 = vsub.f32 %v88, %v235
    %v304 = vsub.f32 %v89, %v236
    %v305 = vsub.f32 %v90, %v237
    %v306 = vsub.f32 %v62, %v238
    %v307 = vsub.f32 %v91, %v239
    %v308 = vsub.f32 %v92, %v240
    %v309 = vsub.f32 %v93, %v241
    %v310 = vsub.f32 %v94, %v242
    %v311 = vsub.f32 %v95, %v243
    %v312 = vsub.f32 %v96, %v244
    %v313 = vsub.f32 %v97, %v245
    %v314 = vsub.f32 %v63, %v246
    %v315 = vmul.f32 %v281, %v281
    %v316 = vmul.f32 %v282, %v282
    %v317 = vmul.f32 %v283, %v283
    %v318 = vmul.f32 %v284, %v284
    %v319 = vmul.f32 %v285, %v285
    %v320 = vmul.f32 %v286, %v286
    %v321 = vmul.f32 %v287, %v287
    %v322 = vmul.f32 %v288, %v288
    %v323 = vmul.f32 %v289, %v289
    %v324 = vmul.f32 %v290, %v290
    %v325 = vmul.f32 %v291, %v291
    %v326 = vmul.f32 %v292, %v292
    %v327 = vmul.f32 %v293, %v293
    %v328 = vmul.f32 %v294, %v294
    %v329 = vmul.f32 %v295, %v295
    %v330 = vmul.f32 %v296, %v296
    %v331 = vmul.f32 %v297, %v297
    %v332 = vmul.f32 %v298, %v298
    %v333 = vmul.f32 %v299, %v299
    %v334 = vmul.f32 %v300, %v300
    %v335 = vmul.f32 %v301, %v301
    %v336 = vmul.f32 %v302, %v302
    %v337 = vmul.f32 %v303, %v303
    %v338 = vmul.f32 %v304, %v304
    %v339 = vmul.f32 %v305, %v305
    %v340 = vmul.f32 %v306, %v306
    %v341 = vmul.f32 %v307, %v307
    %v342 = vmul.f32 %v308, %v308
    %v343 = vmul.f32 %v309, %v309
    %v344 = vmul.f32 %v310, %v310
    %v345 = vmul.f32 %v311, %v311
    %v346 = vmul.f32 %v312, %v312
    %v347 = vmul.f32 %v313, %v313
    %v348 = vmul.f32 %v314, %v314
    %383 = vst [vmem:[#allocation1] ss:$9 sm:$0xff] %v315
    %s384 = scalar_lea.vmem [#allocation1], 1
    %385 = vst [vmem:[%s384] ss:$9 sm:$0xff] %v316
    %s386 = scalar_lea.vmem [#allocation1], 2
    %387 = vst [vmem:[%s386] ss:$9 sm:$0xff] %v317
    %s388 = scalar_lea.vmem [#allocation1], 3
    %389 = vst [vmem:[%s388] ss:$9 sm:$0xff] %v318
    %s390 = scalar_lea.vmem [#allocation1], 4
    %391 = vst [vmem:[%s390] ss:$9 sm:$0xff] %v319
    %s392 = scalar_lea.vmem [#allocation1], 5
    %393 = vst [vmem:[%s392] ss:$9 sm:$0xff] %v320
    %s394 = scalar_lea.vmem [#allocation1], 6
    %395 = vst [vmem:[%s394] ss:$9 sm:$0xff] %v321
    %s396 = scalar_lea.vmem [#allocation1], 7
    %397 = vst [vmem:[%s396] ss:$9 sm:$0xff] %v322
    %v398 = vld [vmem:[#allocation1] sm:$0xff]
    %399 = vst [vmem:[#allocation1] ss:$9 sm:$0xff] %v323
    %400 = vst [vmem:[%s384] ss:$9 sm:$0xff] %v324
    %401 = vst [vmem:[%s386] ss:$9 sm:$0xff] %v325
    %402 = vst [vmem:[%s388] ss:$9 sm:$0xff] %v326
    %403 = vst [vmem:[%s390] ss:$9 sm:$0xff] %v327
    %404 = vst [vmem:[%s392] ss:$9 sm:$0xff] %v328
    %405 = vst [vmem:[%s394] ss:$9 sm:$0xff] %v329
    %406 = vst [vmem:[%s396] ss:$9 sm:$0xff] %v330
    %v407 = vld [vmem:[#allocation1] sm:$0xff]
    %408 = vst [vmem:[#allocation1] ss:$9 sm:$0xff] %v331
    %409 = vst [vmem:[%s384] ss:$9 sm:$0xff] %v332
    %410 = vst [vmem:[%s386] ss:$9 sm:$0xff] %v333
    %411 = vst [vmem:[%s388] ss:$9 sm:$0xff] %v334
    %412 = vst [vmem:[%s390] ss:$9 sm:$0xff] %v335
    %413 = vst [vmem:[%s392] ss:$9 sm:$0xff] %v336
    %414 = vst [vmem:[%s394] ss:$9 sm:$0xff] %v337
    %415 = vst [vmem:[%s396] ss:$9 sm:$0xff] %v338
    %v416 = vld [vmem:[#allocation1] sm:$0xff]
    %417 = vst [vmem:[#allocation1] ss:$9 sm:$0xff] %v339
    %418 = vst [vmem:[%s384] ss:$9 sm:$0xff] %v340
    %419 = vst [vmem:[%s386] ss:$9 sm:$0xff] %v341
    %420 = vst [vmem:[%s388] ss:$9 sm:$0xff] %v342
    %421 = vst [vmem:[%s390] ss:$9 sm:$0xff] %v343
    %422 = vst [vmem:[%s392] ss:$9 sm:$0xff] %v344
    %423 = vst [vmem:[%s394] ss:$9 sm:$0xff] %v345
    %424 = vst [vmem:[%s396] ss:$9 sm:$0xff] %v346
    %v425 = vld [vmem:[#allocation1] sm:$0xff]
    %426 = vst [vmem:[#allocation1] ss:$9 sm:$0xff] %v347
    %427 = vst [vmem:[%s384] ss:$9 sm:$0xff] %v348
    %v428 = vld [vmem:[#allocation1] sm:$0xff]
    %v434 = vsel %vm179, %v398, 0.0
    %435 = vadd.xlane.f32.xlu0 %v434
    %v436 = vpop.xlane.xlu0 %435
    %v437 = vsel %vm179, %v407, 0.0
    %438 = vadd.xlane.f32.xlu0 %v437
    %v439 = vpop.xlane.xlu0 %438
    %v440 = vsel %vm179, %v416, 0.0
    %441 = vadd.xlane.f32.xlu0 %v440
    %v442 = vpop.xlane.xlu0 %441
    %v443 = vsel %vm179, %v425, 0.0
    %444 = vadd.xlane.f32.xlu0 %v443
    %v445 = vpop.xlane.xlu0 %444
    %v446 = vsel %vm192, %v428, 0.0
    %447 = vadd.xlane.f32.xlu0 %v446
    %v448 = vpop.xlane.xlu0 %447
    %v449 = vmul.f32 %v436, %v202
    %v450 = vmul.f32 %v439, %v202
    %v451 = vmul.f32 %v442, %v202
    %v452 = vmul.f32 %v445, %v202
    %v453 = vmul.f32 %v448, %v202
    %v454 = vadd.f32 %v449, 1e-06
    %v455 = vadd.f32 %v450, 1e-06
    %v456 = vadd.f32 %v451, 1e-06
    %v457 = vadd.f32 %v452, 1e-06
    %v458 = vadd.f32 %v453, 1e-06
    %v459 = vrsqrt.pop %v454
    %v460 = vmul.f32 %v459, %v454
    %v461 = vmul.f32 %v460, %v459
    %v462 = vmul.f32 0.5, %v461
    %v463 = vsub.f32 1.5, %v462
    %v464 = vmul.f32 %v459, %v463
    %vm465 = vweird.f32 %v454
    %vm466 = vweird.f32 %v459
    %vm467 = vmor %vm465, %vm466
    %v468 = vsel %vm467, %v459, %v464
    %v469 = vrsqrt.pop %v455
    %v470 = vmul.f32 %v469, %v455
    %v471 = vmul.f32 %v470, %v469
    %v472 = vmul.f32 0.5, %v471
    %v473 = vsub.f32 1.5, %v472
    %v474 = vmul.f32 %v469, %v473
    %vm475 = vweird.f32 %v455
    %vm476 = vweird.f32 %v469
    %vm477 = vmor %vm475, %vm476
    %v478 = vsel %vm477, %v469, %v474
    %v479 = vrsqrt.pop %v456
    %v480 = vmul.f32 %v479, %v456
    %v481 = vmul.f32 %v480, %v479
    %v482 = vmul.f32 0.5, %v481
    %v483 = vsub.f32 1.5, %v482
    %v484 = vmul.f32 %v479, %v483
    %vm485 = vweird.f32 %v456
    %vm486 = vweird.f32 %v479
    %vm487 = vmor %vm485, %vm486
    %v488 = vsel %vm487, %v479, %v484
    %v489 = vrsqrt.pop %v457
    %v490 = vmul.f32 %v489, %v457
    %v491 = vmul.f32 %v490, %v489
    %v492 = vmul.f32 0.5, %v491
    %v493 = vsub.f32 1.5, %v492
    %v494 = vmul.f32 %v489, %v493
    %vm495 = vweird.f32 %v457
    %vm496 = vweird.f32 %v489
    %vm497 = vmor %vm495, %vm496
    %v498 = vsel %vm497, %v489, %v494
    %v499 = vrsqrt.pop %v458
    %v500 = vmul.f32 %v499, %v458
    %v501 = vmul.f32 %v500, %v499
    %v502 = vmul.f32 0.5, %v501
    %v503 = vsub.f32 1.5, %v502
    %v504 = vmul.f32 %v499, %v503
    %vm505 = vweird.f32 %v458
    %vm506 = vweird.f32 %v499
    %vm507 = vmor %vm505, %vm506
    %v508 = vsel %vm507, %v499, %v504
    %v514 = vperm.slane %v468, 0
    %v515 = vperm.slane %v468, 1
    %v516 = vperm.slane %v468, 2
    %v517 = vperm.slane %v468, 3
    %v518 = vperm.slane %v468, 4
    %v519 = vperm.slane %v468, 5
    %v520 = vperm.slane %v468, 6
    %v521 = vperm.slane %v468, 7
    %v522 = vperm.slane %v478, 0
    %v523 = vperm.slane %v478, 1
    %v524 = vperm.slane %v478, 2
    %v525 = vperm.slane %v478, 3
    %v526 = vperm.slane %v478, 4
    %v527 = vperm.slane %v478, 5
    %v528 = vperm.slane %v478, 6
    %v529 = vperm.slane %v478, 7
    %v530 = vperm.slane %v488, 0
    %v531 = vperm.slane %v488, 1
    %v532 = vperm.slane %v488, 2
    %v533 = vperm.slane %v488, 3
    %v534 = vperm.slane %v488, 4
    %v535 = vperm.slane %v488, 5
    %v536 = vperm.slane %v488, 6
    %v537 = vperm.slane %v488, 7
    %v538 = vperm.slane %v498, 0
    %v539 = vperm.slane %v498, 1
    %v540 = vperm.slane %v498, 2
    %v541 = vperm.slane %v498, 3
    %v542 = vperm.slane %v498, 4
    %v543 = vperm.slane %v498, 5
    %v544 = vperm.slane %v498, 6
    %v545 = vperm.slane %v498, 7
    %v546 = vperm.slane %v508, 0
    %v547 = vperm.slane %v508, 1
    %v582 = vmul.f32 %v281, %v514
    %v583 = vmul.f32 %v282, %v515
    %v584 = vmul.f32 %v283, %v516
    %v585 = vmul.f32 %v284, %v517
    %v586 = vmul.f32 %v285, %v518
    %v587 = vmul.f32 %v286, %v519
    %v588 = vmul.f32 %v287, %v520
    %v589 = vmul.f32 %v288, %v521
    %v590 = vmul.f32 %v289, %v522
    %v591 = vmul.f32 %v290, %v523
    %v592 = vmul.f32 %v291, %v524
    %v593 = vmul.f32 %v292, %v525
    %v594 = vmul.f32 %v293, %v526
    %v595 = vmul.f32 %v294, %v527
    %v596 = vmul.f32 %v295, %v528
    %v597 = vmul.f32 %v296, %v529
    %v598 = vmul.f32 %v297, %v530
    %v599 = vmul.f32 %v298, %v531
    %v600 = vmul.f32 %v299, %v532
    %v601 = vmul.f32 %v300, %v533
    %v602 = vmul.f32 %v301, %v534
    %v603 = vmul.f32 %v302, %v535
    %v604 = vmul.f32 %v303, %v536
    %v605 = vmul.f32 %v304, %v537
    %v606 = vmul.f32 %v305, %v538
    %v607 = vmul.f32 %v306, %v539
    %v608 = vmul.f32 %v307, %v540
    %v609 = vmul.f32 %v308, %v541
    %v610 = vmul.f32 %v309, %v542
    %v611 = vmul.f32 %v310, %v543
    %v612 = vmul.f32 %v311, %v544
    %v613 = vmul.f32 %v312, %v545
    %v614 = vmul.f32 %v313, %v546
    %v615 = vmul.f32 %v314, %v547
    %v617 = vperm.slane %v126, 0
    %v619 = vrot.slane %v617, 1
    %v620 = vrot.slane %v617, 2
    %v621 = vrot.slane %v617, 3
    %v622 = vrot.slane %v617, 4
    %v623 = vrot.slane %v617, 5
    %v624 = vrot.slane %v617, 6
    %v625 = vrot.slane %v617, 7
    %v633 = vmul.f32 %v582, %v617
    %v634 = vmul.f32 %v583, %v619
    %v635 = vmul.f32 %v584, %v620
    %v636 = vmul.f32 %v585, %v621
    %v637 = vmul.f32 %v586, %v622
    %v638 = vmul.f32 %v587, %v623
    %v639 = vmul.f32 %v588, %v624
    %v640 = vmul.f32 %v589, %v625
    %v641 = vmul.f32 %v590, %v617
    %v642 = vmul.f32 %v591, %v619
    %v643 = vmul.f32 %v592, %v620
    %v644 = vmul.f32 %v593, %v621
    %v645 = vmul.f32 %v594, %v622
    %v646 = vmul.f32 %v595, %v623
    %v647 = vmul.f32 %v596, %v624
    %v648 = vmul.f32 %v597, %v625
    %v649 = vmul.f32 %v598, %v617
    %v650 = vmul.f32 %v599, %v619
    %v651 = vmul.f32 %v600, %v620
    %v652 = vmul.f32 %v601, %v621
    %v653 = vmul.f32 %v602, %v622
    %v654 = vmul.f32 %v603, %v623
    %v655 = vmul.f32 %v604, %v624
    %v656 = vmul.f32 %v605, %v625
    %v657 = vmul.f32 %v606, %v617
    %v658 = vmul.f32 %v607, %v619
    %v659 = vmul.f32 %v608, %v620
    %v660 = vmul.f32 %v609, %v621
    %v661 = vmul.f32 %v610, %v622
    %v662 = vmul.f32 %v611, %v623
    %v663 = vmul.f32 %v612, %v624
    %v664 = vmul.f32 %v613, %v625
    %v665 = vmul.f32 %v614, %v617
    %v666 = vmul.f32 %v615, %v619
    %v668 = vperm.slane %v127, 0
    %v670 = vrot.slane %v668, 1
    %v671 = vrot.slane %v668, 2
    %v672 = vrot.slane %v668, 3
    %v673 = vrot.slane %v668, 4
    %v674 = vrot.slane %v668, 5
    %v675 = vrot.slane %v668, 6
    %v676 = vrot.slane %v668, 7
    %v684 = vadd.f32 %v633, %v668
    %v685 = vadd.f32 %v634, %v670
    %v686 = vadd.f32 %v635, %v671
    %v687 = vadd.f32 %v636, %v672
    %v688 = vadd.f32 %v637, %v673
    %v689 = vadd.f32 %v638, %v674
    %v690 = vadd.f32 %v639, %v675
    %v691 = vadd.f32 %v640, %v676
    %v692 = vadd.f32 %v641, %v668
    %v693 = vadd.f32 %v642, %v670
    %v694 = vadd.f32 %v643, %v671
    %v695 = vadd.f32 %v644, %v672
    %v696 = vadd.f32 %v645, %v673
    %v697 = vadd.f32 %v646, %v674
    %v698 = vadd.f32 %v647, %v675
    %v699 = vadd.f32 %v648, %v676
    %v700 = vadd.f32 %v649, %v668
    %v701 = vadd.f32 %v650, %v670
    %v702 = vadd.f32 %v651, %v671
    %v703 = vadd.f32 %v652, %v672
    %v704 = vadd.f32 %v653, %v673
    %v705 = vadd.f32 %v654, %v674
    %v706 = vadd.f32 %v655, %v675
    %v707 = vadd.f32 %v656, %v676
    %v708 = vadd.f32 %v657, %v668
    %v709 = vadd.f32 %v658, %v670
    %v710 = vadd.f32 %v659, %v671
    %v711 = vadd.f32 %v660, %v672
    %v712 = vadd.f32 %v661, %v673
    %v713 = vadd.f32 %v662, %v674
    %v714 = vadd.f32 %v663, %v675
    %v715 = vadd.f32 %v664, %v676
    %v716 = vadd.f32 %v665, %v668
    %v717 = vadd.f32 %v666, %v670
    %752 = vst [vmem:[#allocation1] ss:$9 sm:$0xff] %v684
    %s753 = scalar_lea.vmem [#allocation1], 1
    %754 = vst [vmem:[%s753] ss:$9 sm:$0xff] %v685
    %s755 = scalar_lea.vmem [#allocation1], 2
    %756 = vst [vmem:[%s755] ss:$9 sm:$0xff] %v686
    %s757 = scalar_lea.vmem [#allocation1], 3
    %758 = vst [vmem:[%s757] ss:$9 sm:$0xff] %v687
    %s759 = scalar_lea.vmem [#allocation1], 4
    %760 = vst [vmem:[%s759] ss:$9 sm:$0xff] %v688
    %s761 = scalar_lea.vmem [#allocation1], 5
    %762 = vst [vmem:[%s761] ss:$9 sm:$0xff] %v689
    %s763 = scalar_lea.vmem [#allocation1], 6
    %764 = vst [vmem:[%s763] ss:$9 sm:$0xff] %v690
    %s765 = scalar_lea.vmem [#allocation1], 7
    %766 = vst [vmem:[%s765] ss:$9 sm:$0xff] %v691
    %v767 = vld [vmem:[#allocation1] sm:$0xff]
    %768 = vst [vmem:[#allocation1] ss:$9 sm:$0xff] %v692
    %769 = vst [vmem:[%s753] ss:$9 sm:$0xff] %v693
    %770 = vst [vmem:[%s755] ss:$9 sm:$0xff] %v694
    %771 = vst [vmem:[%s757] ss:$9 sm:$0xff] %v695
    %772 = vst [vmem:[%s759] ss:$9 sm:$0xff] %v696
    %773 = vst [vmem:[%s761] ss:$9 sm:$0xff] %v697
    %774 = vst [vmem:[%s763] ss:$9 sm:$0xff] %v698
    %775 = vst [vmem:[%s765] ss:$9 sm:$0xff] %v699
    %v776 = vld [vmem:[#allocation1] sm:$0xff]
    %777 = vst [vmem:[#allocation1] ss:$9 sm:$0xff] %v700
    %778 = vst [vmem:[%s753] ss:$9 sm:$0xff] %v701
    %779 = vst [vmem:[%s755] ss:$9 sm:$0xff] %v702
    %780 = vst [vmem:[%s757] ss:$9 sm:$0xff] %v703
    %781 = vst [vmem:[%s759] ss:$9 sm:$0xff] %v704
    %782 = vst [vmem:[%s761] ss:$9 sm:$0xff] %v705
    %783 = vst [vmem:[%s763] ss:$9 sm:$0xff] %v706
    %784 = vst [vmem:[%s765] ss:$9 sm:$0xff] %v707
    %v785 = vld [vmem:[#allocation1] sm:$0xff]
    %786 = vst [vmem:[#allocation1] ss:$9 sm:$0xff] %v708
    %787 = vst [vmem:[%s753] ss:$9 sm:$0xff] %v709
    %788 = vst [vmem:[%s755] ss:$9 sm:$0xff] %v710
    %789 = vst [vmem:[%s757] ss:$9 sm:$0xff] %v711
    %790 = vst [vmem:[%s759] ss:$9 sm:$0xff] %v712
    %791 = vst [vmem:[%s761] ss:$9 sm:$0xff] %v713
    %792 = vst [vmem:[%s763] ss:$9 sm:$0xff] %v714
    %793 = vst [vmem:[%s765] ss:$9 sm:$0xff] %v715
    %v794 = vld [vmem:[#allocation1] sm:$0xff]
    %795 = vst [vmem:[#allocation1] ss:$9 sm:$0xff] %v716
    %796 = vst [vmem:[%s753] ss:$9 sm:$0xff] %v717
    %v797 = vld [vmem:[#allocation1] sm:$0xff]
    %v803 = vpack.c.bf16 %v776, %v767
    %v804 = vpack.c.bf16 %v794, %v785
    %v805 = vpack.c.bf16 %v797, %v797
    %v806 = vld [vmem:[%s3] sm:$0xf]
    %v807 = vld [vmem:[%s3 + $0x4] sm:$0xf]
    %v808 = vld [vmem:[%s3 + $0x8] sm:$0xf]
    %v809 = vld [vmem:[%s3 + $0xc] sm:$0xf]
    %v810 = vld [vmem:[%s4] sm:$0x1]
    %v812 = vperm.slane %v810, 0
    %v818 = vunpack.c.l.b16 %v806
    %v819 = vunpack.c.l.b16 %v807
    %v820 = vunpack.c.l.b16 %v808
    %v821 = vunpack.c.l.b16 %v809
    %v822 = vpack.c.b16 %v819, %v818
    %v823 = vpack.c.b16 %v821, %v820
    %v827 = vsel %vm179, %v803, 0
    %v830 = vsel %vm179, %v804, 0
    %v833 = vsel %vm179, %v805, 0
    %835 = vmatpush.bf16.msra.mxu0 0
    %836 = vmatpush.bf16.msra.mxu0 0
    %837 = vmatpush.bf16.msra.mxu0 0
    %838 = vmatpush.bf16.msra.mxu0 0
    %839 = vmatpush.bf16.msra.mxu0 0
    %840 = vmatpush.bf16.msra.mxu0 0
    %841 = vmatpush.bf16.msra.mxu0 %v823
    %842 = vmatpush.bf16.msra.mxu0 %v822
    %843 = vmatmul.bf16.gmra.mxu0 %v827
    %v844 = vpop.f32.mrf.mxu0
    %v845 = vadd.f32 %v812, %v844
    %v846 = vpop.f32.mrf.mxu0
    %v847 = vadd.f32 %v812, %v846
    %848 = vmatmul.bf16.gmra.mxu0 %v830
    %v849 = vpop.f32.mrf.mxu0
    %v850 = vadd.f32 %v812, %v849
    %v851 = vpop.f32.mrf.mxu0
    %v852 = vadd.f32 %v812, %v851
    %853 = vmatmul.bf16.gmra.mxu0 %v833
    %v854 = vpop.f32.mrf.mxu0
    %v855 = vadd.f32 %v812, %v854
    %v856 = vpop.f32.mrf.mxu0
    %857 = vdwg.mxu0
    %v863 = vrot.slane %v845, 1
    %v864 = vrot.slane %v845, 2
    %v865 = vrot.slane %v845, 3
    %v866 = vrot.slane %v845, 4
    %v867 = vrot.slane %v845, 5
    %v868 = vrot.slane %v845, 6
    %v869 = vrot.slane %v845, 7
    %v870 = vrot.slane %v847, 1
    %v871 = vrot.slane %v847, 2
    %v872 = vrot.slane %v847, 3
    %v873 = vrot.slane %v847, 4
    %v874 = vrot.slane %v847, 5
    %v875 = vrot.slane %v847, 6
    %v876 = vrot.slane %v847, 7
    %v877 = vrot.slane %v850, 1
    %v878 = vrot.slane %v850, 2
    %v879 = vrot.slane %v850, 3
    %v880 = vrot.slane %v850, 4
    %v881 = vrot.slane %v850, 5
    %v882 = vrot.slane %v850, 6
    %v883 = vrot.slane %v850, 7
    %v884 = vrot.slane %v852, 1
    %v885 = vrot.slane %v852, 2
    %v886 = vrot.slane %v852, 3
    %v887 = vrot.slane %v852, 4
    %v888 = vrot.slane %v852, 5
    %v889 = vrot.slane %v852, 6
    %v890 = vrot.slane %v852, 7
    %v891 = vrot.slane %v855, 1
    %v921 = vld [vmem:[%s5] sm:$0xf]
    %v922 = vld [vmem:[%s5 + $0x4] sm:$0xf]
    %v923 = vld [vmem:[%s5 + $0x8] sm:$0xf]
    %v924 = vld [vmem:[%s5 + $0xc] sm:$0xf]
    %v925 = vmul.f32 %v845, 0.25
    %v926 = vmul.f32 %v863, 0.25
    %v927 = vmul.f32 %v864, 0.25
    %v928 = vmul.f32 %v865, 0.25
    %v929 = vmul.f32 %v866, 0.25
    %v930 = vmul.f32 %v867, 0.25
    %v931 = vmul.f32 %v868, 0.25
    %v932 = vmul.f32 %v869, 0.25
    %v933 = vmul.f32 %v847, 0.25
    %v934 = vmul.f32 %v870, 0.25
    %v935 = vmul.f32 %v871, 0.25
    %v936 = vmul.f32 %v872, 0.25
    %v937 = vmul.f32 %v873, 0.25
    %v938 = vmul.f32 %v874, 0.25
    %v939 = vmul.f32 %v875, 0.25
    %v940 = vmul.f32 %v876, 0.25
    %v941 = vmul.f32 %v850, 0.25
    %v942 = vmul.f32 %v877, 0.25
    %v943 = vmul.f32 %v878, 0.25
    %v944 = vmul.f32 %v879, 0.25
    %v945 = vmul.f32 %v880, 0.25
    %v946 = vmul.f32 %v881, 0.25
    %v947 = vmul.f32 %v882, 0.25
    %v948 = vmul.f32 %v883, 0.25
    %v949 = vmul.f32 %v852, 0.25
    %v950 = vmul.f32 %v884, 0.25
    %v951 = vmul.f32 %v885, 0.25
    %v952 = vmul.f32 %v886, 0.25
    %v953 = vmul.f32 %v887, 0.25
    %v954 = vmul.f32 %v888, 0.25
    %v955 = vmul.f32 %v889, 0.25
    %v956 = vmul.f32 %v890, 0.25
    %v957 = vmul.f32 %v855, 0.25
    %v958 = vmul.f32 %v891, 0.25
    %993 = vst [vmem:[#allocation1] ss:$9 sm:$0xff] %v925
    %s994 = scalar_lea.vmem [#allocation1], 1
    %995 = vst [vmem:[%s994] ss:$9 sm:$0xff] %v926
    %s996 = scalar_lea.vmem [#allocation1], 2
    %997 = vst [vmem:[%s996] ss:$9 sm:$0xff] %v927
    %s998 = scalar_lea.vmem [#allocation1], 3
    %999 = vst [vmem:[%s998] ss:$9 sm:$0xff] %v928
    %s1000 = scalar_lea.vmem [#allocation1], 4
    %1001 = vst [vmem:[%s1000] ss:$9 sm:$0xff] %v929
    %s1002 = scalar_lea.vmem [#allocation1], 5
    %1003 = vst [vmem:[%s1002] ss:$9 sm:$0xff] %v930
    %s1004 = scalar_lea.vmem [#allocation1], 6
    %1005 = vst [vmem:[%s1004] ss:$9 sm:$0xff] %v931
    %s1006 = scalar_lea.vmem [#allocation1], 7
    %1007 = vst [vmem:[%s1006] ss:$9 sm:$0xff] %v932
    %v1008 = vld [vmem:[#allocation1] sm:$0xff]
    %1009 = vst [vmem:[#allocation1] ss:$9 sm:$0xff] %v933
    %1010 = vst [vmem:[%s994] ss:$9 sm:$0xff] %v934
    %1011 = vst [vmem:[%s996] ss:$9 sm:$0xff] %v935
    %1012 = vst [vmem:[%s998] ss:$9 sm:$0xff] %v936
    %1013 = vst [vmem:[%s1000] ss:$9 sm:$0xff] %v937
    %1014 = vst [vmem:[%s1002] ss:$9 sm:$0xff] %v938
    %1015 = vst [vmem:[%s1004] ss:$9 sm:$0xff] %v939
    %1016 = vst [vmem:[%s1006] ss:$9 sm:$0xff] %v940
    %v1017 = vld [vmem:[#allocation1] sm:$0xff]
    %1018 = vst [vmem:[#allocation1] ss:$9 sm:$0xff] %v941
    %v1019 = vld [vmem:[#allocation1] sm:$0xff]
    %1020 = vst [vmem:[#allocation1] ss:$9 sm:$0xff] %v942
    %1021 = vst [vmem:[%s994] ss:$9 sm:$0xff] %v943
    %1022 = vst [vmem:[%s996] ss:$9 sm:$0xff] %v944
    %1023 = vst [vmem:[%s998] ss:$9 sm:$0xff] %v945
    %1024 = vst [vmem:[%s1000] ss:$9 sm:$0xff] %v946
    %1025 = vst [vmem:[%s1002] ss:$9 sm:$0xff] %v947
    %1026 = vst [vmem:[%s1004] ss:$9 sm:$0xff] %v948
    %1027 = vst [vmem:[%s1006] ss:$9 sm:$0xff] %v949
    %v1028 = vld [vmem:[#allocation1] sm:$0xff]
    %1029 = vst [vmem:[#allocation1] ss:$9 sm:$0xff] %v950
    %1030 = vst [vmem:[%s994] ss:$9 sm:$0xff] %v951
    %1031 = vst [vmem:[%s996] ss:$9 sm:$0xff] %v952
    %1032 = vst [vmem:[%s998] ss:$9 sm:$0xff] %v953
    %1033 = vst [vmem:[%s1000] ss:$9 sm:$0xff] %v954
    %1034 = vst [vmem:[%s1002] ss:$9 sm:$0xff] %v955
    %1035 = vst [vmem:[%s1004] ss:$9 sm:$0xff] %v956
    %1036 = vst [vmem:[%s1006] ss:$9 sm:$0xff] %v957
    %v1037 = vld [vmem:[#allocation1] sm:$0xff]
    %1038 = vst [vmem:[#allocation1] ss:$9 sm:$0xff] %v958
    %v1039 = vld [vmem:[#allocation1] sm:$0xff]
    %v1046 = vpack.c.bf16 %v1008, %v1008
    %v1047 = vpack.c.bf16 %v1017, %v1017
    %v1048 = vpack.c.bf16 %v1019, %v1019
    %v1049 = vpack.c.bf16 %v1028, %v1028
    %v1050 = vpack.c.bf16 %v1037, %v1037
    %v1051 = vpack.c.bf16 %v1039, %v1039
    %1052 = vst [vmem:[#allocation1] ss:$9 sm:$0xff] %v845
    %s1053 = scalar_lea.vmem [#allocation1], 1
    %1054 = vst [vmem:[%s1053] ss:$9 sm:$0xff] %v863
    %s1055 = scalar_lea.vmem [#allocation1], 2
    %1056 = vst [vmem:[%s1055] ss:$9 sm:$0xff] %v864
    %s1057 = scalar_lea.vmem [#allocation1], 3
    %1058 = vst [vmem:[%s1057] ss:$9 sm:$0xff] %v865
    %s1059 = scalar_lea.vmem [#allocation1], 4
    %1060 = vst [vmem:[%s1059] ss:$9 sm:$0xff] %v866
    %s1061 = scalar_lea.vmem [#allocation1], 5
    %1062 = vst [vmem:[%s1061] ss:$9 sm:$0xff] %v867
    %s1063 = scalar_lea.vmem [#allocation1], 6
    %1064 = vst [vmem:[%s1063] ss:$9 sm:$0xff] %v868
    %s1065 = scalar_lea.vmem [#allocation1], 7
    %1066 = vst [vmem:[%s1065] ss:$9 sm:$0xff] %v869
    %v1067 = vld [vmem:[#allocation1] sm:$0xff]
    %1068 = vst [vmem:[#allocation1] ss:$9 sm:$0xff] %v847
    %1069 = vst [vmem:[%s1053] ss:$9 sm:$0xff] %v870
    %1070 = vst [vmem:[%s1055] ss:$9 sm:$0xff] %v871
    %1071 = vst [vmem:[%s1057] ss:$9 sm:$0xff] %v872
    %1072 = vst [vmem:[%s1059] ss:$9 sm:$0xff] %v873
    %1073 = vst [vmem:[%s1061] ss:$9 sm:$0xff] %v874
    %1074 = vst [vmem:[%s1063] ss:$9 sm:$0xff] %v875
    %1075 = vst [vmem:[%s1065] ss:$9 sm:$0xff] %v876
    %v1076 = vld [vmem:[#allocation1] sm:$0xff]
    %1077 = vst [vmem:[#allocation1] ss:$9 sm:$0xff] %v850
    %v1078 = vld [vmem:[#allocation1] sm:$0xff]
    %1079 = vst [vmem:[#allocation1] ss:$9 sm:$0xff] %v877
    %1080 = vst [vmem:[%s1053] ss:$9 sm:$0xff] %v878
    %1081 = vst [vmem:[%s1055] ss:$9 sm:$0xff] %v879
    %1082 = vst [vmem:[%s1057] ss:$9 sm:$0xff] %v880
    %1083 = vst [vmem:[%s1059] ss:$9 sm:$0xff] %v881
    %1084 = vst [vmem:[%s1061] ss:$9 sm:$0xff] %v882
    %1085 = vst [vmem:[%s1063] ss:$9 sm:$0xff] %v883
    %1086 = vst [vmem:[%s1065] ss:$9 sm:$0xff] %v852
    %v1087 = vld [vmem:[#allocation1] sm:$0xff]
    %1088 = vst [vmem:[#allocation1] ss:$9 sm:$0xff] %v884
    %1089 = vst [vmem:[%s1053] ss:$9 sm:$0xff] %v885
    %1090 = vst [vmem:[%s1055] ss:$9 sm:$0xff] %v886
    %1091 = vst [vmem:[%s1057] ss:$9 sm:$0xff] %v887
    %1092 = vst [vmem:[%s1059] ss:$9 sm:$0xff] %v888
    %1093 = vst [vmem:[%s1061] ss:$9 sm:$0xff] %v889
    %1094 = vst [vmem:[%s1063] ss:$9 sm:$0xff] %v890
    %1095 = vst [vmem:[%s1065] ss:$9 sm:$0xff] %v855
    %v1096 = vld [vmem:[#allocation1] sm:$0xff]
    %1097 = vst [vmem:[#allocation1] ss:$9 sm:$0xff] %v891
    %v1098 = vld [vmem:[#allocation1] sm:$0xff]
    %v1105 = vpack.c.bf16 %v1067, %v1067
    %v1106 = vpack.c.bf16 %v1076, %v1076
    %v1107 = vpack.c.bf16 %v1078, %v1078
    %v1108 = vpack.c.bf16 %v1087, %v1087
    %v1109 = vpack.c.bf16 %v1096, %v1096
    %v1110 = vpack.c.bf16 %v1098, %v1098
    %1111 = vst [vmem:[#allocation1] ss:$9 sm:$0xff] %v845
    %s1112 = scalar_lea.vmem [#allocation1], 1
    %1113 = vst [vmem:[%s1112] ss:$9 sm:$0xff] %v863
    %s1114 = scalar_lea.vmem [#allocation1], 2
    %1115 = vst [vmem:[%s1114] ss:$9 sm:$0xff] %v864
    %s1116 = scalar_lea.vmem [#allocation1], 3
    %1117 = vst [vmem:[%s1116] ss:$9 sm:$0xff] %v865
    %s1118 = scalar_lea.vmem [#allocation1], 4
    %1119 = vst [vmem:[%s1118] ss:$9 sm:$0xff] %v866
    %s1120 = scalar_lea.vmem [#allocation1], 5
    %1121 = vst [vmem:[%s1120] ss:$9 sm:$0xff] %v867
    %s1122 = scalar_lea.vmem [#allocation1], 6
    %1123 = vst [vmem:[%s1122] ss:$9 sm:$0xff] %v868
    %s1124 = scalar_lea.vmem [#allocation1], 7
    %1125 = vst [vmem:[%s1124] ss:$9 sm:$0xff] %v869
    %v1126 = vld [vmem:[#allocation1] sm:$0xff]
    %1127 = vst [vmem:[#allocation1] ss:$9 sm:$0xff] %v847
    %1128 = vst [vmem:[%s1112] ss:$9 sm:$0xff] %v870
    %1129 = vst [vmem:[%s1114] ss:$9 sm:$0xff] %v871
    %1130 = vst [vmem:[%s1116] ss:$9 sm:$0xff] %v872
    %1131 = vst [vmem:[%s1118] ss:$9 sm:$0xff] %v873
    %1132 = vst [vmem:[%s1120] ss:$9 sm:$0xff] %v874
    %1133 = vst [vmem:[%s1122] ss:$9 sm:$0xff] %v875
    %1134 = vst [vmem:[%s1124] ss:$9 sm:$0xff] %v876
    %v1135 = vld [vmem:[#allocation1] sm:$0xff]
    %1136 = vst [vmem:[#allocation1] ss:$9 sm:$0xff] %v850
    %v1137 = vld [vmem:[#allocation1] sm:$0xff]
    %1138 = vst [vmem:[#allocation1] ss:$9 sm:$0xff] %v877
    %1139 = vst [vmem:[%s1112] ss:$9 sm:$0xff] %v878
    %1140 = vst [vmem:[%s1114] ss:$9 sm:$0xff] %v879
    %1141 = vst [vmem:[%s1116] ss:$9 sm:$0xff] %v880
    %1142 = vst [vmem:[%s1118] ss:$9 sm:$0xff] %v881
    %1143 = vst [vmem:[%s1120] ss:$9 sm:$0xff] %v882
    %1144 = vst [vmem:[%s1122] ss:$9 sm:$0xff] %v883
    %1145 = vst [vmem:[%s1124] ss:$9 sm:$0xff] %v852
    %v1146 = vld [vmem:[#allocation1] sm:$0xff]
    %1147 = vst [vmem:[#allocation1] ss:$9 sm:$0xff] %v884
    %1148 = vst [vmem:[%s1112] ss:$9 sm:$0xff] %v885
    %1149 = vst [vmem:[%s1114] ss:$9 sm:$0xff] %v886
    %1150 = vst [vmem:[%s1116] ss:$9 sm:$0xff] %v887
    %1151 = vst [vmem:[%s1118] ss:$9 sm:$0xff] %v888
    %1152 = vst [vmem:[%s1120] ss:$9 sm:$0xff] %v889
    %1153 = vst [vmem:[%s1122] ss:$9 sm:$0xff] %v890
    %1154 = vst [vmem:[%s1124] ss:$9 sm:$0xff] %v855
    %v1155 = vld [vmem:[#allocation1] sm:$0xff]
    %1156 = vst [vmem:[#allocation1] ss:$9 sm:$0xff] %v891
    %v1157 = vld [vmem:[#allocation1] sm:$0xff]
    %v1164 = vpack.c.bf16 %v1126, %v1126
    %v1165 = vpack.c.bf16 %v1135, %v1135
    %v1166 = vpack.c.bf16 %v1137, %v1137
    %v1167 = vpack.c.bf16 %v1146, %v1146
    %v1168 = vpack.c.bf16 %v1155, %v1155
    %v1169 = vpack.c.bf16 %v1157, %v1157
    %v1173 = vunpack.c.l.b16 %v1046
    %v1174 = vunpack.c.l.b16 %v1047
    %v1175 = vunpack.c.l.b16 %v1048
    %v1176 = vpack.c.b16 %v1174, %v1173
    %v1177 = vpack.c.b16 %v1175, %v1175
    %v1181 = vunpack.c.l.b16 %v1105
    %v1182 = vunpack.c.l.b16 %v1106
    %v1183 = vunpack.c.l.b16 %v1107
    %v1184 = vpack.c.b16 %v1182, %v1181
    %v1185 = vpack.c.b16 %v1183, %v1183
    %1186 = vrot.lane.b32.xlu0 %v1184, 96
    %v1187 = vpop.permute.xlu0 %1186
    %1188 = vrot.lane.b32.xlu0 %v1185, 96
    %v1189 = vpop.permute.xlu0 %1188
    %vm1190 = vcmask 130048
    %v1192 = vsel %vm1190, %v1176, 0
    %v1195 = vsel %vm1190, %v1177, 0
    %v1198 = vsel %vm1190, %v1187, 0
    %v1201 = vsel %vm1190, %v1189, 0
    %1203 = vmatpush.bf16.xpose.msra.mxu0 0
    %1204 = vmatpush.bf16.xpose.msra.mxu0 0
    %1205 = vmatpush.bf16.xpose.msra.mxu0 0
    %1206 = vmatpush.bf16.xpose.msra.mxu0 0
    %1207 = vmatpush.bf16.xpose.msra.mxu0 0
    %1208 = vmatpush.bf16.xpose.msra.mxu0 0
    %1209 = vmatpush.bf16.xpose.msra.mxu0 %v1201
    %1210 = vmatpush.bf16.xpose.msra.mxu0 %v1198
    %1211 = vmatmul.bf16.gmra.mxu0 %v1192
    %v1212 = vpop.f32.mrf.mxu0
    %v1213 = vadd.f32 0.0, %v1212
    %v1214 = vpop.f32.mrf.mxu0
    %v1215 = vadd.f32 0.0, %v1214
    %1216 = vmatmul.bf16.gmra.mxu0 %v1195
    %v1217 = vpop.f32.mrf.mxu0
    %v1218 = vadd.f32 0.0, %v1217
    %v1219 = vpop.f32.mrf.mxu0
    %1220 = vdwg.mxu0
    %v1224 = vunpack.c.l.b16 %v1049
    %v1225 = vunpack.c.l.b16 %v1050
    %v1226 = vunpack.c.l.b16 %v1051
    %v1227 = vpack.c.b16 %v1225, %v1224
    %v1228 = vpack.c.b16 %v1226, %v1226
    %v1232 = vunpack.c.l.b16 %v1108
    %v1233 = vunpack.c.l.b16 %v1109
    %v1234 = vunpack.c.l.b16 %v1110
    %v1235 = vpack.c.b16 %v1233, %v1232
    %v1236 = vpack.c.b16 %v1234, %v1234
    %1237 = vrot.lane.b32.xlu0 %v1235, 96
    %v1238 = vpop.permute.xlu0 %1237
    %1239 = vrot.lane.b32.xlu0 %v1236, 96
    %v1240 = vpop.permute.xlu0 %1239
    %v1242 = vsel %vm1190, %v1227, 0
    %v1245 = vsel %vm1190, %v1228, 0
    %v1248 = vsel %vm1190, %v1238, 0
    %v1251 = vsel %vm1190, %v1240, 0
    %1253 = vmatpush.bf16.xpose.msra.mxu0 0
    %1254 = vmatpush.bf16.xpose.msra.mxu0 0
    %1255 = vmatpush.bf16.xpose.msra.mxu0 0
    %1256 = vmatpush.bf16.xpose.msra.mxu0 0
    %1257 = vmatpush.bf16.xpose.msra.mxu0 0
    %1258 = vmatpush.bf16.xpose.msra.mxu0 0
    %1259 = vmatpush.bf16.xpose.msra.mxu0 %v1251
    %1260 = vmatpush.bf16.xpose.msra.mxu0 %v1248
    %1261 = vmatmul.bf16.gmra.mxu0 %v1242
    %v1262 = vpop.f32.mrf.mxu0
    %v1263 = vadd.f32 0.0, %v1262
    %v1264 = vpop.f32.mrf.mxu0
    %v1265 = vadd.f32 0.0, %v1264
    %1266 = vmatmul.bf16.gmra.mxu0 %v1245
    %v1267 = vpop.f32.mrf.mxu0
    %v1268 = vadd.f32 0.0, %v1267
    %v1269 = vpop.f32.mrf.mxu0
    %1270 = vdwg.mxu0
    %vm1271 = vcmask 138240
    %v1272 = vsel %vm1271, %v1213, -inf
    %1273 = vmax.xlane.f32.xlu0 %v1272
    %v1274 = vpop.xlane.xlu0 %1273
    %v1275 = vsel %vm1271, %v1215, -inf
    %1276 = vmax.xlane.f32.xlu0 %v1275
    %v1277 = vpop.xlane.xlu0 %1276
    %vm1278 = vcmask 131072
    %v1279 = vsel %vm1278, %v1218, -inf
    %1280 = vmax.xlane.f32.xlu0 %v1279
    %v1281 = vpop.xlane.xlu0 %1280
    %v1282 = vsel %vm1271, %v1263, -inf
    %1283 = vmax.xlane.f32.xlu0 %v1282
    %v1284 = vpop.xlane.xlu0 %1283
    %v1285 = vsel %vm1271, %v1265, -inf
    %1286 = vmax.xlane.f32.xlu0 %v1285
    %v1287 = vpop.xlane.xlu0 %1286
    %v1288 = vsel %vm1278, %v1268, -inf
    %1289 = vmax.xlane.f32.xlu0 %v1288
    %v1290 = vpop.xlane.xlu0 %1289
    %v1291 = vsub.f32 %v1213, %v1274
    %v1292 = vsub.f32 %v1215, %v1277
    %v1293 = vsub.f32 %v1218, %v1281
    %v1294 = vsub.f32 %v1263, %v1284
    %v1295 = vsub.f32 %v1265, %v1287
    %v1296 = vsub.f32 %v1268, %v1290
    %v1297 = vmul.f32 %v1291, 1.442695
    %v1298 = vpow.pop %v1297
    %v1299 = vmul.f32 %v1292, 1.442695
    %v1300 = vpow.pop %v1299
    %v1301 = vmul.f32 %v1293, 1.442695
    %v1302 = vpow.pop %v1301
    %v1303 = vmul.f32 %v1294, 1.442695
    %v1304 = vpow.pop %v1303
    %v1305 = vmul.f32 %v1295, 1.442695
    %v1306 = vpow.pop %v1305
    %v1307 = vmul.f32 %v1296, 1.442695
    %v1308 = vpow.pop %v1307
    %v1309 = vsel %vm1271, %v1298, 0.0
    %1310 = vadd.xlane.f32.xlu0 %v1309
    %v1311 = vpop.xlane.xlu0 %1310
    %v1312 = vsel %vm1271, %v1300, 0.0
    %1313 = vadd.xlane.f32.xlu0 %v1312
    %v1314 = vpop.xlane.xlu0 %1313
    %v1315 = vsel %vm1278, %v1302, 0.0
    %1316 = vadd.xlane.f32.xlu0 %v1315
    %v1317 = vpop.xlane.xlu0 %1316
    %v1318 = vsel %vm1271, %v1304, 0.0
    %1319 = vadd.xlane.f32.xlu0 %v1318
    %v1320 = vpop.xlane.xlu0 %1319
    %v1321 = vsel %vm1271, %v1306, 0.0
    %1322 = vadd.xlane.f32.xlu0 %v1321
    %v1323 = vpop.xlane.xlu0 %1322
    %v1324 = vsel %vm1278, %v1308, 0.0
    %1325 = vadd.xlane.f32.xlu0 %v1324
    %v1326 = vpop.xlane.xlu0 %1325
    %v1327 = vrcp.pop %v1311
    %v1328 = vrcp.pop %v1314
    %v1329 = vrcp.pop %v1317
    %v1330 = vrcp.pop %v1320
    %v1331 = vrcp.pop %v1323
    %v1332 = vrcp.pop %v1326
    %v1333 = vmul.f32 %v1298, %v1327
    %v1334 = vmul.f32 %v1300, %v1328
    %v1335 = vmul.f32 %v1302, %v1329
    %v1336 = vmul.f32 %v1304, %v1330
    %v1337 = vmul.f32 %v1306, %v1331
    %v1338 = vmul.f32 %v1308, %v1332
    %v1339 = vpack.c.bf16 %v1333, %v1333
    %v1340 = vpack.c.bf16 %v1334, %v1334
    %v1341 = vpack.c.bf16 %v1335, %v1335
    %v1342 = vpack.c.bf16 %v1336, %v1336
    %v1343 = vpack.c.bf16 %v1337, %v1337
    %v1344 = vpack.c.bf16 %v1338, %v1338
    %v1348 = vunpack.c.l.b16 %v1339
    %v1349 = vunpack.c.l.b16 %v1340
    %v1350 = vunpack.c.l.b16 %v1341
    %v1351 = vpack.c.b16 %v1349, %v1348
    %v1352 = vpack.c.b16 %v1350, %v1350
    %v1356 = vunpack.c.l.b16 %v1164
    %v1357 = vunpack.c.l.b16 %v1165
    %v1358 = vunpack.c.l.b16 %v1166
    %v1359 = vpack.c.b16 %v1357, %v1356
    %v1360 = vpack.c.b16 %v1358, %v1358
    %1361 = vrot.lane.b32.xlu0 %v1359, 64
    %v1362 = vpop.permute.xlu0 %1361
    %1363 = vrot.lane.b32.xlu0 %v1360, 64
    %v1364 = vpop.permute.xlu0 %1363
    %v1367 = vsel %vm1271, %v1351, 0
    %v1370 = vsel %vm1271, %v1352, 0
    %vm1372 = vcmask 1040384
    %v1373 = vsel 0, 4294967295, 65535
    %v1374 = vsel %vm1372, %v1373, 0
    %v1376 = vand.u32 %v1364, %v1374
    %1378 = vmatpush.bf16.msra.mxu0 0
    %1379 = vmatpush.bf16.msra.mxu0 0
    %1380 = vmatpush.bf16.msra.mxu0 0
    %1381 = vmatpush.bf16.msra.mxu0 0
    %1382 = vmatpush.bf16.msra.mxu0 0
    %1383 = vmatpush.bf16.msra.mxu0 0
    %1384 = vmatpush.bf16.msra.mxu0 %v1376
    %1385 = vmatpush.bf16.msra.mxu0 %v1362
    %1386 = vmatmul.bf16.gmra.mxu0 %v1367
    %v1387 = vpop.f32.mrf.mxu0
    %v1388 = vadd.f32 0.0, %v1387
    %v1389 = vpop.f32.mrf.mxu0
    %v1390 = vadd.f32 0.0, %v1389
    %1391 = vmatmul.bf16.gmra.mxu0 %v1370
    %v1392 = vpop.f32.mrf.mxu0
    %v1393 = vadd.f32 0.0, %v1392
    %v1394 = vpop.f32.mrf.mxu0
    %1395 = vdwg.mxu0
    %v1399 = vunpack.c.l.b16 %v1342
    %v1400 = vunpack.c.l.b16 %v1343
    %v1401 = vunpack.c.l.b16 %v1344
    %v1402 = vpack.c.b16 %v1400, %v1399
    %v1403 = vpack.c.b16 %v1401, %v1401
    %v1407 = vunpack.c.l.b16 %v1167
    %v1408 = vunpack.c.l.b16 %v1168
    %v1409 = vunpack.c.l.b16 %v1169
    %v1410 = vpack.c.b16 %v1408, %v1407
    %v1411 = vpack.c.b16 %v1409, %v1409
    %1412 = vrot.lane.b32.xlu0 %v1410, 64
    %v1413 = vpop.permute.xlu0 %1412
    %1414 = vrot.lane.b32.xlu0 %v1411, 64
    %v1415 = vpop.permute.xlu0 %1414
    %v1418 = vsel %vm1271, %v1402, 0
    %v1421 = vsel %vm1271, %v1403, 0
    %v1424 = vand.u32 %v1415, %v1374
    %1426 = vmatpush.bf16.msra.mxu0 0
    %1427 = vmatpush.bf16.msra.mxu0 0
    %1428 = vmatpush.bf16.msra.mxu0 0
    %1429 = vmatpush.bf16.msra.mxu0 0
    %1430 = vmatpush.bf16.msra.mxu0 0
    %1431 = vmatpush.bf16.msra.mxu0 0
    %1432 = vmatpush.bf16.msra.mxu0 %v1424
    %1433 = vmatpush.bf16.msra.mxu0 %v1413
    %1434 = vmatmul.bf16.gmra.mxu0 %v1418
    %v1435 = vpop.f32.mrf.mxu0
    %v1436 = vadd.f32 0.0, %v1435
    %v1437 = vpop.f32.mrf.mxu0
    %v1438 = vadd.f32 0.0, %v1437
    %1439 = vmatmul.bf16.gmra.mxu0 %v1421
    %v1440 = vpop.f32.mrf.mxu0
    %v1441 = vadd.f32 0.0, %v1440
    %v1442 = vpop.f32.mrf.mxu0
    %1443 = vdwg.mxu0
    %v1450 = vrot.slane %v1388, 1
    %v1451 = vrot.slane %v1388, 2
    %v1452 = vrot.slane %v1388, 3
    %v1453 = vrot.slane %v1388, 4
    %v1454 = vrot.slane %v1388, 5
    %v1455 = vrot.slane %v1388, 6
    %v1456 = vrot.slane %v1388, 7
    %v1457 = vrot.slane %v1390, 1
    %v1458 = vrot.slane %v1390, 2
    %v1459 = vrot.slane %v1390, 3
    %v1460 = vrot.slane %v1390, 4
    %v1461 = vrot.slane %v1390, 5
    %v1462 = vrot.slane %v1390, 6
    %v1463 = vrot.slane %v1390, 7
    %v1464 = vrot.slane %v1436, 1
    %v1465 = vrot.slane %v1436, 2
    %v1466 = vrot.slane %v1436, 3
    %v1467 = vrot.slane %v1436, 4
    %v1468 = vrot.slane %v1436, 5
    %v1469 = vrot.slane %v1436, 6
    %v1470 = vrot.slane %v1436, 7
    %v1471 = vrot.slane %v1438, 1
    %v1472 = vrot.slane %v1438, 2
    %v1473 = vrot.slane %v1438, 3
    %v1474 = vrot.slane %v1438, 4
    %v1475 = vrot.slane %v1438, 5
    %v1476 = vrot.slane %v1438, 6
    %v1477 = vrot.slane %v1438, 7
    %1478 = vst [vmem:[#allocation1] ss:$9 sm:$0xff] %v1388
    %s1479 = scalar_lea.vmem [#allocation1], 1
    %1480 = vst [vmem:[%s1479] ss:$9 sm:$0xff] %v1450
    %s1481 = scalar_lea.vmem [#allocation1], 2
    %1482 = vst [vmem:[%s1481] ss:$9 sm:$0xff] %v1451
    %s1483 = scalar_lea.vmem [#allocation1], 3
    %1484 = vst [vmem:[%s1483] ss:$9 sm:$0xff] %v1452
    %s1485 = scalar_lea.vmem [#allocation1], 4
    %1486 = vst [vmem:[%s1485] ss:$9 sm:$0xff] %v1453
    %s1487 = scalar_lea.vmem [#allocation1], 5
    %1488 = vst [vmem:[%s1487] ss:$9 sm:$0xff] %v1454
    %s1489 = scalar_lea.vmem [#allocation1], 6
    %1490 = vst [vmem:[%s1489] ss:$9 sm:$0xff] %v1455
    %s1491 = scalar_lea.vmem [#allocation1], 7
    %1492 = vst [vmem:[%s1491] ss:$9 sm:$0xff] %v1456
    %v1493 = vld [vmem:[#allocation1] sm:$0xff]
    %1494 = vst [vmem:[#allocation1] ss:$9 sm:$0xff] %v1390
    %1495 = vst [vmem:[%s1479] ss:$9 sm:$0xff] %v1457
    %1496 = vst [vmem:[%s1481] ss:$9 sm:$0xff] %v1458
    %1497 = vst [vmem:[%s1483] ss:$9 sm:$0xff] %v1459
    %1498 = vst [vmem:[%s1485] ss:$9 sm:$0xff] %v1460
    %1499 = vst [vmem:[%s1487] ss:$9 sm:$0xff] %v1461
    %1500 = vst [vmem:[%s1489] ss:$9 sm:$0xff] %v1462
    %1501 = vst [vmem:[%s1491] ss:$9 sm:$0xff] %v1463
    %v1502 = vld [vmem:[#allocation1] sm:$0xff]
    %1503 = vst [vmem:[#allocation1] ss:$9 sm:$0xff] %v1393
    %1504 = vst [vmem:[%s1479] ss:$9 sm:$0xff] %v1436
    %1505 = vst [vmem:[%s1481] ss:$9 sm:$0xff] %v1464
    %1506 = vst [vmem:[%s1483] ss:$9 sm:$0xff] %v1465
    %1507 = vst [vmem:[%s1485] ss:$9 sm:$0xff] %v1466
    %1508 = vst [vmem:[%s1487] ss:$9 sm:$0xff] %v1467
    %1509 = vst [vmem:[%s1489] ss:$9 sm:$0xff] %v1468
    %1510 = vst [vmem:[%s1491] ss:$9 sm:$0xff] %v1469
    %v1511 = vld [vmem:[#allocation1] sm:$0xff]
    %1512 = vst [vmem:[#allocation1] ss:$9 sm:$0xff] %v1470
    %1513 = vst [vmem:[%s1479] ss:$9 sm:$0xff] %v1438
    %1514 = vst [vmem:[%s1481] ss:$9 sm:$0xff] %v1471
    %1515 = vst [vmem:[%s1483] ss:$9 sm:$0xff] %v1472
    %1516 = vst [vmem:[%s1485] ss:$9 sm:$0xff] %v1473
    %1517 = vst [vmem:[%s1487] ss:$9 sm:$0xff] %v1474
    %1518 = vst [vmem:[%s1489] ss:$9 sm:$0xff] %v1475
    %1519 = vst [vmem:[%s1491] ss:$9 sm:$0xff] %v1476
    %v1520 = vld [vmem:[#allocation1] sm:$0xff]
    %1521 = vst [vmem:[#allocation1] ss:$9 sm:$0xff] %v1477
    %1522 = vst [vmem:[%s1479] ss:$9 sm:$0xff] %v1441
    %v1523 = vld [vmem:[#allocation1] sm:$0xff]
    %v1529 = vpack.c.bf16 %v1502, %v1493
    %v1530 = vpack.c.bf16 %v1520, %v1511
    %v1531 = vpack.c.bf16 %v1523, %v1523
    %1532 = vst [vmem:[#allocation1] ss:$9 sm:$0xff] %v925
    %s1533 = scalar_lea.vmem [#allocation1], 1
    %1534 = vst [vmem:[%s1533] ss:$9 sm:$0xff] %v926
    %s1535 = scalar_lea.vmem [#allocation1], 2
    %1536 = vst [vmem:[%s1535] ss:$9 sm:$0xff] %v927
    %s1537 = scalar_lea.vmem [#allocation1], 3
    %1538 = vst [vmem:[%s1537] ss:$9 sm:$0xff] %v928
    %s1539 = scalar_lea.vmem [#allocation1], 4
    %1540 = vst [vmem:[%s1539] ss:$9 sm:$0xff] %v929
    %s1541 = scalar_lea.vmem [#allocation1], 5
    %1542 = vst [vmem:[%s1541] ss:$9 sm:$0xff] %v930
    %s1543 = scalar_lea.vmem [#allocation1], 6
    %1544 = vst [vmem:[%s1543] ss:$9 sm:$0xff] %v931
    %s1545 = scalar_lea.vmem [#allocation1], 7
    %1546 = vst [vmem:[%s1545] ss:$9 sm:$0xff] %v932
    %v1547 = vld [vmem:[#allocation1] sm:$0xff]
    %1548 = vst [vmem:[#allocation1] ss:$9 sm:$0xff] %v933
    %1549 = vst [vmem:[%s1533] ss:$9 sm:$0xff] %v934
    %1550 = vst [vmem:[%s1535] ss:$9 sm:$0xff] %v935
    %1551 = vst [vmem:[%s1537] ss:$9 sm:$0xff] %v936
    %1552 = vst [vmem:[%s1539] ss:$9 sm:$0xff] %v937
    %1553 = vst [vmem:[%s1541] ss:$9 sm:$0xff] %v938
    %1554 = vst [vmem:[%s1543] ss:$9 sm:$0xff] %v939
    %1555 = vst [vmem:[%s1545] ss:$9 sm:$0xff] %v940
    %v1556 = vld [vmem:[#allocation1] sm:$0xff]
    %1557 = vst [vmem:[#allocation1] ss:$9 sm:$0xff] %v941
    %v1558 = vld [vmem:[#allocation1] sm:$0xff]
    %1559 = vst [vmem:[#allocation1] ss:$9 sm:$0xff] %v942
    %1560 = vst [vmem:[%s1533] ss:$9 sm:$0xff] %v943
    %1561 = vst [vmem:[%s1535] ss:$9 sm:$0xff] %v944
    %1562 = vst [vmem:[%s1537] ss:$9 sm:$0xff] %v945
    %1563 = vst [vmem:[%s1539] ss:$9 sm:$0xff] %v946
    %1564 = vst [vmem:[%s1541] ss:$9 sm:$0xff] %v947
    %1565 = vst [vmem:[%s1543] ss:$9 sm:$0xff] %v948
    %1566 = vst [vmem:[%s1545] ss:$9 sm:$0xff] %v949
    %v1567 = vld [vmem:[#allocation1] sm:$0xff]
    %1568 = vst [vmem:[#allocation1] ss:$9 sm:$0xff] %v950
    %1569 = vst [vmem:[%s1533] ss:$9 sm:$0xff] %v951
    %1570 = vst [vmem:[%s1535] ss:$9 sm:$0xff] %v952
    %1571 = vst [vmem:[%s1537] ss:$9 sm:$0xff] %v953
    %1572 = vst [vmem:[%s1539] ss:$9 sm:$0xff] %v954
    %1573 = vst [vmem:[%s1541] ss:$9 sm:$0xff] %v955
    %1574 = vst [vmem:[%s1543] ss:$9 sm:$0xff] %v956
    %1575 = vst [vmem:[%s1545] ss:$9 sm:$0xff] %v957
    %v1576 = vld [vmem:[#allocation1] sm:$0xff]
    %1577 = vst [vmem:[#allocation1] ss:$9 sm:$0xff] %v958
    %v1578 = vld [vmem:[#allocation1] sm:$0xff]
    %v1585 = vpack.c.bf16 %v1547, %v1547
    %v1586 = vpack.c.bf16 %v1556, %v1556
    %v1587 = vpack.c.bf16 %v1558, %v1558
    %v1588 = vpack.c.bf16 %v1567, %v1567
    %v1589 = vpack.c.bf16 %v1576, %v1576
    %v1590 = vpack.c.bf16 %v1578, %v1578
    %1591 = vst [vmem:[#allocation1] ss:$9 sm:$0xff] %v845
    %s1592 = scalar_lea.vmem [#allocation1], 1
    %1593 = vst [vmem:[%s1592] ss:$9 sm:$0xff] %v863
    %s1594 = scalar_lea.vmem [#allocation1], 2
    %1595 = vst [vmem:[%s1594] ss:$9 sm:$0xff] %v864
    %s1596 = scalar_lea.vmem [#allocation1], 3
    %1597 = vst [vmem:[%s1596] ss:$9 sm:$0xff] %v865
    %s1598 = scalar_lea.vmem [#allocation1], 4
    %1599 = vst [vmem:[%s1598] ss:$9 sm:$0xff] %v866
    %s1600 = scalar_lea.vmem [#allocation1], 5
    %1601 = vst [vmem:[%s1600] ss:$9 sm:$0xff] %v867
    %s1602 = scalar_lea.vmem [#allocation1], 6
    %1603 = vst [vmem:[%s1602] ss:$9 sm:$0xff] %v868
    %s1604 = scalar_lea.vmem [#allocation1], 7
    %1605 = vst [vmem:[%s1604] ss:$9 sm:$0xff] %v869
    %v1606 = vld [vmem:[#allocation1] sm:$0xff]
    %1607 = vst [vmem:[#allocation1] ss:$9 sm:$0xff] %v847
    %1608 = vst [vmem:[%s1592] ss:$9 sm:$0xff] %v870
    %1609 = vst [vmem:[%s1594] ss:$9 sm:$0xff] %v871
    %1610 = vst [vmem:[%s1596] ss:$9 sm:$0xff] %v872
    %1611 = vst [vmem:[%s1598] ss:$9 sm:$0xff] %v873
    %1612 = vst [vmem:[%s1600] ss:$9 sm:$0xff] %v874
    %1613 = vst [vmem:[%s1602] ss:$9 sm:$0xff] %v875
    %1614 = vst [vmem:[%s1604] ss:$9 sm:$0xff] %v876
    %v1615 = vld [vmem:[#allocation1] sm:$0xff]
    %1616 = vst [vmem:[#allocation1] ss:$9 sm:$0xff] %v850
    %v1617 = vld [vmem:[#allocation1] sm:$0xff]
    %1618 = vst [vmem:[#allocation1] ss:$9 sm:$0xff] %v877
    %1619 = vst [vmem:[%s1592] ss:$9 sm:$0xff] %v878
    %1620 = vst [vmem:[%s1594] ss:$9 sm:$0xff] %v879
    %1621 = vst [vmem:[%s1596] ss:$9 sm:$0xff] %v880
    %1622 = vst [vmem:[%s1598] ss:$9 sm:$0xff] %v881
    %1623 = vst [vmem:[%s1600] ss:$9 sm:$0xff] %v882
    %1624 = vst [vmem:[%s1602] ss:$9 sm:$0xff] %v883
    %1625 = vst [vmem:[%s1604] ss:$9 sm:$0xff] %v852
    %v1626 = vld [vmem:[#allocation1] sm:$0xff]
    %1627 = vst [vmem:[#allocation1] ss:$9 sm:$0xff] %v884
    %1628 = vst [vmem:[%s1592] ss:$9 sm:$0xff] %v885
    %1629 = vst [vmem:[%s1594] ss:$9 sm:$0xff] %v886
    %1630 = vst [vmem:[%s1596] ss:$9 sm:$0xff] %v887
    %1631 = vst [vmem:[%s1598] ss:$9 sm:$0xff] %v888
    %1632 = vst [vmem:[%s1600] ss:$9 sm:$0xff] %v889
    %1633 = vst [vmem:[%s1602] ss:$9 sm:$0xff] %v890
    %1634 = vst [vmem:[%s1604] ss:$9 sm:$0xff] %v855
    %v1635 = vld [vmem:[#allocation1] sm:$0xff]
    %1636 = vst [vmem:[#allocation1] ss:$9 sm:$0xff] %v891
    %v1637 = vld [vmem:[#allocation1] sm:$0xff]
    %v1644 = vpack.c.bf16 %v1606, %v1606
    %v1645 = vpack.c.bf16 %v1615, %v1615
    %v1646 = vpack.c.bf16 %v1617, %v1617
    %v1647 = vpack.c.bf16 %v1626, %v1626
    %v1648 = vpack.c.bf16 %v1635, %v1635
    %v1649 = vpack.c.bf16 %v1637, %v1637
    %1650 = vst [vmem:[#allocation1] ss:$9 sm:$0xff] %v845
    %s1651 = scalar_lea.vmem [#allocation1], 1
    %1652 = vst [vmem:[%s1651] ss:$9 sm:$0xff] %v863
    %s1653 = scalar_lea.vmem [#allocation1], 2
    %1654 = vst [vmem:[%s1653] ss:$9 sm:$0xff] %v864
    %s1655 = scalar_lea.vmem [#allocation1], 3
    %1656 = vst [vmem:[%s1655] ss:$9 sm:$0xff] %v865
    %s1657 = scalar_lea.vmem [#allocation1], 4
    %1658 = vst [vmem:[%s1657] ss:$9 sm:$0xff] %v866
    %s1659 = scalar_lea.vmem [#allocation1], 5
    %1660 = vst [vmem:[%s1659] ss:$9 sm:$0xff] %v867
    %s1661 = scalar_lea.vmem [#allocation1], 6
    %1662 = vst [vmem:[%s1661] ss:$9 sm:$0xff] %v868
    %s1663 = scalar_lea.vmem [#allocation1], 7
    %1664 = vst [vmem:[%s1663] ss:$9 sm:$0xff] %v869
    %v1665 = vld [vmem:[#allocation1] sm:$0xff]
    %1666 = vst [vmem:[#allocation1] ss:$9 sm:$0xff] %v847
    %1667 = vst [vmem:[%s1651] ss:$9 sm:$0xff] %v870
    %1668 = vst [vmem:[%s1653] ss:$9 sm:$0xff] %v871
    %1669 = vst [vmem:[%s1655] ss:$9 sm:$0xff] %v872
    %1670 = vst [vmem:[%s1657] ss:$9 sm:$0xff] %v873
    %1671 = vst [vmem:[%s1659] ss:$9 sm:$0xff] %v874
    %1672 = vst [vmem:[%s1661] ss:$9 sm:$0xff] %v875
    %1673 = vst [vmem:[%s1663] ss:$9 sm:$0xff] %v876
    %v1674 = vld [vmem:[#allocation1] sm:$0xff]
    %1675 = vst [vmem:[#allocation1] ss:$9 sm:$0xff] %v850
    %v1676 = vld [vmem:[#allocation1] sm:$0xff]
    %1677 = vst [vmem:[#allocation1] ss:$9 sm:$0xff] %v877
    %1678 = vst [vmem:[%s1651] ss:$9 sm:$0xff] %v878
    %1679 = vst [vmem:[%s1653] ss:$9 sm:$0xff] %v879
    %1680 = vst [vmem:[%s1655] ss:$9 sm:$0xff] %v880
    %1681 = vst [vmem:[%s1657] ss:$9 sm:$0xff] %v881
    %1682 = vst [vmem:[%s1659] ss:$9 sm:$0xff] %v882
    %1683 = vst [vmem:[%s1661] ss:$9 sm:$0xff] %v883
    %1684 = vst [vmem:[%s1663] ss:$9 sm:$0xff] %v852
    %v1685 = vld [vmem:[#allocation1] sm:$0xff]
    %1686 = vst [vmem:[#allocation1] ss:$9 sm:$0xff] %v884
    %1687 = vst [vmem:[%s1651] ss:$9 sm:$0xff] %v885
    %1688 = vst [vmem:[%s1653] ss:$9 sm:$0xff] %v886
    %1689 = vst [vmem:[%s1655] ss:$9 sm:$0xff] %v887
    %1690 = vst [vmem:[%s1657] ss:$9 sm:$0xff] %v888
    %1691 = vst [vmem:[%s1659] ss:$9 sm:$0xff] %v889
    %1692 = vst [vmem:[%s1661] ss:$9 sm:$0xff] %v890
    %1693 = vst [vmem:[%s1663] ss:$9 sm:$0xff] %v855
    %v1694 = vld [vmem:[#allocation1] sm:$0xff]
    %1695 = vst [vmem:[#allocation1] ss:$9 sm:$0xff] %v891
    %v1696 = vld [vmem:[#allocation1] sm:$0xff]
    %v1703 = vpack.c.bf16 %v1665, %v1665
    %v1704 = vpack.c.bf16 %v1674, %v1674
    %v1705 = vpack.c.bf16 %v1676, %v1676
    %v1706 = vpack.c.bf16 %v1685, %v1685
    %v1707 = vpack.c.bf16 %v1694, %v1694
    %v1708 = vpack.c.bf16 %v1696, %v1696
    %v1712 = vunpack.c.l.b16 %v1585
    %v1713 = vunpack.c.l.b16 %v1586
    %v1714 = vunpack.c.l.b16 %v1587
    %v1715 = vpack.c.b16 %v1713, %v1712
    %v1716 = vpack.c.b16 %v1714, %v1714
    %1717 = vrot.lane.b32.xlu0 %v1715, 112
    %v1718 = vpop.permute.xlu0 %1717
    %1719 = vrot.lane.b32.xlu0 %v1716, 112
    %v1720 = vpop.permute.xlu0 %1719
    %v1724 = vunpack.c.l.b16 %v1644
    %v1725 = vunpack.c.l.b16 %v1645
    %v1726 = vunpack.c.l.b16 %v1646
    %v1727 = vpack.c.b16 %v1725, %v1724
    %v1728 = vpack.c.b16 %v1726, %v1726
    %1729 = vrot.lane.b32.xlu0 %v1727, 80
    %v1730 = vpop.permute.xlu0 %1729
    %1731 = vrot.lane.b32.xlu0 %v1728, 80
    %v1732 = vpop.permute.xlu0 %1731
    %v1734 = vsel %vm1190, %v1718, 0
    %v1737 = vsel %vm1190, %v1720, 0
    %v1740 = vsel %vm1190, %v1730, 0
    %v1743 = vsel %vm1190, %v1732, 0
    %1745 = vmatpush.bf16.xpose.msra.mxu0 0
    %1746 = vmatpush.bf16.xpose.msra.mxu0 0
    %1747 = vmatpush.bf16.xpose.msra.mxu0 0
    %1748 = vmatpush.bf16.xpose.msra.mxu0 0
    %1749 = vmatpush.bf16.xpose.msra.mxu0 0
    %1750 = vmatpush.bf16.xpose.msra.mxu0 0
    %1751 = vmatpush.bf16.xpose.msra.mxu0 %v1743
    %1752 = vmatpush.bf16.xpose.msra.mxu0 %v1740
    %1753 = vmatmul.bf16.gmra.mxu0 %v1734
    %v1754 = vpop.f32.mrf.mxu0
    %v1755 = vadd.f32 0.0, %v1754
    %v1756 = vpop.f32.mrf.mxu0
    %v1757 = vadd.f32 0.0, %v1756
    %1758 = vmatmul.bf16.gmra.mxu0 %v1737
    %v1759 = vpop.f32.mrf.mxu0
    %v1760 = vadd.f32 0.0, %v1759
    %v1761 = vpop.f32.mrf.mxu0
    %1762 = vdwg.mxu0
    %v1766 = vunpack.c.l.b16 %v1588
    %v1767 = vunpack.c.l.b16 %v1589
    %v1768 = vunpack.c.l.b16 %v1590
    %v1769 = vpack.c.b16 %v1767, %v1766
    %v1770 = vpack.c.b16 %v1768, %v1768
    %1771 = vrot.lane.b32.xlu0 %v1769, 112
    %v1772 = vpop.permute.xlu0 %1771
    %1773 = vrot.lane.b32.xlu0 %v1770, 112
    %v1774 = vpop.permute.xlu0 %1773
    %v1778 = vunpack.c.l.b16 %v1647
    %v1779 = vunpack.c.l.b16 %v1648
    %v1780 = vunpack.c.l.b16 %v1649
    %v1781 = vpack.c.b16 %v1779, %v1778
    %v1782 = vpack.c.b16 %v1780, %v1780
    %1783 = vrot.lane.b32.xlu0 %v1781, 80
    %v1784 = vpop.permute.xlu0 %1783
    %1785 = vrot.lane.b32.xlu0 %v1782, 80
    %v1786 = vpop.permute.xlu0 %1785
    %v1788 = vsel %vm1190, %v1772, 0
    %v1791 = vsel %vm1190, %v1774, 0
    %v1794 = vsel %vm1190, %v1784, 0
    %v1797 = vsel %vm1190, %v1786, 0
    %1799 = vmatpush.bf16.xpose.msra.mxu0 0
    %1800 = vmatpush.bf16.xpose.msra.mxu0 0
    %1801 = vmatpush.bf16.xpose.msra.mxu0 0
    %1802 = vmatpush.bf16.xpose.msra.mxu0 0
    %1803 = vmatpush.bf16.xpose.msra.mxu0 0
    %1804 = vmatpush.bf16.xpose.msra.mxu0 0
    %1805 = vmatpush.bf16.xpose.msra.mxu0 %v1797
    %1806 = vmatpush.bf16.xpose.msra.mxu0 %v1794
    %1807 = vmatmul.bf16.gmra.mxu0 %v1788
    %v1808 = vpop.f32.mrf.mxu0
    %v1809 = vadd.f32 0.0, %v1808
    %v1810 = vpop.f32.mrf.mxu0
    %v1811 = vadd.f32 0.0, %v1810
    %1812 = vmatmul.bf16.gmra.mxu0 %v1791
    %v1813 = vpop.f32.mrf.mxu0
    %v1814 = vadd.f32 0.0, %v1813
    %v1815 = vpop.f32.mrf.mxu0
    %1816 = vdwg.mxu0
    %v1817 = vsel %vm1271, %v1755, -inf
    %1818 = vmax.xlane.f32.xlu0 %v1817
    %v1819 = vpop.xlane.xlu0 %1818
    %v1820 = vsel %vm1271, %v1757, -inf
    %1821 = vmax.xlane.f32.xlu0 %v1820
    %v1822 = vpop.xlane.xlu0 %1821
    %v1823 = vsel %vm1278, %v1760, -inf
    %1824 = vmax.xlane.f32.xlu0 %v1823
    %v1825 = vpop.xlane.xlu0 %1824
    %v1826 = vsel %vm1271, %v1809, -inf
    %1827 = vmax.xlane.f32.xlu0 %v1826
    %v1828 = vpop.xlane.xlu0 %1827
    %v1829 = vsel %vm1271, %v1811, -inf
    %1830 = vmax.xlane.f32.xlu0 %v1829
    %v1831 = vpop.xlane.xlu0 %1830
    %v1832 = vsel %vm1278, %v1814, -inf
    %1833 = vmax.xlane.f32.xlu0 %v1832
    %v1834 = vpop.xlane.xlu0 %1833
    %v1835 = vsub.f32 %v1755, %v1819
    %v1836 = vsub.f32 %v1757, %v1822
    %v1837 = vsub.f32 %v1760, %v1825
    %v1838 = vsub.f32 %v1809, %v1828
    %v1839 = vsub.f32 %v1811, %v1831
    %v1840 = vsub.f32 %v1814, %v1834
    %v1841 = vmul.f32 %v1835, 1.442695
    %v1842 = vpow.pop %v1841
    %v1843 = vmul.f32 %v1836, 1.442695
    %v1844 = vpow.pop %v1843
    %v1845 = vmul.f32 %v1837, 1.442695
    %v1846 = vpow.pop %v1845
    %v1847 = vmul.f32 %v1838, 1.442695
    %v1848 = vpow.pop %v1847
    %v1849 = vmul.f32 %v1839, 1.442695
    %v1850 = vpow.pop %v1849
    %v1851 = vmul.f32 %v1840, 1.442695
    %v1852 = vpow.pop %v1851
    %v1853 = vsel %vm1271, %v1842, 0.0
    %1854 = vadd.xlane.f32.xlu0 %v1853
    %v1855 = vpop.xlane.xlu0 %1854
    %v1856 = vsel %vm1271, %v1844, 0.0
    %1857 = vadd.xlane.f32.xlu0 %v1856
    %v1858 = vpop.xlane.xlu0 %1857
    %v1859 = vsel %vm1278, %v1846, 0.0
    %1860 = vadd.xlane.f32.xlu0 %v1859
    %v1861 = vpop.xlane.xlu0 %1860
    %v1862 = vsel %vm1271, %v1848, 0.0
    %1863 = vadd.xlane.f32.xlu0 %v1862
    %v1864 = vpop.xlane.xlu0 %1863
    %v1865 = vsel %vm1271, %v1850, 0.0
    %1866 = vadd.xlane.f32.xlu0 %v1865
    %v1867 = vpop.xlane.xlu0 %1866
    %v1868 = vsel %vm1278, %v1852, 0.0
    %1869 = vadd.xlane.f32.xlu0 %v1868
    %v1870 = vpop.xlane.xlu0 %1869
    %v1871 = vrcp.pop %v1855
    %v1872 = vrcp.pop %v1858
    %v1873 = vrcp.pop %v1861
    %v1874 = vrcp.pop %v1864
    %v1875 = vrcp.pop %v1867
    %v1876 = vrcp.pop %v1870
    %v1877 = vmul.f32 %v1842, %v1871
    %v1878 = vmul.f32 %v1844, %v1872
    %v1879 = vmul.f32 %v1846, %v1873
    %v1880 = vmul.f32 %v1848, %v1874
    %v1881 = vmul.f32 %v1850, %v1875
    %v1882 = vmul.f32 %v1852, %v1876
    %v1883 = vpack.c.bf16 %v1877, %v1877
    %v1884 = vpack.c.bf16 %v1878, %v1878
    %v1885 = vpack.c.bf16 %v1879, %v1879
    %v1886 = vpack.c.bf16 %v1880, %v1880
    %v1887 = vpack.c.bf16 %v1881, %v1881
    %v1888 = vpack.c.bf16 %v1882, %v1882
    %v1892 = vunpack.c.l.b16 %v1883
    %v1893 = vunpack.c.l.b16 %v1884
    %v1894 = vunpack.c.l.b16 %v1885
    %v1895 = vpack.c.b16 %v1893, %v1892
    %v1896 = vpack.c.b16 %v1894, %v1894
    %v1900 = vunpack.c.l.b16 %v1703
    %v1901 = vunpack.c.l.b16 %v1704
    %v1902 = vunpack.c.l.b16 %v1705
    %v1903 = vpack.c.b16 %v1901, %v1900
    %v1904 = vpack.c.b16 %v1902, %v1902
    %1905 = vrot.lane.b32.xlu0 %v1903, 48
    %v1906 = vpop.permute.xlu0 %1905
    %1907 = vrot.lane.b32.xlu0 %v1904, 48
    %v1908 = vpop.permute.xlu0 %1907
    %v1911 = vsel %vm1271, %v1895, 0
    %v1914 = vsel %vm1271, %v1896, 0
    %v1917 = vand.u32 %v1908, %v1374
    %1919 = vmatpush.bf16.msra.mxu0 0
    %1920 = vmatpush.bf16.msra.mxu0 0
    %1921 = vmatpush.bf16.msra.mxu0 0
    %1922 = vmatpush.bf16.msra.mxu0 0
    %1923 = vmatpush.bf16.msra.mxu0 0
    %1924 = vmatpush.bf16.msra.mxu0 0
    %1925 = vmatpush.bf16.msra.mxu0 %v1917
    %1926 = vmatpush.bf16.msra.mxu0 %v1906
    %1927 = vmatmul.bf16.gmra.mxu0 %v1911
    %v1928 = vpop.f32.mrf.mxu0
    %v1929 = vadd.f32 0.0, %v1928
    %v1930 = vpop.f32.mrf.mxu0
    %v1931 = vadd.f32 0.0, %v1930
    %1932 = vmatmul.bf16.gmra.mxu0 %v1914
    %v1933 = vpop.f32.mrf.mxu0
    %v1934 = vadd.f32 0.0, %v1933
    %v1935 = vpop.f32.mrf.mxu0
    %1936 = vdwg.mxu0
    %v1940 = vunpack.c.l.b16 %v1886
    %v1941 = vunpack.c.l.b16 %v1887
    %v1942 = vunpack.c.l.b16 %v1888
    %v1943 = vpack.c.b16 %v1941, %v1940
    %v1944 = vpack.c.b16 %v1942, %v1942
    %v1948 = vunpack.c.l.b16 %v1706
    %v1949 = vunpack.c.l.b16 %v1707
    %v1950 = vunpack.c.l.b16 %v1708
    %v1951 = vpack.c.b16 %v1949, %v1948
    %v1952 = vpack.c.b16 %v1950, %v1950
    %1953 = vrot.lane.b32.xlu0 %v1951, 48
    %v1954 = vpop.permute.xlu0 %1953
    %1955 = vrot.lane.b32.xlu0 %v1952, 48
    %v1956 = vpop.permute.xlu0 %1955
    %v1959 = vsel %vm1271, %v1943, 0
    %v1962 = vsel %vm1271, %v1944, 0
    %v1965 = vand.u32 %v1956, %v1374
    %1967 = vmatpush.bf16.msra.mxu0 0
    %1968 = vmatpush.bf16.msra.mxu0 0
    %1969 = vmatpush.bf16.msra.mxu0 0
    %1970 = vmatpush.bf16.msra.mxu0 0
    %1971 = vmatpush.bf16.msra.mxu0 0
    %1972 = vmatpush.bf16.msra.mxu0 0
    %1973 = vmatpush.bf16.msra.mxu0 %v1965
    %1974 = vmatpush.bf16.msra.mxu0 %v1954
    %1975 = vmatmul.bf16.gmra.mxu0 %v1959
    %v1976 = vpop.f32.mrf.mxu0
    %v1977 = vadd.f32 0.0, %v1976
    %v1978 = vpop.f32.mrf.mxu0
    %v1979 = vadd.f32 0.0, %v1978
    %1980 = vmatmul.bf16.gmra.mxu0 %v1962
    %v1981 = vpop.f32.mrf.mxu0
    %v1982 = vadd.f32 0.0, %v1981
    %v1983 = vpop.f32.mrf.mxu0
    %1984 = vdwg.mxu0
    %v1991 = vrot.slane %v1929, 1
    %v1992 = vrot.slane %v1929, 2
    %v1993 = vrot.slane %v1929, 3
    %v1994 = vrot.slane %v1929, 4
    %v1995 = vrot.slane %v1929, 5
    %v1996 = vrot.slane %v1929, 6
    %v1997 = vrot.slane %v1929, 7
    %v1998 = vrot.slane %v1931, 1
    %v1999 = vrot.slane %v1931, 2
    %v2000 = vrot.slane %v1931, 3
    %v2001 = vrot.slane %v1931, 4
    %v2002 = vrot.slane %v1931, 5
    %v2003 = vrot.slane %v1931, 6
    %v2004 = vrot.slane %v1931, 7
    %v2005 = vrot.slane %v1977, 1
    %v2006 = vrot.slane %v1977, 2
    %v2007 = vrot.slane %v1977, 3
    %v2008 = vrot.slane %v1977, 4
    %v2009 = vrot.slane %v1977, 5
    %v2010 = vrot.slane %v1977, 6
    %v2011 = vrot.slane %v1977, 7
    %v2012 = vrot.slane %v1979, 1
    %v2013 = vrot.slane %v1979, 2
    %v2014 = vrot.slane %v1979, 3
    %v2015 = vrot.slane %v1979, 4
    %v2016 = vrot.slane %v1979, 5
    %v2017 = vrot.slane %v1979, 6
    %v2018 = vrot.slane %v1979, 7
    %2019 = vst [vmem:[#allocation1] ss:$9 sm:$0xff] %v1929
    %s2020 = scalar_lea.vmem [#allocation1], 1
    %2021 = vst [vmem:[%s2020] ss:$9 sm:$0xff] %v1991
    %s2022 = scalar_lea.vmem [#allocation1], 2
    %2023 = vst [vmem:[%s2022] ss:$9 sm:$0xff] %v1992
    %s2024 = scalar_lea.vmem [#allocation1], 3
    %2025 = vst [vmem:[%s2024] ss:$9 sm:$0xff] %v1993
    %s2026 = scalar_lea.vmem [#allocation1], 4
    %2027 = vst [vmem:[%s2026] ss:$9 sm:$0xff] %v1994
    %s2028 = scalar_lea.vmem [#allocation1], 5
    %2029 = vst [vmem:[%s2028] ss:$9 sm:$0xff] %v1995
    %s2030 = scalar_lea.vmem [#allocation1], 6
    %2031 = vst [vmem:[%s2030] ss:$9 sm:$0xff] %v1996
    %s2032 = scalar_lea.vmem [#allocation1], 7
    %2033 = vst [vmem:[%s2032] ss:$9 sm:$0xff] %v1997
    %v2034 = vld [vmem:[#allocation1] sm:$0xff]
    %2035 = vst [vmem:[#allocation1] ss:$9 sm:$0xff] %v1931
    %2036 = vst [vmem:[%s2020] ss:$9 sm:$0xff] %v1998
    %2037 = vst [vmem:[%s2022] ss:$9 sm:$0xff] %v1999
    %2038 = vst [vmem:[%s2024] ss:$9 sm:$0xff] %v2000
    %2039 = vst [vmem:[%s2026] ss:$9 sm:$0xff] %v2001
    %2040 = vst [vmem:[%s2028] ss:$9 sm:$0xff] %v2002
    %2041 = vst [vmem:[%s2030] ss:$9 sm:$0xff] %v2003
    %2042 = vst [vmem:[%s2032] ss:$9 sm:$0xff] %v2004
    %v2043 = vld [vmem:[#allocation1] sm:$0xff]
    %2044 = vst [vmem:[#allocation1] ss:$9 sm:$0xff] %v1934
    %2045 = vst [vmem:[%s2020] ss:$9 sm:$0xff] %v1977
    %2046 = vst [vmem:[%s2022] ss:$9 sm:$0xff] %v2005
    %2047 = vst [vmem:[%s2024] ss:$9 sm:$0xff] %v2006
    %2048 = vst [vmem:[%s2026] ss:$9 sm:$0xff] %v2007
    %2049 = vst [vmem:[%s2028] ss:$9 sm:$0xff] %v2008
    %2050 = vst [vmem:[%s2030] ss:$9 sm:$0xff] %v2009
    %2051 = vst [vmem:[%s2032] ss:$9 sm:$0xff] %v2010
    %v2052 = vld [vmem:[#allocation1] sm:$0xff]
    %2053 = vst [vmem:[#allocation1] ss:$9 sm:$0xff] %v2011
    %2054 = vst [vmem:[%s2020] ss:$9 sm:$0xff] %v1979
    %2055 = vst [vmem:[%s2022] ss:$9 sm:$0xff] %v2012
    %2056 = vst [vmem:[%s2024] ss:$9 sm:$0xff] %v2013
    %2057 = vst [vmem:[%s2026] ss:$9 sm:$0xff] %v2014
    %2058 = vst [vmem:[%s2028] ss:$9 sm:$0xff] %v2015
    %2059 = vst [vmem:[%s2030] ss:$9 sm:$0xff] %v2016
    %2060 = vst [vmem:[%s2032] ss:$9 sm:$0xff] %v2017
    %v2061 = vld [vmem:[#allocation1] sm:$0xff]
    %2062 = vst [vmem:[#allocation1] ss:$9 sm:$0xff] %v2018
    %2063 = vst [vmem:[%s2020] ss:$9 sm:$0xff] %v1982
    %v2064 = vld [vmem:[#allocation1] sm:$0xff]
    %v2070 = vpack.c.bf16 %v2043, %v2034
    %v2071 = vpack.c.bf16 %v2061, %v2052
    %v2072 = vpack.c.bf16 %v2064, %v2064
    %v2075 = vunpack.c.l.b16 %v923
    %v2076 = vunpack.c.l.b16 %v924
    %v2077 = vpack.c.b16 %v2076, %v2075
    %v2080 = vsel %vm1190, %v2070, 0
    %v2083 = vsel %vm1190, %v2071, 0
    %v2086 = vsel %vm1190, %v2072, 0
    %2088 = vmatpush.bf16.msra.mxu0 0
    %2089 = vmatpush.bf16.msra.mxu0 0
    %2090 = vmatpush.bf16.msra.mxu0 0
    %2091 = vmatpush.bf16.msra.mxu0 0
    %2092 = vmatpush.bf16.msra.mxu0 0
    %2093 = vmatpush.bf16.msra.mxu0 0
    %2094 = vmatpush.bf16.msra.mxu0 0
    %2095 = vmatpush.bf16.msra.mxu0 %v2077
    %2096 = vmatmul.bf16.gmra.mxu0 %v2080
    %v2097 = vpop.f32.mrf.mxu0
    %v2098 = vadd.f32 0.0, %v2097
    %v2099 = vpop.f32.mrf.mxu0
    %v2100 = vadd.f32 0.0, %v2099
    %2101 = vmatmul.bf16.gmra.mxu0 %v2083
    %v2102 = vpop.f32.mrf.mxu0
    %v2103 = vadd.f32 0.0, %v2102
    %v2104 = vpop.f32.mrf.mxu0
    %v2105 = vadd.f32 0.0, %v2104
    %2106 = vmatmul.bf16.gmra.mxu0 %v2086
    %v2107 = vpop.f32.mrf.mxu0
    %v2108 = vadd.f32 0.0, %v2107
    %v2109 = vpop.f32.mrf.mxu0
    %2110 = vdwg.mxu0
    %v2113 = vunpack.c.l.b16 %v921
    %v2114 = vunpack.c.l.b16 %v922
    %v2115 = vpack.c.b16 %v2114, %v2113
    %v2118 = vsel %vm1190, %v1529, 0
    %v2121 = vsel %vm1190, %v1530, 0
    %v2124 = vsel %vm1190, %v1531, 0
    %2126 = vmatpush.bf16.msra.mxu0 0
    %2127 = vmatpush.bf16.msra.mxu0 0
    %2128 = vmatpush.bf16.msra.mxu0 0
    %2129 = vmatpush.bf16.msra.mxu0 0
    %2130 = vmatpush.bf16.msra.mxu0 0
    %2131 = vmatpush.bf16.msra.mxu0 0
    %2132 = vmatpush.bf16.msra.mxu0 0
    %2133 = vmatpush.bf16.msra.mxu0 %v2115
    %2134 = vmatmul.bf16.gmra.mxu0 %v2118
    %v2135 = vpop.f32.mrf.mxu0
    %v2136 = vadd.f32 %v2098, %v2135
    %v2137 = vpop.f32.mrf.mxu0
    %v2138 = vadd.f32 %v2100, %v2137
    %2139 = vmatmul.bf16.gmra.mxu0 %v2121
    %v2140 = vpop.f32.mrf.mxu0
    %v2141 = vadd.f32 %v2103, %v2140
    %v2142 = vpop.f32.mrf.mxu0
    %v2143 = vadd.f32 %v2105, %v2142
    %2144 = vmatmul.bf16.gmra.mxu0 %v2124
    %v2145 = vpop.f32.mrf.mxu0
    %v2146 = vadd.f32 %v2108, %v2145
    %v2147 = vpop.f32.mrf.mxu0
    %2148 = vdwg.mxu0
    %v2154 = vrot.slane %v2136, 1
    %v2155 = vrot.slane %v2136, 2
    %v2156 = vrot.slane %v2136, 3
    %v2157 = vrot.slane %v2136, 4
    %v2158 = vrot.slane %v2136, 5
    %v2159 = vrot.slane %v2136, 6
    %v2160 = vrot.slane %v2136, 7
    %v2161 = vrot.slane %v2138, 1
    %v2162 = vrot.slane %v2138, 2
    %v2163 = vrot.slane %v2138, 3
    %v2164 = vrot.slane %v2138, 4
    %v2165 = vrot.slane %v2138, 5
    %v2166 = vrot.slane %v2138, 6
    %v2167 = vrot.slane %v2138, 7
    %v2168 = vrot.slane %v2141, 1
    %v2169 = vrot.slane %v2141, 2
    %v2170 = vrot.slane %v2141, 3
    %v2171 = vrot.slane %v2141, 4
    %v2172 = vrot.slane %v2141, 5
    %v2173 = vrot.slane %v2141, 6
    %v2174 = vrot.slane %v2141, 7
    %v2175 = vrot.slane %v2143, 1
    %v2176 = vrot.slane %v2143, 2
    %v2177 = vrot.slane %v2143, 3
    %v2178 = vrot.slane %v2143, 4
    %v2179 = vrot.slane %v2143, 5
    %v2180 = vrot.slane %v2143, 6
    %v2181 = vrot.slane %v2143, 7
    %v2182 = vrot.slane %v2146, 1
    %v2212 = vadd.f32 %v58, %v2136
    %v2213 = vadd.f32 %v70, %v2154
    %v2214 = vadd.f32 %v71, %v2155
    %v2215 = vadd.f32 %v72, %v2156
    %v2216 = vadd.f32 %v73, %v2157
    %v2217 = vadd.f32 %v74, %v2158
    %v2218 = vadd.f32 %v75, %v2159
    %v2219 = vadd.f32 %v76, %v2160
    %v2220 = vadd.f32 %v59, %v2138
    %v2221 = vadd.f32 %v77, %v2161
    %v2222 = vadd.f32 %v78, %v2162
    %v2223 = vadd.f32 %v79, %v2163
    %v2224 = vadd.f32 %v80, %v2164
    %v2225 = vadd.f32 %v81, %v2165
    %v2226 = vadd.f32 %v82, %v2166
    %v2227 = vadd.f32 %v83, %v2167
    %v2228 = vadd.f32 %v60, %v2141
    %v2229 = vadd.f32 %v61, %v2168
    %v2230 = vadd.f32 %v84, %v2169
    %v2231 = vadd.f32 %v85, %v2170
    %v2232 = vadd.f32 %v86, %v2171
    %v2233 = vadd.f32 %v87, %v2172
    %v2234 = vadd.f32 %v88, %v2173
    %v2235 = vadd.f32 %v89, %v2174
    %v2236 = vadd.f32 %v90, %v2143
    %v2237 = vadd.f32 %v62, %v2175
    %v2238 = vadd.f32 %v91, %v2176
    %v2239 = vadd.f32 %v92, %v2177
    %v2240 = vadd.f32 %v93, %v2178
    %v2241 = vadd.f32 %v94, %v2179
    %v2242 = vadd.f32 %v95, %v2180
    %v2243 = vadd.f32 %v96, %v2181
    %v2244 = vadd.f32 %v97, %v2146
    %v2245 = vadd.f32 %v63, %v2182
    %v2246 = vld [vmem:[%s6] sm:$0x1]
    %v2248 = vperm.slane %v2246, 0
    %v2250 = vrot.slane %v2248, 1
    %v2251 = vrot.slane %v2248, 2
    %v2252 = vrot.slane %v2248, 3
    %v2253 = vrot.slane %v2248, 4
    %v2254 = vrot.slane %v2248, 5
    %v2255 = vrot.slane %v2248, 6
    %v2256 = vrot.slane %v2248, 7
    %v2264 = vadd.f32 %v2212, %v2248
    %v2265 = vadd.f32 %v2213, %v2250
    %v2266 = vadd.f32 %v2214, %v2251
    %v2267 = vadd.f32 %v2215, %v2252
    %v2268 = vadd.f32 %v2216, %v2253
    %v2269 = vadd.f32 %v2217, %v2254
    %v2270 = vadd.f32 %v2218, %v2255
    %v2271 = vadd.f32 %v2219, %v2256
    %v2272 = vadd.f32 %v2220, %v2248
    %v2273 = vadd.f32 %v2221, %v2250
    %v2274 = vadd.f32 %v2222, %v2251
    %v2275 = vadd.f32 %v2223, %v2252
    %v2276 = vadd.f32 %v2224, %v2253
    %v2277 = vadd.f32 %v2225, %v2254
    %v2278 = vadd.f32 %v2226, %v2255
    %v2279 = vadd.f32 %v2227, %v2256
    %v2280 = vadd.f32 %v2228, %v2248
    %v2281 = vadd.f32 %v2229, %v2250
    %v2282 = vadd.f32 %v2230, %v2251
    %v2283 = vadd.f32 %v2231, %v2252
    %v2284 = vadd.f32 %v2232, %v2253
    %v2285 = vadd.f32 %v2233, %v2254
    %v2286 = vadd.f32 %v2234, %v2255
    %v2287 = vadd.f32 %v2235, %v2256
    %v2288 = vadd.f32 %v2236, %v2248
    %v2289 = vadd.f32 %v2237, %v2250
    %v2290 = vadd.f32 %v2238, %v2251
    %v2291 = vadd.f32 %v2239, %v2252
    %v2292 = vadd.f32 %v2240, %v2253
    %v2293 = vadd.f32 %v2241, %v2254
    %v2294 = vadd.f32 %v2242, %v2255
    %v2295 = vadd.f32 %v2243, %v2256
    %v2296 = vadd.f32 %v2244, %v2248
    %v2297 = vadd.f32 %v2245, %v2250
    %v2298 = vld [vmem:[%s7] sm:$0x1]
    %v2299 = vld [vmem:[%s8] sm:$0x1]
    %2334 = vst [vmem:[#allocation1] ss:$9 sm:$0xff] %v2264
    %s2335 = scalar_lea.vmem [#allocation1], 1
    %2336 = vst [vmem:[%s2335] ss:$9 sm:$0xff] %v2265
    %s2337 = scalar_lea.vmem [#allocation1], 2
    %2338 = vst [vmem:[%s2337] ss:$9 sm:$0xff] %v2266
    %s2339 = scalar_lea.vmem [#allocation1], 3
    %2340 = vst [vmem:[%s2339] ss:$9 sm:$0xff] %v2267
    %s2341 = scalar_lea.vmem [#allocation1], 4
    %2342 = vst [vmem:[%s2341] ss:$9 sm:$0xff] %v2268
    %s2343 = scalar_lea.vmem [#allocation1], 5
    %2344 = vst [vmem:[%s2343] ss:$9 sm:$0xff] %v2269
    %s2345 = scalar_lea.vmem [#allocation1], 6
    %2346 = vst [vmem:[%s2345] ss:$9 sm:$0xff] %v2270
    %s2347 = scalar_lea.vmem [#allocation1], 7
    %2348 = vst [vmem:[%s2347] ss:$9 sm:$0xff] %v2271
    %v2349 = vld [vmem:[#allocation1] sm:$0xff]
    %2350 = vst [vmem:[#allocation1] ss:$9 sm:$0xff] %v2272
    %2351 = vst [vmem:[%s2335] ss:$9 sm:$0xff] %v2273
    %2352 = vst [vmem:[%s2337] ss:$9 sm:$0xff] %v2274
    %2353 = vst [vmem:[%s2339] ss:$9 sm:$0xff] %v2275
    %2354 = vst [vmem:[%s2341] ss:$9 sm:$0xff] %v2276
    %2355 = vst [vmem:[%s2343] ss:$9 sm:$0xff] %v2277
    %2356 = vst [vmem:[%s2345] ss:$9 sm:$0xff] %v2278
    %2357 = vst [vmem:[%s2347] ss:$9 sm:$0xff] %v2279
    %v2358 = vld [vmem:[#allocation1] sm:$0xff]
    %2359 = vst [vmem:[#allocation1] ss:$9 sm:$0xff] %v2280
    %2360 = vst [vmem:[%s2335] ss:$9 sm:$0xff] %v2281
    %2361 = vst [vmem:[%s2337] ss:$9 sm:$0xff] %v2282
    %2362 = vst [vmem:[%s2339] ss:$9 sm:$0xff] %v2283
    %2363 = vst [vmem:[%s2341] ss:$9 sm:$0xff] %v2284
    %2364 = vst [vmem:[%s2343] ss:$9 sm:$0xff] %v2285
    %2365 = vst [vmem:[%s2345] ss:$9 sm:$0xff] %v2286
    %2366 = vst [vmem:[%s2347] ss:$9 sm:$0xff] %v2287
    %v2367 = vld [vmem:[#allocation1] sm:$0xff]
    %2368 = vst [vmem:[#allocation1] ss:$9 sm:$0xff] %v2288
    %2369 = vst [vmem:[%s2335] ss:$9 sm:$0xff] %v2289
    %2370 = vst [vmem:[%s2337] ss:$9 sm:$0xff] %v2290
    %2371 = vst [vmem:[%s2339] ss:$9 sm:$0xff] %v2291
    %2372 = vst [vmem:[%s2341] ss:$9 sm:$0xff] %v2292
    %2373 = vst [vmem:[%s2343] ss:$9 sm:$0xff] %v2293
    %2374 = vst [vmem:[%s2345] ss:$9 sm:$0xff] %v2294
    %2375 = vst [vmem:[%s2347] ss:$9 sm:$0xff] %v2295
    %v2376 = vld [vmem:[#allocation1] sm:$0xff]
    %2377 = vst [vmem:[#allocation1] ss:$9 sm:$0xff] %v2296
    %2378 = vst [vmem:[%s2335] ss:$9 sm:$0xff] %v2297
    %v2379 = vld [vmem:[#allocation1] sm:$0xff]
    %v2385 = vsel %vm179, %v2349, 0.0
    %2386 = vadd.xlane.f32.xlu0 %v2385
    %v2387 = vpop.xlane.xlu0 %2386
    %v2388 = vsel %vm179, %v2358, 0.0
    %2389 = vadd.xlane.f32.xlu0 %v2388
    %v2390 = vpop.xlane.xlu0 %2389
    %v2391 = vsel %vm179, %v2367, 0.0
    %2392 = vadd.xlane.f32.xlu0 %v2391
    %v2393 = vpop.xlane.xlu0 %2392
    %v2394 = vsel %vm179, %v2376, 0.0
    %2395 = vadd.xlane.f32.xlu0 %v2394
    %v2396 = vpop.xlane.xlu0 %2395
    %v2397 = vsel %vm192, %v2379, 0.0
    %2398 = vadd.xlane.f32.xlu0 %v2397
    %v2399 = vpop.xlane.xlu0 %2398
    %v2400 = vmul.f32 %v2387, %v202
    %v2401 = vmul.f32 %v2390, %v202
    %v2402 = vmul.f32 %v2393, %v202
    %v2403 = vmul.f32 %v2396, %v202
    %v2404 = vmul.f32 %v2399, %v202
    %v2410 = vperm.slane %v2400, 0
    %v2411 = vperm.slane %v2400, 1
    %v2412 = vperm.slane %v2400, 2
    %v2413 = vperm.slane %v2400, 3
    %v2414 = vperm.slane %v2400, 4
    %v2415 = vperm.slane %v2400, 5
    %v2416 = vperm.slane %v2400, 6
    %v2417 = vperm.slane %v2400, 7
    %v2418 = vperm.slane %v2401, 0
    %v2419 = vperm.slane %v2401, 1
    %v2420 = vperm.slane %v2401, 2
    %v2421 = vperm.slane %v2401, 3
    %v2422 = vperm.slane %v2401, 4
    %v2423 = vperm.slane %v2401, 5
    %v2424 = vperm.slane %v2401, 6
    %v2425 = vperm.slane %v2401, 7
    %v2426 = vperm.slane %v2402, 0
    %v2427 = vperm.slane %v2402, 1
    %v2428 = vperm.slane %v2402, 2
    %v2429 = vperm.slane %v2402, 3
    %v2430 = vperm.slane %v2402, 4
    %v2431 = vperm.slane %v2402, 5
    %v2432 = vperm.slane %v2402, 6
    %v2433 = vperm.slane %v2402, 7
    %v2434 = vperm.slane %v2403, 0
    %v2435 = vperm.slane %v2403, 1
    %v2436 = vperm.slane %v2403, 2
    %v2437 = vperm.slane %v2403, 3
    %v2438 = vperm.slane %v2403, 4
    %v2439 = vperm.slane %v2403, 5
    %v2440 = vperm.slane %v2403, 6
    %v2441 = vperm.slane %v2403, 7
    %v2442 = vperm.slane %v2404, 0
    %v2443 = vperm.slane %v2404, 1
    %v2478 = vsub.f32 %v2264, %v2410
    %v2479 = vsub.f32 %v2265, %v2411
    %v2480 = vsub.f32 %v2266, %v2412
    %v2481 = vsub.f32 %v2267, %v2413
    %v2482 = vsub.f32 %v2268, %v2414
    %v2483 = vsub.f32 %v2269, %v2415
    %v2484 = vsub.f32 %v2270, %v2416
    %v2485 = vsub.f32 %v2271, %v2417
    %v2486 = vsub.f32 %v2272, %v2418
    %v2487 = vsub.f32 %v2273, %v2419
    %v2488 = vsub.f32 %v2274, %v2420
    %v2489 = vsub.f32 %v2275, %v2421
    %v2490 = vsub.f32 %v2276, %v2422
    %v2491 = vsub.f32 %v2277, %v2423
    %v2492 = vsub.f32 %v2278, %v2424
    %v2493 = vsub.f32 %v2279, %v2425
    %v2494 = vsub.f32 %v2280, %v2426
    %v2495 = vsub.f32 %v2281, %v2427
    %v2496 = vsub.f32 %v2282, %v2428
    %v2497 = vsub.f32 %v2283, %v2429
    %v2498 = vsub.f32 %v2284, %v2430
    %v2499 = vsub.f32 %v2285, %v2431
    %v2500 = vsub.f32 %v2286, %v2432
    %v2501 = vsub.f32 %v2287, %v2433
    %v2502 = vsub.f32 %v2288, %v2434
    %v2503 = vsub.f32 %v2289, %v2435
    %v2504 = vsub.f32 %v2290, %v2436
    %v2505 = vsub.f32 %v2291, %v2437
    %v2506 = vsub.f32 %v2292, %v2438
    %v2507 = vsub.f32 %v2293, %v2439
    %v2508 = vsub.f32 %v2294, %v2440
    %v2509 = vsub.f32 %v2295, %v2441
    %v2510 = vsub.f32 %v2296, %v2442
    %v2511 = vsub.f32 %v2297, %v2443
    %v2512 = vmul.f32 %v2478, %v2478
    %v2513 = vmul.f32 %v2479, %v2479
    %v2514 = vmul.f32 %v2480, %v2480
    %v2515 = vmul.f32 %v2481, %v2481
    %v2516 = vmul.f32 %v2482, %v2482
    %v2517 = vmul.f32 %v2483, %v2483
    %v2518 = vmul.f32 %v2484, %v2484
    %v2519 = vmul.f32 %v2485, %v2485
    %v2520 = vmul.f32 %v2486, %v2486
    %v2521 = vmul.f32 %v2487, %v2487
    %v2522 = vmul.f32 %v2488, %v2488
    %v2523 = vmul.f32 %v2489, %v2489
    %v2524 = vmul.f32 %v2490, %v2490
    %v2525 = vmul.f32 %v2491, %v2491
    %v2526 = vmul.f32 %v2492, %v2492
    %v2527 = vmul.f32 %v2493, %v2493
    %v2528 = vmul.f32 %v2494, %v2494
    %v2529 = vmul.f32 %v2495, %v2495
    %v2530 = vmul.f32 %v2496, %v2496
    %v2531 = vmul.f32 %v2497, %v2497
    %v2532 = vmul.f32 %v2498, %v2498
    %v2533 = vmul.f32 %v2499, %v2499
    %v2534 = vmul.f32 %v2500, %v2500
    %v2535 = vmul.f32 %v2501, %v2501
    %v2536 = vmul.f32 %v2502, %v2502
    %v2537 = vmul.f32 %v2503, %v2503
    %v2538 = vmul.f32 %v2504, %v2504
    %v2539 = vmul.f32 %v2505, %v2505
    %v2540 = vmul.f32 %v2506, %v2506
    %v2541 = vmul.f32 %v2507, %v2507
    %v2542 = vmul.f32 %v2508, %v2508
    %v2543 = vmul.f32 %v2509, %v2509
    %v2544 = vmul.f32 %v2510, %v2510
    %v2545 = vmul.f32 %v2511, %v2511
    %2580 = vst [vmem:[#allocation1] ss:$9 sm:$0xff] %v2512
    %s2581 = scalar_lea.vmem [#allocation1], 1
    %2582 = vst [vmem:[%s2581] ss:$9 sm:$0xff] %v2513
    %s2583 = scalar_lea.vmem [#allocation1], 2
    %2584 = vst [vmem:[%s2583] ss:$9 sm:$0xff] %v2514
    %s2585 = scalar_lea.vmem [#allocation1], 3
    %2586 = vst [vmem:[%s2585] ss:$9 sm:$0xff] %v2515
    %s2587 = scalar_lea.vmem [#allocation1], 4
    %2588 = vst [vmem:[%s2587] ss:$9 sm:$0xff] %v2516
    %s2589 = scalar_lea.vmem [#allocation1], 5
    %2590 = vst [vmem:[%s2589] ss:$9 sm:$0xff] %v2517
    %s2591 = scalar_lea.vmem [#allocation1], 6
    %2592 = vst [vmem:[%s2591] ss:$9 sm:$0xff] %v2518
    %s2593 = scalar_lea.vmem [#allocation1], 7
    %2594 = vst [vmem:[%s2593] ss:$9 sm:$0xff] %v2519
    %v2595 = vld [vmem:[#allocation1] sm:$0xff]
    %2596 = vst [vmem:[#allocation1] ss:$9 sm:$0xff] %v2520
    %2597 = vst [vmem:[%s2581] ss:$9 sm:$0xff] %v2521
    %2598 = vst [vmem:[%s2583] ss:$9 sm:$0xff] %v2522
    %2599 = vst [vmem:[%s2585] ss:$9 sm:$0xff] %v2523
    %2600 = vst [vmem:[%s2587] ss:$9 sm:$0xff] %v2524
    %2601 = vst [vmem:[%s2589] ss:$9 sm:$0xff] %v2525
    %2602 = vst [vmem:[%s2591] ss:$9 sm:$0xff] %v2526
    %2603 = vst [vmem:[%s2593] ss:$9 sm:$0xff] %v2527
    %v2604 = vld [vmem:[#allocation1] sm:$0xff]
    %2605 = vst [vmem:[#allocation1] ss:$9 sm:$0xff] %v2528
    %2606 = vst [vmem:[%s2581] ss:$9 sm:$0xff] %v2529
    %2607 = vst [vmem:[%s2583] ss:$9 sm:$0xff] %v2530
    %2608 = vst [vmem:[%s2585] ss:$9 sm:$0xff] %v2531
    %2609 = vst [vmem:[%s2587] ss:$9 sm:$0xff] %v2532
    %2610 = vst [vmem:[%s2589] ss:$9 sm:$0xff] %v2533
    %2611 = vst [vmem:[%s2591] ss:$9 sm:$0xff] %v2534
    %2612 = vst [vmem:[%s2593] ss:$9 sm:$0xff] %v2535
    %v2613 = vld [vmem:[#allocation1] sm:$0xff]
    %2614 = vst [vmem:[#allocation1] ss:$9 sm:$0xff] %v2536
    %2615 = vst [vmem:[%s2581] ss:$9 sm:$0xff] %v2537
    %2616 = vst [vmem:[%s2583] ss:$9 sm:$0xff] %v2538
    %2617 = vst [vmem:[%s2585] ss:$9 sm:$0xff] %v2539
    %2618 = vst [vmem:[%s2587] ss:$9 sm:$0xff] %v2540
    %2619 = vst [vmem:[%s2589] ss:$9 sm:$0xff] %v2541
    %2620 = vst [vmem:[%s2591] ss:$9 sm:$0xff] %v2542
    %2621 = vst [vmem:[%s2593] ss:$9 sm:$0xff] %v2543
    %v2622 = vld [vmem:[#allocation1] sm:$0xff]
    %2623 = vst [vmem:[#allocation1] ss:$9 sm:$0xff] %v2544
    %2624 = vst [vmem:[%s2581] ss:$9 sm:$0xff] %v2545
    %v2625 = vld [vmem:[#allocation1] sm:$0xff]
    %v2631 = vsel %vm179, %v2595, 0.0
    %2632 = vadd.xlane.f32.xlu0 %v2631
    %v2633 = vpop.xlane.xlu0 %2632
    %v2634 = vsel %vm179, %v2604, 0.0
    %2635 = vadd.xlane.f32.xlu0 %v2634
    %v2636 = vpop.xlane.xlu0 %2635
    %v2637 = vsel %vm179, %v2613, 0.0
    %2638 = vadd.xlane.f32.xlu0 %v2637
    %v2639 = vpop.xlane.xlu0 %2638
    %v2640 = vsel %vm179, %v2622, 0.0
    %2641 = vadd.xlane.f32.xlu0 %v2640
    %v2642 = vpop.xlane.xlu0 %2641
    %v2643 = vsel %vm192, %v2625, 0.0
    %2644 = vadd.xlane.f32.xlu0 %v2643
    %v2645 = vpop.xlane.xlu0 %2644
    %v2646 = vmul.f32 %v2633, %v202
    %v2647 = vmul.f32 %v2636, %v202
    %v2648 = vmul.f32 %v2639, %v202
    %v2649 = vmul.f32 %v2642, %v202
    %v2650 = vmul.f32 %v2645, %v202
    %v2651 = vadd.f32 %v2646, 1e-06
    %v2652 = vadd.f32 %v2647, 1e-06
    %v2653 = vadd.f32 %v2648, 1e-06
    %v2654 = vadd.f32 %v2649, 1e-06
    %v2655 = vadd.f32 %v2650, 1e-06
    %v2656 = vrsqrt.pop %v2651
    %v2657 = vmul.f32 %v2656, %v2651
    %v2658 = vmul.f32 %v2657, %v2656
    %v2659 = vmul.f32 0.5, %v2658
    %v2660 = vsub.f32 1.5, %v2659
    %v2661 = vmul.f32 %v2656, %v2660
    %vm2662 = vweird.f32 %v2651
    %vm2663 = vweird.f32 %v2656
    %vm2664 = vmor %vm2662, %vm2663
    %v2665 = vsel %vm2664, %v2656, %v2661
    %v2666 = vrsqrt.pop %v2652
    %v2667 = vmul.f32 %v2666, %v2652
    %v2668 = vmul.f32 %v2667, %v2666
    %v2669 = vmul.f32 0.5, %v2668
    %v2670 = vsub.f32 1.5, %v2669
    %v2671 = vmul.f32 %v2666, %v2670
    %vm2672 = vweird.f32 %v2652
    %vm2673 = vweird.f32 %v2666
    %vm2674 = vmor %vm2672, %vm2673
    %v2675 = vsel %vm2674, %v2666, %v2671
    %v2676 = vrsqrt.pop %v2653
    %v2677 = vmul.f32 %v2676, %v2653
    %v2678 = vmul.f32 %v2677, %v2676
    %v2679 = vmul.f32 0.5, %v2678
    %v2680 = vsub.f32 1.5, %v2679
    %v2681 = vmul.f32 %v2676, %v2680
    %vm2682 = vweird.f32 %v2653
    %vm2683 = vweird.f32 %v2676
    %vm2684 = vmor %vm2682, %vm2683
    %v2685 = vsel %vm2684, %v2676, %v2681
    %v2686 = vrsqrt.pop %v2654
    %v2687 = vmul.f32 %v2686, %v2654
    %v2688 = vmul.f32 %v2687, %v2686
    %v2689 = vmul.f32 0.5, %v2688
    %v2690 = vsub.f32 1.5, %v2689
    %v2691 = vmul.f32 %v2686, %v2690
    %vm2692 = vweird.f32 %v2654
    %vm2693 = vweird.f32 %v2686
    %vm2694 = vmor %vm2692, %vm2693
    %v2695 = vsel %vm2694, %v2686, %v2691
    %v2696 = vrsqrt.pop %v2655
    %v2697 = vmul.f32 %v2696, %v2655
    %v2698 = vmul.f32 %v2697, %v2696
    %v2699 = vmul.f32 0.5, %v2698
    %v2700 = vsub.f32 1.5, %v2699
    %v2701 = vmul.f32 %v2696, %v2700
    %vm2702 = vweird.f32 %v2655
    %vm2703 = vweird.f32 %v2696
    %vm2704 = vmor %vm2702, %vm2703
    %v2705 = vsel %vm2704, %v2696, %v2701
    %v2711 = vperm.slane %v2665, 0
    %v2712 = vperm.slane %v2665, 1
    %v2713 = vperm.slane %v2665, 2
    %v2714 = vperm.slane %v2665, 3
    %v2715 = vperm.slane %v2665, 4
    %v2716 = vperm.slane %v2665, 5
    %v2717 = vperm.slane %v2665, 6
    %v2718 = vperm.slane %v2665, 7
    %v2719 = vperm.slane %v2675, 0
    %v2720 = vperm.slane %v2675, 1
    %v2721 = vperm.slane %v2675, 2
    %v2722 = vperm.slane %v2675, 3
    %v2723 = vperm.slane %v2675, 4
    %v2724 = vperm.slane %v2675, 5
    %v2725 = vperm.slane %v2675, 6
    %v2726 = vperm.slane %v2675, 7
    %v2727 = vperm.slane %v2685, 0
    %v2728 = vperm.slane %v2685, 1
    %v2729 = vperm.slane %v2685, 2
    %v2730 = vperm.slane %v2685, 3
    %v2731 = vperm.slane %v2685, 4
    %v2732 = vperm.slane %v2685, 5
    %v2733 = vperm.slane %v2685, 6
    %v2734 = vperm.slane %v2685, 7
    %v2735 = vperm.slane %v2695, 0
    %v2736 = vperm.slane %v2695, 1
    %v2737 = vperm.slane %v2695, 2
    %v2738 = vperm.slane %v2695, 3
    %v2739 = vperm.slane %v2695, 4
    %v2740 = vperm.slane %v2695, 5
    %v2741 = vperm.slane %v2695, 6
    %v2742 = vperm.slane %v2695, 7
    %v2743 = vperm.slane %v2705, 0
    %v2744 = vperm.slane %v2705, 1
    %v2779 = vmul.f32 %v2478, %v2711
    %v2780 = vmul.f32 %v2479, %v2712
    %v2781 = vmul.f32 %v2480, %v2713
    %v2782 = vmul.f32 %v2481, %v2714
    %v2783 = vmul.f32 %v2482, %v2715
    %v2784 = vmul.f32 %v2483, %v2716
    %v2785 = vmul.f32 %v2484, %v2717
    %v2786 = vmul.f32 %v2485, %v2718
    %v2787 = vmul.f32 %v2486, %v2719
    %v2788 = vmul.f32 %v2487, %v2720
    %v2789 = vmul.f32 %v2488, %v2721
    %v2790 = vmul.f32 %v2489, %v2722
    %v2791 = vmul.f32 %v2490, %v2723
    %v2792 = vmul.f32 %v2491, %v2724
    %v2793 = vmul.f32 %v2492, %v2725
    %v2794 = vmul.f32 %v2493, %v2726
    %v2795 = vmul.f32 %v2494, %v2727
    %v2796 = vmul.f32 %v2495, %v2728
    %v2797 = vmul.f32 %v2496, %v2729
    %v2798 = vmul.f32 %v2497, %v2730
    %v2799 = vmul.f32 %v2498, %v2731
    %v2800 = vmul.f32 %v2499, %v2732
    %v2801 = vmul.f32 %v2500, %v2733
    %v2802 = vmul.f32 %v2501, %v2734
    %v2803 = vmul.f32 %v2502, %v2735
    %v2804 = vmul.f32 %v2503, %v2736
    %v2805 = vmul.f32 %v2504, %v2737
    %v2806 = vmul.f32 %v2505, %v2738
    %v2807 = vmul.f32 %v2506, %v2739
    %v2808 = vmul.f32 %v2507, %v2740
    %v2809 = vmul.f32 %v2508, %v2741
    %v2810 = vmul.f32 %v2509, %v2742
    %v2811 = vmul.f32 %v2510, %v2743
    %v2812 = vmul.f32 %v2511, %v2744
    %v2814 = vperm.slane %v2298, 0
    %v2816 = vrot.slane %v2814, 1
    %v2817 = vrot.slane %v2814, 2
    %v2818 = vrot.slane %v2814, 3
    %v2819 = vrot.slane %v2814, 4
    %v2820 = vrot.slane %v2814, 5
    %v2821 = vrot.slane %v2814, 6
    %v2822 = vrot.slane %v2814, 7
    %v2830 = vmul.f32 %v2779, %v2814
    %v2831 = vmul.f32 %v2780, %v2816
    %v2832 = vmul.f32 %v2781, %v2817
    %v2833 = vmul.f32 %v2782, %v2818
    %v2834 = vmul.f32 %v2783, %v2819
    %v2835 = vmul.f32 %v2784, %v2820
    %v2836 = vmul.f32 %v2785, %v2821
    %v2837 = vmul.f32 %v2786, %v2822
    %v2838 = vmul.f32 %v2787, %v2814
    %v2839 = vmul.f32 %v2788, %v2816
    %v2840 = vmul.f32 %v2789, %v2817
    %v2841 = vmul.f32 %v2790, %v2818
    %v2842 = vmul.f32 %v2791, %v2819
    %v2843 = vmul.f32 %v2792, %v2820
    %v2844 = vmul.f32 %v2793, %v2821
    %v2845 = vmul.f32 %v2794, %v2822
    %v2846 = vmul.f32 %v2795, %v2814
    %v2847 = vmul.f32 %v2796, %v2816
    %v2848 = vmul.f32 %v2797, %v2817
    %v2849 = vmul.f32 %v2798, %v2818
    %v2850 = vmul.f32 %v2799, %v2819
    %v2851 = vmul.f32 %v2800, %v2820
    %v2852 = vmul.f32 %v2801, %v2821
    %v2853 = vmul.f32 %v2802, %v2822
    %v2854 = vmul.f32 %v2803, %v2814
    %v2855 = vmul.f32 %v2804, %v2816
    %v2856 = vmul.f32 %v2805, %v2817
    %v2857 = vmul.f32 %v2806, %v2818
    %v2858 = vmul.f32 %v2807, %v2819
    %v2859 = vmul.f32 %v2808, %v2820
    %v2860 = vmul.f32 %v2809, %v2821
    %v2861 = vmul.f32 %v2810, %v2822
    %v2862 = vmul.f32 %v2811, %v2814
    %v2863 = vmul.f32 %v2812, %v2816
    %v2865 = vperm.slane %v2299, 0
    %v2867 = vrot.slane %v2865, 1
    %v2868 = vrot.slane %v2865, 2
    %v2869 = vrot.slane %v2865, 3
    %v2870 = vrot.slane %v2865, 4
    %v2871 = vrot.slane %v2865, 5
    %v2872 = vrot.slane %v2865, 6
    %v2873 = vrot.slane %v2865, 7
    %v2881 = vadd.f32 %v2830, %v2865
    %v2882 = vadd.f32 %v2831, %v2867
    %v2883 = vadd.f32 %v2832, %v2868
    %v2884 = vadd.f32 %v2833, %v2869
    %v2885 = vadd.f32 %v2834, %v2870
    %v2886 = vadd.f32 %v2835, %v2871
    %v2887 = vadd.f32 %v2836, %v2872
    %v2888 = vadd.f32 %v2837, %v2873
    %v2889 = vadd.f32 %v2838, %v2865
    %v2890 = vadd.f32 %v2839, %v2867
    %v2891 = vadd.f32 %v2840, %v2868
    %v2892 = vadd.f32 %v2841, %v2869
    %v2893 = vadd.f32 %v2842, %v2870
    %v2894 = vadd.f32 %v2843, %v2871
    %v2895 = vadd.f32 %v2844, %v2872
    %v2896 = vadd.f32 %v2845, %v2873
    %v2897 = vadd.f32 %v2846, %v2865
    %v2898 = vadd.f32 %v2847, %v2867
    %v2899 = vadd.f32 %v2848, %v2868
    %v2900 = vadd.f32 %v2849, %v2869
    %v2901 = vadd.f32 %v2850, %v2870
    %v2902 = vadd.f32 %v2851, %v2871
    %v2903 = vadd.f32 %v2852, %v2872
    %v2904 = vadd.f32 %v2853, %v2873
    %v2905 = vadd.f32 %v2854, %v2865
    %v2906 = vadd.f32 %v2855, %v2867
    %v2907 = vadd.f32 %v2856, %v2868
    %v2908 = vadd.f32 %v2857, %v2869
    %v2909 = vadd.f32 %v2858, %v2870
    %v2910 = vadd.f32 %v2859, %v2871
    %v2911 = vadd.f32 %v2860, %v2872
    %v2912 = vadd.f32 %v2861, %v2873
    %v2913 = vadd.f32 %v2862, %v2865
    %v2914 = vadd.f32 %v2863, %v2867
    %2949 = vst [vmem:[#allocation1] ss:$9 sm:$0xff] %v2881
    %s2950 = scalar_lea.vmem [#allocation1], 1
    %2951 = vst [vmem:[%s2950] ss:$9 sm:$0xff] %v2882
    %s2952 = scalar_lea.vmem [#allocation1], 2
    %2953 = vst [vmem:[%s2952] ss:$9 sm:$0xff] %v2883
    %s2954 = scalar_lea.vmem [#allocation1], 3
    %2955 = vst [vmem:[%s2954] ss:$9 sm:$0xff] %v2884
    %s2956 = scalar_lea.vmem [#allocation1], 4
    %2957 = vst [vmem:[%s2956] ss:$9 sm:$0xff] %v2885
    %s2958 = scalar_lea.vmem [#allocation1], 5
    %2959 = vst [vmem:[%s2958] ss:$9 sm:$0xff] %v2886
    %s2960 = scalar_lea.vmem [#allocation1], 6
    %2961 = vst [vmem:[%s2960] ss:$9 sm:$0xff] %v2887
    %s2962 = scalar_lea.vmem [#allocation1], 7
    %2963 = vst [vmem:[%s2962] ss:$9 sm:$0xff] %v2888
    %v2964 = vld [vmem:[#allocation1] sm:$0xff]
    %2965 = vst [vmem:[#allocation1] ss:$9 sm:$0xff] %v2889
    %2966 = vst [vmem:[%s2950] ss:$9 sm:$0xff] %v2890
    %2967 = vst [vmem:[%s2952] ss:$9 sm:$0xff] %v2891
    %2968 = vst [vmem:[%s2954] ss:$9 sm:$0xff] %v2892
    %2969 = vst [vmem:[%s2956] ss:$9 sm:$0xff] %v2893
    %2970 = vst [vmem:[%s2958] ss:$9 sm:$0xff] %v2894
    %2971 = vst [vmem:[%s2960] ss:$9 sm:$0xff] %v2895
    %2972 = vst [vmem:[%s2962] ss:$9 sm:$0xff] %v2896
    %v2973 = vld [vmem:[#allocation1] sm:$0xff]
    %2974 = vst [vmem:[#allocation1] ss:$9 sm:$0xff] %v2897
    %2975 = vst [vmem:[%s2950] ss:$9 sm:$0xff] %v2898
    %2976 = vst [vmem:[%s2952] ss:$9 sm:$0xff] %v2899
    %2977 = vst [vmem:[%s2954] ss:$9 sm:$0xff] %v2900
    %2978 = vst [vmem:[%s2956] ss:$9 sm:$0xff] %v2901
    %2979 = vst [vmem:[%s2958] ss:$9 sm:$0xff] %v2902
    %2980 = vst [vmem:[%s2960] ss:$9 sm:$0xff] %v2903
    %2981 = vst [vmem:[%s2962] ss:$9 sm:$0xff] %v2904
    %v2982 = vld [vmem:[#allocation1] sm:$0xff]
    %2983 = vst [vmem:[#allocation1] ss:$9 sm:$0xff] %v2905
    %2984 = vst [vmem:[%s2950] ss:$9 sm:$0xff] %v2906
    %2985 = vst [vmem:[%s2952] ss:$9 sm:$0xff] %v2907
    %2986 = vst [vmem:[%s2954] ss:$9 sm:$0xff] %v2908
    %2987 = vst [vmem:[%s2956] ss:$9 sm:$0xff] %v2909
    %2988 = vst [vmem:[%s2958] ss:$9 sm:$0xff] %v2910
    %2989 = vst [vmem:[%s2960] ss:$9 sm:$0xff] %v2911
    %2990 = vst [vmem:[%s2962] ss:$9 sm:$0xff] %v2912
    %v2991 = vld [vmem:[#allocation1] sm:$0xff]
    %2992 = vst [vmem:[#allocation1] ss:$9 sm:$0xff] %v2913
    %2993 = vst [vmem:[%s2950] ss:$9 sm:$0xff] %v2914
    %v2994 = vld [vmem:[#allocation1] sm:$0xff]
    %v3000 = vpack.c.bf16 %v2973, %v2964
    %v3001 = vpack.c.bf16 %v2991, %v2982
    %v3002 = vpack.c.bf16 %v2994, %v2994
    %v3003 = vld [vmem:[%s9] sm:$0xf]
    %v3004 = vld [vmem:[%s9 + $0x4] sm:$0xf]
    %v3005 = vld [vmem:[%s9 + $0x8] sm:$0xf]
    %v3006 = vld [vmem:[%s9 + $0xc] sm:$0xf]
    %v3007 = vld [vmem:[%s10] sm:$0x1]
    %v3009 = vperm.slane %v3007, 0
    %v3015 = vunpack.c.l.b16 %v3003
    %v3016 = vunpack.c.l.b16 %v3004
    %v3017 = vunpack.c.l.b16 %v3005
    %v3018 = vunpack.c.l.b16 %v3006
    %v3019 = vpack.c.b16 %v3016, %v3015
    %v3020 = vpack.c.b16 %v3018, %v3017
    %v3024 = vsel %vm179, %v3000, 0
    %v3027 = vsel %vm179, %v3001, 0
    %v3030 = vsel %vm179, %v3002, 0
    %3032 = vmatpush.bf16.msra.mxu0 0
    %3033 = vmatpush.bf16.msra.mxu0 0
    %3034 = vmatpush.bf16.msra.mxu0 0
    %3035 = vmatpush.bf16.msra.mxu0 0
    %3036 = vmatpush.bf16.msra.mxu0 0
    %3037 = vmatpush.bf16.msra.mxu0 0
    %3038 = vmatpush.bf16.msra.mxu0 %v3020
    %3039 = vmatpush.bf16.msra.mxu0 %v3019
    %3040 = vmatmul.bf16.gmra.mxu0 %v3024
    %v3041 = vpop.f32.mrf.mxu0
    %v3042 = vadd.f32 %v3009, %v3041
    %v3043 = vpop.f32.mrf.mxu0
    %v3044 = vadd.f32 %v3009, %v3043
    %3045 = vmatmul.bf16.gmra.mxu0 %v3027
    %v3046 = vpop.f32.mrf.mxu0
    %v3047 = vadd.f32 %v3009, %v3046
    %v3048 = vpop.f32.mrf.mxu0
    %v3049 = vadd.f32 %v3009, %v3048
    %3050 = vmatmul.bf16.gmra.mxu0 %v3030
    %v3051 = vpop.f32.mrf.mxu0
    %v3052 = vadd.f32 %v3009, %v3051
    %v3053 = vpop.f32.mrf.mxu0
    %3054 = vdwg.mxu0
    %v3055 = vmul.f32 %v3042, %v3042
    %v3056 = vmul.f32 %v3044, %v3044
    %v3057 = vmul.f32 %v3047, %v3047
    %v3058 = vmul.f32 %v3049, %v3049
    %v3059 = vmul.f32 %v3052, %v3052
    %v3060 = vmul.f32 %v3042, %v3055
    %v3061 = vmul.f32 %v3044, %v3056
    %v3062 = vmul.f32 %v3047, %v3057
    %v3063 = vmul.f32 %v3049, %v3058
    %v3064 = vmul.f32 %v3052, %v3059
    %v3065 = vmul.f32 %v3060, 0.044715
    %v3066 = vmul.f32 %v3061, 0.044715
    %v3067 = vmul.f32 %v3062, 0.044715
    %v3068 = vmul.f32 %v3063, 0.044715
    %v3069 = vmul.f32 %v3064, 0.044715
    %v3070 = vadd.f32 %v3042, %v3065
    %v3071 = vadd.f32 %v3044, %v3066
    %v3072 = vadd.f32 %v3047, %v3067
    %v3073 = vadd.f32 %v3049, %v3068
    %v3074 = vadd.f32 %v3052, %v3069
    %v3075 = vmul.f32 %v3070, 0.7978846
    %v3076 = vmul.f32 %v3071, 0.7978846
    %v3077 = vmul.f32 %v3072, 0.7978846
    %v3078 = vmul.f32 %v3073, 0.7978846
    %v3079 = vmul.f32 %v3074, 0.7978846
    %v3080 = vtanh.pop %v3075
    %v3081 = vtanh.pop %v3076
    %v3082 = vtanh.pop %v3077
    %v3083 = vtanh.pop %v3078
    %v3084 = vtanh.pop %v3079
    %v3085 = vadd.f32 %v3080, 1.0
    %v3086 = vadd.f32 %v3081, 1.0
    %v3087 = vadd.f32 %v3082, 1.0
    %v3088 = vadd.f32 %v3083, 1.0
    %v3089 = vadd.f32 %v3084, 1.0
    %v3090 = vmul.f32 %v3085, 0.5
    %v3091 = vmul.f32 %v3086, 0.5
    %v3092 = vmul.f32 %v3087, 0.5
    %v3093 = vmul.f32 %v3088, 0.5
    %v3094 = vmul.f32 %v3089, 0.5
    %v3095 = vmul.f32 %v3042, %v3090
    %v3096 = vmul.f32 %v3044, %v3091
    %v3097 = vmul.f32 %v3047, %v3092
    %v3098 = vmul.f32 %v3049, %v3093
    %v3099 = vmul.f32 %v3052, %v3094
    %v3100 = vpack.c.bf16 %v3096, %v3095
    %v3101 = vpack.c.bf16 %v3098, %v3097
    %v3102 = vpack.c.bf16 %v3099, %v3099
    %v3103 = vld [vmem:[%s11] sm:$0xf]
    %v3104 = vld [vmem:[%s11 + $0x4] sm:$0xf]
    %v3105 = vld [vmem:[%s11 + $0x8] sm:$0xf]
    %v3106 = vld [vmem:[%s11 + $0xc] sm:$0xf]
    %v3107 = vld [vmem:[%s11 + $0x10] sm:$0xf]
    %v3108 = vld [vmem:[%s11 + $0x14] sm:$0xf]
    %v3109 = vld [vmem:[%s11 + $0x18] sm:$0xf]
    %v3110 = vld [vmem:[%s11 + $0x1c] sm:$0xf]
    %v3111 = vld [vmem:[%s11 + $0x20] sm:$0xf]
    %v3112 = vld [vmem:[%s11 + $0x24] sm:$0xf]
    %v3113 = vld [vmem:[%s11 + $0x28] sm:$0xf]
    %v3114 = vld [vmem:[%s11 + $0x2c] sm:$0xf]
    %v3115 = vld [vmem:[%s11 + $0x30] sm:$0xf]
    %v3116 = vld [vmem:[%s11 + $0x34] sm:$0xf]
    %v3117 = vld [vmem:[%s11 + $0x38] sm:$0xf]
    %v3118 = vld [vmem:[%s11 + $0x3c] sm:$0xf]
    %v3119 = vld [vmem:[%s12] sm:$0x1]
    %v3121 = vperm.slane %v3119, 0
    %v3139 = vunpack.c.l.b16 %v3103
    %v3140 = vunpack.c.l.b16 %v3104
    %v3141 = vunpack.c.l.b16 %v3105
    %v3142 = vunpack.c.l.b16 %v3106
    %v3143 = vunpack.c.l.b16 %v3107
    %v3144 = vunpack.c.l.b16 %v3108
    %v3145 = vunpack.c.l.b16 %v3109
    %v3146 = vunpack.c.l.b16 %v3110
    %v3147 = vunpack.c.l.b16 %v3111
    %v3148 = vunpack.c.l.b16 %v3112
    %v3149 = vunpack.c.l.b16 %v3113
    %v3150 = vunpack.c.l.b16 %v3114
    %v3151 = vunpack.c.l.b16 %v3115
    %v3152 = vunpack.c.l.b16 %v3116
    %v3153 = vunpack.c.l.b16 %v3117
    %v3154 = vunpack.c.l.b16 %v3118
    %v3155 = vpack.c.b16 %v3140, %v3139
    %v3156 = vpack.c.b16 %v3142, %v3141
    %v3157 = vpack.c.b16 %v3144, %v3143
    %v3158 = vpack.c.b16 %v3146, %v3145
    %v3159 = vpack.c.b16 %v3148, %v3147
    %v3160 = vpack.c.b16 %v3150, %v3149
    %v3161 = vpack.c.b16 %v3152, %v3151
    %v3162 = vpack.c.b16 %v3154, %v3153
    %3171 = vmatpush.bf16.msra.mxu0 %v3162
    %3172 = vmatpush.bf16.msra.mxu0 %v3161
    %3173 = vmatpush.bf16.msra.mxu0 %v3160
    %3174 = vmatpush.bf16.msra.mxu0 %v3159
    %3175 = vmatpush.bf16.msra.mxu0 %v3158
    %3176 = vmatpush.bf16.msra.mxu0 %v3157
    %3177 = vmatpush.bf16.msra.mxu0 %v3156
    %3178 = vmatpush.bf16.msra.mxu0 %v3155
    %3179 = vmatmul.bf16.gmra.mxu0 %v3100
    %v3180 = vpop.f32.mrf.mxu0
    %v3181 = vadd.f32 %v3121, %v3180
    %v3182 = vpop.f32.mrf.mxu0
    %3183 = vmatmul.bf16.gmra.mxu0 %v3101
    %v3184 = vpop.f32.mrf.mxu0
    %v3185 = vadd.f32 %v3121, %v3184
    %v3186 = vpop.f32.mrf.mxu0
    %3187 = vmatmul.bf16.gmra.mxu0 %v3102
    %v3188 = vpop.f32.mrf.mxu0
    %v3189 = vpop.f32.mrf.mxu0
    %3190 = vdwg.mxu0
    %v3192 = vrot.slane %v3185, 1
    %v3194 = vadd.f32 %v2264, %v3181
    %v3195 = vadd.f32 %v2281, %v3192
    %v3196 = vld [vmem:[%s13] sm:$0x1]
    %v3197 = vld [vmem:[%s14] sm:$0x1]
    %3200 = vst [vmem:[#allocation1] ss:$9 sm:$0xff] %v3194
    %s3201 = scalar_lea.vmem [#allocation1], 1
    %3202 = vst [vmem:[%s3201] ss:$9 sm:$0xff] %v3195
    %v3203 = vld [vmem:[#allocation1] sm:$0xff]
    %v3205 = vsel %vm192, %v3203, 0.0
    %3206 = vadd.xlane.f32.xlu0 %v3205
    %v3207 = vpop.xlane.xlu0 %3206
    %v3208 = vmul.f32 %v3207, %v202
    %v3210 = vperm.slane %v3208, 0
    %v3211 = vperm.slane %v3208, 1
    %v3214 = vsub.f32 %v3194, %v3210
    %v3215 = vsub.f32 %v3195, %v3211
    %v3216 = vmul.f32 %v3214, %v3214
    %v3217 = vmul.f32 %v3215, %v3215
    %3220 = vst [vmem:[#allocation1] ss:$9 sm:$0xff] %v3216
    %s3221 = scalar_lea.vmem [#allocation1], 1
    %3222 = vst [vmem:[%s3221] ss:$9 sm:$0xff] %v3217
    %v3223 = vld [vmem:[#allocation1] sm:$0xff]
    %v3225 = vsel %vm192, %v3223, 0.0
    %3226 = vadd.xlane.f32.xlu0 %v3225
    %v3227 = vpop.xlane.xlu0 %3226
    %v3228 = vmul.f32 %v3227, %v202
    %v3229 = vadd.f32 %v3228, 1e-06
    %v3230 = vrsqrt.pop %v3229
    %v3231 = vmul.f32 %v3230, %v3229
    %v3232 = vmul.f32 %v3231, %v3230
    %v3233 = vmul.f32 0.5, %v3232
    %v3234 = vsub.f32 1.5, %v3233
    %v3235 = vmul.f32 %v3230, %v3234
    %vm3236 = vweird.f32 %v3229
    %vm3237 = vweird.f32 %v3230
    %vm3238 = vmor %vm3236, %vm3237
    %v3239 = vsel %vm3238, %v3230, %v3235
    %v3241 = vperm.slane %v3239, 0
    %v3242 = vperm.slane %v3239, 1
    %v3245 = vmul.f32 %v3214, %v3241
    %v3246 = vmul.f32 %v3215, %v3242
    %v3248 = vperm.slane %v3196, 0
    %v3250 = vrot.slane %v3248, 1
    %v3252 = vmul.f32 %v3245, %v3248
    %v3253 = vmul.f32 %v3246, %v3250
    %v3255 = vperm.slane %v3197, 0
    %v3257 = vrot.slane %v3255, 1
    %v3259 = vadd.f32 %v3252, %v3255
    %v3260 = vadd.f32 %v3253, %v3257
    %3263 = vst [vmem:[#allocation1] ss:$9 sm:$0xff] %v3259
    %s3264 = scalar_lea.vmem [#allocation1], 1
    %3265 = vst [vmem:[%s3264] ss:$9 sm:$0xff] %v3260
    %v3266 = vld [vmem:[#allocation1] sm:$0xff]
    %3268 = vst.msk [vmem:[#allocation2] sm:$0x3] %vm192, %v3266
    // Predicated region
    $region62: #{vit_forward.5} parent=1 // pred_check
      _
    $region63: #{vit_forward.5} parent=1 // pred_check_branch
      %3270 = sbr.rel (0) target = $region65
    $region64: #{vit_forward.5} parent=1 // pred_region
      %3272 = vsyncadd [#allocation3], 0
      %s3274 = sshll.u32 [#allocation2], 4
      %s3275 = int_to_ptr.vmem [resolvable:$true] %s3274
      %s3276 = sshll.u32 %s15, 4
      %s3277 = int_to_ptr.hbm [resolvable:$true] %s3276
      %3279 = dma.vmem_to_hbm [thread:$0]  %s3275, 32, %s3277, [#allocation3]
    $region65: #{vit_forward.5} parent=1 // pred_fallthru
      _
    // Predicated region
    $region66: #{vit_forward.5} parent=1 // pred_check
      _
    $region67: #{vit_forward.5} parent=1 // pred_check_branch
      %3281 = sbr.rel (0) target = $region69
    $region68: #{vit_forward.5} parent=1 // pred_region
      %3283 = dma.done [#allocation3], 32
    $region69: #{vit_forward.5} parent=1 // pred_fallthru
      _
    %3284 = vsyncpa [#allocation3], 1

// kernel: vit_forward.4
$region0: #{vit_forward.4}
  #allocation0 [shape = 'u32[]', space=smem, size = 0x4, offset = 0x4, fixed_abs, tag = 'smem constant byte address 0x4 - core index']
  #allocation1 [shape = 'u32[72,128]{1,0:T(1,128)}', space=vmem, size = 0x9000, scoped, tag = 'internal scratch']
  %s0 = inlined_call_operand.vmem [shape: bf16[2,17,32], index: 0, kind: input, shape index: {}]
  %s1 = inlined_call_operand.vmem [shape: f32[1,32], index: 1, kind: input, shape index: {}]
  %s2 = inlined_call_operand.vmem [shape: f32[1,32], index: 2, kind: input, shape index: {}]
  %s3 = inlined_call_operand.vmem [shape: bf16[32,96], index: 3, kind: input, shape index: {}]
  %s4 = inlined_call_operand.vmem [shape: f32[1,96], index: 4, kind: input, shape index: {}]
  %s5 = inlined_call_operand.vmem [shape: bf16[32,32], index: 5, kind: input, shape index: {}]
  %s6 = inlined_call_operand.vmem [shape: f32[1,32], index: 6, kind: input, shape index: {}]
  %s7 = inlined_call_operand.vmem [shape: f32[1,32], index: 7, kind: input, shape index: {}]
  %s8 = inlined_call_operand.vmem [shape: f32[1,32], index: 8, kind: input, shape index: {}]
  %s9 = inlined_call_operand.vmem [shape: bf16[32,128], index: 9, kind: input, shape index: {}]
  %s10 = inlined_call_operand.vmem [shape: f32[1,128], index: 10, kind: input, shape index: {}]
  %s11 = inlined_call_operand.vmem [shape: bf16[128,32], index: 11, kind: input, shape index: {}]
  %s12 = inlined_call_operand.vmem [shape: f32[1,32], index: 12, kind: input, shape index: {}]
  %s13 = inlined_call_operand.vmem [shape: bf16[2,17,32], index: 13, kind: output, shape index: {}]
  %s14 = sld [smem:[#allocation0]]
  $region62: #{vit_forward.4} parent=0
    _
  %s16 = ssub.s32 1, %s14
  %s17 = scalar_select 0, %s16, %s14
  // Predicated region
  $region2: #{vit_forward.4} parent=0 // pred_check
    _
  $region3: #{vit_forward.4} parent=0 // pred_check_branch
    %19 = sbr.rel (0) target = $region5
  $region4: #{vit_forward.4} parent=0 // pred_region
    _
  $region5: #{vit_forward.4} parent=0 // pred_fallthru
    _
  // Predicated region
  $region6: #{vit_forward.4} parent=0 // pred_check
    _
  $region7: #{vit_forward.4} parent=0 // pred_check_branch
    %21 = sbr.rel (0) target = $region9
  $region8: #{vit_forward.4} parent=0 // pred_region
    _
  $region9: #{vit_forward.4} parent=0 // pred_fallthru
    _
  // Predicated region
  $region10: #{vit_forward.4} parent=0 // pred_check
    _
  $region11: #{vit_forward.4} parent=0 // pred_check_branch
    %23 = sbr.rel (0) target = $region13
  $region12: #{vit_forward.4} parent=0 // pred_region
    _
  $region13: #{vit_forward.4} parent=0 // pred_fallthru
    _
  // Predicated region
  $region14: #{vit_forward.4} parent=0 // pred_check
    _
  $region15: #{vit_forward.4} parent=0 // pred_check_branch
    %25 = sbr.rel (0) target = $region17
  $region16: #{vit_forward.4} parent=0 // pred_region
    _
  $region17: #{vit_forward.4} parent=0 // pred_fallthru
    _
  // Predicated region
  $region18: #{vit_forward.4} parent=0 // pred_check
    _
  $region19: #{vit_forward.4} parent=0 // pred_check_branch
    %27 = sbr.rel (0) target = $region21
  $region20: #{vit_forward.4} parent=0 // pred_region
    _
  $region21: #{vit_forward.4} parent=0 // pred_fallthru
    _
  // Predicated region
  $region22: #{vit_forward.4} parent=0 // pred_check
    _
  $region23: #{vit_forward.4} parent=0 // pred_check_branch
    %29 = sbr.rel (0) target = $region25
  $region24: #{vit_forward.4} parent=0 // pred_region
    _
  $region25: #{vit_forward.4} parent=0 // pred_fallthru
    _
  // Predicated region
  $region26: #{vit_forward.4} parent=0 // pred_check
    _
  $region27: #{vit_forward.4} parent=0 // pred_check_branch
    %31 = sbr.rel (0) target = $region29
  $region28: #{vit_forward.4} parent=0 // pred_region
    _
  $region29: #{vit_forward.4} parent=0 // pred_fallthru
    _
  // Predicated region
  $region30: #{vit_forward.4} parent=0 // pred_check
    _
  $region31: #{vit_forward.4} parent=0 // pred_check_branch
    %33 = sbr.rel (0) target = $region33
  $region32: #{vit_forward.4} parent=0 // pred_region
    _
  $region33: #{vit_forward.4} parent=0 // pred_fallthru
    _
  // Predicated region
  $region34: #{vit_forward.4} parent=0 // pred_check
    _
  $region35: #{vit_forward.4} parent=0 // pred_check_branch
    %35 = sbr.rel (0) target = $region37
  $region36: #{vit_forward.4} parent=0 // pred_region
    _
  $region37: #{vit_forward.4} parent=0 // pred_fallthru
    _
  // Predicated region
  $region38: #{vit_forward.4} parent=0 // pred_check
    _
  $region39: #{vit_forward.4} parent=0 // pred_check_branch
    %37 = sbr.rel (0) target = $region41
  $region40: #{vit_forward.4} parent=0 // pred_region
    _
  $region41: #{vit_forward.4} parent=0 // pred_fallthru
    _
  // Predicated region
  $region42: #{vit_forward.4} parent=0 // pred_check
    _
  $region43: #{vit_forward.4} parent=0 // pred_check_branch
    %39 = sbr.rel (0) target = $region45
  $region44: #{vit_forward.4} parent=0 // pred_region
    _
  $region45: #{vit_forward.4} parent=0 // pred_fallthru
    _
  // Predicated region
  $region46: #{vit_forward.4} parent=0 // pred_check
    _
  $region47: #{vit_forward.4} parent=0 // pred_check_branch
    %41 = sbr.rel (0) target = $region49
  $region48: #{vit_forward.4} parent=0 // pred_region
    _
  $region49: #{vit_forward.4} parent=0 // pred_fallthru
    _
  // Predicated region
  $region50: #{vit_forward.4} parent=0 // pred_check
    _
  $region51: #{vit_forward.4} parent=0 // pred_check_branch
    %43 = sbr.rel (0) target = $region53
  $region52: #{vit_forward.4} parent=0 // pred_region
    _
  $region53: #{vit_forward.4} parent=0 // pred_fallthru
    _
  %v45 = vld [vmem:[%s0] sm:$0xf]
  %v46 = vld [vmem:[%s0 + $0x4] sm:$0xf]
  %v47 = vld [vmem:[%s0 + $0x8] sm:$0x1]
  %v48 = vld [vmem:[%s0 + $0xc] sm:$0xf]
  %v49 = vld [vmem:[%s0 + $0x10] sm:$0xf]
  %v50 = vld [vmem:[%s0 + $0x14] sm:$0x1]
  %v51 = vunpack.c.l.bf16 %v45
  %v52 = vunpack.c.l.bf16 %v46
  %v53 = vunpack.c.l.bf16 %v47
  %v54 = vunpack.c.l.bf16 %v48
  %v55 = vunpack.c.l.bf16 %v49
  %v56 = vunpack.c.l.bf16 %v50
  %v63 = vrot.slane %v51, 1
  %v64 = vrot.slane %v51, 2
  %v65 = vrot.slane %v51, 3
  %v66 = vrot.slane %v51, 4
  %v67 = vrot.slane %v51, 5
  %v68 = vrot.slane %v51, 6
  %v69 = vrot.slane %v51, 7
  %v70 = vrot.slane %v52, 1
  %v71 = vrot.slane %v52, 2
  %v72 = vrot.slane %v52, 3
  %v73 = vrot.slane %v52, 4
  %v74 = vrot.slane %v52, 5
  %v75 = vrot.slane %v52, 6
  %v76 = vrot.slane %v52, 7
  %v77 = vrot.slane %v54, 1
  %v78 = vrot.slane %v54, 2
  %v79 = vrot.slane %v54, 3
  %v80 = vrot.slane %v54, 4
  %v81 = vrot.slane %v54, 5
  %v82 = vrot.slane %v54, 6
  %v83 = vrot.slane %v54, 7
  %v84 = vrot.slane %v55, 1
  %v85 = vrot.slane %v55, 2
  %v86 = vrot.slane %v55, 3
  %v87 = vrot.slane %v55, 4
  %v88 = vrot.slane %v55, 5
  %v89 = vrot.slane %v55, 6
  %v90 = vrot.slane %v55, 7
  %v119 = vld [vmem:[%s1] sm:$0x1]
  %v120 = vld [vmem:[%s2] sm:$0x1]
  %121 = vst [vmem:[#allocation1] ss:$9 sm:$0xff] %v51
  %s122 = scalar_lea.vmem [#allocation1], 1
  %123 = vst [vmem:[%s122] ss:$9 sm:$0xff] %v63
  %s124 = scalar_lea.vmem [#allocation1], 2
  %125 = vst [vmem:[%s124] ss:$9 sm:$0xff] %v64
  %s126 = scalar_lea.vmem [#allocation1], 3
  %127 = vst [vmem:[%s126] ss:$9 sm:$0xff] %v65
  %s128 = scalar_lea.vmem [#allocation1], 4
  %129 = vst [vmem:[%s128] ss:$9 sm:$0xff] %v66
  %s130 = scalar_lea.vmem [#allocation1], 5
  %131 = vst [vmem:[%s130] ss:$9 sm:$0xff] %v67
  %s132 = scalar_lea.vmem [#allocation1], 6
  %133 = vst [vmem:[%s132] ss:$9 sm:$0xff] %v68
  %s134 = scalar_lea.vmem [#allocation1], 7
  %135 = vst [vmem:[%s134] ss:$9 sm:$0xff] %v69
  %v136 = vld [vmem:[#allocation1] sm:$0xff]
  %137 = vst [vmem:[#allocation1] ss:$9 sm:$0xff] %v52
  %138 = vst [vmem:[%s122] ss:$9 sm:$0xff] %v70
  %139 = vst [vmem:[%s124] ss:$9 sm:$0xff] %v71
  %140 = vst [vmem:[%s126] ss:$9 sm:$0xff] %v72
  %141 = vst [vmem:[%s128] ss:$9 sm:$0xff] %v73
  %142 = vst [vmem:[%s130] ss:$9 sm:$0xff] %v74
  %143 = vst [vmem:[%s132] ss:$9 sm:$0xff] %v75
  %144 = vst [vmem:[%s134] ss:$9 sm:$0xff] %v76
  %v145 = vld [vmem:[#allocation1] sm:$0xff]
  %146 = vst [vmem:[#allocation1] ss:$9 sm:$0xff] %v53
  %147 = vst [vmem:[%s122] ss:$9 sm:$0xff] %v54
  %148 = vst [vmem:[%s124] ss:$9 sm:$0xff] %v77
  %149 = vst [vmem:[%s126] ss:$9 sm:$0xff] %v78
  %150 = vst [vmem:[%s128] ss:$9 sm:$0xff] %v79
  %151 = vst [vmem:[%s130] ss:$9 sm:$0xff] %v80
  %152 = vst [vmem:[%s132] ss:$9 sm:$0xff] %v81
  %153 = vst [vmem:[%s134] ss:$9 sm:$0xff] %v82
  %v154 = vld [vmem:[#allocation1] sm:$0xff]
  %155 = vst [vmem:[#allocation1] ss:$9 sm:$0xff] %v83
  %156 = vst [vmem:[%s122] ss:$9 sm:$0xff] %v55
  %157 = vst [vmem:[%s124] ss:$9 sm:$0xff] %v84
  %158 = vst [vmem:[%s126] ss:$9 sm:$0xff] %v85
  %159 = vst [vmem:[%s128] ss:$9 sm:$0xff] %v86
  %160 = vst [vmem:[%s130] ss:$9 sm:$0xff] %v87
  %161 = vst [vmem:[%s132] ss:$9 sm:$0xff] %v88
  %162 = vst [vmem:[%s134] ss:$9 sm:$0xff] %v89
  %v163 = vld [vmem:[#allocation1] sm:$0xff]
  %164 = vst [vmem:[#allocation1] ss:$9 sm:$0xff] %v90
  %165 = vst [vmem:[%s122] ss:$9 sm:$0xff] %v56
  %v166 = vld [vmem:[#allocation1] sm:$0xff]
  %vm172 = vcmask 261120
  %v173 = vsel %vm172, %v136, 0.0
  %174 = vadd.xlane.f32.xlu0 %v173
  %v175 = vpop.xlane.xlu0 %174
  %v176 = vsel %vm172, %v145, 0.0
  %177 = vadd.xlane.f32.xlu0 %v176
  %v178 = vpop.xlane.xlu0 %177
  %v179 = vsel %vm172, %v154, 0.0
  %180 = vadd.xlane.f32.xlu0 %v179
  %v181 = vpop.xlane.xlu0 %180
  %v182 = vsel %vm172, %v163, 0.0
  %183 = vadd.xlane.f32.xlu0 %v182
  %v184 = vpop.xlane.xlu0 %183
  %vm185 = vcmask 254976
  %v186 = vsel %vm185, %v166, 0.0
  %187 = vadd.xlane.f32.xlu0 %v186
  %v188 = vpop.xlane.xlu0 %187
  %v189 = vrcp.pop 32.0
  %v190 = vmul.f32 32.0, %v189
  %v191 = vsub.f32 1.0, %v190
  %v192 = vmul.f32 %v189, %v191
  %v193 = vadd.f32 %v189, %v192
  %vm194 = vweird.f32 %v189
  %v195 = vsel %vm194, %v189, %v193
  %v196 = vmul.f32 %v175, %v195
  %v197 = vmul.f32 %v178, %v195
  %v198 = vmul.f32 %v181, %v195
  %v199 = vmul.f32 %v184, %v195
  %v200 = vmul.f32 %v188, %v195
  %v206 = vperm.slane %v196, 0
  %v207 = vperm.slane %v196, 1
  %v208 = vperm.slane %v196, 2
  %v209 = vperm.slane %v196, 3
  %v210 = vperm.slane %v196, 4
  %v211 = vperm.slane %v196, 5
  %v212 = vperm.slane %v196, 6
  %v213 = vperm.slane %v196, 7
  %v214 = vperm.slane %v197, 0
  %v215 = vperm.slane %v197, 1
  %v216 = vperm.slane %v197, 2
  %v217 = vperm.slane %v197, 3
  %v218 = vperm.slane %v197, 4
  %v219 = vperm.slane %v197, 5
  %v220 = vperm.slane %v197, 6
  %v221 = vperm.slane %v197, 7
  %v222 = vperm.slane %v198, 0
  %v223 = vperm.slane %v198, 1
  %v224 = vperm.slane %v198, 2
  %v225 = vperm.slane %v198, 3
  %v226 = vperm.slane %v198, 4
  %v227 = vperm.slane %v198, 5
  %v228 = vperm.slane %v198, 6
  %v229 = vperm.slane %v198, 7
  %v230 = vperm.slane %v199, 0
  %v231 = vperm.slane %v199, 1
  %v232 = vperm.slane %v199, 2
  %v233 = vperm.slane %v199, 3
  %v234 = vperm.slane %v199, 4
  %v235 = vperm.slane %v199, 5
  %v236 = vperm.slane %v199, 6
  %v237 = vperm.slane %v199, 7
  %v238 = vperm.slane %v200, 0
  %v239 = vperm.slane %v200, 1
  %v274 = vsub.f32 %v51, %v206
  %v275 = vsub.f32 %v63, %v207
  %v276 = vsub.f32 %v64, %v208
  %v277 = vsub.f32 %v65, %v209
  %v278 = vsub.f32 %v66, %v210
  %v279 = vsub.f32 %v67, %v211
  %v280 = vsub.f32 %v68, %v212
  %v281 = vsub.f32 %v69, %v213
  %v282 = vsub.f32 %v52, %v214
  %v283 = vsub.f32 %v70, %v215
  %v284 = vsub.f32 %v71, %v216
  %v285 = vsub.f32 %v72, %v217
  %v286 = vsub.f32 %v73, %v218
  %v287 = vsub.f32 %v74, %v219
  %v288 = vsub.f32 %v75, %v220
  %v289 = vsub.f32 %v76, %v221
  %v290 = vsub.f32 %v53, %v222
  %v291 = vsub.f32 %v54, %v223
  %v292 = vsub.f32 %v77, %v224
  %v293 = vsub.f32 %v78, %v225
  %v294 = vsub.f32 %v79, %v226
  %v295 = vsub.f32 %v80, %v227
  %v296 = vsub.f32 %v81, %v228
  %v297 = vsub.f32 %v82, %v229
  %v298 = vsub.f32 %v83, %v230
  %v299 = vsub.f32 %v55, %v231
  %v300 = vsub.f32 %v84, %v232
  %v301 = vsub.f32 %v85, %v233
  %v302 = vsub.f32 %v86, %v234
  %v303 = vsub.f32 %v87, %v235
  %v304 = vsub.f32 %v88, %v236
  %v305 = vsub.f32 %v89, %v237
  %v306 = vsub.f32 %v90, %v238
  %v307 = vsub.f32 %v56, %v239
  %v308 = vmul.f32 %v274, %v274
  %v309 = vmul.f32 %v275, %v275
  %v310 = vmul.f32 %v276, %v276
  %v311 = vmul.f32 %v277, %v277
  %v312 = vmul.f32 %v278, %v278
  %v313 = vmul.f32 %v279, %v279
  %v314 = vmul.f32 %v280, %v280
  %v315 = vmul.f32 %v281, %v281
  %v316 = vmul.f32 %v282, %v282
  %v317 = vmul.f32 %v283, %v283
  %v318 = vmul.f32 %v284, %v284
  %v319 = vmul.f32 %v285, %v285
  %v320 = vmul.f32 %v286, %v286
  %v321 = vmul.f32 %v287, %v287
  %v322 = vmul.f32 %v288, %v288
  %v323 = vmul.f32 %v289, %v289
  %v324 = vmul.f32 %v290, %v290
  %v325 = vmul.f32 %v291, %v291
  %v326 = vmul.f32 %v292, %v292
  %v327 = vmul.f32 %v293, %v293
  %v328 = vmul.f32 %v294, %v294
  %v329 = vmul.f32 %v295, %v295
  %v330 = vmul.f32 %v296, %v296
  %v331 = vmul.f32 %v297, %v297
  %v332 = vmul.f32 %v298, %v298
  %v333 = vmul.f32 %v299, %v299
  %v334 = vmul.f32 %v300, %v300
  %v335 = vmul.f32 %v301, %v301
  %v336 = vmul.f32 %v302, %v302
  %v337 = vmul.f32 %v303, %v303
  %v338 = vmul.f32 %v304, %v304
  %v339 = vmul.f32 %v305, %v305
  %v340 = vmul.f32 %v306, %v306
  %v341 = vmul.f32 %v307, %v307
  %376 = vst [vmem:[#allocation1] ss:$9 sm:$0xff] %v308
  %s377 = scalar_lea.vmem [#allocation1], 1
  %378 = vst [vmem:[%s377] ss:$9 sm:$0xff] %v309
  %s379 = scalar_lea.vmem [#allocation1], 2
  %380 = vst [vmem:[%s379] ss:$9 sm:$0xff] %v310
  %s381 = scalar_lea.vmem [#allocation1], 3
  %382 = vst [vmem:[%s381] ss:$9 sm:$0xff] %v311
  %s383 = scalar_lea.vmem [#allocation1], 4
  %384 = vst [vmem:[%s383] ss:$9 sm:$0xff] %v312
  %s385 = scalar_lea.vmem [#allocation1], 5
  %386 = vst [vmem:[%s385] ss:$9 sm:$0xff] %v313
  %s387 = scalar_lea.vmem [#allocation1], 6
  %388 = vst [vmem:[%s387] ss:$9 sm:$0xff] %v314
  %s389 = scalar_lea.vmem [#allocation1], 7
  %390 = vst [vmem:[%s389] ss:$9 sm:$0xff] %v315
  %v391 = vld [vmem:[#allocation1] sm:$0xff]
  %392 = vst [vmem:[#allocation1] ss:$9 sm:$0xff] %v316
  %393 = vst [vmem:[%s377] ss:$9 sm:$0xff] %v317
  %394 = vst [vmem:[%s379] ss:$9 sm:$0xff] %v318
  %395 = vst [vmem:[%s381] ss:$9 sm:$0xff] %v319
  %396 = vst [vmem:[%s383] ss:$9 sm:$0xff] %v320
  %397 = vst [vmem:[%s385] ss:$9 sm:$0xff] %v321
  %398 = vst [vmem:[%s387] ss:$9 sm:$0xff] %v322
  %399 = vst [vmem:[%s389] ss:$9 sm:$0xff] %v323
  %v400 = vld [vmem:[#allocation1] sm:$0xff]
  %401 = vst [vmem:[#allocation1] ss:$9 sm:$0xff] %v324
  %402 = vst [vmem:[%s377] ss:$9 sm:$0xff] %v325
  %403 = vst [vmem:[%s379] ss:$9 sm:$0xff] %v326
  %404 = vst [vmem:[%s381] ss:$9 sm:$0xff] %v327
  %405 = vst [vmem:[%s383] ss:$9 sm:$0xff] %v328
  %406 = vst [vmem:[%s385] ss:$9 sm:$0xff] %v329
  %407 = vst [vmem:[%s387] ss:$9 sm:$0xff] %v330
  %408 = vst [vmem:[%s389] ss:$9 sm:$0xff] %v331
  %v409 = vld [vmem:[#allocation1] sm:$0xff]
  %410 = vst [vmem:[#allocation1] ss:$9 sm:$0xff] %v332
  %411 = vst [vmem:[%s377] ss:$9 sm:$0xff] %v333
  %412 = vst [vmem:[%s379] ss:$9 sm:$0xff] %v334
  %413 = vst [vmem:[%s381] ss:$9 sm:$0xff] %v335
  %414 = vst [vmem:[%s383] ss:$9 sm:$0xff] %v336
  %415 = vst [vmem:[%s385] ss:$9 sm:$0xff] %v337
  %416 = vst [vmem:[%s387] ss:$9 sm:$0xff] %v338
  %417 = vst [vmem:[%s389] ss:$9 sm:$0xff] %v339
  %v418 = vld [vmem:[#allocation1] sm:$0xff]
  %419 = vst [vmem:[#allocation1] ss:$9 sm:$0xff] %v340
  %420 = vst [vmem:[%s377] ss:$9 sm:$0xff] %v341
  %v421 = vld [vmem:[#allocation1] sm:$0xff]
  %v427 = vsel %vm172, %v391, 0.0
  %428 = vadd.xlane.f32.xlu0 %v427
  %v429 = vpop.xlane.xlu0 %428
  %v430 = vsel %vm172, %v400, 0.0
  %431 = vadd.xlane.f32.xlu0 %v430
  %v432 = vpop.xlane.xlu0 %431
  %v433 = vsel %vm172, %v409, 0.0
  %434 = vadd.xlane.f32.xlu0 %v433
  %v435 = vpop.xlane.xlu0 %434
  %v436 = vsel %vm172, %v418, 0.0
  %437 = vadd.xlane.f32.xlu0 %v436
  %v438 = vpop.xlane.xlu0 %437
  %v439 = vsel %vm185, %v421, 0.0
  %440 = vadd.xlane.f32.xlu0 %v439
  %v441 = vpop.xlane.xlu0 %440
  %v442 = vmul.f32 %v429, %v195
  %v443 = vmul.f32 %v432, %v195
  %v444 = vmul.f32 %v435, %v195
  %v445 = vmul.f32 %v438, %v195
  %v446 = vmul.f32 %v441, %v195
  %v447 = vadd.f32 %v442, 1e-06
  %v448 = vadd.f32 %v443, 1e-06
  %v449 = vadd.f32 %v444, 1e-06
  %v450 = vadd.f32 %v445, 1e-06
  %v451 = vadd.f32 %v446, 1e-06
  %v452 = vrsqrt.pop %v447
  %v453 = vmul.f32 %v452, %v447
  %v454 = vmul.f32 %v453, %v452
  %v455 = vmul.f32 0.5, %v454
  %v456 = vsub.f32 1.5, %v455
  %v457 = vmul.f32 %v452, %v456
  %vm458 = vweird.f32 %v447
  %vm459 = vweird.f32 %v452
  %vm460 = vmor %vm458, %vm459
  %v461 = vsel %vm460, %v452, %v457
  %v462 = vrsqrt.pop %v448
  %v463 = vmul.f32 %v462, %v448
  %v464 = vmul.f32 %v463, %v462
  %v465 = vmul.f32 0.5, %v464
  %v466 = vsub.f32 1.5, %v465
  %v467 = vmul.f32 %v462, %v466
  %vm468 = vweird.f32 %v448
  %vm469 = vweird.f32 %v462
  %vm470 = vmor %vm468, %vm469
  %v471 = vsel %vm470, %v462, %v467
  %v472 = vrsqrt.pop %v449
  %v473 = vmul.f32 %v472, %v449
  %v474 = vmul.f32 %v473, %v472
  %v475 = vmul.f32 0.5, %v474
  %v476 = vsub.f32 1.5, %v475
  %v477 = vmul.f32 %v472, %v476
  %vm478 = vweird.f32 %v449
  %vm479 = vweird.f32 %v472
  %vm480 = vmor %vm478, %vm479
  %v481 = vsel %vm480, %v472, %v477
  %v482 = vrsqrt.pop %v450
  %v483 = vmul.f32 %v482, %v450
  %v484 = vmul.f32 %v483, %v482
  %v485 = vmul.f32 0.5, %v484
  %v486 = vsub.f32 1.5, %v485
  %v487 = vmul.f32 %v482, %v486
  %vm488 = vweird.f32 %v450
  %vm489 = vweird.f32 %v482
  %vm490 = vmor %vm488, %vm489
  %v491 = vsel %vm490, %v482, %v487
  %v492 = vrsqrt.pop %v451
  %v493 = vmul.f32 %v492, %v451
  %v494 = vmul.f32 %v493, %v492
  %v495 = vmul.f32 0.5, %v494
  %v496 = vsub.f32 1.5, %v495
  %v497 = vmul.f32 %v492, %v496
  %vm498 = vweird.f32 %v451
  %vm499 = vweird.f32 %v492
  %vm500 = vmor %vm498, %vm499
  %v501 = vsel %vm500, %v492, %v497
  %v507 = vperm.slane %v461, 0
  %v508 = vperm.slane %v461, 1
  %v509 = vperm.slane %v461, 2
  %v510 = vperm.slane %v461, 3
  %v511 = vperm.slane %v461, 4
  %v512 = vperm.slane %v461, 5
  %v513 = vperm.slane %v461, 6
  %v514 = vperm.slane %v461, 7
  %v515 = vperm.slane %v471, 0
  %v516 = vperm.slane %v471, 1
  %v517 = vperm.slane %v471, 2
  %v518 = vperm.slane %v471, 3
  %v519 = vperm.slane %v471, 4
  %v520 = vperm.slane %v471, 5
  %v521 = vperm.slane %v471, 6
  %v522 = vperm.slane %v471, 7
  %v523 = vperm.slane %v481, 0
  %v524 = vperm.slane %v481, 1
  %v525 = vperm.slane %v481, 2
  %v526 = vperm.slane %v481, 3
  %v527 = vperm.slane %v481, 4
  %v528 = vperm.slane %v481, 5
  %v529 = vperm.slane %v481, 6
  %v530 = vperm.slane %v481, 7
  %v531 = vperm.slane %v491, 0
  %v532 = vperm.slane %v491, 1
  %v533 = vperm.slane %v491, 2
  %v534 = vperm.slane %v491, 3
  %v535 = vperm.slane %v491, 4
  %v536 = vperm.slane %v491, 5
  %v537 = vperm.slane %v491, 6
  %v538 = vperm.slane %v491, 7
  %v539 = vperm.slane %v501, 0
  %v540 = vperm.slane %v501, 1
  %v575 = vmul.f32 %v274, %v507
  %v576 = vmul.f32 %v275, %v508
  %v577 = vmul.f32 %v276, %v509
  %v578 = vmul.f32 %v277, %v510
  %v579 = vmul.f32 %v278, %v511
  %v580 = vmul.f32 %v279, %v512
  %v581 = vmul.f32 %v280, %v513
  %v582 = vmul.f32 %v281, %v514
  %v583 = vmul.f32 %v282, %v515
  %v584 = vmul.f32 %v283, %v516
  %v585 = vmul.f32 %v284, %v517
  %v586 = vmul.f32 %v285, %v518
  %v587 = vmul.f32 %v286, %v519
  %v588 = vmul.f32 %v287, %v520
  %v589 = vmul.f32 %v288, %v521
  %v590 = vmul.f32 %v289, %v522
  %v591 = vmul.f32 %v290, %v523
  %v592 = vmul.f32 %v291, %v524
  %v593 = vmul.f32 %v292, %v525
  %v594 = vmul.f32 %v293, %v526
  %v595 = vmul.f32 %v294, %v527
  %v596 = vmul.f32 %v295, %v528
  %v597 = vmul.f32 %v296, %v529
  %v598 = vmul.f32 %v297, %v530
  %v599 = vmul.f32 %v298, %v531
  %v600 = vmul.f32 %v299, %v532
  %v601 = vmul.f32 %v300, %v533
  %v602 = vmul.f32 %v301, %v534
  %v603 = vmul.f32 %v302, %v535
  %v604 = vmul.f32 %v303, %v536
  %v605 = vmul.f32 %v304, %v537
  %v606 = vmul.f32 %v305, %v538
  %v607 = vmul.f32 %v306, %v539
  %v608 = vmul.f32 %v307, %v540
  %v610 = vperm.slane %v119, 0
  %v612 = vrot.slane %v610, 1
  %v613 = vrot.slane %v610, 2
  %v614 = vrot.slane %v610, 3
  %v615 = vrot.slane %v610, 4
  %v616 = vrot.slane %v610, 5
  %v617 = vrot.slane %v610, 6
  %v618 = vrot.slane %v610, 7
  %v626 = vmul.f32 %v575, %v610
  %v627 = vmul.f32 %v576, %v612
  %v628 = vmul.f32 %v577, %v613
  %v629 = vmul.f32 %v578, %v614
  %v630 = vmul.f32 %v579, %v615
  %v631 = vmul.f32 %v580, %v616
  %v632 = vmul.f32 %v581, %v617
  %v633 = vmul.f32 %v582, %v618
  %v634 = vmul.f32 %v583, %v610
  %v635 = vmul.f32 %v584, %v612
  %v636 = vmul.f32 %v585, %v613
  %v637 = vmul.f32 %v586, %v614
  %v638 = vmul.f32 %v587, %v615
  %v639 = vmul.f32 %v588, %v616
  %v640 = vmul.f32 %v589, %v617
  %v641 = vmul.f32 %v590, %v618
  %v642 = vmul.f32 %v591, %v610
  %v643 = vmul.f32 %v592, %v612
  %v644 = vmul.f32 %v593, %v613
  %v645 = vmul.f32 %v594, %v614
  %v646 = vmul.f32 %v595, %v615
  %v647 = vmul.f32 %v596, %v616
  %v648 = vmul.f32 %v597, %v617
  %v649 = vmul.f32 %v598, %v618
  %v650 = vmul.f32 %v599, %v610
  %v651 = vmul.f32 %v600, %v612
  %v652 = vmul.f32 %v601, %v613
  %v653 = vmul.f32 %v602, %v614
  %v654 = vmul.f32 %v603, %v615
  %v655 = vmul.f32 %v604, %v616
  %v656 = vmul.f32 %v605, %v617
  %v657 = vmul.f32 %v606, %v618
  %v658 = vmul.f32 %v607, %v610
  %v659 = vmul.f32 %v608, %v612
  %v661 = vperm.slane %v120, 0
  %v663 = vrot.slane %v661, 1
  %v664 = vrot.slane %v661, 2
  %v665 = vrot.slane %v661, 3
  %v666 = vrot.slane %v661, 4
  %v667 = vrot.slane %v661, 5
  %v668 = vrot.slane %v661, 6
  %v669 = vrot.slane %v661, 7
  %v677 = vadd.f32 %v626, %v661
  %v678 = vadd.f32 %v627, %v663
  %v679 = vadd.f32 %v628, %v664
  %v680 = vadd.f32 %v629, %v665
  %v681 = vadd.f32 %v630, %v666
  %v682 = vadd.f32 %v631, %v667
  %v683 = vadd.f32 %v632, %v668
  %v684 = vadd.f32 %v633, %v669
  %v685 = vadd.f32 %v634, %v661
  %v686 = vadd.f32 %v635, %v663
  %v687 = vadd.f32 %v636, %v664
  %v688 = vadd.f32 %v637, %v665
  %v689 = vadd.f32 %v638, %v666
  %v690 = vadd.f32 %v639, %v667
  %v691 = vadd.f32 %v640, %v668
  %v692 = vadd.f32 %v641, %v669
  %v693 = vadd.f32 %v642, %v661
  %v694 = vadd.f32 %v643, %v663
  %v695 = vadd.f32 %v644, %v664
  %v696 = vadd.f32 %v645, %v665
  %v697 = vadd.f32 %v646, %v666
  %v698 = vadd.f32 %v647, %v667
  %v699 = vadd.f32 %v648, %v668
  %v700 = vadd.f32 %v649, %v669
  %v701 = vadd.f32 %v650, %v661
  %v702 = vadd.f32 %v651, %v663
  %v703 = vadd.f32 %v652, %v664
  %v704 = vadd.f32 %v653, %v665
  %v705 = vadd.f32 %v654, %v666
  %v706 = vadd.f32 %v655, %v667
  %v707 = vadd.f32 %v656, %v668
  %v708 = vadd.f32 %v657, %v669
  %v709 = vadd.f32 %v658, %v661
  %v710 = vadd.f32 %v659, %v663
  %745 = vst [vmem:[#allocation1] ss:$9 sm:$0xff] %v677
  %s746 = scalar_lea.vmem [#allocation1], 1
  %747 = vst [vmem:[%s746] ss:$9 sm:$0xff] %v678
  %s748 = scalar_lea.vmem [#allocation1], 2
  %749 = vst [vmem:[%s748] ss:$9 sm:$0xff] %v679
  %s750 = scalar_lea.vmem [#allocation1], 3
  %751 = vst [vmem:[%s750] ss:$9 sm:$0xff] %v680
  %s752 = scalar_lea.vmem [#allocation1], 4
  %753 = vst [vmem:[%s752] ss:$9 sm:$0xff] %v681
  %s754 = scalar_lea.vmem [#allocation1], 5
  %755 = vst [vmem:[%s754] ss:$9 sm:$0xff] %v682
  %s756 = scalar_lea.vmem [#allocation1], 6
  %757 = vst [vmem:[%s756] ss:$9 sm:$0xff] %v683
  %s758 = scalar_lea.vmem [#allocation1], 7
  %759 = vst [vmem:[%s758] ss:$9 sm:$0xff] %v684
  %v760 = vld [vmem:[#allocation1] sm:$0xff]
  %761 = vst [vmem:[#allocation1] ss:$9 sm:$0xff] %v685
  %762 = vst [vmem:[%s746] ss:$9 sm:$0xff] %v686
  %763 = vst [vmem:[%s748] ss:$9 sm:$0xff] %v687
  %764 = vst [vmem:[%s750] ss:$9 sm:$0xff] %v688
  %765 = vst [vmem:[%s752] ss:$9 sm:$0xff] %v689
  %766 = vst [vmem:[%s754] ss:$9 sm:$0xff] %v690
  %767 = vst [vmem:[%s756] ss:$9 sm:$0xff] %v691
  %768 = vst [vmem:[%s758] ss:$9 sm:$0xff] %v692
  %v769 = vld [vmem:[#allocation1] sm:$0xff]
  %770 = vst [vmem:[#allocation1] ss:$9 sm:$0xff] %v693
  %771 = vst [vmem:[%s746] ss:$9 sm:$0xff] %v694
  %772 = vst [vmem:[%s748] ss:$9 sm:$0xff] %v695
  %773 = vst [vmem:[%s750] ss:$9 sm:$0xff] %v696
  %774 = vst [vmem:[%s752] ss:$9 sm:$0xff] %v697
  %775 = vst [vmem:[%s754] ss:$9 sm:$0xff] %v698
  %776 = vst [vmem:[%s756] ss:$9 sm:$0xff] %v699
  %777 = vst [vmem:[%s758] ss:$9 sm:$0xff] %v700
  %v778 = vld [vmem:[#allocation1] sm:$0xff]
  %779 = vst [vmem:[#allocation1] ss:$9 sm:$0xff] %v701
  %780 = vst [vmem:[%s746] ss:$9 sm:$0xff] %v702
  %781 = vst [vmem:[%s748] ss:$9 sm:$0xff] %v703
  %782 = vst [vmem:[%s750] ss:$9 sm:$0xff] %v704
  %783 = vst [vmem:[%s752] ss:$9 sm:$0xff] %v705
  %784 = vst [vmem:[%s754] ss:$9 sm:$0xff] %v706
  %785 = vst [vmem:[%s756] ss:$9 sm:$0xff] %v707
  %786 = vst [vmem:[%s758] ss:$9 sm:$0xff] %v708
  %v787 = vld [vmem:[#allocation1] sm:$0xff]
  %788 = vst [vmem:[#allocation1] ss:$9 sm:$0xff] %v709
  %789 = vst [vmem:[%s746] ss:$9 sm:$0xff] %v710
  %v790 = vld [vmem:[#allocation1] sm:$0xff]
  %v796 = vpack.c.bf16 %v769, %v760
  %v797 = vpack.c.bf16 %v787, %v778
  %v798 = vpack.c.bf16 %v790, %v790
  %v799 = vld [vmem:[%s3] sm:$0xf]
  %v800 = vld [vmem:[%s3 + $0x4] sm:$0xf]
  %v801 = vld [vmem:[%s3 + $0x8] sm:$0xf]
  %v802 = vld [vmem:[%s3 + $0xc] sm:$0xf]
  %v803 = vld [vmem:[%s4] sm:$0x1]
  %v805 = vperm.slane %v803, 0
  %v811 = vunpack.c.l.b16 %v799
  %v812 = vunpack.c.l.b16 %v800
  %v813 = vunpack.c.l.b16 %v801
  %v814 = vunpack.c.l.b16 %v802
  %v815 = vpack.c.b16 %v812, %v811
  %v816 = vpack.c.b16 %v814, %v813
  %v820 = vsel %vm172, %v796, 0
  %v823 = vsel %vm172, %v797, 0
  %v826 = vsel %vm172, %v798, 0
  %828 = vmatpush.bf16.msra.mxu0 0
  %829 = vmatpush.bf16.msra.mxu0 0
  %830 = vmatpush.bf16.msra.mxu0 0
  %831 = vmatpush.bf16.msra.mxu0 0
  %832 = vmatpush.bf16.msra.mxu0 0
  %833 = vmatpush.bf16.msra.mxu0 0
  %834 = vmatpush.bf16.msra.mxu0 %v816
  %835 = vmatpush.bf16.msra.mxu0 %v815
  %836 = vmatmul.bf16.gmra.mxu0 %v820
  %v837 = vpop.f32.mrf.mxu0
  %v838 = vadd.f32 %v805, %v837
  %v839 = vpop.f32.mrf.mxu0
  %v840 = vadd.f32 %v805, %v839
  %841 = vmatmul.bf16.gmra.mxu0 %v823
  %v842 = vpop.f32.mrf.mxu0
  %v843 = vadd.f32 %v805, %v842
  %v844 = vpop.f32.mrf.mxu0
  %v845 = vadd.f32 %v805, %v844
  %846 = vmatmul.bf16.gmra.mxu0 %v826
  %v847 = vpop.f32.mrf.mxu0
  %v848 = vadd.f32 %v805, %v847
  %v849 = vpop.f32.mrf.mxu0
  %850 = vdwg.mxu0
  %v856 = vrot.slane %v838, 1
  %v857 = vrot.slane %v838, 2
  %v858 = vrot.slane %v838, 3
  %v859 = vrot.slane %v838, 4
  %v860 = vrot.slane %v838, 5
  %v861 = vrot.slane %v838, 6
  %v862 = vrot.slane %v838, 7
  %v863 = vrot.slane %v840, 1
  %v864 = vrot.slane %v840, 2
  %v865 = vrot.slane %v840, 3
  %v866 = vrot.slane %v840, 4
  %v867 = vrot.slane %v840, 5
  %v868 = vrot.slane %v840, 6
  %v869 = vrot.slane %v840, 7
  %v870 = vrot.slane %v843, 1
  %v871 = vrot.slane %v843, 2
  %v872 = vrot.slane %v843, 3
  %v873 = vrot.slane %v843, 4
  %v874 = vrot.slane %v843, 5
  %v875 = vrot.slane %v843, 6
  %v876 = vrot.slane %v843, 7
  %v877 = vrot.slane %v845, 1
  %v878 = vrot.slane %v845, 2
  %v879 = vrot.slane %v845, 3
  %v880 = vrot.slane %v845, 4
  %v881 = vrot.slane %v845, 5
  %v882 = vrot.slane %v845, 6
  %v883 = vrot.slane %v845, 7
  %v884 = vrot.slane %v848, 1
  %v914 = vld [vmem:[%s5] sm:$0xf]
  %v915 = vld [vmem:[%s5 + $0x4] sm:$0xf]
  %v916 = vld [vmem:[%s5 + $0x8] sm:$0xf]
  %v917 = vld [vmem:[%s5 + $0xc] sm:$0xf]
  %v918 = vmul.f32 %v838, 0.25
  %v919 = vmul.f32 %v856, 0.25
  %v920 = vmul.f32 %v857, 0.25
  %v921 = vmul.f32 %v858, 0.25
  %v922 = vmul.f32 %v859, 0.25
  %v923 = vmul.f32 %v860, 0.25
  %v924 = vmul.f32 %v861, 0.25
  %v925 = vmul.f32 %v862, 0.25
  %v926 = vmul.f32 %v840, 0.25
  %v927 = vmul.f32 %v863, 0.25
  %v928 = vmul.f32 %v864, 0.25
  %v929 = vmul.f32 %v865, 0.25
  %v930 = vmul.f32 %v866, 0.25
  %v931 = vmul.f32 %v867, 0.25
  %v932 = vmul.f32 %v868, 0.25
  %v933 = vmul.f32 %v869, 0.25
  %v934 = vmul.f32 %v843, 0.25
  %v935 = vmul.f32 %v870, 0.25
  %v936 = vmul.f32 %v871, 0.25
  %v937 = vmul.f32 %v872, 0.25
  %v938 = vmul.f32 %v873, 0.25
  %v939 = vmul.f32 %v874, 0.25
  %v940 = vmul.f32 %v875, 0.25
  %v941 = vmul.f32 %v876, 0.25
  %v942 = vmul.f32 %v845, 0.25
  %v943 = vmul.f32 %v877, 0.25
  %v944 = vmul.f32 %v878, 0.25
  %v945 = vmul.f32 %v879, 0.25
  %v946 = vmul.f32 %v880, 0.25
  %v947 = vmul.f32 %v881, 0.25
  %v948 = vmul.f32 %v882, 0.25
  %v949 = vmul.f32 %v883, 0.25
  %v950 = vmul.f32 %v848, 0.25
  %v951 = vmul.f32 %v884, 0.25
  %986 = vst [vmem:[#allocation1] ss:$9 sm:$0xff] %v918
  %s987 = scalar_lea.vmem [#allocation1], 1
  %988 = vst [vmem:[%s987] ss:$9 sm:$0xff] %v919
  %s989 = scalar_lea.vmem [#allocation1], 2
  %990 = vst [vmem:[%s989] ss:$9 sm:$0xff] %v920
  %s991 = scalar_lea.vmem [#allocation1], 3
  %992 = vst [vmem:[%s991] ss:$9 sm:$0xff] %v921
  %s993 = scalar_lea.vmem [#allocation1], 4
  %994 = vst [vmem:[%s993] ss:$9 sm:$0xff] %v922
  %s995 = scalar_lea.vmem [#allocation1], 5
  %996 = vst [vmem:[%s995] ss:$9 sm:$0xff] %v923
  %s997 = scalar_lea.vmem [#allocation1], 6
  %998 = vst [vmem:[%s997] ss:$9 sm:$0xff] %v924
  %s999 = scalar_lea.vmem [#allocation1], 7
  %1000 = vst [vmem:[%s999] ss:$9 sm:$0xff] %v925
  %v1001 = vld [vmem:[#allocation1] sm:$0xff]
  %1002 = vst [vmem:[#allocation1] ss:$9 sm:$0xff] %v926
  %1003 = vst [vmem:[%s987] ss:$9 sm:$0xff] %v927
  %1004 = vst [vmem:[%s989] ss:$9 sm:$0xff] %v928
  %1005 = vst [vmem:[%s991] ss:$9 sm:$0xff] %v929
  %1006 = vst [vmem:[%s993] ss:$9 sm:$0xff] %v930
  %1007 = vst [vmem:[%s995] ss:$9 sm:$0xff] %v931
  %1008 = vst [vmem:[%s997] ss:$9 sm:$0xff] %v932
  %1009 = vst [vmem:[%s999] ss:$9 sm:$0xff] %v933
  %v1010 = vld [vmem:[#allocation1] sm:$0xff]
  %1011 = vst [vmem:[#allocation1] ss:$9 sm:$0xff] %v934
  %v1012 = vld [vmem:[#allocation1] sm:$0xff]
  %1013 = vst [vmem:[#allocation1] ss:$9 sm:$0xff] %v935
  %1014 = vst [vmem:[%s987] ss:$9 sm:$0xff] %v936
  %1015 = vst [vmem:[%s989] ss:$9 sm:$0xff] %v937
  %1016 = vst [vmem:[%s991] ss:$9 sm:$0xff] %v938
  %1017 = vst [vmem:[%s993] ss:$9 sm:$0xff] %v939
  %1018 = vst [vmem:[%s995] ss:$9 sm:$0xff] %v940
  %1019 = vst [vmem:[%s997] ss:$9 sm:$0xff] %v941
  %1020 = vst [vmem:[%s999] ss:$9 sm:$0xff] %v942
  %v1021 = vld [vmem:[#allocation1] sm:$0xff]
  %1022 = vst [vmem:[#allocation1] ss:$9 sm:$0xff] %v943
  %1023 = vst [vmem:[%s987] ss:$9 sm:$0xff] %v944
  %1024 = vst [vmem:[%s989] ss:$9 sm:$0xff] %v945
  %1025 = vst [vmem:[%s991] ss:$9 sm:$0xff] %v946
  %1026 = vst [vmem:[%s993] ss:$9 sm:$0xff] %v947
  %1027 = vst [vmem:[%s995] ss:$9 sm:$0xff] %v948
  %1028 = vst [vmem:[%s997] ss:$9 sm:$0xff] %v949
  %1029 = vst [vmem:[%s999] ss:$9 sm:$0xff] %v950
  %v1030 = vld [vmem:[#allocation1] sm:$0xff]
  %1031 = vst [vmem:[#allocation1] ss:$9 sm:$0xff] %v951
  %v1032 = vld [vmem:[#allocation1] sm:$0xff]
  %v1039 = vpack.c.bf16 %v1001, %v1001
  %v1040 = vpack.c.bf16 %v1010, %v1010
  %v1041 = vpack.c.bf16 %v1012, %v1012
  %v1042 = vpack.c.bf16 %v1021, %v1021
  %v1043 = vpack.c.bf16 %v1030, %v1030
  %v1044 = vpack.c.bf16 %v1032, %v1032
  %1045 = vst [vmem:[#allocation1] ss:$9 sm:$0xff] %v838
  %s1046 = scalar_lea.vmem [#allocation1], 1
  %1047 = vst [vmem:[%s1046] ss:$9 sm:$0xff] %v856
  %s1048 = scalar_lea.vmem [#allocation1], 2
  %1049 = vst [vmem:[%s1048] ss:$9 sm:$0xff] %v857
  %s1050 = scalar_lea.vmem [#allocation1], 3
  %1051 = vst [vmem:[%s1050] ss:$9 sm:$0xff] %v858
  %s1052 = scalar_lea.vmem [#allocation1], 4
  %1053 = vst [vmem:[%s1052] ss:$9 sm:$0xff] %v859
  %s1054 = scalar_lea.vmem [#allocation1], 5
  %1055 = vst [vmem:[%s1054] ss:$9 sm:$0xff] %v860
  %s1056 = scalar_lea.vmem [#allocation1], 6
  %1057 = vst [vmem:[%s1056] ss:$9 sm:$0xff] %v861
  %s1058 = scalar_lea.vmem [#allocation1], 7
  %1059 = vst [vmem:[%s1058] ss:$9 sm:$0xff] %v862
  %v1060 = vld [vmem:[#allocation1] sm:$0xff]
  %1061 = vst [vmem:[#allocation1] ss:$9 sm:$0xff] %v840
  %1062 = vst [vmem:[%s1046] ss:$9 sm:$0xff] %v863
  %1063 = vst [vmem:[%s1048] ss:$9 sm:$0xff] %v864
  %1064 = vst [vmem:[%s1050] ss:$9 sm:$0xff] %v865
  %1065 = vst [vmem:[%s1052] ss:$9 sm:$0xff] %v866
  %1066 = vst [vmem:[%s1054] ss:$9 sm:$0xff] %v867
  %1067 = vst [vmem:[%s1056] ss:$9 sm:$0xff] %v868
  %1068 = vst [vmem:[%s1058] ss:$9 sm:$0xff] %v869
  %v1069 = vld [vmem:[#allocation1] sm:$0xff]
  %1070 = vst [vmem:[#allocation1] ss:$9 sm:$0xff] %v843
  %v1071 = vld [vmem:[#allocation1] sm:$0xff]
  %1072 = vst [vmem:[#allocation1] ss:$9 sm:$0xff] %v870
  %1073 = vst [vmem:[%s1046] ss:$9 sm:$0xff] %v871
  %1074 = vst [vmem:[%s1048] ss:$9 sm:$0xff] %v872
  %1075 = vst [vmem:[%s1050] ss:$9 sm:$0xff] %v873
  %1076 = vst [vmem:[%s1052] ss:$9 sm:$0xff] %v874
  %1077 = vst [vmem:[%s1054] ss:$9 sm:$0xff] %v875
  %1078 = vst [vmem:[%s1056] ss:$9 sm:$0xff] %v876
  %1079 = vst [vmem:[%s1058] ss:$9 sm:$0xff] %v845
  %v1080 = vld [vmem:[#allocation1] sm:$0xff]
  %1081 = vst [vmem:[#allocation1] ss:$9 sm:$0xff] %v877
  %1082 = vst [vmem:[%s1046] ss:$9 sm:$0xff] %v878
  %1083 = vst [vmem:[%s1048] ss:$9 sm:$0xff] %v879
  %1084 = vst [vmem:[%s1050] ss:$9 sm:$0xff] %v880
  %1085 = vst [vmem:[%s1052] ss:$9 sm:$0xff] %v881
  %1086 = vst [vmem:[%s1054] ss:$9 sm:$0xff] %v882
  %1087 = vst [vmem:[%s1056] ss:$9 sm:$0xff] %v883
  %1088 = vst [vmem:[%s1058] ss:$9 sm:$0xff] %v848
  %v1089 = vld [vmem:[#allocation1] sm:$0xff]
  %1090 = vst [vmem:[#allocation1] ss:$9 sm:$0xff] %v884
  %v1091 = vld [vmem:[#allocation1] sm:$0xff]
  %v1098 = vpack.c.bf16 %v1060, %v1060
  %v1099 = vpack.c.bf16 %v1069, %v1069
  %v1100 = vpack.c.bf16 %v1071, %v1071
  %v1101 = vpack.c.bf16 %v1080, %v1080
  %v1102 = vpack.c.bf16 %v1089, %v1089
  %v1103 = vpack.c.bf16 %v1091, %v1091
  %1104 = vst [vmem:[#allocation1] ss:$9 sm:$0xff] %v838
  %s1105 = scalar_lea.vmem [#allocation1], 1
  %1106 = vst [vmem:[%s1105] ss:$9 sm:$0xff] %v856
  %s1107 = scalar_lea.vmem [#allocation1], 2
  %1108 = vst [vmem:[%s1107] ss:$9 sm:$0xff] %v857
  %s1109 = scalar_lea.vmem [#allocation1], 3
  %1110 = vst [vmem:[%s1109] ss:$9 sm:$0xff] %v858
  %s1111 = scalar_lea.vmem [#allocation1], 4
  %1112 = vst [vmem:[%s1111] ss:$9 sm:$0xff] %v859
  %s1113 = scalar_lea.vmem [#allocation1], 5
  %1114 = vst [vmem:[%s1113] ss:$9 sm:$0xff] %v860
  %s1115 = scalar_lea.vmem [#allocation1], 6
  %1116 = vst [vmem:[%s1115] ss:$9 sm:$0xff] %v861
  %s1117 = scalar_lea.vmem [#allocation1], 7
  %1118 = vst [vmem:[%s1117] ss:$9 sm:$0xff] %v862
  %v1119 = vld [vmem:[#allocation1] sm:$0xff]
  %1120 = vst [vmem:[#allocation1] ss:$9 sm:$0xff] %v840
  %1121 = vst [vmem:[%s1105] ss:$9 sm:$0xff] %v863
  %1122 = vst [vmem:[%s1107] ss:$9 sm:$0xff] %v864
  %1123 = vst [vmem:[%s1109] ss:$9 sm:$0xff] %v865
  %1124 = vst [vmem:[%s1111] ss:$9 sm:$0xff] %v866
  %1125 = vst [vmem:[%s1113] ss:$9 sm:$0xff] %v867
  %1126 = vst [vmem:[%s1115] ss:$9 sm:$0xff] %v868
  %1127 = vst [vmem:[%s1117] ss:$9 sm:$0xff] %v869
  %v1128 = vld [vmem:[#allocation1] sm:$0xff]
  %1129 = vst [vmem:[#allocation1] ss:$9 sm:$0xff] %v843
  %v1130 = vld [vmem:[#allocation1] sm:$0xff]
  %1131 = vst [vmem:[#allocation1] ss:$9 sm:$0xff] %v870
  %1132 = vst [vmem:[%s1105] ss:$9 sm:$0xff] %v871
  %1133 = vst [vmem:[%s1107] ss:$9 sm:$0xff] %v872
  %1134 = vst [vmem:[%s1109] ss:$9 sm:$0xff] %v873
  %1135 = vst [vmem:[%s1111] ss:$9 sm:$0xff] %v874
  %1136 = vst [vmem:[%s1113] ss:$9 sm:$0xff] %v875
  %1137 = vst [vmem:[%s1115] ss:$9 sm:$0xff] %v876
  %1138 = vst [vmem:[%s1117] ss:$9 sm:$0xff] %v845
  %v1139 = vld [vmem:[#allocation1] sm:$0xff]
  %1140 = vst [vmem:[#allocation1] ss:$9 sm:$0xff] %v877
  %1141 = vst [vmem:[%s1105] ss:$9 sm:$0xff] %v878
  %1142 = vst [vmem:[%s1107] ss:$9 sm:$0xff] %v879
  %1143 = vst [vmem:[%s1109] ss:$9 sm:$0xff] %v880
  %1144 = vst [vmem:[%s1111] ss:$9 sm:$0xff] %v881
  %1145 = vst [vmem:[%s1113] ss:$9 sm:$0xff] %v882
  %1146 = vst [vmem:[%s1115] ss:$9 sm:$0xff] %v883
  %1147 = vst [vmem:[%s1117] ss:$9 sm:$0xff] %v848
  %v1148 = vld [vmem:[#allocation1] sm:$0xff]
  %1149 = vst [vmem:[#allocation1] ss:$9 sm:$0xff] %v884
  %v1150 = vld [vmem:[#allocation1] sm:$0xff]
  %v1157 = vpack.c.bf16 %v1119, %v1119
  %v1158 = vpack.c.bf16 %v1128, %v1128
  %v1159 = vpack.c.bf16 %v1130, %v1130
  %v1160 = vpack.c.bf16 %v1139, %v1139
  %v1161 = vpack.c.bf16 %v1148, %v1148
  %v1162 = vpack.c.bf16 %v1150, %v1150
  %v1166 = vunpack.c.l.b16 %v1039
  %v1167 = vunpack.c.l.b16 %v1040
  %v1168 = vunpack.c.l.b16 %v1041
  %v1169 = vpack.c.b16 %v1167, %v1166
  %v1170 = vpack.c.b16 %v1168, %v1168
  %v1174 = vunpack.c.l.b16 %v1098
  %v1175 = vunpack.c.l.b16 %v1099
  %v1176 = vunpack.c.l.b16 %v1100
  %v1177 = vpack.c.b16 %v1175, %v1174
  %v1178 = vpack.c.b16 %v1176, %v1176
  %1179 = vrot.lane.b32.xlu0 %v1177, 96
  %v1180 = vpop.permute.xlu0 %1179
  %1181 = vrot.lane.b32.xlu0 %v1178, 96
  %v1182 = vpop.permute.xlu0 %1181
  %vm1183 = vcmask 130048
  %v1185 = vsel %vm1183, %v1169, 0
  %v1188 = vsel %vm1183, %v1170, 0
  %v1191 = vsel %vm1183, %v1180, 0
  %v1194 = vsel %vm1183, %v1182, 0
  %1196 = vmatpush.bf16.xpose.msra.mxu0 0
  %1197 = vmatpush.bf16.xpose.msra.mxu0 0
  %1198 = vmatpush.bf16.xpose.msra.mxu0 0
  %1199 = vmatpush.bf16.xpose.msra.mxu0 0
  %1200 = vmatpush.bf16.xpose.msra.mxu0 0
  %1201 = vmatpush.bf16.xpose.msra.mxu0 0
  %1202 = vmatpush.bf16.xpose.msra.mxu0 %v1194
  %1203 = vmatpush.bf16.xpose.msra.mxu0 %v1191
  %1204 = vmatmul.bf16.gmra.mxu0 %v1185
  %v1205 = vpop.f32.mrf.mxu0
  %v1206 = vadd.f32 0.0, %v1205
  %v1207 = vpop.f32.mrf.mxu0
  %v1208 = vadd.f32 0.0, %v1207
  %1209 = vmatmul.bf16.gmra.mxu0 %v1188
  %v1210 = vpop.f32.mrf.mxu0
  %v1211 = vadd.f32 0.0, %v1210
  %v1212 = vpop.f32.mrf.mxu0
  %1213 = vdwg.mxu0
  %v1217 = vunpack.c.l.b16 %v1042
  %v1218 = vunpack.c.l.b16 %v1043
  %v1219 = vunpack.c.l.b16 %v1044
  %v1220 = vpack.c.b16 %v1218, %v1217
  %v1221 = vpack.c.b16 %v1219, %v1219
  %v1225 = vunpack.c.l.b16 %v1101
  %v1226 = vunpack.c.l.b16 %v1102
  %v1227 = vunpack.c.l.b16 %v1103
  %v1228 = vpack.c.b16 %v1226, %v1225
  %v1229 = vpack.c.b16 %v1227, %v1227
  %1230 = vrot.lane.b32.xlu0 %v1228, 96
  %v1231 = vpop.permute.xlu0 %1230
  %1232 = vrot.lane.b32.xlu0 %v1229, 96
  %v1233 = vpop.permute.xlu0 %1232
  %v1235 = vsel %vm1183, %v1220, 0
  %v1238 = vsel %vm1183, %v1221, 0
  %v1241 = vsel %vm1183, %v1231, 0
  %v1244 = vsel %vm1183, %v1233, 0
  %1246 = vmatpush.bf16.xpose.msra.mxu0 0
  %1247 = vmatpush.bf16.xpose.msra.mxu0 0
  %1248 = vmatpush.bf16.xpose.msra.mxu0 0
  %1249 = vmatpush.bf16.xpose.msra.mxu0 0
  %1250 = vmatpush.bf16.xpose.msra.mxu0 0
  %1251 = vmatpush.bf16.xpose.msra.mxu0 0
  %1252 = vmatpush.bf16.xpose.msra.mxu0 %v1244
  %1253 = vmatpush.bf16.xpose.msra.mxu0 %v1241
  %1254 = vmatmul.bf16.gmra.mxu0 %v1235
  %v1255 = vpop.f32.mrf.mxu0
  %v1256 = vadd.f32 0.0, %v1255
  %v1257 = vpop.f32.mrf.mxu0
  %v1258 = vadd.f32 0.0, %v1257
  %1259 = vmatmul.bf16.gmra.mxu0 %v1238
  %v1260 = vpop.f32.mrf.mxu0
  %v1261 = vadd.f32 0.0, %v1260
  %v1262 = vpop.f32.mrf.mxu0
  %1263 = vdwg.mxu0
  %vm1264 = vcmask 138240
  %v1265 = vsel %vm1264, %v1206, -inf
  %1266 = vmax.xlane.f32.xlu0 %v1265
  %v1267 = vpop.xlane.xlu0 %1266
  %v1268 = vsel %vm1264, %v1208, -inf
  %1269 = vmax.xlane.f32.xlu0 %v1268
  %v1270 = vpop.xlane.xlu0 %1269
  %vm1271 = vcmask 131072
  %v1272 = vsel %vm1271, %v1211, -inf
  %1273 = vmax.xlane.f32.xlu0 %v1272
  %v1274 = vpop.xlane.xlu0 %1273
  %v1275 = vsel %vm1264, %v1256, -inf
  %1276 = vmax.xlane.f32.xlu0 %v1275
  %v1277 = vpop.xlane.xlu0 %1276
  %v1278 = vsel %vm1264, %v1258, -inf
  %1279 = vmax.xlane.f32.xlu0 %v1278
  %v1280 = vpop.xlane.xlu0 %1279
  %v1281 = vsel %vm1271, %v1261, -inf
  %1282 = vmax.xlane.f32.xlu0 %v1281
  %v1283 = vpop.xlane.xlu0 %1282
  %v1284 = vsub.f32 %v1206, %v1267
  %v1285 = vsub.f32 %v1208, %v1270
  %v1286 = vsub.f32 %v1211, %v1274
  %v1287 = vsub.f32 %v1256, %v1277
  %v1288 = vsub.f32 %v1258, %v1280
  %v1289 = vsub.f32 %v1261, %v1283
  %v1290 = vmul.f32 %v1284, 1.442695
  %v1291 = vpow.pop %v1290
  %v1292 = vmul.f32 %v1285, 1.442695
  %v1293 = vpow.pop %v1292
  %v1294 = vmul.f32 %v1286, 1.442695
  %v1295 = vpow.pop %v1294
  %v1296 = vmul.f32 %v1287, 1.442695
  %v1297 = vpow.pop %v1296
  %v1298 = vmul.f32 %v1288, 1.442695
  %v1299 = vpow.pop %v1298
  %v1300 = vmul.f32 %v1289, 1.442695
  %v1301 = vpow.pop %v1300
  %v1302 = vsel %vm1264, %v1291, 0.0
  %1303 = vadd.xlane.f32.xlu0 %v1302
  %v1304 = vpop.xlane.xlu0 %1303
  %v1305 = vsel %vm1264, %v1293, 0.0
  %1306 = vadd.xlane.f32.xlu0 %v1305
  %v1307 = vpop.xlane.xlu0 %1306
  %v1308 = vsel %vm1271, %v1295, 0.0
  %1309 = vadd.xlane.f32.xlu0 %v1308
  %v1310 = vpop.xlane.xlu0 %1309
  %v1311 = vsel %vm1264, %v1297, 0.0
  %1312 = vadd.xlane.f32.xlu0 %v1311
  %v1313 = vpop.xlane.xlu0 %1312
  %v1314 = vsel %vm1264, %v1299, 0.0
  %1315 = vadd.xlane.f32.xlu0 %v1314
  %v1316 = vpop.xlane.xlu0 %1315
  %v1317 = vsel %vm1271, %v1301, 0.0
  %1318 = vadd.xlane.f32.xlu0 %v1317
  %v1319 = vpop.xlane.xlu0 %1318
  %v1320 = vrcp.pop %v1304
  %v1321 = vrcp.pop %v1307
  %v1322 = vrcp.pop %v1310
  %v1323 = vrcp.pop %v1313
  %v1324 = vrcp.pop %v1316
  %v1325 = vrcp.pop %v1319
  %v1326 = vmul.f32 %v1291, %v1320
  %v1327 = vmul.f32 %v1293, %v1321
  %v1328 = vmul.f32 %v1295, %v1322
  %v1329 = vmul.f32 %v1297, %v1323
  %v1330 = vmul.f32 %v1299, %v1324
  %v1331 = vmul.f32 %v1301, %v1325
  %v1332 = vpack.c.bf16 %v1326, %v1326
  %v1333 = vpack.c.bf16 %v1327, %v1327
  %v1334 = vpack.c.bf16 %v1328, %v1328
  %v1335 = vpack.c.bf16 %v1329, %v1329
  %v1336 = vpack.c.bf16 %v1330, %v1330
  %v1337 = vpack.c.bf16 %v1331, %v1331
  %v1341 = vunpack.c.l.b16 %v1332
  %v1342 = vunpack.c.l.b16 %v1333
  %v1343 = vunpack.c.l.b16 %v1334
  %v1344 = vpack.c.b16 %v1342, %v1341
  %v1345 = vpack.c.b16 %v1343, %v1343
  %v1349 = vunpack.c.l.b16 %v1157
  %v1350 = vunpack.c.l.b16 %v1158
  %v1351 = vunpack.c.l.b16 %v1159
  %v1352 = vpack.c.b16 %v1350, %v1349
  %v1353 = vpack.c.b16 %v1351, %v1351
  %1354 = vrot.lane.b32.xlu0 %v1352, 64
  %v1355 = vpop.permute.xlu0 %1354
  %1356 = vrot.lane.b32.xlu0 %v1353, 64
  %v1357 = vpop.permute.xlu0 %1356
  %v1360 = vsel %vm1264, %v1344, 0
  %v1363 = vsel %vm1264, %v1345, 0
  %vm1365 = vcmask 1040384
  %v1366 = vsel 0, 4294967295, 65535
  %v1367 = vsel %vm1365, %v1366, 0
  %v1369 = vand.u32 %v1357, %v1367
  %1371 = vmatpush.bf16.msra.mxu0 0
  %1372 = vmatpush.bf16.msra.mxu0 0
  %1373 = vmatpush.bf16.msra.mxu0 0
  %1374 = vmatpush.bf16.msra.mxu0 0
  %1375 = vmatpush.bf16.msra.mxu0 0
  %1376 = vmatpush.bf16.msra.mxu0 0
  %1377 = vmatpush.bf16.msra.mxu0 %v1369
  %1378 = vmatpush.bf16.msra.mxu0 %v1355
  %1379 = vmatmul.bf16.gmra.mxu0 %v1360
  %v1380 = vpop.f32.mrf.mxu0
  %v1381 = vadd.f32 0.0, %v1380
  %v1382 = vpop.f32.mrf.mxu0
  %v1383 = vadd.f32 0.0, %v1382
  %1384 = vmatmul.bf16.gmra.mxu0 %v1363
  %v1385 = vpop.f32.mrf.mxu0
  %v1386 = vadd.f32 0.0, %v1385
  %v1387 = vpop.f32.mrf.mxu0
  %1388 = vdwg.mxu0
  %v1392 = vunpack.c.l.b16 %v1335
  %v1393 = vunpack.c.l.b16 %v1336
  %v1394 = vunpack.c.l.b16 %v1337
  %v1395 = vpack.c.b16 %v1393, %v1392
  %v1396 = vpack.c.b16 %v1394, %v1394
  %v1400 = vunpack.c.l.b16 %v1160
  %v1401 = vunpack.c.l.b16 %v1161
  %v1402 = vunpack.c.l.b16 %v1162
  %v1403 = vpack.c.b16 %v1401, %v1400
  %v1404 = vpack.c.b16 %v1402, %v1402
  %1405 = vrot.lane.b32.xlu0 %v1403, 64
  %v1406 = vpop.permute.xlu0 %1405
  %1407 = vrot.lane.b32.xlu0 %v1404, 64
  %v1408 = vpop.permute.xlu0 %1407
  %v1411 = vsel %vm1264, %v1395, 0
  %v1414 = vsel %vm1264, %v1396, 0
  %v1417 = vand.u32 %v1408, %v1367
  %1419 = vmatpush.bf16.msra.mxu0 0
  %1420 = vmatpush.bf16.msra.mxu0 0
  %1421 = vmatpush.bf16.msra.mxu0 0
  %1422 = vmatpush.bf16.msra.mxu0 0
  %1423 = vmatpush.bf16.msra.mxu0 0
  %1424 = vmatpush.bf16.msra.mxu0 0
  %1425 = vmatpush.bf16.msra.mxu0 %v1417
  %1426 = vmatpush.bf16.msra.mxu0 %v1406
  %1427 = vmatmul.bf16.gmra.mxu0 %v1411
  %v1428 = vpop.f32.mrf.mxu0
  %v1429 = vadd.f32 0.0, %v1428
  %v1430 = vpop.f32.mrf.mxu0
  %v1431 = vadd.f32 0.0, %v1430
  %1432 = vmatmul.bf16.gmra.mxu0 %v1414
  %v1433 = vpop.f32.mrf.mxu0
  %v1434 = vadd.f32 0.0, %v1433
  %v1435 = vpop.f32.mrf.mxu0
  %1436 = vdwg.mxu0
  %v1443 = vrot.slane %v1381, 1
  %v1444 = vrot.slane %v1381, 2
  %v1445 = vrot.slane %v1381, 3
  %v1446 = vrot.slane %v1381, 4
  %v1447 = vrot.slane %v1381, 5
  %v1448 = vrot.slane %v1381, 6
  %v1449 = vrot.slane %v1381, 7
  %v1450 = vrot.slane %v1383, 1
  %v1451 = vrot.slane %v1383, 2
  %v1452 = vrot.slane %v1383, 3
  %v1453 = vrot.slane %v1383, 4
  %v1454 = vrot.slane %v1383, 5
  %v1455 = vrot.slane %v1383, 6
  %v1456 = vrot.slane %v1383, 7
  %v1457 = vrot.slane %v1429, 1
  %v1458 = vrot.slane %v1429, 2
  %v1459 = vrot.slane %v1429, 3
  %v1460 = vrot.slane %v1429, 4
  %v1461 = vrot.slane %v1429, 5
  %v1462 = vrot.slane %v1429, 6
  %v1463 = vrot.slane %v1429, 7
  %v1464 = vrot.slane %v1431, 1
  %v1465 = vrot.slane %v1431, 2
  %v1466 = vrot.slane %v1431, 3
  %v1467 = vrot.slane %v1431, 4
  %v1468 = vrot.slane %v1431, 5
  %v1469 = vrot.slane %v1431, 6
  %v1470 = vrot.slane %v1431, 7
  %1471 = vst [vmem:[#allocation1] ss:$9 sm:$0xff] %v1381
  %s1472 = scalar_lea.vmem [#allocation1], 1
  %1473 = vst [vmem:[%s1472] ss:$9 sm:$0xff] %v1443
  %s1474 = scalar_lea.vmem [#allocation1], 2
  %1475 = vst [vmem:[%s1474] ss:$9 sm:$0xff] %v1444
  %s1476 = scalar_lea.vmem [#allocation1], 3
  %1477 = vst [vmem:[%s1476] ss:$9 sm:$0xff] %v1445
  %s1478 = scalar_lea.vmem [#allocation1], 4
  %1479 = vst [vmem:[%s1478] ss:$9 sm:$0xff] %v1446
  %s1480 = scalar_lea.vmem [#allocation1], 5
  %1481 = vst [vmem:[%s1480] ss:$9 sm:$0xff] %v1447
  %s1482 = scalar_lea.vmem [#allocation1], 6
  %1483 = vst [vmem:[%s1482] ss:$9 sm:$0xff] %v1448
  %s1484 = scalar_lea.vmem [#allocation1], 7
  %1485 = vst [vmem:[%s1484] ss:$9 sm:$0xff] %v1449
  %v1486 = vld [vmem:[#allocation1] sm:$0xff]
  %1487 = vst [vmem:[#allocation1] ss:$9 sm:$0xff] %v1383
  %1488 = vst [vmem:[%s1472] ss:$9 sm:$0xff] %v1450
  %1489 = vst [vmem:[%s1474] ss:$9 sm:$0xff] %v1451
  %1490 = vst [vmem:[%s1476] ss:$9 sm:$0xff] %v1452
  %1491 = vst [vmem:[%s1478] ss:$9 sm:$0xff] %v1453
  %1492 = vst [vmem:[%s1480] ss:$9 sm:$0xff] %v1454
  %1493 = vst [vmem:[%s1482] ss:$9 sm:$0xff] %v1455
  %1494 = vst [vmem:[%s1484] ss:$9 sm:$0xff] %v1456
  %v1495 = vld [vmem:[#allocation1] sm:$0xff]
  %1496 = vst [vmem:[#allocation1] ss:$9 sm:$0xff] %v1386
  %1497 = vst [vmem:[%s1472] ss:$9 sm:$0xff] %v1429
  %1498 = vst [vmem:[%s1474] ss:$9 sm:$0xff] %v1457
  %1499 = vst [vmem:[%s1476] ss:$9 sm:$0xff] %v1458
  %1500 = vst [vmem:[%s1478] ss:$9 sm:$0xff] %v1459
  %1501 = vst [vmem:[%s1480] ss:$9 sm:$0xff] %v1460
  %1502 = vst [vmem:[%s1482] ss:$9 sm:$0xff] %v1461
  %1503 = vst [vmem:[%s1484] ss:$9 sm:$0xff] %v1462
  %v1504 = vld [vmem:[#allocation1] sm:$0xff]
  %1505 = vst [vmem:[#allocation1] ss:$9 sm:$0xff] %v1463
  %1506 = vst [vmem:[%s1472] ss:$9 sm:$0xff] %v1431
  %1507 = vst [vmem:[%s1474] ss:$9 sm:$0xff] %v1464
  %1508 = vst [vmem:[%s1476] ss:$9 sm:$0xff] %v1465
  %1509 = vst [vmem:[%s1478] ss:$9 sm:$0xff] %v1466
  %1510 = vst [vmem:[%s1480] ss:$9 sm:$0xff] %v1467
  %1511 = vst [vmem:[%s1482] ss:$9 sm:$0xff] %v1468
  %1512 = vst [vmem:[%s1484] ss:$9 sm:$0xff] %v1469
  %v1513 = vld [vmem:[#allocation1] sm:$0xff]
  %1514 = vst [vmem:[#allocation1] ss:$9 sm:$0xff] %v1470
  %1515 = vst [vmem:[%s1472] ss:$9 sm:$0xff] %v1434
  %v1516 = vld [vmem:[#allocation1] sm:$0xff]
  %v1522 = vpack.c.bf16 %v1495, %v1486
  %v1523 = vpack.c.bf16 %v1513, %v1504
  %v1524 = vpack.c.bf16 %v1516, %v1516
  %1525 = vst [vmem:[#allocation1] ss:$9 sm:$0xff] %v918
  %s1526 = scalar_lea.vmem [#allocation1], 1
  %1527 = vst [vmem:[%s1526] ss:$9 sm:$0xff] %v919
  %s1528 = scalar_lea.vmem [#allocation1], 2
  %1529 = vst [vmem:[%s1528] ss:$9 sm:$0xff] %v920
  %s1530 = scalar_lea.vmem [#allocation1], 3
  %1531 = vst [vmem:[%s1530] ss:$9 sm:$0xff] %v921
  %s1532 = scalar_lea.vmem [#allocation1], 4
  %1533 = vst [vmem:[%s1532] ss:$9 sm:$0xff] %v922
  %s1534 = scalar_lea.vmem [#allocation1], 5
  %1535 = vst [vmem:[%s1534] ss:$9 sm:$0xff] %v923
  %s1536 = scalar_lea.vmem [#allocation1], 6
  %1537 = vst [vmem:[%s1536] ss:$9 sm:$0xff] %v924
  %s1538 = scalar_lea.vmem [#allocation1], 7
  %1539 = vst [vmem:[%s1538] ss:$9 sm:$0xff] %v925
  %v1540 = vld [vmem:[#allocation1] sm:$0xff]
  %1541 = vst [vmem:[#allocation1] ss:$9 sm:$0xff] %v926
  %1542 = vst [vmem:[%s1526] ss:$9 sm:$0xff] %v927
  %1543 = vst [vmem:[%s1528] ss:$9 sm:$0xff] %v928
  %1544 = vst [vmem:[%s1530] ss:$9 sm:$0xff] %v929
  %1545 = vst [vmem:[%s1532] ss:$9 sm:$0xff] %v930
  %1546 = vst [vmem:[%s1534] ss:$9 sm:$0xff] %v931
  %1547 = vst [vmem:[%s1536] ss:$9 sm:$0xff] %v932
  %1548 = vst [vmem:[%s1538] ss:$9 sm:$0xff] %v933
  %v1549 = vld [vmem:[#allocation1] sm:$0xff]
  %1550 = vst [vmem:[#allocation1] ss:$9 sm:$0xff] %v934
  %v1551 = vld [vmem:[#allocation1] sm:$0xff]
  %1552 = vst [vmem:[#allocation1] ss:$9 sm:$0xff] %v935
  %1553 = vst [vmem:[%s1526] ss:$9 sm:$0xff] %v936
  %1554 = vst [vmem:[%s1528] ss:$9 sm:$0xff] %v937
  %1555 = vst [vmem:[%s1530] ss:$9 sm:$0xff] %v938
  %1556 = vst [vmem:[%s1532] ss:$9 sm:$0xff] %v939
  %1557 = vst [vmem:[%s1534] ss:$9 sm:$0xff] %v940
  %1558 = vst [vmem:[%s1536] ss:$9 sm:$0xff] %v941
  %1559 = vst [vmem:[%s1538] ss:$9 sm:$0xff] %v942
  %v1560 = vld [vmem:[#allocation1] sm:$0xff]
  %1561 = vst [vmem:[#allocation1] ss:$9 sm:$0xff] %v943
  %1562 = vst [vmem:[%s1526] ss:$9 sm:$0xff] %v944
  %1563 = vst [vmem:[%s1528] ss:$9 sm:$0xff] %v945
  %1564 = vst [vmem:[%s1530] ss:$9 sm:$0xff] %v946
  %1565 = vst [vmem:[%s1532] ss:$9 sm:$0xff] %v947
  %1566 = vst [vmem:[%s1534] ss:$9 sm:$0xff] %v948
  %1567 = vst [vmem:[%s1536] ss:$9 sm:$0xff] %v949
  %1568 = vst [vmem:[%s1538] ss:$9 sm:$0xff] %v950
  %v1569 = vld [vmem:[#allocation1] sm:$0xff]
  %1570 = vst [vmem:[#allocation1] ss:$9 sm:$0xff] %v951
  %v1571 = vld [vmem:[#allocation1] sm:$0xff]
  %v1578 = vpack.c.bf16 %v1540, %v1540
  %v1579 = vpack.c.bf16 %v1549, %v1549
  %v1580 = vpack.c.bf16 %v1551, %v1551
  %v1581 = vpack.c.bf16 %v1560, %v1560
  %v1582 = vpack.c.bf16 %v1569, %v1569
  %v1583 = vpack.c.bf16 %v1571, %v1571
  %1584 = vst [vmem:[#allocation1] ss:$9 sm:$0xff] %v838
  %s1585 = scalar_lea.vmem [#allocation1], 1
  %1586 = vst [vmem:[%s1585] ss:$9 sm:$0xff] %v856
  %s1587 = scalar_lea.vmem [#allocation1], 2
  %1588 = vst [vmem:[%s1587] ss:$9 sm:$0xff] %v857
  %s1589 = scalar_lea.vmem [#allocation1], 3
  %1590 = vst [vmem:[%s1589] ss:$9 sm:$0xff] %v858
  %s1591 = scalar_lea.vmem [#allocation1], 4
  %1592 = vst [vmem:[%s1591] ss:$9 sm:$0xff] %v859
  %s1593 = scalar_lea.vmem [#allocation1], 5
  %1594 = vst [vmem:[%s1593] ss:$9 sm:$0xff] %v860
  %s1595 = scalar_lea.vmem [#allocation1], 6
  %1596 = vst [vmem:[%s1595] ss:$9 sm:$0xff] %v861
  %s1597 = scalar_lea.vmem [#allocation1], 7
  %1598 = vst [vmem:[%s1597] ss:$9 sm:$0xff] %v862
  %v1599 = vld [vmem:[#allocation1] sm:$0xff]
  %1600 = vst [vmem:[#allocation1] ss:$9 sm:$0xff] %v840
  %1601 = vst [vmem:[%s1585] ss:$9 sm:$0xff] %v863
  %1602 = vst [vmem:[%s1587] ss:$9 sm:$0xff] %v864
  %1603 = vst [vmem:[%s1589] ss:$9 sm:$0xff] %v865
  %1604 = vst [vmem:[%s1591] ss:$9 sm:$0xff] %v866
  %1605 = vst [vmem:[%s1593] ss:$9 sm:$0xff] %v867
  %1606 = vst [vmem:[%s1595] ss:$9 sm:$0xff] %v868
  %1607 = vst [vmem:[%s1597] ss:$9 sm:$0xff] %v869
  %v1608 = vld [vmem:[#allocation1] sm:$0xff]
  %1609 = vst [vmem:[#allocation1] ss:$9 sm:$0xff] %v843
  %v1610 = vld [vmem:[#allocation1] sm:$0xff]
  %1611 = vst [vmem:[#allocation1] ss:$9 sm:$0xff] %v870
  %1612 = vst [vmem:[%s1585] ss:$9 sm:$0xff] %v871
  %1613 = vst [vmem:[%s1587] ss:$9 sm:$0xff] %v872
  %1614 = vst [vmem:[%s1589] ss:$9 sm:$0xff] %v873
  %1615 = vst [vmem:[%s1591] ss:$9 sm:$0xff] %v874
  %1616 = vst [vmem:[%s1593] ss:$9 sm:$0xff] %v875
  %1617 = vst [vmem:[%s1595] ss:$9 sm:$0xff] %v876
  %1618 = vst [vmem:[%s1597] ss:$9 sm:$0xff] %v845
  %v1619 = vld [vmem:[#allocation1] sm:$0xff]
  %1620 = vst [vmem:[#allocation1] ss:$9 sm:$0xff] %v877
  %1621 = vst [vmem:[%s1585] ss:$9 sm:$0xff] %v878
  %1622 = vst [vmem:[%s1587] ss:$9 sm:$0xff] %v879
  %1623 = vst [vmem:[%s1589] ss:$9 sm:$0xff] %v880
  %1624 = vst [vmem:[%s1591] ss:$9 sm:$0xff] %v881
  %1625 = vst [vmem:[%s1593] ss:$9 sm:$0xff] %v882
  %1626 = vst [vmem:[%s1595] ss:$9 sm:$0xff] %v883
  %1627 = vst [vmem:[%s1597] ss:$9 sm:$0xff] %v848
  %v1628 = vld [vmem:[#allocation1] sm:$0xff]
  %1629 = vst [vmem:[#allocation1] ss:$9 sm:$0xff] %v884
  %v1630 = vld [vmem:[#allocation1] sm:$0xff]
  %v1637 = vpack.c.bf16 %v1599, %v1599
  %v1638 = vpack.c.bf16 %v1608, %v1608
  %v1639 = vpack.c.bf16 %v1610, %v1610
  %v1640 = vpack.c.bf16 %v1619, %v1619
  %v1641 = vpack.c.bf16 %v1628, %v1628
  %v1642 = vpack.c.bf16 %v1630, %v1630
  %1643 = vst [vmem:[#allocation1] ss:$9 sm:$0xff] %v838
  %s1644 = scalar_lea.vmem [#allocation1], 1
  %1645 = vst [vmem:[%s1644] ss:$9 sm:$0xff] %v856
  %s1646 = scalar_lea.vmem [#allocation1], 2
  %1647 = vst [vmem:[%s1646] ss:$9 sm:$0xff] %v857
  %s1648 = scalar_lea.vmem [#allocation1], 3
  %1649 = vst [vmem:[%s1648] ss:$9 sm:$0xff] %v858
  %s1650 = scalar_lea.vmem [#allocation1], 4
  %1651 = vst [vmem:[%s1650] ss:$9 sm:$0xff] %v859
  %s1652 = scalar_lea.vmem [#allocation1], 5
  %1653 = vst [vmem:[%s1652] ss:$9 sm:$0xff] %v860
  %s1654 = scalar_lea.vmem [#allocation1], 6
  %1655 = vst [vmem:[%s1654] ss:$9 sm:$0xff] %v861
  %s1656 = scalar_lea.vmem [#allocation1], 7
  %1657 = vst [vmem:[%s1656] ss:$9 sm:$0xff] %v862
  %v1658 = vld [vmem:[#allocation1] sm:$0xff]
  %1659 = vst [vmem:[#allocation1] ss:$9 sm:$0xff] %v840
  %1660 = vst [vmem:[%s1644] ss:$9 sm:$0xff] %v863
  %1661 = vst [vmem:[%s1646] ss:$9 sm:$0xff] %v864
  %1662 = vst [vmem:[%s1648] ss:$9 sm:$0xff] %v865
  %1663 = vst [vmem:[%s1650] ss:$9 sm:$0xff] %v866
  %1664 = vst [vmem:[%s1652] ss:$9 sm:$0xff] %v867
  %1665 = vst [vmem:[%s1654] ss:$9 sm:$0xff] %v868
  %1666 = vst [vmem:[%s1656] ss:$9 sm:$0xff] %v869
  %v1667 = vld [vmem:[#allocation1] sm:$0xff]
  %1668 = vst [vmem:[#allocation1] ss:$9 sm:$0xff] %v843
  %v1669 = vld [vmem:[#allocation1] sm:$0xff]
  %1670 = vst [vmem:[#allocation1] ss:$9 sm:$0xff] %v870
  %1671 = vst [vmem:[%s1644] ss:$9 sm:$0xff] %v871
  %1672 = vst [vmem:[%s1646] ss:$9 sm:$0xff] %v872
  %1673 = vst [vmem:[%s1648] ss:$9 sm:$0xff] %v873
  %1674 = vst [vmem:[%s1650] ss:$9 sm:$0xff] %v874
  %1675 = vst [vmem:[%s1652] ss:$9 sm:$0xff] %v875
  %1676 = vst [vmem:[%s1654] ss:$9 sm:$0xff] %v876
  %1677 = vst [vmem:[%s1656] ss:$9 sm:$0xff] %v845
  %v1678 = vld [vmem:[#allocation1] sm:$0xff]
  %1679 = vst [vmem:[#allocation1] ss:$9 sm:$0xff] %v877
  %1680 = vst [vmem:[%s1644] ss:$9 sm:$0xff] %v878
  %1681 = vst [vmem:[%s1646] ss:$9 sm:$0xff] %v879
  %1682 = vst [vmem:[%s1648] ss:$9 sm:$0xff] %v880
  %1683 = vst [vmem:[%s1650] ss:$9 sm:$0xff] %v881
  %1684 = vst [vmem:[%s1652] ss:$9 sm:$0xff] %v882
  %1685 = vst [vmem:[%s1654] ss:$9 sm:$0xff] %v883
  %1686 = vst [vmem:[%s1656] ss:$9 sm:$0xff] %v848
  %v1687 = vld [vmem:[#allocation1] sm:$0xff]
  %1688 = vst [vmem:[#allocation1] ss:$9 sm:$0xff] %v884
  %v1689 = vld [vmem:[#allocation1] sm:$0xff]
  %v1696 = vpack.c.bf16 %v1658, %v1658
  %v1697 = vpack.c.bf16 %v1667, %v1667
  %v1698 = vpack.c.bf16 %v1669, %v1669
  %v1699 = vpack.c.bf16 %v1678, %v1678
  %v1700 = vpack.c.bf16 %v1687, %v1687
  %v1701 = vpack.c.bf16 %v1689, %v1689
  %v1705 = vunpack.c.l.b16 %v1578
  %v1706 = vunpack.c.l.b16 %v1579
  %v1707 = vunpack.c.l.b16 %v1580
  %v1708 = vpack.c.b16 %v1706, %v1705
  %v1709 = vpack.c.b16 %v1707, %v1707
  %1710 = vrot.lane.b32.xlu0 %v1708, 112
  %v1711 = vpop.permute.xlu0 %1710
  %1712 = vrot.lane.b32.xlu0 %v1709, 112
  %v1713 = vpop.permute.xlu0 %1712
  %v1717 = vunpack.c.l.b16 %v1637
  %v1718 = vunpack.c.l.b16 %v1638
  %v1719 = vunpack.c.l.b16 %v1639
  %v1720 = vpack.c.b16 %v1718, %v1717
  %v1721 = vpack.c.b16 %v1719, %v1719
  %1722 = vrot.lane.b32.xlu0 %v1720, 80
  %v1723 = vpop.permute.xlu0 %1722
  %1724 = vrot.lane.b32.xlu0 %v1721, 80
  %v1725 = vpop.permute.xlu0 %1724
  %v1727 = vsel %vm1183, %v1711, 0
  %v1730 = vsel %vm1183, %v1713, 0
  %v1733 = vsel %vm1183, %v1723, 0
  %v1736 = vsel %vm1183, %v1725, 0
  %1738 = vmatpush.bf16.xpose.msra.mxu0 0
  %1739 = vmatpush.bf16.xpose.msra.mxu0 0
  %1740 = vmatpush.bf16.xpose.msra.mxu0 0
  %1741 = vmatpush.bf16.xpose.msra.mxu0 0
  %1742 = vmatpush.bf16.xpose.msra.mxu0 0
  %1743 = vmatpush.bf16.xpose.msra.mxu0 0
  %1744 = vmatpush.bf16.xpose.msra.mxu0 %v1736
  %1745 = vmatpush.bf16.xpose.msra.mxu0 %v1733
  %1746 = vmatmul.bf16.gmra.mxu0 %v1727
  %v1747 = vpop.f32.mrf.mxu0
  %v1748 = vadd.f32 0.0, %v1747
  %v1749 = vpop.f32.mrf.mxu0
  %v1750 = vadd.f32 0.0, %v1749
  %1751 = vmatmul.bf16.gmra.mxu0 %v1730
  %v1752 = vpop.f32.mrf.mxu0
  %v1753 = vadd.f32 0.0, %v1752
  %v1754 = vpop.f32.mrf.mxu0
  %1755 = vdwg.mxu0
  %v1759 = vunpack.c.l.b16 %v1581
  %v1760 = vunpack.c.l.b16 %v1582
  %v1761 = vunpack.c.l.b16 %v1583
  %v1762 = vpack.c.b16 %v1760, %v1759
  %v1763 = vpack.c.b16 %v1761, %v1761
  %1764 = vrot.lane.b32.xlu0 %v1762, 112
  %v1765 = vpop.permute.xlu0 %1764
  %1766 = vrot.lane.b32.xlu0 %v1763, 112
  %v1767 = vpop.permute.xlu0 %1766
  %v1771 = vunpack.c.l.b16 %v1640
  %v1772 = vunpack.c.l.b16 %v1641
  %v1773 = vunpack.c.l.b16 %v1642
  %v1774 = vpack.c.b16 %v1772, %v1771
  %v1775 = vpack.c.b16 %v1773, %v1773
  %1776 = vrot.lane.b32.xlu0 %v1774, 80
  %v1777 = vpop.permute.xlu0 %1776
  %1778 = vrot.lane.b32.xlu0 %v1775, 80
  %v1779 = vpop.permute.xlu0 %1778
  %v1781 = vsel %vm1183, %v1765, 0
  %v1784 = vsel %vm1183, %v1767, 0
  %v1787 = vsel %vm1183, %v1777, 0
  %v1790 = vsel %vm1183, %v1779, 0
  %1792 = vmatpush.bf16.xpose.msra.mxu0 0
  %1793 = vmatpush.bf16.xpose.msra.mxu0 0
  %1794 = vmatpush.bf16.xpose.msra.mxu0 0
  %1795 = vmatpush.bf16.xpose.msra.mxu0 0
  %1796 = vmatpush.bf16.xpose.msra.mxu0 0
  %1797 = vmatpush.bf16.xpose.msra.mxu0 0
  %1798 = vmatpush.bf16.xpose.msra.mxu0 %v1790
  %1799 = vmatpush.bf16.xpose.msra.mxu0 %v1787
  %1800 = vmatmul.bf16.gmra.mxu0 %v1781
  %v1801 = vpop.f32.mrf.mxu0
  %v1802 = vadd.f32 0.0, %v1801
  %v1803 = vpop.f32.mrf.mxu0
  %v1804 = vadd.f32 0.0, %v1803
  %1805 = vmatmul.bf16.gmra.mxu0 %v1784
  %v1806 = vpop.f32.mrf.mxu0
  %v1807 = vadd.f32 0.0, %v1806
  %v1808 = vpop.f32.mrf.mxu0
  %1809 = vdwg.mxu0
  %v1810 = vsel %vm1264, %v1748, -inf
  %1811 = vmax.xlane.f32.xlu0 %v1810
  %v1812 = vpop.xlane.xlu0 %1811
  %v1813 = vsel %vm1264, %v1750, -inf
  %1814 = vmax.xlane.f32.xlu0 %v1813
  %v1815 = vpop.xlane.xlu0 %1814
  %v1816 = vsel %vm1271, %v1753, -inf
  %1817 = vmax.xlane.f32.xlu0 %v1816
  %v1818 = vpop.xlane.xlu0 %1817
  %v1819 = vsel %vm1264, %v1802, -inf
  %1820 = vmax.xlane.f32.xlu0 %v1819
  %v1821 = vpop.xlane.xlu0 %1820
  %v1822 = vsel %vm1264, %v1804, -inf
  %1823 = vmax.xlane.f32.xlu0 %v1822
  %v1824 = vpop.xlane.xlu0 %1823
  %v1825 = vsel %vm1271, %v1807, -inf
  %1826 = vmax.xlane.f32.xlu0 %v1825
  %v1827 = vpop.xlane.xlu0 %1826
  %v1828 = vsub.f32 %v1748, %v1812
  %v1829 = vsub.f32 %v1750, %v1815
  %v1830 = vsub.f32 %v1753, %v1818
  %v1831 = vsub.f32 %v1802, %v1821
  %v1832 = vsub.f32 %v1804, %v1824
  %v1833 = vsub.f32 %v1807, %v1827
  %v1834 = vmul.f32 %v1828, 1.442695
  %v1835 = vpow.pop %v1834
  %v1836 = vmul.f32 %v1829, 1.442695
  %v1837 = vpow.pop %v1836
  %v1838 = vmul.f32 %v1830, 1.442695
  %v1839 = vpow.pop %v1838
  %v1840 = vmul.f32 %v1831, 1.442695
  %v1841 = vpow.pop %v1840
  %v1842 = vmul.f32 %v1832, 1.442695
  %v1843 = vpow.pop %v1842
  %v1844 = vmul.f32 %v1833, 1.442695
  %v1845 = vpow.pop %v1844
  %v1846 = vsel %vm1264, %v1835, 0.0
  %1847 = vadd.xlane.f32.xlu0 %v1846
  %v1848 = vpop.xlane.xlu0 %1847
  %v1849 = vsel %vm1264, %v1837, 0.0
  %1850 = vadd.xlane.f32.xlu0 %v1849
  %v1851 = vpop.xlane.xlu0 %1850
  %v1852 = vsel %vm1271, %v1839, 0.0
  %1853 = vadd.xlane.f32.xlu0 %v1852
  %v1854 = vpop.xlane.xlu0 %1853
  %v1855 = vsel %vm1264, %v1841, 0.0
  %1856 = vadd.xlane.f32.xlu0 %v1855
  %v1857 = vpop.xlane.xlu0 %1856
  %v1858 = vsel %vm1264, %v1843, 0.0
  %1859 = vadd.xlane.f32.xlu0 %v1858
  %v1860 = vpop.xlane.xlu0 %1859
  %v1861 = vsel %vm1271, %v1845, 0.0
  %1862 = vadd.xlane.f32.xlu0 %v1861
  %v1863 = vpop.xlane.xlu0 %1862
  %v1864 = vrcp.pop %v1848
  %v1865 = vrcp.pop %v1851
  %v1866 = vrcp.pop %v1854
  %v1867 = vrcp.pop %v1857
  %v1868 = vrcp.pop %v1860
  %v1869 = vrcp.pop %v1863
  %v1870 = vmul.f32 %v1835, %v1864
  %v1871 = vmul.f32 %v1837, %v1865
  %v1872 = vmul.f32 %v1839, %v1866
  %v1873 = vmul.f32 %v1841, %v1867
  %v1874 = vmul.f32 %v1843, %v1868
  %v1875 = vmul.f32 %v1845, %v1869
  %v1876 = vpack.c.bf16 %v1870, %v1870
  %v1877 = vpack.c.bf16 %v1871, %v1871
  %v1878 = vpack.c.bf16 %v1872, %v1872
  %v1879 = vpack.c.bf16 %v1873, %v1873
  %v1880 = vpack.c.bf16 %v1874, %v1874
  %v1881 = vpack.c.bf16 %v1875, %v1875
  %v1885 = vunpack.c.l.b16 %v1876
  %v1886 = vunpack.c.l.b16 %v1877
  %v1887 = vunpack.c.l.b16 %v1878
  %v1888 = vpack.c.b16 %v1886, %v1885
  %v1889 = vpack.c.b16 %v1887, %v1887
  %v1893 = vunpack.c.l.b16 %v1696
  %v1894 = vunpack.c.l.b16 %v1697
  %v1895 = vunpack.c.l.b16 %v1698
  %v1896 = vpack.c.b16 %v1894, %v1893
  %v1897 = vpack.c.b16 %v1895, %v1895
  %1898 = vrot.lane.b32.xlu0 %v1896, 48
  %v1899 = vpop.permute.xlu0 %1898
  %1900 = vrot.lane.b32.xlu0 %v1897, 48
  %v1901 = vpop.permute.xlu0 %1900
  %v1904 = vsel %vm1264, %v1888, 0
  %v1907 = vsel %vm1264, %v1889, 0
  %v1910 = vand.u32 %v1901, %v1367
  %1912 = vmatpush.bf16.msra.mxu0 0
  %1913 = vmatpush.bf16.msra.mxu0 0
  %1914 = vmatpush.bf16.msra.mxu0 0
  %1915 = vmatpush.bf16.msra.mxu0 0
  %1916 = vmatpush.bf16.msra.mxu0 0
  %1917 = vmatpush.bf16.msra.mxu0 0
  %1918 = vmatpush.bf16.msra.mxu0 %v1910
  %1919 = vmatpush.bf16.msra.mxu0 %v1899
  %1920 = vmatmul.bf16.gmra.mxu0 %v1904
  %v1921 = vpop.f32.mrf.mxu0
  %v1922 = vadd.f32 0.0, %v1921
  %v1923 = vpop.f32.mrf.mxu0
  %v1924 = vadd.f32 0.0, %v1923
  %1925 = vmatmul.bf16.gmra.mxu0 %v1907
  %v1926 = vpop.f32.mrf.mxu0
  %v1927 = vadd.f32 0.0, %v1926
  %v1928 = vpop.f32.mrf.mxu0
  %1929 = vdwg.mxu0
  %v1933 = vunpack.c.l.b16 %v1879
  %v1934 = vunpack.c.l.b16 %v1880
  %v1935 = vunpack.c.l.b16 %v1881
  %v1936 = vpack.c.b16 %v1934, %v1933
  %v1937 = vpack.c.b16 %v1935, %v1935
  %v1941 = vunpack.c.l.b16 %v1699
  %v1942 = vunpack.c.l.b16 %v1700
  %v1943 = vunpack.c.l.b16 %v1701
  %v1944 = vpack.c.b16 %v1942, %v1941
  %v1945 = vpack.c.b16 %v1943, %v1943
  %1946 = vrot.lane.b32.xlu0 %v1944, 48
  %v1947 = vpop.permute.xlu0 %1946
  %1948 = vrot.lane.b32.xlu0 %v1945, 48
  %v1949 = vpop.permute.xlu0 %1948
  %v1952 = vsel %vm1264, %v1936, 0
  %v1955 = vsel %vm1264, %v1937, 0
  %v1958 = vand.u32 %v1949, %v1367
  %1960 = vmatpush.bf16.msra.mxu0 0
  %1961 = vmatpush.bf16.msra.mxu0 0
  %1962 = vmatpush.bf16.msra.mxu0 0
  %1963 = vmatpush.bf16.msra.mxu0 0
  %1964 = vmatpush.bf16.msra.mxu0 0
  %1965 = vmatpush.bf16.msra.mxu0 0
  %1966 = vmatpush.bf16.msra.mxu0 %v1958
  %1967 = vmatpush.bf16.msra.mxu0 %v1947
  %1968 = vmatmul.bf16.gmra.mxu0 %v1952
  %v1969 = vpop.f32.mrf.mxu0
  %v1970 = vadd.f32 0.0, %v1969
  %v1971 = vpop.f32.mrf.mxu0
  %v1972 = vadd.f32 0.0, %v1971
  %1973 = vmatmul.bf16.gmra.mxu0 %v1955
  %v1974 = vpop.f32.mrf.mxu0
  %v1975 = vadd.f32 0.0, %v1974
  %v1976 = vpop.f32.mrf.mxu0
  %1977 = vdwg.mxu0
  %v1984 = vrot.slane %v1922, 1
  %v1985 = vrot.slane %v1922, 2
  %v1986 = vrot.slane %v1922, 3
  %v1987 = vrot.slane %v1922, 4
  %v1988 = vrot.slane %v1922, 5
  %v1989 = vrot.slane %v1922, 6
  %v1990 = vrot.slane %v1922, 7
  %v1991 = vrot.slane %v1924, 1
  %v1992 = vrot.slane %v1924, 2
  %v1993 = vrot.slane %v1924, 3
  %v1994 = vrot.slane %v1924, 4
  %v1995 = vrot.slane %v1924, 5
  %v1996 = vrot.slane %v1924, 6
  %v1997 = vrot.slane %v1924, 7
  %v1998 = vrot.slane %v1970, 1
  %v1999 = vrot.slane %v1970, 2
  %v2000 = vrot.slane %v1970, 3
  %v2001 = vrot.slane %v1970, 4
  %v2002 = vrot.slane %v1970, 5
  %v2003 = vrot.slane %v1970, 6
  %v2004 = vrot.slane %v1970, 7
  %v2005 = vrot.slane %v1972, 1
  %v2006 = vrot.slane %v1972, 2
  %v2007 = vrot.slane %v1972, 3
  %v2008 = vrot.slane %v1972, 4
  %v2009 = vrot.slane %v1972, 5
  %v2010 = vrot.slane %v1972, 6
  %v2011 = vrot.slane %v1972, 7
  %2012 = vst [vmem:[#allocation1] ss:$9 sm:$0xff] %v1922
  %s2013 = scalar_lea.vmem [#allocation1], 1
  %2014 = vst [vmem:[%s2013] ss:$9 sm:$0xff] %v1984
  %s2015 = scalar_lea.vmem [#allocation1], 2
  %2016 = vst [vmem:[%s2015] ss:$9 sm:$0xff] %v1985
  %s2017 = scalar_lea.vmem [#allocation1], 3
  %2018 = vst [vmem:[%s2017] ss:$9 sm:$0xff] %v1986
  %s2019 = scalar_lea.vmem [#allocation1], 4
  %2020 = vst [vmem:[%s2019] ss:$9 sm:$0xff] %v1987
  %s2021 = scalar_lea.vmem [#allocation1], 5
  %2022 = vst [vmem:[%s2021] ss:$9 sm:$0xff] %v1988
  %s2023 = scalar_lea.vmem [#allocation1], 6
  %2024 = vst [vmem:[%s2023] ss:$9 sm:$0xff] %v1989
  %s2025 = scalar_lea.vmem [#allocation1], 7
  %2026 = vst [vmem:[%s2025] ss:$9 sm:$0xff] %v1990
  %v2027 = vld [vmem:[#allocation1] sm:$0xff]
  %2028 = vst [vmem:[#allocation1] ss:$9 sm:$0xff] %v1924
  %2029 = vst [vmem:[%s2013] ss:$9 sm:$0xff] %v1991
  %2030 = vst [vmem:[%s2015] ss:$9 sm:$0xff] %v1992
  %2031 = vst [vmem:[%s2017] ss:$9 sm:$0xff] %v1993
  %2032 = vst [vmem:[%s2019] ss:$9 sm:$0xff] %v1994
  %2033 = vst [vmem:[%s2021] ss:$9 sm:$0xff] %v1995
  %2034 = vst [vmem:[%s2023] ss:$9 sm:$0xff] %v1996
  %2035 = vst [vmem:[%s2025] ss:$9 sm:$0xff] %v1997
  %v2036 = vld [vmem:[#allocation1] sm:$0xff]
  %2037 = vst [vmem:[#allocation1] ss:$9 sm:$0xff] %v1927
  %2038 = vst [vmem:[%s2013] ss:$9 sm:$0xff] %v1970
  %2039 = vst [vmem:[%s2015] ss:$9 sm:$0xff] %v1998
  %2040 = vst [vmem:[%s2017] ss:$9 sm:$0xff] %v1999
  %2041 = vst [vmem:[%s2019] ss:$9 sm:$0xff] %v2000
  %2042 = vst [vmem:[%s2021] ss:$9 sm:$0xff] %v2001
  %2043 = vst [vmem:[%s2023] ss:$9 sm:$0xff] %v2002
  %2044 = vst [vmem:[%s2025] ss:$9 sm:$0xff] %v2003
  %v2045 = vld [vmem:[#allocation1] sm:$0xff]
  %2046 = vst [vmem:[#allocation1] ss:$9 sm:$0xff] %v2004
  %2047 = vst [vmem:[%s2013] ss:$9 sm:$0xff] %v1972
  %2048 = vst [vmem:[%s2015] ss:$9 sm:$0xff] %v2005
  %2049 = vst [vmem:[%s2017] ss:$9 sm:$0xff] %v2006
  %2050 = vst [vmem:[%s2019] ss:$9 sm:$0xff] %v2007
  %2051 = vst [vmem:[%s2021] ss:$9 sm:$0xff] %v2008
  %2052 = vst [vmem:[%s2023] ss:$9 sm:$0xff] %v2009
  %2053 = vst [vmem:[%s2025] ss:$9 sm:$0xff] %v2010
  %v2054 = vld [vmem:[#allocation1] sm:$0xff]
  %2055 = vst [vmem:[#allocation1] ss:$9 sm:$0xff] %v2011
  %2056 = vst [vmem:[%s2013] ss:$9 sm:$0xff] %v1975
  %v2057 = vld [vmem:[#allocation1] sm:$0xff]
  %v2063 = vpack.c.bf16 %v2036, %v2027
  %v2064 = vpack.c.bf16 %v2054, %v2045
  %v2065 = vpack.c.bf16 %v2057, %v2057
  %v2068 = vunpack.c.l.b16 %v916
  %v2069 = vunpack.c.l.b16 %v917
  %v2070 = vpack.c.b16 %v2069, %v2068
  %v2073 = vsel %vm1183, %v2063, 0
  %v2076 = vsel %vm1183, %v2064, 0
  %v2079 = vsel %vm1183, %v2065, 0
  %2081 = vmatpush.bf16.msra.mxu0 0
  %2082 = vmatpush.bf16.msra.mxu0 0
  %2083 = vmatpush.bf16.msra.mxu0 0
  %2084 = vmatpush.bf16.msra.mxu0 0
  %2085 = vmatpush.bf16.msra.mxu0 0
  %2086 = vmatpush.bf16.msra.mxu0 0
  %2087 = vmatpush.bf16.msra.mxu0 0
  %2088 = vmatpush.bf16.msra.mxu0 %v2070
  %2089 = vmatmul.bf16.gmra.mxu0 %v2073
  %v2090 = vpop.f32.mrf.mxu0
  %v2091 = vadd.f32 0.0, %v2090
  %v2092 = vpop.f32.mrf.mxu0
  %v2093 = vadd.f32 0.0, %v2092
  %2094 = vmatmul.bf16.gmra.mxu0 %v2076
  %v2095 = vpop.f32.mrf.mxu0
  %v2096 = vadd.f32 0.0, %v2095
  %v2097 = vpop.f32.mrf.mxu0
  %v2098 = vadd.f32 0.0, %v2097
  %2099 = vmatmul.bf16.gmra.mxu0 %v2079
  %v2100 = vpop.f32.mrf.mxu0
  %v2101 = vadd.f32 0.0, %v2100
  %v2102 = vpop.f32.mrf.mxu0
  %2103 = vdwg.mxu0
  %v2106 = vunpack.c.l.b16 %v914
  %v2107 = vunpack.c.l.b16 %v915
  %v2108 = vpack.c.b16 %v2107, %v2106
  %v2111 = vsel %vm1183, %v1522, 0
  %v2114 = vsel %vm1183, %v1523, 0
  %v2117 = vsel %vm1183, %v1524, 0
  %2119 = vmatpush.bf16.msra.mxu0 0
  %2120 = vmatpush.bf16.msra.mxu0 0
  %2121 = vmatpush.bf16.msra.mxu0 0
  %2122 = vmatpush.bf16.msra.mxu0 0
  %2123 = vmatpush.bf16.msra.mxu0 0
  %2124 = vmatpush.bf16.msra.mxu0 0
  %2125 = vmatpush.bf16.msra.mxu0 0
  %2126 = vmatpush.bf16.msra.mxu0 %v2108
  %2127 = vmatmul.bf16.gmra.mxu0 %v2111
  %v2128 = vpop.f32.mrf.mxu0
  %v2129 = vadd.f32 %v2091, %v2128
  %v2130 = vpop.f32.mrf.mxu0
  %v2131 = vadd.f32 %v2093, %v2130
  %2132 = vmatmul.bf16.gmra.mxu0 %v2114
  %v2133 = vpop.f32.mrf.mxu0
  %v2134 = vadd.f32 %v2096, %v2133
  %v2135 = vpop.f32.mrf.mxu0
  %v2136 = vadd.f32 %v2098, %v2135
  %2137 = vmatmul.bf16.gmra.mxu0 %v2117
  %v2138 = vpop.f32.mrf.mxu0
  %v2139 = vadd.f32 %v2101, %v2138
  %v2140 = vpop.f32.mrf.mxu0
  %2141 = vdwg.mxu0
  %v2147 = vrot.slane %v2129, 1
  %v2148 = vrot.slane %v2129, 2
  %v2149 = vrot.slane %v2129, 3
  %v2150 = vrot.slane %v2129, 4
  %v2151 = vrot.slane %v2129, 5
  %v2152 = vrot.slane %v2129, 6
  %v2153 = vrot.slane %v2129, 7
  %v2154 = vrot.slane %v2131, 1
  %v2155 = vrot.slane %v2131, 2
  %v2156 = vrot.slane %v2131, 3
  %v2157 = vrot.slane %v2131, 4
  %v2158 = vrot.slane %v2131, 5
  %v2159 = vrot.slane %v2131, 6
  %v2160 = vrot.slane %v2131, 7
  %v2161 = vrot.slane %v2134, 1
  %v2162 = vrot.slane %v2134, 2
  %v2163 = vrot.slane %v2134, 3
  %v2164 = vrot.slane %v2134, 4
  %v2165 = vrot.slane %v2134, 5
  %v2166 = vrot.slane %v2134, 6
  %v2167 = vrot.slane %v2134, 7
  %v2168 = vrot.slane %v2136, 1
  %v2169 = vrot.slane %v2136, 2
  %v2170 = vrot.slane %v2136, 3
  %v2171 = vrot.slane %v2136, 4
  %v2172 = vrot.slane %v2136, 5
  %v2173 = vrot.slane %v2136, 6
  %v2174 = vrot.slane %v2136, 7
  %v2175 = vrot.slane %v2139, 1
  %v2205 = vadd.f32 %v51, %v2129
  %v2206 = vadd.f32 %v63, %v2147
  %v2207 = vadd.f32 %v64, %v2148
  %v2208 = vadd.f32 %v65, %v2149
  %v2209 = vadd.f32 %v66, %v2150
  %v2210 = vadd.f32 %v67, %v2151
  %v2211 = vadd.f32 %v68, %v2152
  %v2212 = vadd.f32 %v69, %v2153
  %v2213 = vadd.f32 %v52, %v2131
  %v2214 = vadd.f32 %v70, %v2154
  %v2215 = vadd.f32 %v71, %v2155
  %v2216 = vadd.f32 %v72, %v2156
  %v2217 = vadd.f32 %v73, %v2157
  %v2218 = vadd.f32 %v74, %v2158
  %v2219 = vadd.f32 %v75, %v2159
  %v2220 = vadd.f32 %v76, %v2160
  %v2221 = vadd.f32 %v53, %v2134
  %v2222 = vadd.f32 %v54, %v2161
  %v2223 = vadd.f32 %v77, %v2162
  %v2224 = vadd.f32 %v78, %v2163
  %v2225 = vadd.f32 %v79, %v2164
  %v2226 = vadd.f32 %v80, %v2165
  %v2227 = vadd.f32 %v81, %v2166
  %v2228 = vadd.f32 %v82, %v2167
  %v2229 = vadd.f32 %v83, %v2136
  %v2230 = vadd.f32 %v55, %v2168
  %v2231 = vadd.f32 %v84, %v2169
  %v2232 = vadd.f32 %v85, %v2170
  %v2233 = vadd.f32 %v86, %v2171
  %v2234 = vadd.f32 %v87, %v2172
  %v2235 = vadd.f32 %v88, %v2173
  %v2236 = vadd.f32 %v89, %v2174
  %v2237 = vadd.f32 %v90, %v2139
  %v2238 = vadd.f32 %v56, %v2175
  %v2239 = vld [vmem:[%s6] sm:$0x1]
  %v2241 = vperm.slane %v2239, 0
  %v2243 = vrot.slane %v2241, 1
  %v2244 = vrot.slane %v2241, 2
  %v2245 = vrot.slane %v2241, 3
  %v2246 = vrot.slane %v2241, 4
  %v2247 = vrot.slane %v2241, 5
  %v2248 = vrot.slane %v2241, 6
  %v2249 = vrot.slane %v2241, 7
  %v2257 = vadd.f32 %v2205, %v2241
  %v2258 = vadd.f32 %v2206, %v2243
  %v2259 = vadd.f32 %v2207, %v2244
  %v2260 = vadd.f32 %v2208, %v2245
  %v2261 = vadd.f32 %v2209, %v2246
  %v2262 = vadd.f32 %v2210, %v2247
  %v2263 = vadd.f32 %v2211, %v2248
  %v2264 = vadd.f32 %v2212, %v2249
  %v2265 = vadd.f32 %v2213, %v2241
  %v2266 = vadd.f32 %v2214, %v2243
  %v2267 = vadd.f32 %v2215, %v2244
  %v2268 = vadd.f32 %v2216, %v2245
  %v2269 = vadd.f32 %v2217, %v2246
  %v2270 = vadd.f32 %v2218, %v2247
  %v2271 = vadd.f32 %v2219, %v2248
  %v2272 = vadd.f32 %v2220, %v2249
  %v2273 = vadd.f32 %v2221, %v2241
  %v2274 = vadd.f32 %v2222, %v2243
  %v2275 = vadd.f32 %v2223, %v2244
  %v2276 = vadd.f32 %v2224, %v2245
  %v2277 = vadd.f32 %v2225, %v2246
  %v2278 = vadd.f32 %v2226, %v2247
  %v2279 = vadd.f32 %v2227, %v2248
  %v2280 = vadd.f32 %v2228, %v2249
  %v2281 = vadd.f32 %v2229, %v2241
  %v2282 = vadd.f32 %v2230, %v2243
  %v2283 = vadd.f32 %v2231, %v2244
  %v2284 = vadd.f32 %v2232, %v2245
  %v2285 = vadd.f32 %v2233, %v2246
  %v2286 = vadd.f32 %v2234, %v2247
  %v2287 = vadd.f32 %v2235, %v2248
  %v2288 = vadd.f32 %v2236, %v2249
  %v2289 = vadd.f32 %v2237, %v2241
  %v2290 = vadd.f32 %v2238, %v2243
  %v2291 = vld [vmem:[%s7] sm:$0x1]
  %v2292 = vld [vmem:[%s8] sm:$0x1]
  %2327 = vst [vmem:[#allocation1] ss:$9 sm:$0xff] %v2257
  %s2328 = scalar_lea.vmem [#allocation1], 1
  %2329 = vst [vmem:[%s2328] ss:$9 sm:$0xff] %v2258
  %s2330 = scalar_lea.vmem [#allocation1], 2
  %2331 = vst [vmem:[%s2330] ss:$9 sm:$0xff] %v2259
  %s2332 = scalar_lea.vmem [#allocation1], 3
  %2333 = vst [vmem:[%s2332] ss:$9 sm:$0xff] %v2260
  %s2334 = scalar_lea.vmem [#allocation1], 4
  %2335 = vst [vmem:[%s2334] ss:$9 sm:$0xff] %v2261
  %s2336 = scalar_lea.vmem [#allocation1], 5
  %2337 = vst [vmem:[%s2336] ss:$9 sm:$0xff] %v2262
  %s2338 = scalar_lea.vmem [#allocation1], 6
  %2339 = vst [vmem:[%s2338] ss:$9 sm:$0xff] %v2263
  %s2340 = scalar_lea.vmem [#allocation1], 7
  %2341 = vst [vmem:[%s2340] ss:$9 sm:$0xff] %v2264
  %v2342 = vld [vmem:[#allocation1] sm:$0xff]
  %2343 = vst [vmem:[#allocation1] ss:$9 sm:$0xff] %v2265
  %2344 = vst [vmem:[%s2328] ss:$9 sm:$0xff] %v2266
  %2345 = vst [vmem:[%s2330] ss:$9 sm:$0xff] %v2267
  %2346 = vst [vmem:[%s2332] ss:$9 sm:$0xff] %v2268
  %2347 = vst [vmem:[%s2334] ss:$9 sm:$0xff] %v2269
  %2348 = vst [vmem:[%s2336] ss:$9 sm:$0xff] %v2270
  %2349 = vst [vmem:[%s2338] ss:$9 sm:$0xff] %v2271
  %2350 = vst [vmem:[%s2340] ss:$9 sm:$0xff] %v2272
  %v2351 = vld [vmem:[#allocation1] sm:$0xff]
  %2352 = vst [vmem:[#allocation1] ss:$9 sm:$0xff] %v2273
  %2353 = vst [vmem:[%s2328] ss:$9 sm:$0xff] %v2274
  %2354 = vst [vmem:[%s2330] ss:$9 sm:$0xff] %v2275
  %2355 = vst [vmem:[%s2332] ss:$9 sm:$0xff] %v2276
  %2356 = vst [vmem:[%s2334] ss:$9 sm:$0xff] %v2277
  %2357 = vst [vmem:[%s2336] ss:$9 sm:$0xff] %v2278
  %2358 = vst [vmem:[%s2338] ss:$9 sm:$0xff] %v2279
  %2359 = vst [vmem:[%s2340] ss:$9 sm:$0xff] %v2280
  %v2360 = vld [vmem:[#allocation1] sm:$0xff]
  %2361 = vst [vmem:[#allocation1] ss:$9 sm:$0xff] %v2281
  %2362 = vst [vmem:[%s2328] ss:$9 sm:$0xff] %v2282
  %2363 = vst [vmem:[%s2330] ss:$9 sm:$0xff] %v2283
  %2364 = vst [vmem:[%s2332] ss:$9 sm:$0xff] %v2284
  %2365 = vst [vmem:[%s2334] ss:$9 sm:$0xff] %v2285
  %2366 = vst [vmem:[%s2336] ss:$9 sm:$0xff] %v2286
  %2367 = vst [vmem:[%s2338] ss:$9 sm:$0xff] %v2287
  %2368 = vst [vmem:[%s2340] ss:$9 sm:$0xff] %v2288
  %v2369 = vld [vmem:[#allocation1] sm:$0xff]
  %2370 = vst [vmem:[#allocation1] ss:$9 sm:$0xff] %v2289
  %2371 = vst [vmem:[%s2328] ss:$9 sm:$0xff] %v2290
  %v2372 = vld [vmem:[#allocation1] sm:$0xff]
  %v2378 = vsel %vm172, %v2342, 0.0
  %2379 = vadd.xlane.f32.xlu0 %v2378
  %v2380 = vpop.xlane.xlu0 %2379
  %v2381 = vsel %vm172, %v2351, 0.0
  %2382 = vadd.xlane.f32.xlu0 %v2381
  %v2383 = vpop.xlane.xlu0 %2382
  %v2384 = vsel %vm172, %v2360, 0.0
  %2385 = vadd.xlane.f32.xlu0 %v2384
  %v2386 = vpop.xlane.xlu0 %2385
  %v2387 = vsel %vm172, %v2369, 0.0
  %2388 = vadd.xlane.f32.xlu0 %v2387
  %v2389 = vpop.xlane.xlu0 %2388
  %v2390 = vsel %vm185, %v2372, 0.0
  %2391 = vadd.xlane.f32.xlu0 %v2390
  %v2392 = vpop.xlane.xlu0 %2391
  %v2393 = vmul.f32 %v2380, %v195
  %v2394 = vmul.f32 %v2383, %v195
  %v2395 = vmul.f32 %v2386, %v195
  %v2396 = vmul.f32 %v2389, %v195
  %v2397 = vmul.f32 %v2392, %v195
  %v2403 = vperm.slane %v2393, 0
  %v2404 = vperm.slane %v2393, 1
  %v2405 = vperm.slane %v2393, 2
  %v2406 = vperm.slane %v2393, 3
  %v2407 = vperm.slane %v2393, 4
  %v2408 = vperm.slane %v2393, 5
  %v2409 = vperm.slane %v2393, 6
  %v2410 = vperm.slane %v2393, 7
  %v2411 = vperm.slane %v2394, 0
  %v2412 = vperm.slane %v2394, 1
  %v2413 = vperm.slane %v2394, 2
  %v2414 = vperm.slane %v2394, 3
  %v2415 = vperm.slane %v2394, 4
  %v2416 = vperm.slane %v2394, 5
  %v2417 = vperm.slane %v2394, 6
  %v2418 = vperm.slane %v2394, 7
  %v2419 = vperm.slane %v2395, 0
  %v2420 = vperm.slane %v2395, 1
  %v2421 = vperm.slane %v2395, 2
  %v2422 = vperm.slane %v2395, 3
  %v2423 = vperm.slane %v2395, 4
  %v2424 = vperm.slane %v2395, 5
  %v2425 = vperm.slane %v2395, 6
  %v2426 = vperm.slane %v2395, 7
  %v2427 = vperm.slane %v2396, 0
  %v2428 = vperm.slane %v2396, 1
  %v2429 = vperm.slane %v2396, 2
  %v2430 = vperm.slane %v2396, 3
  %v2431 = vperm.slane %v2396, 4
  %v2432 = vperm.slane %v2396, 5
  %v2433 = vperm.slane %v2396, 6
  %v2434 = vperm.slane %v2396, 7
  %v2435 = vperm.slane %v2397, 0
  %v2436 = vperm.slane %v2397, 1
  %v2471 = vsub.f32 %v2257, %v2403
  %v2472 = vsub.f32 %v2258, %v2404
  %v2473 = vsub.f32 %v2259, %v2405
  %v2474 = vsub.f32 %v2260, %v2406
  %v2475 = vsub.f32 %v2261, %v2407
  %v2476 = vsub.f32 %v2262, %v2408
  %v2477 = vsub.f32 %v2263, %v2409
  %v2478 = vsub.f32 %v2264, %v2410
  %v2479 = vsub.f32 %v2265, %v2411
  %v2480 = vsub.f32 %v2266, %v2412
  %v2481 = vsub.f32 %v2267, %v2413
  %v2482 = vsub.f32 %v2268, %v2414
  %v2483 = vsub.f32 %v2269, %v2415
  %v2484 = vsub.f32 %v2270, %v2416
  %v2485 = vsub.f32 %v2271, %v2417
  %v2486 = vsub.f32 %v2272, %v2418
  %v2487 = vsub.f32 %v2273, %v2419
  %v2488 = vsub.f32 %v2274, %v2420
  %v2489 = vsub.f32 %v2275, %v2421
  %v2490 = vsub.f32 %v2276, %v2422
  %v2491 = vsub.f32 %v2277, %v2423
  %v2492 = vsub.f32 %v2278, %v2424
  %v2493 = vsub.f32 %v2279, %v2425
  %v2494 = vsub.f32 %v2280, %v2426
  %v2495 = vsub.f32 %v2281, %v2427
  %v2496 = vsub.f32 %v2282, %v2428
  %v2497 = vsub.f32 %v2283, %v2429
  %v2498 = vsub.f32 %v2284, %v2430
  %v2499 = vsub.f32 %v2285, %v2431
  %v2500 = vsub.f32 %v2286, %v2432
  %v2501 = vsub.f32 %v2287, %v2433
  %v2502 = vsub.f32 %v2288, %v2434
  %v2503 = vsub.f32 %v2289, %v2435
  %v2504 = vsub.f32 %v2290, %v2436
  %v2505 = vmul.f32 %v2471, %v2471
  %v2506 = vmul.f32 %v2472, %v2472
  %v2507 = vmul.f32 %v2473, %v2473
  %v2508 = vmul.f32 %v2474, %v2474
  %v2509 = vmul.f32 %v2475, %v2475
  %v2510 = vmul.f32 %v2476, %v2476
  %v2511 = vmul.f32 %v2477, %v2477
  %v2512 = vmul.f32 %v2478, %v2478
  %v2513 = vmul.f32 %v2479, %v2479
  %v2514 = vmul.f32 %v2480, %v2480
  %v2515 = vmul.f32 %v2481, %v2481
  %v2516 = vmul.f32 %v2482, %v2482
  %v2517 = vmul.f32 %v2483, %v2483
  %v2518 = vmul.f32 %v2484, %v2484
  %v2519 = vmul.f32 %v2485, %v2485
  %v2520 = vmul.f32 %v2486, %v2486
  %v2521 = vmul.f32 %v2487, %v2487
  %v2522 = vmul.f32 %v2488, %v2488
  %v2523 = vmul.f32 %v2489, %v2489
  %v2524 = vmul.f32 %v2490, %v2490
  %v2525 = vmul.f32 %v2491, %v2491
  %v2526 = vmul.f32 %v2492, %v2492
  %v2527 = vmul.f32 %v2493, %v2493
  %v2528 = vmul.f32 %v2494, %v2494
  %v2529 = vmul.f32 %v2495, %v2495
  %v2530 = vmul.f32 %v2496, %v2496
  %v2531 = vmul.f32 %v2497, %v2497
  %v2532 = vmul.f32 %v2498, %v2498
  %v2533 = vmul.f32 %v2499, %v2499
  %v2534 = vmul.f32 %v2500, %v2500
  %v2535 = vmul.f32 %v2501, %v2501
  %v2536 = vmul.f32 %v2502, %v2502
  %v2537 = vmul.f32 %v2503, %v2503
  %v2538 = vmul.f32 %v2504, %v2504
  %2573 = vst [vmem:[#allocation1] ss:$9 sm:$0xff] %v2505
  %s2574 = scalar_lea.vmem [#allocation1], 1
  %2575 = vst [vmem:[%s2574] ss:$9 sm:$0xff] %v2506
  %s2576 = scalar_lea.vmem [#allocation1], 2
  %2577 = vst [vmem:[%s2576] ss:$9 sm:$0xff] %v2507
  %s2578 = scalar_lea.vmem [#allocation1], 3
  %2579 = vst [vmem:[%s2578] ss:$9 sm:$0xff] %v2508
  %s2580 = scalar_lea.vmem [#allocation1], 4
  %2581 = vst [vmem:[%s2580] ss:$9 sm:$0xff] %v2509
  %s2582 = scalar_lea.vmem [#allocation1], 5
  %2583 = vst [vmem:[%s2582] ss:$9 sm:$0xff] %v2510
  %s2584 = scalar_lea.vmem [#allocation1], 6
  %2585 = vst [vmem:[%s2584] ss:$9 sm:$0xff] %v2511
  %s2586 = scalar_lea.vmem [#allocation1], 7
  %2587 = vst [vmem:[%s2586] ss:$9 sm:$0xff] %v2512
  %v2588 = vld [vmem:[#allocation1] sm:$0xff]
  %2589 = vst [vmem:[#allocation1] ss:$9 sm:$0xff] %v2513
  %2590 = vst [vmem:[%s2574] ss:$9 sm:$0xff] %v2514
  %2591 = vst [vmem:[%s2576] ss:$9 sm:$0xff] %v2515
  %2592 = vst [vmem:[%s2578] ss:$9 sm:$0xff] %v2516
  %2593 = vst [vmem:[%s2580] ss:$9 sm:$0xff] %v2517
  %2594 = vst [vmem:[%s2582] ss:$9 sm:$0xff] %v2518
  %2595 = vst [vmem:[%s2584] ss:$9 sm:$0xff] %v2519
  %2596 = vst [vmem:[%s2586] ss:$9 sm:$0xff] %v2520
  %v2597 = vld [vmem:[#allocation1] sm:$0xff]
  %2598 = vst [vmem:[#allocation1] ss:$9 sm:$0xff] %v2521
  %2599 = vst [vmem:[%s2574] ss:$9 sm:$0xff] %v2522
  %2600 = vst [vmem:[%s2576] ss:$9 sm:$0xff] %v2523
  %2601 = vst [vmem:[%s2578] ss:$9 sm:$0xff] %v2524
  %2602 = vst [vmem:[%s2580] ss:$9 sm:$0xff] %v2525
  %2603 = vst [vmem:[%s2582] ss:$9 sm:$0xff] %v2526
  %2604 = vst [vmem:[%s2584] ss:$9 sm:$0xff] %v2527
  %2605 = vst [vmem:[%s2586] ss:$9 sm:$0xff] %v2528
  %v2606 = vld [vmem:[#allocation1] sm:$0xff]
  %2607 = vst [vmem:[#allocation1] ss:$9 sm:$0xff] %v2529
  %2608 = vst [vmem:[%s2574] ss:$9 sm:$0xff] %v2530
  %2609 = vst [vmem:[%s2576] ss:$9 sm:$0xff] %v2531
  %2610 = vst [vmem:[%s2578] ss:$9 sm:$0xff] %v2532
  %2611 = vst [vmem:[%s2580] ss:$9 sm:$0xff] %v2533
  %2612 = vst [vmem:[%s2582] ss:$9 sm:$0xff] %v2534
  %2613 = vst [vmem:[%s2584] ss:$9 sm:$0xff] %v2535
  %2614 = vst [vmem:[%s2586] ss:$9 sm:$0xff] %v2536
  %v2615 = vld [vmem:[#allocation1] sm:$0xff]
  %2616 = vst [vmem:[#allocation1] ss:$9 sm:$0xff] %v2537
  %2617 = vst [vmem:[%s2574] ss:$9 sm:$0xff] %v2538
  %v2618 = vld [vmem:[#allocation1] sm:$0xff]
  %v2624 = vsel %vm172, %v2588, 0.0
  %2625 = vadd.xlane.f32.xlu0 %v2624
  %v2626 = vpop.xlane.xlu0 %2625
  %v2627 = vsel %vm172, %v2597, 0.0
  %2628 = vadd.xlane.f32.xlu0 %v2627
  %v2629 = vpop.xlane.xlu0 %2628
  %v2630 = vsel %vm172, %v2606, 0.0
  %2631 = vadd.xlane.f32.xlu0 %v2630
  %v2632 = vpop.xlane.xlu0 %2631
  %v2633 = vsel %vm172, %v2615, 0.0
  %2634 = vadd.xlane.f32.xlu0 %v2633
  %v2635 = vpop.xlane.xlu0 %2634
  %v2636 = vsel %vm185, %v2618, 0.0
  %2637 = vadd.xlane.f32.xlu0 %v2636
  %v2638 = vpop.xlane.xlu0 %2637
  %v2639 = vmul.f32 %v2626, %v195
  %v2640 = vmul.f32 %v2629, %v195
  %v2641 = vmul.f32 %v2632, %v195
  %v2642 = vmul.f32 %v2635, %v195
  %v2643 = vmul.f32 %v2638, %v195
  %v2644 = vadd.f32 %v2639, 1e-06
  %v2645 = vadd.f32 %v2640, 1e-06
  %v2646 = vadd.f32 %v2641, 1e-06
  %v2647 = vadd.f32 %v2642, 1e-06
  %v2648 = vadd.f32 %v2643, 1e-06
  %v2649 = vrsqrt.pop %v2644
  %v2650 = vmul.f32 %v2649, %v2644
  %v2651 = vmul.f32 %v2650, %v2649
  %v2652 = vmul.f32 0.5, %v2651
  %v2653 = vsub.f32 1.5, %v2652
  %v2654 = vmul.f32 %v2649, %v2653
  %vm2655 = vweird.f32 %v2644
  %vm2656 = vweird.f32 %v2649
  %vm2657 = vmor %vm2655, %vm2656
  %v2658 = vsel %vm2657, %v2649, %v2654
  %v2659 = vrsqrt.pop %v2645
  %v2660 = vmul.f32 %v2659, %v2645
  %v2661 = vmul.f32 %v2660, %v2659
  %v2662 = vmul.f32 0.5, %v2661
  %v2663 = vsub.f32 1.5, %v2662
  %v2664 = vmul.f32 %v2659, %v2663
  %vm2665 = vweird.f32 %v2645
  %vm2666 = vweird.f32 %v2659
  %vm2667 = vmor %vm2665, %vm2666
  %v2668 = vsel %vm2667, %v2659, %v2664
  %v2669 = vrsqrt.pop %v2646
  %v2670 = vmul.f32 %v2669, %v2646
  %v2671 = vmul.f32 %v2670, %v2669
  %v2672 = vmul.f32 0.5, %v2671
  %v2673 = vsub.f32 1.5, %v2672
  %v2674 = vmul.f32 %v2669, %v2673
  %vm2675 = vweird.f32 %v2646
  %vm2676 = vweird.f32 %v2669
  %vm2677 = vmor %vm2675, %vm2676
  %v2678 = vsel %vm2677, %v2669, %v2674
  %v2679 = vrsqrt.pop %v2647
  %v2680 = vmul.f32 %v2679, %v2647
  %v2681 = vmul.f32 %v2680, %v2679
  %v2682 = vmul.f32 0.5, %v2681
  %v2683 = vsub.f32 1.5, %v2682
  %v2684 = vmul.f32 %v2679, %v2683
  %vm2685 = vweird.f32 %v2647
  %vm2686 = vweird.f32 %v2679
  %vm2687 = vmor %vm2685, %vm2686
  %v2688 = vsel %vm2687, %v2679, %v2684
  %v2689 = vrsqrt.pop %v2648
  %v2690 = vmul.f32 %v2689, %v2648
  %v2691 = vmul.f32 %v2690, %v2689
  %v2692 = vmul.f32 0.5, %v2691
  %v2693 = vsub.f32 1.5, %v2692
  %v2694 = vmul.f32 %v2689, %v2693
  %vm2695 = vweird.f32 %v2648
  %vm2696 = vweird.f32 %v2689
  %vm2697 = vmor %vm2695, %vm2696
  %v2698 = vsel %vm2697, %v2689, %v2694
  %v2704 = vperm.slane %v2658, 0
  %v2705 = vperm.slane %v2658, 1
  %v2706 = vperm.slane %v2658, 2
  %v2707 = vperm.slane %v2658, 3
  %v2708 = vperm.slane %v2658, 4
  %v2709 = vperm.slane %v2658, 5
  %v2710 = vperm.slane %v2658, 6
  %v2711 = vperm.slane %v2658, 7
  %v2712 = vperm.slane %v2668, 0
  %v2713 = vperm.slane %v2668, 1
  %v2714 = vperm.slane %v2668, 2
  %v2715 = vperm.slane %v2668, 3
  %v2716 = vperm.slane %v2668, 4
  %v2717 = vperm.slane %v2668, 5
  %v2718 = vperm.slane %v2668, 6
  %v2719 = vperm.slane %v2668, 7
  %v2720 = vperm.slane %v2678, 0
  %v2721 = vperm.slane %v2678, 1
  %v2722 = vperm.slane %v2678, 2
  %v2723 = vperm.slane %v2678, 3
  %v2724 = vperm.slane %v2678, 4
  %v2725 = vperm.slane %v2678, 5
  %v2726 = vperm.slane %v2678, 6
  %v2727 = vperm.slane %v2678, 7
  %v2728 = vperm.slane %v2688, 0
  %v2729 = vperm.slane %v2688, 1
  %v2730 = vperm.slane %v2688, 2
  %v2731 = vperm.slane %v2688, 3
  %v2732 = vperm.slane %v2688, 4
  %v2733 = vperm.slane %v2688, 5
  %v2734 = vperm.slane %v2688, 6
  %v2735 = vperm.slane %v2688, 7
  %v2736 = vperm.slane %v2698, 0
  %v2737 = vperm.slane %v2698, 1
  %v2772 = vmul.f32 %v2471, %v2704
  %v2773 = vmul.f32 %v2472, %v2705
  %v2774 = vmul.f32 %v2473, %v2706
  %v2775 = vmul.f32 %v2474, %v2707
  %v2776 = vmul.f32 %v2475, %v2708
  %v2777 = vmul.f32 %v2476, %v2709
  %v2778 = vmul.f32 %v2477, %v2710
  %v2779 = vmul.f32 %v2478, %v2711
  %v2780 = vmul.f32 %v2479, %v2712
  %v2781 = vmul.f32 %v2480, %v2713
  %v2782 = vmul.f32 %v2481, %v2714
  %v2783 = vmul.f32 %v2482, %v2715
  %v2784 = vmul.f32 %v2483, %v2716
  %v2785 = vmul.f32 %v2484, %v2717
  %v2786 = vmul.f32 %v2485, %v2718
  %v2787 = vmul.f32 %v2486, %v2719
  %v2788 = vmul.f32 %v2487, %v2720
  %v2789 = vmul.f32 %v2488, %v2721
  %v2790 = vmul.f32 %v2489, %v2722
  %v2791 = vmul.f32 %v2490, %v2723
  %v2792 = vmul.f32 %v2491, %v2724
  %v2793 = vmul.f32 %v2492, %v2725
  %v2794 = vmul.f32 %v2493, %v2726
  %v2795 = vmul.f32 %v2494, %v2727
  %v2796 = vmul.f32 %v2495, %v2728
  %v2797 = vmul.f32 %v2496, %v2729
  %v2798 = vmul.f32 %v2497, %v2730
  %v2799 = vmul.f32 %v2498, %v2731
  %v2800 = vmul.f32 %v2499, %v2732
  %v2801 = vmul.f32 %v2500, %v2733
  %v2802 = vmul.f32 %v2501, %v2734
  %v2803 = vmul.f32 %v2502, %v2735
  %v2804 = vmul.f32 %v2503, %v2736
  %v2805 = vmul.f32 %v2504, %v2737
  %v2807 = vperm.slane %v2291, 0
  %v2809 = vrot.slane %v2807, 1
  %v2810 = vrot.slane %v2807, 2
  %v2811 = vrot.slane %v2807, 3
  %v2812 = vrot.slane %v2807, 4
  %v2813 = vrot.slane %v2807, 5
  %v2814 = vrot.slane %v2807, 6
  %v2815 = vrot.slane %v2807, 7
  %v2823 = vmul.f32 %v2772, %v2807
  %v2824 = vmul.f32 %v2773, %v2809
  %v2825 = vmul.f32 %v2774, %v2810
  %v2826 = vmul.f32 %v2775, %v2811
  %v2827 = vmul.f32 %v2776, %v2812
  %v2828 = vmul.f32 %v2777, %v2813
  %v2829 = vmul.f32 %v2778, %v2814
  %v2830 = vmul.f32 %v2779, %v2815
  %v2831 = vmul.f32 %v2780, %v2807
  %v2832 = vmul.f32 %v2781, %v2809
  %v2833 = vmul.f32 %v2782, %v2810
  %v2834 = vmul.f32 %v2783, %v2811
  %v2835 = vmul.f32 %v2784, %v2812
  %v2836 = vmul.f32 %v2785, %v2813
  %v2837 = vmul.f32 %v2786, %v2814
  %v2838 = vmul.f32 %v2787, %v2815
  %v2839 = vmul.f32 %v2788, %v2807
  %v2840 = vmul.f32 %v2789, %v2809
  %v2841 = vmul.f32 %v2790, %v2810
  %v2842 = vmul.f32 %v2791, %v2811
  %v2843 = vmul.f32 %v2792, %v2812
  %v2844 = vmul.f32 %v2793, %v2813
  %v2845 = vmul.f32 %v2794, %v2814
  %v2846 = vmul.f32 %v2795, %v2815
  %v2847 = vmul.f32 %v2796, %v2807
  %v2848 = vmul.f32 %v2797, %v2809
  %v2849 = vmul.f32 %v2798, %v2810
  %v2850 = vmul.f32 %v2799, %v2811
  %v2851 = vmul.f32 %v2800, %v2812
  %v2852 = vmul.f32 %v2801, %v2813
  %v2853 = vmul.f32 %v2802, %v2814
  %v2854 = vmul.f32 %v2803, %v2815
  %v2855 = vmul.f32 %v2804, %v2807
  %v2856 = vmul.f32 %v2805, %v2809
  %v2858 = vperm.slane %v2292, 0
  %v2860 = vrot.slane %v2858, 1
  %v2861 = vrot.slane %v2858, 2
  %v2862 = vrot.slane %v2858, 3
  %v2863 = vrot.slane %v2858, 4
  %v2864 = vrot.slane %v2858, 5
  %v2865 = vrot.slane %v2858, 6
  %v2866 = vrot.slane %v2858, 7
  %v2874 = vadd.f32 %v2823, %v2858
  %v2875 = vadd.f32 %v2824, %v2860
  %v2876 = vadd.f32 %v2825, %v2861
  %v2877 = vadd.f32 %v2826, %v2862
  %v2878 = vadd.f32 %v2827, %v2863
  %v2879 = vadd.f32 %v2828, %v2864
  %v2880 = vadd.f32 %v2829, %v2865
  %v2881 = vadd.f32 %v2830, %v2866
  %v2882 = vadd.f32 %v2831, %v2858
  %v2883 = vadd.f32 %v2832, %v2860
  %v2884 = vadd.f32 %v2833, %v2861
  %v2885 = vadd.f32 %v2834, %v2862
  %v2886 = vadd.f32 %v2835, %v2863
  %v2887 = vadd.f32 %v2836, %v2864
  %v2888 = vadd.f32 %v2837, %v2865
  %v2889 = vadd.f32 %v2838, %v2866
  %v2890 = vadd.f32 %v2839, %v2858
  %v2891 = vadd.f32 %v2840, %v2860
  %v2892 = vadd.f32 %v2841, %v2861
  %v2893 = vadd.f32 %v2842, %v2862
  %v2894 = vadd.f32 %v2843, %v2863
  %v2895 = vadd.f32 %v2844, %v2864
  %v2896 = vadd.f32 %v2845, %v2865
  %v2897 = vadd.f32 %v2846, %v2866
  %v2898 = vadd.f32 %v2847, %v2858
  %v2899 = vadd.f32 %v2848, %v2860
  %v2900 = vadd.f32 %v2849, %v2861
  %v2901 = vadd.f32 %v2850, %v2862
  %v2902 = vadd.f32 %v2851, %v2863
  %v2903 = vadd.f32 %v2852, %v2864
  %v2904 = vadd.f32 %v2853, %v2865
  %v2905 = vadd.f32 %v2854, %v2866
  %v2906 = vadd.f32 %v2855, %v2858
  %v2907 = vadd.f32 %v2856, %v2860
  %2942 = vst [vmem:[#allocation1] ss:$9 sm:$0xff] %v2874
  %s2943 = scalar_lea.vmem [#allocation1], 1
  %2944 = vst [vmem:[%s2943] ss:$9 sm:$0xff] %v2875
  %s2945 = scalar_lea.vmem [#allocation1], 2
  %2946 = vst [vmem:[%s2945] ss:$9 sm:$0xff] %v2876
  %s2947 = scalar_lea.vmem [#allocation1], 3
  %2948 = vst [vmem:[%s2947] ss:$9 sm:$0xff] %v2877
  %s2949 = scalar_lea.vmem [#allocation1], 4
  %2950 = vst [vmem:[%s2949] ss:$9 sm:$0xff] %v2878
  %s2951 = scalar_lea.vmem [#allocation1], 5
  %2952 = vst [vmem:[%s2951] ss:$9 sm:$0xff] %v2879
  %s2953 = scalar_lea.vmem [#allocation1], 6
  %2954 = vst [vmem:[%s2953] ss:$9 sm:$0xff] %v2880
  %s2955 = scalar_lea.vmem [#allocation1], 7
  %2956 = vst [vmem:[%s2955] ss:$9 sm:$0xff] %v2881
  %v2957 = vld [vmem:[#allocation1] sm:$0xff]
  %2958 = vst [vmem:[#allocation1] ss:$9 sm:$0xff] %v2882
  %2959 = vst [vmem:[%s2943] ss:$9 sm:$0xff] %v2883
  %2960 = vst [vmem:[%s2945] ss:$9 sm:$0xff] %v2884
  %2961 = vst [vmem:[%s2947] ss:$9 sm:$0xff] %v2885
  %2962 = vst [vmem:[%s2949] ss:$9 sm:$0xff] %v2886
  %2963 = vst [vmem:[%s2951] ss:$9 sm:$0xff] %v2887
  %2964 = vst [vmem:[%s2953] ss:$9 sm:$0xff] %v2888
  %2965 = vst [vmem:[%s2955] ss:$9 sm:$0xff] %v2889
  %v2966 = vld [vmem:[#allocation1] sm:$0xff]
  %2967 = vst [vmem:[#allocation1] ss:$9 sm:$0xff] %v2890
  %2968 = vst [vmem:[%s2943] ss:$9 sm:$0xff] %v2891
  %2969 = vst [vmem:[%s2945] ss:$9 sm:$0xff] %v2892
  %2970 = vst [vmem:[%s2947] ss:$9 sm:$0xff] %v2893
  %2971 = vst [vmem:[%s2949] ss:$9 sm:$0xff] %v2894
  %2972 = vst [vmem:[%s2951] ss:$9 sm:$0xff] %v2895
  %2973 = vst [vmem:[%s2953] ss:$9 sm:$0xff] %v2896
  %2974 = vst [vmem:[%s2955] ss:$9 sm:$0xff] %v2897
  %v2975 = vld [vmem:[#allocation1] sm:$0xff]
  %2976 = vst [vmem:[#allocation1] ss:$9 sm:$0xff] %v2898
  %2977 = vst [vmem:[%s2943] ss:$9 sm:$0xff] %v2899
  %2978 = vst [vmem:[%s2945] ss:$9 sm:$0xff] %v2900
  %2979 = vst [vmem:[%s2947] ss:$9 sm:$0xff] %v2901
  %2980 = vst [vmem:[%s2949] ss:$9 sm:$0xff] %v2902
  %2981 = vst [vmem:[%s2951] ss:$9 sm:$0xff] %v2903
  %2982 = vst [vmem:[%s2953] ss:$9 sm:$0xff] %v2904
  %2983 = vst [vmem:[%s2955] ss:$9 sm:$0xff] %v2905
  %v2984 = vld [vmem:[#allocation1] sm:$0xff]
  %2985 = vst [vmem:[#allocation1] ss:$9 sm:$0xff] %v2906
  %2986 = vst [vmem:[%s2943] ss:$9 sm:$0xff] %v2907
  %v2987 = vld [vmem:[#allocation1] sm:$0xff]
  %v2993 = vpack.c.bf16 %v2966, %v2957
  %v2994 = vpack.c.bf16 %v2984, %v2975
  %v2995 = vpack.c.bf16 %v2987, %v2987
  %v2996 = vld [vmem:[%s9] sm:$0xf]
  %v2997 = vld [vmem:[%s9 + $0x4] sm:$0xf]
  %v2998 = vld [vmem:[%s9 + $0x8] sm:$0xf]
  %v2999 = vld [vmem:[%s9 + $0xc] sm:$0xf]
  %v3000 = vld [vmem:[%s10] sm:$0x1]
  %v3002 = vperm.slane %v3000, 0
  %v3008 = vunpack.c.l.b16 %v2996
  %v3009 = vunpack.c.l.b16 %v2997
  %v3010 = vunpack.c.l.b16 %v2998
  %v3011 = vunpack.c.l.b16 %v2999
  %v3012 = vpack.c.b16 %v3009, %v3008
  %v3013 = vpack.c.b16 %v3011, %v3010
  %v3017 = vsel %vm172, %v2993, 0
  %v3020 = vsel %vm172, %v2994, 0
  %v3023 = vsel %vm172, %v2995, 0
  %3025 = vmatpush.bf16.msra.mxu0 0
  %3026 = vmatpush.bf16.msra.mxu0 0
  %3027 = vmatpush.bf16.msra.mxu0 0
  %3028 = vmatpush.bf16.msra.mxu0 0
  %3029 = vmatpush.bf16.msra.mxu0 0
  %3030 = vmatpush.bf16.msra.mxu0 0
  %3031 = vmatpush.bf16.msra.mxu0 %v3013
  %3032 = vmatpush.bf16.msra.mxu0 %v3012
  %3033 = vmatmul.bf16.gmra.mxu0 %v3017
  %v3034 = vpop.f32.mrf.mxu0
  %v3035 = vadd.f32 %v3002, %v3034
  %v3036 = vpop.f32.mrf.mxu0
  %v3037 = vadd.f32 %v3002, %v3036
  %3038 = vmatmul.bf16.gmra.mxu0 %v3020
  %v3039 = vpop.f32.mrf.mxu0
  %v3040 = vadd.f32 %v3002, %v3039
  %v3041 = vpop.f32.mrf.mxu0
  %v3042 = vadd.f32 %v3002, %v3041
  %3043 = vmatmul.bf16.gmra.mxu0 %v3023
  %v3044 = vpop.f32.mrf.mxu0
  %v3045 = vadd.f32 %v3002, %v3044
  %v3046 = vpop.f32.mrf.mxu0
  %3047 = vdwg.mxu0
  %v3048 = vmul.f32 %v3035, %v3035
  %v3049 = vmul.f32 %v3037, %v3037
  %v3050 = vmul.f32 %v3040, %v3040
  %v3051 = vmul.f32 %v3042, %v3042
  %v3052 = vmul.f32 %v3045, %v3045
  %v3053 = vmul.f32 %v3035, %v3048
  %v3054 = vmul.f32 %v3037, %v3049
  %v3055 = vmul.f32 %v3040, %v3050
  %v3056 = vmul.f32 %v3042, %v3051
  %v3057 = vmul.f32 %v3045, %v3052
  %v3058 = vmul.f32 %v3053, 0.044715
  %v3059 = vmul.f32 %v3054, 0.044715
  %v3060 = vmul.f32 %v3055, 0.044715
  %v3061 = vmul.f32 %v3056, 0.044715
  %v3062 = vmul.f32 %v3057, 0.044715
  %v3063 = vadd.f32 %v3035, %v3058
  %v3064 = vadd.f32 %v3037, %v3059
  %v3065 = vadd.f32 %v3040, %v3060
  %v3066 = vadd.f32 %v3042, %v3061
  %v3067 = vadd.f32 %v3045, %v3062
  %v3068 = vmul.f32 %v3063, 0.7978846
  %v3069 = vmul.f32 %v3064, 0.7978846
  %v3070 = vmul.f32 %v3065, 0.7978846
  %v3071 = vmul.f32 %v3066, 0.7978846
  %v3072 = vmul.f32 %v3067, 0.7978846
  %v3073 = vtanh.pop %v3068
  %v3074 = vtanh.pop %v3069
  %v3075 = vtanh.pop %v3070
  %v3076 = vtanh.pop %v3071
  %v3077 = vtanh.pop %v3072
  %v3078 = vadd.f32 %v3073, 1.0
  %v3079 = vadd.f32 %v3074, 1.0
  %v3080 = vadd.f32 %v3075, 1.0
  %v3081 = vadd.f32 %v3076, 1.0
  %v3082 = vadd.f32 %v3077, 1.0
  %v3083 = vmul.f32 %v3078, 0.5
  %v3084 = vmul.f32 %v3079, 0.5
  %v3085 = vmul.f32 %v3080, 0.5
  %v3086 = vmul.f32 %v3081, 0.5
  %v3087 = vmul.f32 %v3082, 0.5
  %v3088 = vmul.f32 %v3035, %v3083
  %v3089 = vmul.f32 %v3037, %v3084
  %v3090 = vmul.f32 %v3040, %v3085
  %v3091 = vmul.f32 %v3042, %v3086
  %v3092 = vmul.f32 %v3045, %v3087
  %v3093 = vpack.c.bf16 %v3089, %v3088
  %v3094 = vpack.c.bf16 %v3091, %v3090
  %v3095 = vpack.c.bf16 %v3092, %v3092
  %v3096 = vld [vmem:[%s11] sm:$0xf]
  %v3097 = vld [vmem:[%s11 + $0x4] sm:$0xf]
  %v3098 = vld [vmem:[%s11 + $0x8] sm:$0xf]
  %v3099 = vld [vmem:[%s11 + $0xc] sm:$0xf]
  %v3100 = vld [vmem:[%s11 + $0x10] sm:$0xf]
  %v3101 = vld [vmem:[%s11 + $0x14] sm:$0xf]
  %v3102 = vld [vmem:[%s11 + $0x18] sm:$0xf]
  %v3103 = vld [vmem:[%s11 + $0x1c] sm:$0xf]
  %v3104 = vld [vmem:[%s11 + $0x20] sm:$0xf]
  %v3105 = vld [vmem:[%s11 + $0x24] sm:$0xf]
  %v3106 = vld [vmem:[%s11 + $0x28] sm:$0xf]
  %v3107 = vld [vmem:[%s11 + $0x2c] sm:$0xf]
  %v3108 = vld [vmem:[%s11 + $0x30] sm:$0xf]
  %v3109 = vld [vmem:[%s11 + $0x34] sm:$0xf]
  %v3110 = vld [vmem:[%s11 + $0x38] sm:$0xf]
  %v3111 = vld [vmem:[%s11 + $0x3c] sm:$0xf]
  %v3112 = vld [vmem:[%s12] sm:$0x1]
  %v3114 = vperm.slane %v3112, 0
  %v3132 = vunpack.c.l.b16 %v3096
  %v3133 = vunpack.c.l.b16 %v3097
  %v3134 = vunpack.c.l.b16 %v3098
  %v3135 = vunpack.c.l.b16 %v3099
  %v3136 = vunpack.c.l.b16 %v3100
  %v3137 = vunpack.c.l.b16 %v3101
  %v3138 = vunpack.c.l.b16 %v3102
  %v3139 = vunpack.c.l.b16 %v3103
  %v3140 = vunpack.c.l.b16 %v3104
  %v3141 = vunpack.c.l.b16 %v3105
  %v3142 = vunpack.c.l.b16 %v3106
  %v3143 = vunpack.c.l.b16 %v3107
  %v3144 = vunpack.c.l.b16 %v3108
  %v3145 = vunpack.c.l.b16 %v3109
  %v3146 = vunpack.c.l.b16 %v3110
  %v3147 = vunpack.c.l.b16 %v3111
  %v3148 = vpack.c.b16 %v3133, %v3132
  %v3149 = vpack.c.b16 %v3135, %v3134
  %v3150 = vpack.c.b16 %v3137, %v3136
  %v3151 = vpack.c.b16 %v3139, %v3138
  %v3152 = vpack.c.b16 %v3141, %v3140
  %v3153 = vpack.c.b16 %v3143, %v3142
  %v3154 = vpack.c.b16 %v3145, %v3144
  %v3155 = vpack.c.b16 %v3147, %v3146
  %3164 = vmatpush.bf16.msra.mxu0 %v3155
  %3165 = vmatpush.bf16.msra.mxu0 %v3154
  %3166 = vmatpush.bf16.msra.mxu0 %v3153
  %3167 = vmatpush.bf16.msra.mxu0 %v3152
  %3168 = vmatpush.bf16.msra.mxu0 %v3151
  %3169 = vmatpush.bf16.msra.mxu0 %v3150
  %3170 = vmatpush.bf16.msra.mxu0 %v3149
  %3171 = vmatpush.bf16.msra.mxu0 %v3148
  %3172 = vmatmul.bf16.gmra.mxu0 %v3093
  %v3173 = vpop.f32.mrf.mxu0
  %v3174 = vadd.f32 %v3114, %v3173
  %v3175 = vpop.f32.mrf.mxu0
  %v3176 = vadd.f32 %v3114, %v3175
  %3177 = vmatmul.bf16.gmra.mxu0 %v3094
  %v3178 = vpop.f32.mrf.mxu0
  %v3179 = vadd.f32 %v3114, %v3178
  %v3180 = vpop.f32.mrf.mxu0
  %v3181 = vadd.f32 %v3114, %v3180
  %3182 = vmatmul.bf16.gmra.mxu0 %v3095
  %v3183 = vpop.f32.mrf.mxu0
  %v3184 = vadd.f32 %v3114, %v3183
  %v3185 = vpop.f32.mrf.mxu0
  %3186 = vdwg.mxu0
  %v3192 = vrot.slane %v3174, 1
  %v3193 = vrot.slane %v3174, 2
  %v3194 = vrot.slane %v3174, 3
  %v3195 = vrot.slane %v3174, 4
  %v3196 = vrot.slane %v3174, 5
  %v3197 = vrot.slane %v3174, 6
  %v3198 = vrot.slane %v3174, 7
  %v3199 = vrot.slane %v3176, 1
  %v3200 = vrot.slane %v3176, 2
  %v3201 = vrot.slane %v3176, 3
  %v3202 = vrot.slane %v3176, 4
  %v3203 = vrot.slane %v3176, 5
  %v3204 = vrot.slane %v3176, 6
  %v3205 = vrot.slane %v3176, 7
  %v3206 = vrot.slane %v3179, 1
  %v3207 = vrot.slane %v3179, 2
  %v3208 = vrot.slane %v3179, 3
  %v3209 = vrot.slane %v3179, 4
  %v3210 = vrot.slane %v3179, 5
  %v3211 = vrot.slane %v3179, 6
  %v3212 = vrot.slane %v3179, 7
  %v3213 = vrot.slane %v3181, 1
  %v3214 = vrot.slane %v3181, 2
  %v3215 = vrot.slane %v3181, 3
  %v3216 = vrot.slane %v3181, 4
  %v3217 = vrot.slane %v3181, 5
  %v3218 = vrot.slane %v3181, 6
  %v3219 = vrot.slane %v3181, 7
  %v3220 = vrot.slane %v3184, 1
  %v3250 = vadd.f32 %v2257, %v3174
  %v3251 = vadd.f32 %v2258, %v3192
  %v3252 = vadd.f32 %v2259, %v3193
  %v3253 = vadd.f32 %v2260, %v3194
  %v3254 = vadd.f32 %v2261, %v3195
  %v3255 = vadd.f32 %v2262, %v3196
  %v3256 = vadd.f32 %v2263, %v3197
  %v3257 = vadd.f32 %v2264, %v3198
  %v3258 = vadd.f32 %v2265, %v3176
  %v3259 = vadd.f32 %v2266, %v3199
  %v3260 = vadd.f32 %v2267, %v3200
  %v3261 = vadd.f32 %v2268, %v3201
  %v3262 = vadd.f32 %v2269, %v3202
  %v3263 = vadd.f32 %v2270, %v3203
  %v3264 = vadd.f32 %v2271, %v3204
  %v3265 = vadd.f32 %v2272, %v3205
  %v3266 = vadd.f32 %v2273, %v3179
  %v3267 = vadd.f32 %v2274, %v3206
  %v3268 = vadd.f32 %v2275, %v3207
  %v3269 = vadd.f32 %v2276, %v3208
  %v3270 = vadd.f32 %v2277, %v3209
  %v3271 = vadd.f32 %v2278, %v3210
  %v3272 = vadd.f32 %v2279, %v3211
  %v3273 = vadd.f32 %v2280, %v3212
  %v3274 = vadd.f32 %v2281, %v3181
  %v3275 = vadd.f32 %v2282, %v3213
  %v3276 = vadd.f32 %v2283, %v3214
  %v3277 = vadd.f32 %v2284, %v3215
  %v3278 = vadd.f32 %v2285, %v3216
  %v3279 = vadd.f32 %v2286, %v3217
  %v3280 = vadd.f32 %v2287, %v3218
  %v3281 = vadd.f32 %v2288, %v3219
  %v3282 = vadd.f32 %v2289, %v3184
  %v3283 = vadd.f32 %v2290, %v3220
  %3318 = vst [vmem:[#allocation1] ss:$9 sm:$0xff] %v3250
  %s3319 = scalar_lea.vmem [#allocation1], 1
  %3320 = vst [vmem:[%s3319] ss:$9 sm:$0xff] %v3251
  %s3321 = scalar_lea.vmem [#allocation1], 2
  %3322 = vst [vmem:[%s3321] ss:$9 sm:$0xff] %v3252
  %s3323 = scalar_lea.vmem [#allocation1], 3
  %3324 = vst [vmem:[%s3323] ss:$9 sm:$0xff] %v3253
  %s3325 = scalar_lea.vmem [#allocation1], 4
  %3326 = vst [vmem:[%s3325] ss:$9 sm:$0xff] %v3254
  %s3327 = scalar_lea.vmem [#allocation1], 5
  %3328 = vst [vmem:[%s3327] ss:$9 sm:$0xff] %v3255
  %s3329 = scalar_lea.vmem [#allocation1], 6
  %3330 = vst [vmem:[%s3329] ss:$9 sm:$0xff] %v3256
  %s3331 = scalar_lea.vmem [#allocation1], 7
  %3332 = vst [vmem:[%s3331] ss:$9 sm:$0xff] %v3257
  %v3333 = vld [vmem:[#allocation1] sm:$0xff]
  %3334 = vst [vmem:[#allocation1] ss:$9 sm:$0xff] %v3258
  %3335 = vst [vmem:[%s3319] ss:$9 sm:$0xff] %v3259
  %3336 = vst [vmem:[%s3321] ss:$9 sm:$0xff] %v3260
  %3337 = vst [vmem:[%s3323] ss:$9 sm:$0xff] %v3261
  %3338 = vst [vmem:[%s3325] ss:$9 sm:$0xff] %v3262
  %3339 = vst [vmem:[%s3327] ss:$9 sm:$0xff] %v3263
  %3340 = vst [vmem:[%s3329] ss:$9 sm:$0xff] %v3264
  %3341 = vst [vmem:[%s3331] ss:$9 sm:$0xff] %v3265
  %v3342 = vld [vmem:[#allocation1] sm:$0xff]
  %3343 = vst [vmem:[#allocation1] ss:$9 sm:$0xff] %v3266
  %v3344 = vld [vmem:[#allocation1] sm:$0xff]
  %3345 = vst [vmem:[#allocation1] ss:$9 sm:$0xff] %v3267
  %3346 = vst [vmem:[%s3319] ss:$9 sm:$0xff] %v3268
  %3347 = vst [vmem:[%s3321] ss:$9 sm:$0xff] %v3269
  %3348 = vst [vmem:[%s3323] ss:$9 sm:$0xff] %v3270
  %3349 = vst [vmem:[%s3325] ss:$9 sm:$0xff] %v3271
  %3350 = vst [vmem:[%s3327] ss:$9 sm:$0xff] %v3272
  %3351 = vst [vmem:[%s3329] ss:$9 sm:$0xff] %v3273
  %3352 = vst [vmem:[%s3331] ss:$9 sm:$0xff] %v3274
  %v3353 = vld [vmem:[#allocation1] sm:$0xff]
  %3354 = vst [vmem:[#allocation1] ss:$9 sm:$0xff] %v3275
  %3355 = vst [vmem:[%s3319] ss:$9 sm:$0xff] %v3276
  %3356 = vst [vmem:[%s3321] ss:$9 sm:$0xff] %v3277
  %3357 = vst [vmem:[%s3323] ss:$9 sm:$0xff] %v3278
  %3358 = vst [vmem:[%s3325] ss:$9 sm:$0xff] %v3279
  %3359 = vst [vmem:[%s3327] ss:$9 sm:$0xff] %v3280
  %3360 = vst [vmem:[%s3329] ss:$9 sm:$0xff] %v3281
  %3361 = vst [vmem:[%s3331] ss:$9 sm:$0xff] %v3282
  %v3362 = vld [vmem:[#allocation1] sm:$0xff]
  %3363 = vst [vmem:[#allocation1] ss:$9 sm:$0xff] %v3283
  %v3364 = vld [vmem:[#allocation1] sm:$0xff]
  %v3371 = vpack.c.bf16 %v3333, %v3333
  %v3372 = vpack.c.bf16 %v3342, %v3342
  %v3373 = vpack.c.bf16 %v3344, %v3344
  %v3374 = vpack.c.bf16 %v3353, %v3353
  %v3375 = vpack.c.bf16 %v3362, %v3362
  %v3376 = vpack.c.bf16 %v3364, %v3364
  %vm3377 = vcmask 257024
  %3378 = vst.msk [vmem:[%s13] sm:$0xf] %vm3377, %v3371
  %3379 = vst.msk [vmem:[%s13 + $0x4] sm:$0xf] %vm3377, %v3372
  %vm3380 = vcmask 253952
  %vm3381 = vsmask.f32 256
  %vm3382 = vmand %vm3380, %vm3381
  %v3383 = vld [vmem:[%s13 + $0x8] sm:$0x1]
  %v3384 = vsel %vm3382, %v3373, %v3383
  %3385 = vst [vmem:[%s13 + $0x8] sm:$0x1] %v3384
  %3386 = vst.msk [vmem:[%s13 + $0xc] sm:$0xf] %vm3377, %v3374
  %3387 = vst.msk [vmem:[%s13 + $0x10] sm:$0xf] %vm3377, %v3375
  %v3388 = vld [vmem:[%s13 + $0x14] sm:$0x1]
  %v3389 = vsel %vm3382, %v3376, %v3388
  %3390 = vst [vmem:[%s13 + $0x14] sm:$0x1] %v3389
  // Predicated region
  $region54: #{vit_forward.4} parent=0 // pred_check
    _
  $region55: #{vit_forward.4} parent=0 // pred_check_branch
    %3392 = sbr.rel (0) target = $region57
  $region56: #{vit_forward.4} parent=0 // pred_region
    _
  $region57: #{vit_forward.4} parent=0 // pred_fallthru
    _
  // Predicated region
  $region58: #{vit_forward.4} parent=0 // pred_check
    _
  $region59: #{vit_forward.4} parent=0 // pred_check_branch
    %3394 = sbr.rel (0) target = $region61
  $region60: #{vit_forward.4} parent=0 // pred_region
    _
  $region61: #{vit_forward.4} parent=0 // pred_fallthru
    _

</llo_original>
